<compile_context>
chip_gen: v7x
topology: tpu7x:2x2x1
jax: 0.10.0
libtpu: 0.0.40
codegen_flags: <defaults>
</compile_context>

<pallas_src>
import functools
import math

import jax
import jax.numpy as jnp
from jax.experimental import pallas as pl
from jax.experimental.pallas import tpu as pltpu


# ---------------------------------------------------------------------------
# Helpers
# ---------------------------------------------------------------------------
def _pick_tile(n, candidates):
    for c in candidates:
        if n % c == 0:
            return c
    return n


def _affine_sizes(out_size, channels):
    c, h, w = out_size
    c1, c2, c3, c4, c5 = channels
    return [2 * c5 * (h // 32) * (w // 32),
            2 * c4 * (h // 16) * (w // 16),
            2 * c3 * (h // 8) * (w // 8),
            2 * c2 * (h // 4) * (w // 4),
            2 * c1 * (h // 2) * (w // 2),
            2 * c * h * w]


def _upsample_matrix(hp, wp):
    """0/1 matrix U (hp*wp, 4*hp*wp) s.t. y @ U == nearest x2 upsample of y."""
    hh, ww = 2 * hp, 2 * wp
    j = jnp.arange(hh * ww)
    src = (j // ww // 2) * wp + (j % ww) // 2
    return (src[None, :] == jnp.arange(hp * wp)[:, None]).astype(jnp.bfloat16)


# ---------------------------------------------------------------------------
# Kernel 1: mapping MLP + fused affine projections
# ---------------------------------------------------------------------------
def _mapping_affine_kernel(z_ref, mw_ref, mb_ref, aw_ref, ab_ref, o_ref, *, n_map):
    zz = z_ref[...]                                     # (B, zs) f32
    for i in range(n_map):                              # tiny; recomputed per tile
        wi = mw_ref[i]                                  # (zs, zs) bf16
        bi = mb_ref[i]                                  # (1, zs) f32
        zz = jnp.dot(zz.astype(jnp.bfloat16), wi,
                     preferred_element_type=jnp.float32) + bi
        zz = jnp.maximum(zz, 0.0)                       # ReLU
    acc = jnp.dot(zz.astype(jnp.bfloat16), aw_ref[...],
                  preferred_element_type=jnp.float32)
    o_ref[...] = acc + ab_ref[...]


def mapping_affine(z, map_w, map_b, aff_w, aff_b):
    B, zs = z.shape
    n_map = map_w.shape[0]
    Npad = aff_w.shape[1]
    TN = _pick_tile(Npad, (1024, 512, 256, 128))
    return pl.pallas_call(
        functools.partial(_mapping_affine_kernel, n_map=n_map),
        out_shape=jax.ShapeDtypeStruct((B, Npad), jnp.float32),
        grid=(Npad // TN,),
        in_specs=[
            pl.BlockSpec((B, zs), lambda j: (0, 0)),
            pl.BlockSpec((n_map, zs, zs), lambda j: (0, 0, 0)),
            pl.BlockSpec((n_map, 1, zs), lambda j: (0, 0, 0)),
            pl.BlockSpec((zs, TN), lambda j: (0, j)),
            pl.BlockSpec((1, TN), lambda j: (0, j)),
        ],
        out_specs=pl.BlockSpec((B, TN), lambda j: (0, j)),
        compiler_params=pltpu.CompilerParams(dimension_semantics=("parallel",)),
    )(z, map_w, map_b, aff_w, aff_b)


# ---------------------------------------------------------------------------
# Kernel 2: level-5 (tonoise + base add + AdaIN), grid over batch
# ---------------------------------------------------------------------------
def _level5_kernel(x5_ref, n_ref, tw_ref, tb_ref, sty_ref, o_ref):
    nz = n_ref[0].astype(jnp.bfloat16)                  # (zc, hw)
    xo = (x5_ref[...] + tb_ref[...]
          + jnp.dot(tw_ref[...], nz, preferred_element_type=jnp.float32))
    mean = jnp.mean(xo, axis=-1, keepdims=True)
    var = jnp.mean(jnp.square(xo - mean), axis=-1, keepdims=True)
    xn = (xo - mean) * jax.lax.rsqrt(var + 1e-5)
    sty = sty_ref[...]                                  # (1, 2, C, hw) f32
    o_ref[0] = (sty[0, 0] * xn + sty[0, 1]).astype(o_ref.dtype)


def level5_call(x5, noise, tonoise, style):
    tw, tb = tonoise
    B, zc, hw = noise.shape
    c5 = x5.shape[0]
    return pl.pallas_call(
        _level5_kernel,
        out_shape=jax.ShapeDtypeStruct((B, c5, hw), jnp.bfloat16),
        grid=(B,),
        in_specs=[
            pl.BlockSpec((c5, hw), lambda b: (0, 0)),
            pl.BlockSpec((1, zc, hw), lambda b: (b, 0, 0)),
            pl.BlockSpec((c5, zc), lambda b: (0, 0)),
            pl.BlockSpec((c5, 1), lambda b: (0, 0)),
            pl.BlockSpec((1, 2, c5, hw), lambda b: (b, 0, 0, 0)),
        ],
        out_specs=pl.BlockSpec((1, c5, hw), lambda b: (b, 0, 0)),
        compiler_params=pltpu.CompilerParams(dimension_semantics=("parallel",)),
    )(x5, noise, tw, tb, style)


# ---------------------------------------------------------------------------
# Kernel 3: fused level (conv + ReLU + x2 upsample + tonoise + add + AdaIN
#           [+ final 1x1 conv0]), grid over batch
# ---------------------------------------------------------------------------
def _level_kernel(*refs, hp, wp, cin, cout, ksize, final):
    if final:
        (x_ref, cw_ref, cb_ref, up_ref, n_ref, tw_ref, tb_ref, sty_ref,
         fw_ref, fb_ref, o_ref) = refs
    else:
        (x_ref, cw_ref, cb_ref, up_ref, n_ref, tw_ref, tb_ref, sty_ref,
         o_ref) = refs

    hw_in = hp * wp
    r = ksize // 2
    P = r * (wp + 1)                                    # flattened-spatial pad width

    # ---- 'same' conv, zero padding, in-kernel (no HBM im2col) -------------
    xf = x_ref[0].astype(jnp.float32)                   # (cin, hw_in)
    zpad = jnp.zeros((cin, P), jnp.float32)
    xpad = jnp.concatenate([zpad, xf, zpad], axis=1)    # (cin, hw_in + 2P)
    xcol = jax.lax.broadcasted_iota(jnp.int32, (1, hw_in), 1) % wp

    acc = jnp.zeros((cout, hw_in), jnp.float32)
    t = 0
    for dy in range(-r, r + 1):
        for dx in range(-r, r + 1):
            start = P + dy * wp + dx
            tap = xpad[:, start:start + hw_in]          # shifted view of the input
            if dx != 0:                                 # mask row-boundary wrap in x
                mask = (xcol + dx >= 0) & (xcol + dx < wp)
                tap = jnp.where(mask, tap, 0.0)
            wt = cw_ref[:, t * cin:(t + 1) * cin]       # (cout, cin) bf16
            acc = acc + jnp.dot(wt, tap.astype(jnp.bfloat16),
                                preferred_element_type=jnp.float32)
            t += 1
    y = jnp.maximum(acc + cb_ref[...], 0.0)             # util.Block: conv + ReLU

    # ---- nearest x2 upsample fused via 0/1 matrix on the MXU --------------
    base = jnp.dot(y.astype(jnp.bfloat16), up_ref[...],
                   preferred_element_type=jnp.float32)  # (cout, hw_out)

    # ---- tonoise 1x1 conv + residual add -----------------------------------
    nz = n_ref[0].astype(jnp.bfloat16)                  # (zc, hw_out)
    xo = (base + tb_ref[...]
          + jnp.dot(tw_ref[...], nz, preferred_element_type=jnp.float32))

    # ---- AdaIN: instance norm over spatial + per-element style scale/bias --
    mean = jnp.mean(xo, axis=-1, keepdims=True)
    var = jnp.mean(jnp.square(xo - mean), axis=-1, keepdims=True)
    xn = (xo - mean) * jax.lax.rsqrt(var + 1e-5)
    sty = sty_ref[...]                                  # (1, 2, cout, hw_out) f32
    xo = sty[0, 0] * xn + sty[0, 1]

    if final:                                           # fused conv0: c -> 2c, 1x1
        out = jnp.dot(fw_ref[...], xo.astype(jnp.bfloat16),
                      preferred_element_type=jnp.float32) + fb_ref[...]
        o_ref[0] = out.astype(o_ref.dtype)
    else:
        o_ref[0] = xo.astype(o_ref.dtype)


def level_call(x_prev, noise, style, block, up, tonoise, *,
               hp, wp, cin, cout, zc, ksize, final=None):
    cw, cb = block
    tw, tb = tonoise
    B = x_prev.shape[0]
    hw_in = hp * wp
    hw_out = 4 * hw_in
    out_c = final[0].shape[0] if final is not None else cout
    out_dtype = jnp.float32 if final is not None else jnp.bfloat16

    in_specs = [
        pl.BlockSpec((1, cin, hw_in), lambda b: (b, 0, 0)),
        pl.BlockSpec((cout, ksize * ksize * cin), lambda b: (0, 0)),
        pl.BlockSpec((cout, 1), lambda b: (0, 0)),
        pl.BlockSpec((hw_in, hw_out), lambda b: (0, 0)),
        pl.BlockSpec((1, zc, hw_out), lambda b: (b, 0, 0)),
        pl.BlockSpec((cout, zc), lambda b: (0, 0)),
        pl.BlockSpec((cout, 1), lambda b: (0, 0)),
        pl.BlockSpec((1, 2, cout, hw_out), lambda b: (b, 0, 0, 0)),
    ]
    args = [x_prev, cw, cb, up, noise, tw, tb, style]
    if final is not None:
        fw, fb = final
        in_specs += [pl.BlockSpec((out_c, cout), lambda b: (0, 0)),
                     pl.BlockSpec((out_c, 1), lambda b: (0, 0))]
        args += [fw, fb]

    return pl.pallas_call(
        functools.partial(_level_kernel, hp=hp, wp=wp, cin=cin, cout=cout,
                          ksize=ksize, final=final is not None),
        out_shape=jax.ShapeDtypeStruct((B, out_c, hw_out), out_dtype),
        grid=(B,),
        in_specs=in_specs,
        out_specs=pl.BlockSpec((1, out_c, hw_out), lambda b: (b, 0, 0)),
        compiler_params=pltpu.CompilerParams(dimension_semantics=("parallel",)),
    )(*args)


# ---------------------------------------------------------------------------
# Parameters (pre-transposed matmul layouts, weights pre-cast to bf16)
# ---------------------------------------------------------------------------
def init_params(key, out_size, channels, zchannels, zs, k, mapping):
    assert mapping >= 1
    c, h, w = out_size
    c1, c2, c3, c4, c5 = channels
    z0, z1, z2, z3, z4, z5 = zchannels
    keys = iter(jax.random.split(key, 64))

    def _lin(din, dout):
        s = 1.0 / math.sqrt(din)
        wv = jax.random.uniform(next(keys), (din, dout), jnp.float32, -s, s)
        bv = jax.random.uniform(next(keys), (1, dout), jnp.float32, -s, s)
        return wv, bv

    def _conv(cin, cout, kh, kw):
        s = 1.0 / math.sqrt(cin * kh * kw)
        wv = jax.random.uniform(next(keys), (cout, cin, kh, kw), jnp.float32, -s, s)
        bv = jax.random.uniform(next(keys), (cout, 1), jnp.float32, -s, s)
        wm = wv.transpose(0, 2, 3, 1).reshape(cout, kh * kw * cin)   # tap-major
        return wm.astype(jnp.bfloat16), bv

    p = {}
    mw, mb = [], []
    for _ in range(mapping):
        wv, bv = _lin(zs, zs)
        mw.append(wv)
        mb.append(bv)
    p["map_w"] = jnp.stack(mw).astype(jnp.bfloat16)          # (mapping, zs, zs)
    p["map_b"] = jnp.stack(mb)                               # (mapping, 1, zs)

    aw, ab = [], []
    for n in _affine_sizes(out_size, channels):
        wv, bv = _lin(zs, n)
        aw.append(wv)
        ab.append(bv)
    wa = jnp.concatenate(aw, axis=1)
    ba = jnp.concatenate(ab, axis=1)
    pad = (-wa.shape[1]) % 1024
    if pad:
        wa = jnp.pad(wa, ((0, 0), (0, pad)))
        ba = jnp.pad(ba, ((0, 0), (0, pad)))
    p["affine_w"] = wa.astype(jnp.bfloat16)
    p["affine_b"] = ba

    p["tonoise5"] = _conv(z5, c5, 1, 1)
    p["tonoise4"] = _conv(z4, c4, 1, 1)
    p["tonoise3"] = _conv(z3, c3, 1, 1)
    p["tonoise2"] = _conv(z2, c2, 1, 1)
    p["tonoise1"] = _conv(z1, c1, 1, 1)
    p["tonoise0"] = _conv(z0, c, 1, 1)
    p["block5"] = _conv(c5, c4, k, k)
    p["block4"] = _conv(c4, c3, k, k)
    p["block3"] = _conv(c3, c2, k, k)
    p["block2"] = _conv(c2, c1, k, k)
    p["block1"] = _conv(c1, c, k, k)
    p["conv0"] = _conv(c, 2 * c, 1, 1)

    p["x5"] = jax.random.normal(next(keys), (c5, (h // 32) * (w // 32)), jnp.float32)
    p["x4"] = jax.random.normal(next(keys), (c4, (h // 16) * (w // 16)), jnp.float32)
    p["x3"] = jax.random.normal(next(keys), (c3, (h // 8) * (w // 8)), jnp.float32)
    p["x2"] = jax.random.normal(next(keys), (c2, (h // 4) * (w // 4)), jnp.float32)
    p["x1"] = jax.random.normal(next(keys), (c1, (h // 2) * (w // 2)), jnp.float32)

    p["up5"] = _upsample_matrix(h // 32, w // 32)
    p["up4"] = _upsample_matrix(h // 16, w // 16)
    p["up3"] = _upsample_matrix(h // 8, w // 8)
    p["up2"] = _upsample_matrix(h // 4, w // 4)
    p["up1"] = _upsample_matrix(h // 2, w // 2)
    return p


# ---------------------------------------------------------------------------
# Forward pass (dropouts=None path; all noise inputs provided)
# ---------------------------------------------------------------------------
def style_decoder_forward(params, z, n0, n1, n2, n3, n4, n5, *,
                          out_size, channels, zchannels, k=3):
    c, h, w = out_size
    c1, c2, c3, c4, c5 = channels
    z0c, z1c, z2c, z3c, z4c, z5c = zchannels
    B = z.shape[0]

    # mapping MLP + all affine style projections in one fused kernel
    zaff = mapping_affine(z, params["map_w"], params["map_b"],
                          params["affine_w"], params["affine_b"])   # (B, Npad) f32
    sizes = _affine_sizes(out_size, channels)
    offs = [0]
    for s in sizes:
        offs.append(offs[-1] + s)

    def style(idx, C, hw):
        # contiguous column slice + free reshape (no transpose)
        return zaff[:, offs[idx]:offs[idx + 1]].reshape(B, 2, C, hw)

    h5, w5 = h // 32, w // 32
    h4, w4 = h // 16, w // 16
    h3, w3 = h // 8, w // 8
    h2, w2 = h // 4, w // 4
    h1, w1 = h // 2, w // 2

    # level 5: x5 + tonoise5(n5), AdaIN
    x = level5_call(params["x5"], n5.reshape(B, z5c, h5 * w5),
                    params["tonoise5"], style(0, c5, h5 * w5))

    # level 4
    x = level_call(x, n4.reshape(B, z4c, h4 * w4), style(1, c4, h4 * w4),
                   params["block5"], params["up5"], params["tonoise4"],
                   hp=h5, wp=w5, cin=c5, cout=c4, zc=z4c, ksize=k)
    # level 3
    x = level_call(x, n3.reshape(B, z3c, h3 * w3), style(2, c3, h3 * w3),
                   params["block4"], params["up4"], params["tonoise3"],
                   hp=h4, wp=w4, cin=c4, cout=c3, zc=z3c, ksize=k)
    # level 2
    x = level_call(x, n2.reshape(B, z2c, h2 * w2), style(3, c2, h2 * w2),
                   params["block3"], params["up3"], params["tonoise2"],
                   hp=h3, wp=w3, cin=c3, cout=c2, zc=z2c, ksize=k)
    # level 1
    x = level_call(x, n1.reshape(B, z1c, h1 * w1), style(4, c1, h1 * w1),
                   params["block2"], params["up2"], params["tonoise1"],
                   hp=h2, wp=w2, cin=c2, cout=c1, zc=z1c, ksize=k)
    # level 0 with the final 1x1 conv0 fused into the same kernel
    out = level_call(x, n0.reshape(B, z0c, h * w), style(5, c, h * w),
                     params["block1"], params["up1"], params["tonoise0"],
                     hp=h1, wp=w1, cin=c1, cout=c, zc=z0c, ksize=k,
                     final=params["conv0"])                         # (B, 2c, h*w) f32

    return out.reshape(B, 2 * c, h, w)


# ---------------------------------------------------------------------------
if __name__ == "__main__":
    # small config
    out_size = (2, 32, 32)                 # (c, h, w); h, w divisible by 32
    channels = (4, 4, 8, 8, 8)             # c1..c5
    zchannels = (2, 4, 4, 8, 8, 8)         # z0..z5
    zs = 32
    k = 3
    mapping = 3
    B = 2
    c, h, w = out_size
    z0, z1, z2, z3, z4, z5 = zchannels

    root = jax.random.PRNGKey(0)
    kp, kz, k0, k1, k2, k3, k4, k5 = jax.random.split(root, 8)

    params = init_params(kp, out_size, channels, zchannels, zs, k, mapping)

    z = jax.random.normal(kz, (B, zs), jnp.float32)
    n0 = jax.random.normal(k0, (B, z0, h, w), jnp.float32)
    n1 = jax.random.normal(k1, (B, z1, h // 2, w // 2), jnp.float32)
    n2 = jax.random.normal(k2, (B, z2, h // 4, w // 4), jnp.float32)
    n3 = jax.random.normal(k3, (B, z3, h // 8, w // 8), jnp.float32)
    n4 = jax.random.normal(k4, (B, z4, h // 16, w // 16), jnp.float32)
    n5 = jax.random.normal(k5, (B, z5, h // 32, w // 32), jnp.float32)

    fwd = jax.jit(functools.partial(style_decoder_forward,
                                    out_size=out_size, channels=channels,
                                    zchannels=zchannels, k=k))
    out = jax.block_until_ready(fwd(params, z, n0, n1, n2, n3, n4, n5))
    assert out.shape == (B, 2 * c, h, w), out.shape
    assert bool(jnp.all(jnp.isfinite(out)))
    print("KERNEL_OK")
</pallas_src>

<mosaic_0001>
module attributes {stable_mosaic.version = 11 : i64} {
  func.func @_mapping_affine_kernel(%arg0: i32, %arg1: memref<2x32xf32, #tpu.memory_space<vmem>>, %arg2: memref<3x32x32xbf16, #tpu.memory_space<vmem>>, %arg3: memref<3x1x32xf32, #tpu.memory_space<vmem>>, %arg4: memref<32x1024xbf16, #tpu.memory_space<vmem>>, %arg5: memref<1x1024xf32, #tpu.memory_space<vmem>>, %arg6: memref<2x1024xf32, #tpu.memory_space<vmem>>) attributes {dimension_semantics = [#tpu.dimension_semantics<parallel>], iteration_bounds = array<i64: 7>, scalar_prefetch = 0 : i64, scratch_operands = 0 : i64, tpu.core_type = #tpu.core_type<tc>, window_params = [{pipeline_mode = #tpu.pipeline_mode<synchronous>, transform_indices = @transform_0, window_bounds = array<i64: 2, 32>}, {pipeline_mode = #tpu.pipeline_mode<synchronous>, transform_indices = @transform_1, window_bounds = array<i64: 3, 32, 32>}, {pipeline_mode = #tpu.pipeline_mode<synchronous>, transform_indices = @transform_2, window_bounds = array<i64: 3, 1, 32>}, {transform_indices = @transform_3, window_bounds = array<i64: 32, 1024>}, {transform_indices = @transform_4, window_bounds = array<i64: 1, 1024>}, {transform_indices = @transform_5, window_bounds = array<i64: 2, 1024>}]} {
    %c0 = arith.constant 0 : index
    %c0_0 = arith.constant 0 : index
    %0 = vector.load %arg1[%c0, %c0_0] : memref<2x32xf32, #tpu.memory_space<vmem>>, vector<2x32xf32>
    %c0_1 = arith.constant 0 : index
    %c0_2 = arith.constant 0 : index
    %c0_3 = arith.constant 0 : index
    %1 = vector.load %arg2[%c0_1, %c0_2, %c0_3] : memref<3x32x32xbf16, #tpu.memory_space<vmem>>, vector<1x32x32xbf16>
    %2 = vector.shape_cast %1 : vector<1x32x32xbf16> to vector<32x32xbf16>
    %c0_4 = arith.constant 0 : index
    %c0_5 = arith.constant 0 : index
    %c0_6 = arith.constant 0 : index
    %3 = vector.load %arg3[%c0_4, %c0_5, %c0_6] : memref<3x1x32xf32, #tpu.memory_space<vmem>>, vector<1x1x32xf32>
    %4 = vector.shape_cast %3 : vector<1x1x32xf32> to vector<1x32xf32>
    %5 = arith.truncf %0 : vector<2x32xf32> to vector<2x32xbf16>
    %cst = arith.constant dense<0.000000e+00> : vector<2x32xf32>
    %6 = tpu.matmul %5, %2, %cst {dimension_numbers = #tpu.dot_dimension_numbers<[1], [0], [0], [1], [0, 0, 1, 1], [], []>} : vector<2x32xbf16>, vector<32x32xbf16>, vector<2x32xf32> -> vector<2x32xf32>
    %7 = vector.broadcast %4 : vector<1x32xf32> to vector<2x32xf32>
    %8 = arith.addf %6, %7 : vector<2x32xf32>
    %cst_7 = arith.constant 0.000000e+00 : f32
    %9 = vector.broadcast %cst_7 : f32 to vector<2x32xf32>
    %10 = arith.maximumf %8, %9 : vector<2x32xf32>
    %c1 = arith.constant 1 : index
    %c0_8 = arith.constant 0 : index
    %c0_9 = arith.constant 0 : index
    %11 = vector.load %arg2[%c1, %c0_8, %c0_9] : memref<3x32x32xbf16, #tpu.memory_space<vmem>>, vector<1x32x32xbf16>
    %12 = vector.shape_cast %11 : vector<1x32x32xbf16> to vector<32x32xbf16>
    %c1_10 = arith.constant 1 : index
    %c0_11 = arith.constant 0 : index
    %c0_12 = arith.constant 0 : index
    %13 = vector.load %arg3[%c1_10, %c0_11, %c0_12] : memref<3x1x32xf32, #tpu.memory_space<vmem>>, vector<1x1x32xf32>
    %14 = vector.shape_cast %13 : vector<1x1x32xf32> to vector<1x32xf32>
    %15 = arith.truncf %10 : vector<2x32xf32> to vector<2x32xbf16>
    %cst_13 = arith.constant dense<0.000000e+00> : vector<2x32xf32>
    %16 = tpu.matmul %15, %12, %cst_13 {dimension_numbers = #tpu.dot_dimension_numbers<[1], [0], [0], [1], [0, 0, 1, 1], [], []>} : vector<2x32xbf16>, vector<32x32xbf16>, vector<2x32xf32> -> vector<2x32xf32>
    %17 = vector.broadcast %14 : vector<1x32xf32> to vector<2x32xf32>
    %18 = arith.addf %16, %17 : vector<2x32xf32>
    %cst_14 = arith.constant 0.000000e+00 : f32
    %19 = vector.broadcast %cst_14 : f32 to vector<2x32xf32>
    %20 = arith.maximumf %18, %19 : vector<2x32xf32>
    %c2 = arith.constant 2 : index
    %c0_15 = arith.constant 0 : index
    %c0_16 = arith.constant 0 : index
    %21 = vector.load %arg2[%c2, %c0_15, %c0_16] : memref<3x32x32xbf16, #tpu.memory_space<vmem>>, vector<1x32x32xbf16>
    %22 = vector.shape_cast %21 : vector<1x32x32xbf16> to vector<32x32xbf16>
    %c2_17 = arith.constant 2 : index
    %c0_18 = arith.constant 0 : index
    %c0_19 = arith.constant 0 : index
    %23 = vector.load %arg3[%c2_17, %c0_18, %c0_19] : memref<3x1x32xf32, #tpu.memory_space<vmem>>, vector<1x1x32xf32>
    %24 = vector.shape_cast %23 : vector<1x1x32xf32> to vector<1x32xf32>
    %25 = arith.truncf %20 : vector<2x32xf32> to vector<2x32xbf16>
    %cst_20 = arith.constant dense<0.000000e+00> : vector<2x32xf32>
    %26 = tpu.matmul %25, %22, %cst_20 {dimension_numbers = #tpu.dot_dimension_numbers<[1], [0], [0], [1], [0, 0, 1, 1], [], []>} : vector<2x32xbf16>, vector<32x32xbf16>, vector<2x32xf32> -> vector<2x32xf32>
    %27 = vector.broadcast %24 : vector<1x32xf32> to vector<2x32xf32>
    %28 = arith.addf %26, %27 : vector<2x32xf32>
    %cst_21 = arith.constant 0.000000e+00 : f32
    %29 = vector.broadcast %cst_21 : f32 to vector<2x32xf32>
    %30 = arith.maximumf %28, %29 : vector<2x32xf32>
    %31 = arith.truncf %30 : vector<2x32xf32> to vector<2x32xbf16>
    %c0_22 = arith.constant 0 : index
    %c0_23 = arith.constant 0 : index
    %32 = vector.load %arg4[%c0_22, %c0_23] : memref<32x1024xbf16, #tpu.memory_space<vmem>>, vector<32x1024xbf16>
    %cst_24 = arith.constant dense<0.000000e+00> : vector<2x1024xf32>
    %33 = tpu.matmul %31, %32, %cst_24 {dimension_numbers = #tpu.dot_dimension_numbers<[1], [0], [0], [1], [0, 0, 1, 1], [], []>} : vector<2x32xbf16>, vector<32x1024xbf16>, vector<2x1024xf32> -> vector<2x1024xf32>
    %c0_25 = arith.constant 0 : index
    %c0_26 = arith.constant 0 : index
    %34 = vector.load %arg5[%c0_25, %c0_26] : memref<1x1024xf32, #tpu.memory_space<vmem>>, vector<1x1024xf32>
    %35 = vector.broadcast %34 : vector<1x1024xf32> to vector<2x1024xf32>
    %36 = arith.addf %33, %35 : vector<2x1024xf32>
    %c0_27 = arith.constant 0 : index
    %c0_28 = arith.constant 0 : index
    %37 = vector.load %arg6[%c0_27, %c0_28] : memref<2x1024xf32, #tpu.memory_space<vmem>>, vector<2x1024xf32>
    tpu.vector_store %arg6[%c0_27, %c0_28], %36 {strides = array<i32>} : memref<2x1024xf32, #tpu.memory_space<vmem>>, vector<2x1024xf32>,
    return
  }
  func.func @transform_0(%arg0: i32) -> (i32, i32) {
    %c0_i32 = arith.constant 0 : i32
    %c0_i32_0 = arith.constant 0 : i32
    %c0_i32_1 = arith.constant 0 : i32
    return %c0_i32, %c0_i32_0 : i32, i32
  }
  func.func @transform_1(%arg0: i32) -> (i32, i32, i32) {
    %c0_i32 = arith.constant 0 : i32
    %c0_i32_0 = arith.constant 0 : i32
    %c0_i32_1 = arith.constant 0 : i32
    %c0_i32_2 = arith.constant 0 : i32
    return %c0_i32, %c0_i32_0, %c0_i32_1 : i32, i32, i32
  }
  func.func @transform_2(%arg0: i32) -> (i32, i32, i32) {
    %c0_i32 = arith.constant 0 : i32
    %c0_i32_0 = arith.constant 0 : i32
    %c0_i32_1 = arith.constant 0 : i32
    %c0_i32_2 = arith.constant 0 : i32
    return %c0_i32, %c0_i32_0, %c0_i32_1 : i32, i32, i32
  }
  func.func @transform_3(%arg0: i32) -> (i32, i32) {
    %c0_i32 = arith.constant 0 : i32
    %c0_i32_0 = arith.constant 0 : i32
    return %c0_i32, %arg0 : i32, i32
  }
  func.func @transform_4(%arg0: i32) -> (i32, i32) {
    %c0_i32 = arith.constant 0 : i32
    %c0_i32_0 = arith.constant 0 : i32
    return %c0_i32, %arg0 : i32, i32
  }
  func.func @transform_5(%arg0: i32) -> (i32, i32) {
    %c0_i32 = arith.constant 0 : i32
    %c0_i32_0 = arith.constant 0 : i32
    return %c0_i32, %arg0 : i32, i32
  }
}

module attributes {stable_mosaic.version = 11 : i64} {
  func.func @_level5_kernel(%arg0: i32, %arg1: memref<8x1xf32, #tpu.memory_space<vmem>>, %arg2: memref<1x8x1xf32, #tpu.memory_space<vmem>>, %arg3: memref<8x8xbf16, #tpu.memory_space<vmem>>, %arg4: memref<8x1xf32, #tpu.memory_space<vmem>>, %arg5: memref<1x2x8x1xf32, #tpu.memory_space<vmem>>, %arg6: memref<1x8x1xbf16, #tpu.memory_space<vmem>>) attributes {dimension_semantics = [#tpu.dimension_semantics<parallel>], iteration_bounds = array<i64: 2>, scalar_prefetch = 0 : i64, scratch_operands = 0 : i64, tpu.core_type = #tpu.core_type<tc>, window_params = [{pipeline_mode = #tpu.pipeline_mode<synchronous>, transform_indices = @transform_0, window_bounds = array<i64: 8, 1>}, {transform_indices = @transform_1, window_bounds = array<i64: 1, 8, 1>}, {pipeline_mode = #tpu.pipeline_mode<synchronous>, transform_indices = @transform_2, window_bounds = array<i64: 8, 8>}, {pipeline_mode = #tpu.pipeline_mode<synchronous>, transform_indices = @transform_3, window_bounds = array<i64: 8, 1>}, {transform_indices = @transform_4, window_bounds = array<i64: 1, 2, 8, 1>}, {transform_indices = @transform_5, window_bounds = array<i64: 1, 8, 1>}]} {
    %c0 = arith.constant 0 : index
    %c0_0 = arith.constant 0 : index
    %c0_1 = arith.constant 0 : index
    %0 = vector.load %arg2[%c0, %c0_0, %c0_1] : memref<1x8x1xf32, #tpu.memory_space<vmem>>, vector<1x8x1xf32>
    %1 = vector.shape_cast %0 : vector<1x8x1xf32> to vector<8x1xf32>
    %2 = arith.truncf %1 : vector<8x1xf32> to vector<8x1xbf16>
    %c0_2 = arith.constant 0 : index
    %c0_3 = arith.constant 0 : index
    %3 = vector.load %arg1[%c0_2, %c0_3] : memref<8x1xf32, #tpu.memory_space<vmem>>, vector<8x1xf32>
    %c0_4 = arith.constant 0 : index
    %c0_5 = arith.constant 0 : index
    %4 = vector.load %arg4[%c0_4, %c0_5] : memref<8x1xf32, #tpu.memory_space<vmem>>, vector<8x1xf32>
    %5 = arith.addf %3, %4 : vector<8x1xf32>
    %c0_6 = arith.constant 0 : index
    %c0_7 = arith.constant 0 : index
    %6 = vector.load %arg3[%c0_6, %c0_7] : memref<8x8xbf16, #tpu.memory_space<vmem>>, vector<8x8xbf16>
    %cst = arith.constant dense<0.000000e+00> : vector<8x1xf32>
    %7 = tpu.matmul %6, %2, %cst {dimension_numbers = #tpu.dot_dimension_numbers<[1], [0], [0], [1], [0, 0, 1, 1], [], []>} : vector<8x8xbf16>, vector<8x1xbf16>, vector<8x1xf32> -> vector<8x1xf32>
    %8 = arith.addf %5, %7 : vector<8x1xf32>
    %cst_8 = arith.constant dense<0.000000e+00> : vector<8xf32>
    %9 = vector.multi_reduction <add>, %8, %cst_8 [1] : vector<8x1xf32> to vector<8xf32>
    %10 = vector.shape_cast %9 : vector<8xf32> to vector<8x1xf32>
    %cst_9 = arith.constant 1.000000e+00 : f32
    %11 = vector.broadcast %cst_9 : f32 to vector<8x1xf32>
    %12 = arith.divf %10, %11 : vector<8x1xf32>
    %13 = arith.subf %8, %12 : vector<8x1xf32>
    %14 = arith.mulf %13, %13 : vector<8x1xf32>
    %cst_10 = arith.constant dense<0.000000e+00> : vector<8xf32>
    %15 = vector.multi_reduction <add>, %14, %cst_10 [1] : vector<8x1xf32> to vector<8xf32>
    %16 = vector.shape_cast %15 : vector<8xf32> to vector<8x1xf32>
    %cst_11 = arith.constant 1.000000e+00 : f32
    %17 = vector.broadcast %cst_11 : f32 to vector<8x1xf32>
    %18 = arith.divf %16, %17 : vector<8x1xf32>
    %19 = arith.subf %8, %12 : vector<8x1xf32>
    %cst_12 = arith.constant 9.99999974E-6 : f32
    %20 = vector.broadcast %cst_12 : f32 to vector<8x1xf32>
    %21 = arith.addf %18, %20 : vector<8x1xf32>
    %22 = math.rsqrt %21 : vector<8x1xf32>
    %23 = arith.mulf %19, %22 : vector<8x1xf32>
    %c0_13 = arith.constant 0 : index
    %c0_14 = arith.constant 0 : index
    %c0_15 = arith.constant 0 : index
    %c0_16 = arith.constant 0 : index
    %24 = vector.load %arg5[%c0_13, %c0_14, %c0_15, %c0_16] : memref<1x2x8x1xf32, #tpu.memory_space<vmem>>, vector<1x2x8x1xf32>
    %25 = vector.extract_strided_slice %24 {offsets = [0, 0, 0, 0], sizes = [1, 1, 8, 1], strides = [1, 1, 1, 1]} : vector<1x2x8x1xf32> to vector<1x1x8x1xf32>
    %26 = vector.shape_cast %25 : vector<1x1x8x1xf32> to vector<8x1xf32>
    %27 = arith.mulf %26, %23 : vector<8x1xf32>
    %28 = vector.extract_strided_slice %24 {offsets = [0, 1, 0, 0], sizes = [1, 1, 8, 1], strides = [1, 1, 1, 1]} : vector<1x2x8x1xf32> to vector<1x1x8x1xf32>
    %29 = vector.shape_cast %28 : vector<1x1x8x1xf32> to vector<8x1xf32>
    %30 = arith.addf %27, %29 : vector<8x1xf32>
    %31 = arith.truncf %30 : vector<8x1xf32> to vector<8x1xbf16>
    %c0_17 = arith.constant 0 : index
    %c0_18 = arith.constant 0 : index
    %c0_19 = arith.constant 0 : index
    %32 = vector.load %arg6[%c0_17, %c0_18, %c0_19] : memref<1x8x1xbf16, #tpu.memory_space<vmem>>, vector<1x8x1xbf16>
    %33 = vector.shape_cast %32 : vector<1x8x1xbf16> to vector<8x1xbf16>
    %34 = vector.shape_cast %31 : vector<8x1xbf16> to vector<1x8x1xbf16>
    tpu.vector_store %arg6[%c0_17, %c0_18, %c0_19], %34 {strides = array<i32>} : memref<1x8x1xbf16, #tpu.memory_space<vmem>>, vector<1x8x1xbf16>,
    return
  }
  func.func @transform_0(%arg0: i32) -> (i32, i32) {
    %c0_i32 = arith.constant 0 : i32
    %c0_i32_0 = arith.constant 0 : i32
    %c0_i32_1 = arith.constant 0 : i32
    return %c0_i32, %c0_i32_0 : i32, i32
  }
  func.func @transform_1(%arg0: i32) -> (i32, i32, i32) {
    %c0_i32 = arith.constant 0 : i32
    %c0_i32_0 = arith.constant 0 : i32
    %c0_i32_1 = arith.constant 0 : i32
    return %arg0, %c0_i32, %c0_i32_0 : i32, i32, i32
  }
  func.func @transform_2(%arg0: i32) -> (i32, i32) {
    %c0_i32 = arith.constant 0 : i32
    %c0_i32_0 = arith.constant 0 : i32
    %c0_i32_1 = arith.constant 0 : i32
    return %c0_i32, %c0_i32_0 : i32, i32
  }
  func.func @transform_3(%arg0: i32) -> (i32, i32) {
    %c0_i32 = arith.constant 0 : i32
    %c0_i32_0 = arith.constant 0 : i32
    %c0_i32_1 = arith.constant 0 : i32
    return %c0_i32, %c0_i32_0 : i32, i32
  }
  func.func @transform_4(%arg0: i32) -> (i32, i32, i32, i32) {
    %c0_i32 = arith.constant 0 : i32
    %c0_i32_0 = arith.constant 0 : i32
    %c0_i32_1 = arith.constant 0 : i32
    %c0_i32_2 = arith.constant 0 : i32
    return %arg0, %c0_i32, %c0_i32_0, %c0_i32_1 : i32, i32, i32, i32
  }
  func.func @transform_5(%arg0: i32) -> (i32, i32, i32) {
    %c0_i32 = arith.constant 0 : i32
    %c0_i32_0 = arith.constant 0 : i32
    %c0_i32_1 = arith.constant 0 : i32
    return %arg0, %c0_i32, %c0_i32_0 : i32, i32, i32
  }
}

module attributes {stable_mosaic.version = 11 : i64} {
  func.func @_level_kernel(%arg0: i32, %arg1: memref<1x8x1xbf16, #tpu.memory_space<vmem>>, %arg2: memref<8x72xbf16, #tpu.memory_space<vmem>>, %arg3: memref<8x1xf32, #tpu.memory_space<vmem>>, %arg4: memref<1x4xbf16, #tpu.memory_space<vmem>>, %arg5: memref<1x8x4xf32, #tpu.memory_space<vmem>>, %arg6: memref<8x8xbf16, #tpu.memory_space<vmem>>, %arg7: memref<8x1xf32, #tpu.memory_space<vmem>>, %arg8: memref<1x2x8x4xf32, #tpu.memory_space<vmem>>, %arg9: memref<1x8x4xbf16, #tpu.memory_space<vmem>>) attributes {dimension_semantics = [#tpu.dimension_semantics<parallel>], iteration_bounds = array<i64: 2>, scalar_prefetch = 0 : i64, scratch_operands = 0 : i64, tpu.core_type = #tpu.core_type<tc>, window_params = [{transform_indices = @transform_0, window_bounds = array<i64: 1, 8, 1>}, {pipeline_mode = #tpu.pipeline_mode<synchronous>, transform_indices = @transform_1, window_bounds = array<i64: 8, 72>}, {pipeline_mode = #tpu.pipeline_mode<synchronous>, transform_indices = @transform_2, window_bounds = array<i64: 8, 1>}, {pipeline_mode = #tpu.pipeline_mode<synchronous>, transform_indices = @transform_3, window_bounds = array<i64: 1, 4>}, {transform_indices = @transform_4, window_bounds = array<i64: 1, 8, 4>}, {pipeline_mode = #tpu.pipeline_mode<synchronous>, transform_indices = @transform_5, window_bounds = array<i64: 8, 8>}, {pipeline_mode = #tpu.pipeline_mode<synchronous>, transform_indices = @transform_6, window_bounds = array<i64: 8, 1>}, {transform_indices = @transform_7, window_bounds = array<i64: 1, 2, 8, 4>}, {transform_indices = @transform_8, window_bounds = array<i64: 1, 8, 4>}]} {
    %c0 = arith.constant 0 : index
    %c0_0 = arith.constant 0 : index
    %c0_1 = arith.constant 0 : index
    %0 = vector.load %arg1[%c0, %c0_0, %c0_1] : memref<1x8x1xbf16, #tpu.memory_space<vmem>>, vector<1x8x1xbf16>
    %1 = vector.shape_cast %0 : vector<1x8x1xbf16> to vector<8x1xbf16>
    %2 = arith.extf %1 : vector<8x1xbf16> to vector<8x1xf32>
    %cst = arith.constant 0.000000e+00 : f32
    %3 = vector.broadcast %cst : f32 to vector<8x2xf32>
    %4 = tpu.concatenate %3, %2, %3 in 1 : vector<8x2xf32>, vector<8x1xf32>, vector<8x2xf32> -> vector<8x5xf32>
    %5 = tpu.iota {dimensions = array<i32: 1>} : vector<1x1xi32>
    %c1_i32 = arith.constant 1 : i32
    %c0_i32 = arith.constant 0 : i32
    %6 = arith.cmpi eq, %c1_i32, %c0_i32 : i32
    %c1_i32_2 = arith.constant 1 : i32
    %7 = arith.select %6, %c1_i32_2, %c1_i32 : i32
    %8 = vector.broadcast %7 : i32 to vector<1x1xi32>
    %9 = arith.remsi %5, %8 : vector<1x1xi32>
    %c0_i32_3 = arith.constant 0 : i32
    %10 = vector.broadcast %c0_i32_3 : i32 to vector<1x1xi32>
    %11 = arith.cmpi ne, %9, %10 : vector<1x1xi32>
    %c0_i32_4 = arith.constant 0 : i32
    %12 = vector.broadcast %c0_i32_4 : i32 to vector<1x1xi32>
    %13 = arith.cmpi slt, %9, %12 : vector<1x1xi32>
    %c0_i32_5 = arith.constant 0 : i32
    %14 = arith.cmpi slt, %7, %c0_i32_5 : i32
    %15 = vector.broadcast %14 : i1 to vector<1x1xi1>
    %16 = vector.broadcast %15 : vector<1x1xi1> to vector<1x1xi1>
    %17 = arith.xori %13, %16 : vector<1x1xi1>
    %18 = arith.andi %17, %11 : vector<1x1xi1>
    %19 = vector.broadcast %7 : i32 to vector<1x1xi32>
    %20 = arith.addi %9, %19 : vector<1x1xi32>
    %21 = arith.select %18, %20, %9 : vector<1x1xi1>, vector<1x1xi32>
    %cst_6 = arith.constant 0.000000e+00 : f32
    %22 = vector.broadcast %cst_6 : f32 to vector<8x1xf32>
    %23 = vector.extract_strided_slice %4 {offsets = [0, 0], sizes = [8, 1], strides = [1, 1]} : vector<8x5xf32> to vector<8x1xf32>
    %c-1_i32 = arith.constant -1 : i32
    %24 = vector.broadcast %c-1_i32 : i32 to vector<1x1xi32>
    %25 = arith.addi %21, %24 : vector<1x1xi32>
    %c0_i32_7 = arith.constant 0 : i32
    %26 = vector.broadcast %c0_i32_7 : i32 to vector<1x1xi32>
    %27 = arith.cmpi sge, %25, %26 : vector<1x1xi32>
    %c-1_i32_8 = arith.constant -1 : i32
    %28 = vector.broadcast %c-1_i32_8 : i32 to vector<1x1xi32>
    %29 = arith.addi %21, %28 : vector<1x1xi32>
    %c1_i32_9 = arith.constant 1 : i32
    %30 = vector.broadcast %c1_i32_9 : i32 to vector<1x1xi32>
    %31 = arith.cmpi slt, %29, %30 : vector<1x1xi32>
    %32 = arith.andi %27, %31 : vector<1x1xi1>
    %cst_10 = arith.constant 0.000000e+00 : f32
    %33 = vector.shape_cast %32 : vector<1x1xi1> to vector<1x1xi1>
    %34 = vector.broadcast %33 : vector<1x1xi1> to vector<8x1xi1>
    %35 = vector.broadcast %cst_10 : f32 to vector<8x1xf32>
    %36 = arith.select %34, %23, %35 : vector<8x1xi1>, vector<8x1xf32>
    %c0_11 = arith.constant 0 : index
    %c0_12 = arith.constant 0 : index
    %37 = vector.load %arg2[%c0_11, %c0_12] : memref<8x72xbf16, #tpu.memory_space<vmem>>, vector<8x8xbf16>
    %38 = arith.truncf %36 : vector<8x1xf32> to vector<8x1xbf16>
    %cst_13 = arith.constant dense<0.000000e+00> : vector<8x1xf32>
    %39 = tpu.matmul %37, %38, %cst_13 {dimension_numbers = #tpu.dot_dimension_numbers<[1], [0], [0], [1], [0, 0, 1, 1], [], []>} : vector<8x8xbf16>, vector<8x1xbf16>, vector<8x1xf32> -> vector<8x1xf32>
    %40 = arith.addf %22, %39 : vector<8x1xf32>
    %41 = vector.extract_strided_slice %4 {offsets = [0, 1], sizes = [8, 1], strides = [1, 1]} : vector<8x5xf32> to vector<8x1xf32>
    %c0_14 = arith.constant 0 : index
    %c8 = arith.constant 8 : index
    %42 = vector.load %arg2[%c0_14, %c8] : memref<8x72xbf16, #tpu.memory_space<vmem>>, vector<8x8xbf16>
    %43 = arith.truncf %41 : vector<8x1xf32> to vector<8x1xbf16>
    %cst_15 = arith.constant dense<0.000000e+00> : vector<8x1xf32>
    %44 = tpu.matmul %42, %43, %cst_15 {dimension_numbers = #tpu.dot_dimension_numbers<[1], [0], [0], [1], [0, 0, 1, 1], [], []>} : vector<8x8xbf16>, vector<8x1xbf16>, vector<8x1xf32> -> vector<8x1xf32>
    %45 = arith.addf %40, %44 : vector<8x1xf32>
    %46 = vector.extract_strided_slice %4 {offsets = [0, 2], sizes = [8, 1], strides = [1, 1]} : vector<8x5xf32> to vector<8x1xf32>
    %c1_i32_16 = arith.constant 1 : i32
    %47 = vector.broadcast %c1_i32_16 : i32 to vector<1x1xi32>
    %48 = arith.addi %21, %47 : vector<1x1xi32>
    %c0_i32_17 = arith.constant 0 : i32
    %49 = vector.broadcast %c0_i32_17 : i32 to vector<1x1xi32>
    %50 = arith.cmpi sge, %48, %49 : vector<1x1xi32>
    %c1_i32_18 = arith.constant 1 : i32
    %51 = vector.broadcast %c1_i32_18 : i32 to vector<1x1xi32>
    %52 = arith.addi %21, %51 : vector<1x1xi32>
    %c1_i32_19 = arith.constant 1 : i32
    %53 = vector.broadcast %c1_i32_19 : i32 to vector<1x1xi32>
    %54 = arith.cmpi slt, %52, %53 : vector<1x1xi32>
    %55 = arith.andi %50, %54 : vector<1x1xi1>
    %cst_20 = arith.constant 0.000000e+00 : f32
    %56 = vector.shape_cast %55 : vector<1x1xi1> to vector<1x1xi1>
    %57 = vector.broadcast %56 : vector<1x1xi1> to vector<8x1xi1>
    %58 = vector.broadcast %cst_20 : f32 to vector<8x1xf32>
    %59 = arith.select %57, %46, %58 : vector<8x1xi1>, vector<8x1xf32>
    %c0_21 = arith.constant 0 : index
    %c16 = arith.constant 16 : index
    %60 = vector.load %arg2[%c0_21, %c16] : memref<8x72xbf16, #tpu.memory_space<vmem>>, vector<8x8xbf16>
    %61 = arith.truncf %59 : vector<8x1xf32> to vector<8x1xbf16>
    %cst_22 = arith.constant dense<0.000000e+00> : vector<8x1xf32>
    %62 = tpu.matmul %60, %61, %cst_22 {dimension_numbers = #tpu.dot_dimension_numbers<[1], [0], [0], [1], [0, 0, 1, 1], [], []>} : vector<8x8xbf16>, vector<8x1xbf16>, vector<8x1xf32> -> vector<8x1xf32>
    %63 = arith.addf %45, %62 : vector<8x1xf32>
    %64 = vector.extract_strided_slice %4 {offsets = [0, 1], sizes = [8, 1], strides = [1, 1]} : vector<8x5xf32> to vector<8x1xf32>
    %c-1_i32_23 = arith.constant -1 : i32
    %65 = vector.broadcast %c-1_i32_23 : i32 to vector<1x1xi32>
    %66 = arith.addi %21, %65 : vector<1x1xi32>
    %c0_i32_24 = arith.constant 0 : i32
    %67 = vector.broadcast %c0_i32_24 : i32 to vector<1x1xi32>
    %68 = arith.cmpi sge, %66, %67 : vector<1x1xi32>
    %c-1_i32_25 = arith.constant -1 : i32
    %69 = vector.broadcast %c-1_i32_25 : i32 to vector<1x1xi32>
    %70 = arith.addi %21, %69 : vector<1x1xi32>
    %c1_i32_26 = arith.constant 1 : i32
    %71 = vector.broadcast %c1_i32_26 : i32 to vector<1x1xi32>
    %72 = arith.cmpi slt, %70, %71 : vector<1x1xi32>
    %73 = arith.andi %68, %72 : vector<1x1xi1>
    %cst_27 = arith.constant 0.000000e+00 : f32
    %74 = vector.shape_cast %73 : vector<1x1xi1> to vector<1x1xi1>
    %75 = vector.broadcast %74 : vector<1x1xi1> to vector<8x1xi1>
    %76 = vector.broadcast %cst_27 : f32 to vector<8x1xf32>
    %77 = arith.select %75, %64, %76 : vector<8x1xi1>, vector<8x1xf32>
    %c0_28 = arith.constant 0 : index
    %c24 = arith.constant 24 : index
    %78 = vector.load %arg2[%c0_28, %c24] : memref<8x72xbf16, #tpu.memory_space<vmem>>, vector<8x8xbf16>
    %79 = arith.truncf %77 : vector<8x1xf32> to vector<8x1xbf16>
    %cst_29 = arith.constant dense<0.000000e+00> : vector<8x1xf32>
    %80 = tpu.matmul %78, %79, %cst_29 {dimension_numbers = #tpu.dot_dimension_numbers<[1], [0], [0], [1], [0, 0, 1, 1], [], []>} : vector<8x8xbf16>, vector<8x1xbf16>, vector<8x1xf32> -> vector<8x1xf32>
    %81 = arith.addf %63, %80 : vector<8x1xf32>
    %82 = vector.extract_strided_slice %4 {offsets = [0, 2], sizes = [8, 1], strides = [1, 1]} : vector<8x5xf32> to vector<8x1xf32>
    %c0_30 = arith.constant 0 : index
    %c32 = arith.constant 32 : index
    %83 = vector.load %arg2[%c0_30, %c32] : memref<8x72xbf16, #tpu.memory_space<vmem>>, vector<8x8xbf16>
    %84 = arith.truncf %82 : vector<8x1xf32> to vector<8x1xbf16>
    %cst_31 = arith.constant dense<0.000000e+00> : vector<8x1xf32>
    %85 = tpu.matmul %83, %84, %cst_31 {dimension_numbers = #tpu.dot_dimension_numbers<[1], [0], [0], [1], [0, 0, 1, 1], [], []>} : vector<8x8xbf16>, vector<8x1xbf16>, vector<8x1xf32> -> vector<8x1xf32>
    %86 = arith.addf %81, %85 : vector<8x1xf32>
    %87 = vector.extract_strided_slice %4 {offsets = [0, 3], sizes = [8, 1], strides = [1, 1]} : vector<8x5xf32> to vector<8x1xf32>
    %c1_i32_32 = arith.constant 1 : i32
    %88 = vector.broadcast %c1_i32_32 : i32 to vector<1x1xi32>
    %89 = arith.addi %21, %88 : vector<1x1xi32>
    %c0_i32_33 = arith.constant 0 : i32
    %90 = vector.broadcast %c0_i32_33 : i32 to vector<1x1xi32>
    %91 = arith.cmpi sge, %89, %90 : vector<1x1xi32>
    %c1_i32_34 = arith.constant 1 : i32
    %92 = vector.broadcast %c1_i32_34 : i32 to vector<1x1xi32>
    %93 = arith.addi %21, %92 : vector<1x1xi32>
    %c1_i32_35 = arith.constant 1 : i32
    %94 = vector.broadcast %c1_i32_35 : i32 to vector<1x1xi32>
    %95 = arith.cmpi slt, %93, %94 : vector<1x1xi32>
    %96 = arith.andi %91, %95 : vector<1x1xi1>
    %cst_36 = arith.constant 0.000000e+00 : f32
    %97 = vector.shape_cast %96 : vector<1x1xi1> to vector<1x1xi1>
    %98 = vector.broadcast %97 : vector<1x1xi1> to vector<8x1xi1>
    %99 = vector.broadcast %cst_36 : f32 to vector<8x1xf32>
    %100 = arith.select %98, %87, %99 : vector<8x1xi1>, vector<8x1xf32>
    %c0_37 = arith.constant 0 : index
    %c40 = arith.constant 40 : index
    %101 = vector.load %arg2[%c0_37, %c40] : memref<8x72xbf16, #tpu.memory_space<vmem>>, vector<8x8xbf16>
    %102 = arith.truncf %100 : vector<8x1xf32> to vector<8x1xbf16>
    %cst_38 = arith.constant dense<0.000000e+00> : vector<8x1xf32>
    %103 = tpu.matmul %101, %102, %cst_38 {dimension_numbers = #tpu.dot_dimension_numbers<[1], [0], [0], [1], [0, 0, 1, 1], [], []>} : vector<8x8xbf16>, vector<8x1xbf16>, vector<8x1xf32> -> vector<8x1xf32>
    %104 = arith.addf %86, %103 : vector<8x1xf32>
    %105 = vector.extract_strided_slice %4 {offsets = [0, 2], sizes = [8, 1], strides = [1, 1]} : vector<8x5xf32> to vector<8x1xf32>
    %c-1_i32_39 = arith.constant -1 : i32
    %106 = vector.broadcast %c-1_i32_39 : i32 to vector<1x1xi32>
    %107 = arith.addi %21, %106 : vector<1x1xi32>
    %c0_i32_40 = arith.constant 0 : i32
    %108 = vector.broadcast %c0_i32_40 : i32 to vector<1x1xi32>
    %109 = arith.cmpi sge, %107, %108 : vector<1x1xi32>
    %c-1_i32_41 = arith.constant -1 : i32
    %110 = vector.broadcast %c-1_i32_41 : i32 to vector<1x1xi32>
    %111 = arith.addi %21, %110 : vector<1x1xi32>
    %c1_i32_42 = arith.constant 1 : i32
    %112 = vector.broadcast %c1_i32_42 : i32 to vector<1x1xi32>
    %113 = arith.cmpi slt, %111, %112 : vector<1x1xi32>
    %114 = arith.andi %109, %113 : vector<1x1xi1>
    %cst_43 = arith.constant 0.000000e+00 : f32
    %115 = vector.shape_cast %114 : vector<1x1xi1> to vector<1x1xi1>
    %116 = vector.broadcast %115 : vector<1x1xi1> to vector<8x1xi1>
    %117 = vector.broadcast %cst_43 : f32 to vector<8x1xf32>
    %118 = arith.select %116, %105, %117 : vector<8x1xi1>, vector<8x1xf32>
    %c0_44 = arith.constant 0 : index
    %c48 = arith.constant 48 : index
    %119 = vector.load %arg2[%c0_44, %c48] : memref<8x72xbf16, #tpu.memory_space<vmem>>, vector<8x8xbf16>
    %120 = arith.truncf %118 : vector<8x1xf32> to vector<8x1xbf16>
    %cst_45 = arith.constant dense<0.000000e+00> : vector<8x1xf32>
    %121 = tpu.matmul %119, %120, %cst_45 {dimension_numbers = #tpu.dot_dimension_numbers<[1], [0], [0], [1], [0, 0, 1, 1], [], []>} : vector<8x8xbf16>, vector<8x1xbf16>, vector<8x1xf32> -> vector<8x1xf32>
    %122 = arith.addf %104, %121 : vector<8x1xf32>
    %123 = vector.extract_strided_slice %4 {offsets = [0, 3], sizes = [8, 1], strides = [1, 1]} : vector<8x5xf32> to vector<8x1xf32>
    %c0_46 = arith.constant 0 : index
    %c56 = arith.constant 56 : index
    %124 = vector.load %arg2[%c0_46, %c56] : memref<8x72xbf16, #tpu.memory_space<vmem>>, vector<8x8xbf16>
    %125 = arith.truncf %123 : vector<8x1xf32> to vector<8x1xbf16>
    %cst_47 = arith.constant dense<0.000000e+00> : vector<8x1xf32>
    %126 = tpu.matmul %124, %125, %cst_47 {dimension_numbers = #tpu.dot_dimension_numbers<[1], [0], [0], [1], [0, 0, 1, 1], [], []>} : vector<8x8xbf16>, vector<8x1xbf16>, vector<8x1xf32> -> vector<8x1xf32>
    %127 = arith.addf %122, %126 : vector<8x1xf32>
    %128 = vector.extract_strided_slice %4 {offsets = [0, 4], sizes = [8, 1], strides = [1, 1]} : vector<8x5xf32> to vector<8x1xf32>
    %c1_i32_48 = arith.constant 1 : i32
    %129 = vector.broadcast %c1_i32_48 : i32 to vector<1x1xi32>
    %130 = arith.addi %21, %129 : vector<1x1xi32>
    %c0_i32_49 = arith.constant 0 : i32
    %131 = vector.broadcast %c0_i32_49 : i32 to vector<1x1xi32>
    %132 = arith.cmpi sge, %130, %131 : vector<1x1xi32>
    %c1_i32_50 = arith.constant 1 : i32
    %133 = vector.broadcast %c1_i32_50 : i32 to vector<1x1xi32>
    %134 = arith.addi %21, %133 : vector<1x1xi32>
    %c1_i32_51 = arith.constant 1 : i32
    %135 = vector.broadcast %c1_i32_51 : i32 to vector<1x1xi32>
    %136 = arith.cmpi slt, %134, %135 : vector<1x1xi32>
    %137 = arith.andi %132, %136 : vector<1x1xi1>
    %cst_52 = arith.constant 0.000000e+00 : f32
    %138 = vector.shape_cast %137 : vector<1x1xi1> to vector<1x1xi1>
    %139 = vector.broadcast %138 : vector<1x1xi1> to vector<8x1xi1>
    %140 = vector.broadcast %cst_52 : f32 to vector<8x1xf32>
    %141 = arith.select %139, %128, %140 : vector<8x1xi1>, vector<8x1xf32>
    %c0_53 = arith.constant 0 : index
    %c64 = arith.constant 64 : index
    %142 = vector.load %arg2[%c0_53, %c64] : memref<8x72xbf16, #tpu.memory_space<vmem>>, vector<8x8xbf16>
    %143 = arith.truncf %141 : vector<8x1xf32> to vector<8x1xbf16>
    %cst_54 = arith.constant dense<0.000000e+00> : vector<8x1xf32>
    %144 = tpu.matmul %142, %143, %cst_54 {dimension_numbers = #tpu.dot_dimension_numbers<[1], [0], [0], [1], [0, 0, 1, 1], [], []>} : vector<8x8xbf16>, vector<8x1xbf16>, vector<8x1xf32> -> vector<8x1xf32>
    %145 = arith.addf %127, %144 : vector<8x1xf32>
    %c0_55 = arith.constant 0 : index
    %c0_56 = arith.constant 0 : index
    %146 = vector.load %arg3[%c0_55, %c0_56] : memref<8x1xf32, #tpu.memory_space<vmem>>, vector<8x1xf32>
    %147 = arith.addf %145, %146 : vector<8x1xf32>
    %cst_57 = arith.constant 0.000000e+00 : f32
    %148 = vector.broadcast %cst_57 : f32 to vector<8x1xf32>
    %149 = arith.maximumf %147, %148 : vector<8x1xf32>
    %150 = arith.truncf %149 : vector<8x1xf32> to vector<8x1xbf16>
    %c0_58 = arith.constant 0 : index
    %c0_59 = arith.constant 0 : index
    %151 = vector.load %arg4[%c0_58, %c0_59] : memref<1x4xbf16, #tpu.memory_space<vmem>>, vector<1x4xbf16>
    %cst_60 = arith.constant dense<0.000000e+00> : vector<8x4xf32>
    %152 = tpu.matmul %150, %151, %cst_60 {dimension_numbers = #tpu.dot_dimension_numbers<[1], [0], [0], [1], [0, 0, 1, 1], [], []>} : vector<8x1xbf16>, vector<1x4xbf16>, vector<8x4xf32> -> vector<8x4xf32>
    %c0_61 = arith.constant 0 : index
    %c0_62 = arith.constant 0 : index
    %c0_63 = arith.constant 0 : index
    %153 = vector.load %arg5[%c0_61, %c0_62, %c0_63] : memref<1x8x4xf32, #tpu.memory_space<vmem>>, vector<1x8x4xf32>
    %154 = vector.shape_cast %153 : vector<1x8x4xf32> to vector<8x4xf32>
    %155 = arith.truncf %154 : vector<8x4xf32> to vector<8x4xbf16>
    %c0_64 = arith.constant 0 : index
    %c0_65 = arith.constant 0 : index
    %156 = vector.load %arg7[%c0_64, %c0_65] : memref<8x1xf32, #tpu.memory_space<vmem>>, vector<8x1xf32>
    %157 = vector.broadcast %156 : vector<8x1xf32> to vector<8x4xf32>
    %158 = arith.addf %152, %157 : vector<8x4xf32>
    %c0_66 = arith.constant 0 : index
    %c0_67 = arith.constant 0 : index
    %159 = vector.load %arg6[%c0_66, %c0_67] : memref<8x8xbf16, #tpu.memory_space<vmem>>, vector<8x8xbf16>
    %cst_68 = arith.constant dense<0.000000e+00> : vector<8x4xf32>
    %160 = tpu.matmul %159, %155, %cst_68 {dimension_numbers = #tpu.dot_dimension_numbers<[1], [0], [0], [1], [0, 0, 1, 1], [], []>} : vector<8x8xbf16>, vector<8x4xbf16>, vector<8x4xf32> -> vector<8x4xf32>
    %161 = arith.addf %158, %160 : vector<8x4xf32>
    %cst_69 = arith.constant dense<0.000000e+00> : vector<8xf32>
    %162 = vector.multi_reduction <add>, %161, %cst_69 [1] : vector<8x4xf32> to vector<8xf32>
    %163 = vector.shape_cast %162 : vector<8xf32> to vector<8x1xf32>
    %cst_70 = arith.constant 4.000000e+00 : f32
    %164 = vector.broadcast %cst_70 : f32 to vector<8x1xf32>
    %165 = arith.divf %163, %164 : vector<8x1xf32>
    %166 = vector.broadcast %165 : vector<8x1xf32> to vector<8x4xf32>
    %167 = arith.subf %161, %166 : vector<8x4xf32>
    %168 = arith.mulf %167, %167 : vector<8x4xf32>
    %cst_71 = arith.constant dense<0.000000e+00> : vector<8xf32>
    %169 = vector.multi_reduction <add>, %168, %cst_71 [1] : vector<8x4xf32> to vector<8xf32>
    %170 = vector.shape_cast %169 : vector<8xf32> to vector<8x1xf32>
    %cst_72 = arith.constant 4.000000e+00 : f32
    %171 = vector.broadcast %cst_72 : f32 to vector<8x1xf32>
    %172 = arith.divf %170, %171 : vector<8x1xf32>
    %173 = vector.broadcast %165 : vector<8x1xf32> to vector<8x4xf32>
    %174 = arith.subf %161, %173 : vector<8x4xf32>
    %cst_73 = arith.constant 9.99999974E-6 : f32
    %175 = vector.broadcast %cst_73 : f32 to vector<8x1xf32>
    %176 = arith.addf %172, %175 : vector<8x1xf32>
    %177 = math.rsqrt %176 : vector<8x1xf32>
    %178 = vector.broadcast %177 : vector<8x1xf32> to vector<8x4xf32>
    %179 = arith.mulf %174, %178 : vector<8x4xf32>
    %c0_74 = arith.constant 0 : index
    %c0_75 = arith.constant 0 : index
    %c0_76 = arith.constant 0 : index
    %c0_77 = arith.constant 0 : index
    %180 = vector.load %arg8[%c0_74, %c0_75, %c0_76, %c0_77] : memref<1x2x8x4xf32, #tpu.memory_space<vmem>>, vector<1x2x8x4xf32>
    %181 = vector.extract_strided_slice %180 {offsets = [0, 0, 0, 0], sizes = [1, 1, 8, 4], strides = [1, 1, 1, 1]} : vector<1x2x8x4xf32> to vector<1x1x8x4xf32>
    %182 = vector.shape_cast %181 : vector<1x1x8x4xf32> to vector<8x4xf32>
    %183 = arith.mulf %182, %179 : vector<8x4xf32>
    %184 = vector.extract_strided_slice %180 {offsets = [0, 1, 0, 0], sizes = [1, 1, 8, 4], strides = [1, 1, 1, 1]} : vector<1x2x8x4xf32> to vector<1x1x8x4xf32>
    %185 = vector.shape_cast %184 : vector<1x1x8x4xf32> to vector<8x4xf32>
    %186 = arith.addf %183, %185 : vector<8x4xf32>
    %187 = arith.truncf %186 : vector<8x4xf32> to vector<8x4xbf16>
    %c0_78 = arith.constant 0 : index
    %c0_79 = arith.constant 0 : index
    %c0_80 = arith.constant 0 : index
    %188 = vector.load %arg9[%c0_78, %c0_79, %c0_80] : memref<1x8x4xbf16, #tpu.memory_space<vmem>>, vector<1x8x4xbf16>
    %189 = vector.shape_cast %188 : vector<1x8x4xbf16> to vector<8x4xbf16>
    %190 = vector.shape_cast %187 : vector<8x4xbf16> to vector<1x8x4xbf16>
    tpu.vector_store %arg9[%c0_78, %c0_79, %c0_80], %190 {strides = array<i32>} : memref<1x8x4xbf16, #tpu.memory_space<vmem>>, vector<1x8x4xbf16>,
    return
  }
  func.func @transform_0(%arg0: i32) -> (i32, i32, i32) {
    %c0_i32 = arith.constant 0 : i32
    %c0_i32_0 = arith.constant 0 : i32
    %c0_i32_1 = arith.constant 0 : i32
    return %arg0, %c0_i32, %c0_i32_0 : i32, i32, i32
  }
  func.func @transform_1(%arg0: i32) -> (i32, i32) {
    %c0_i32 = arith.constant 0 : i32
    %c0_i32_0 = arith.constant 0 : i32
    %c0_i32_1 = arith.constant 0 : i32
    return %c0_i32, %c0_i32_0 : i32, i32
  }
  func.func @transform_2(%arg0: i32) -> (i32, i32) {
    %c0_i32 = arith.constant 0 : i32
    %c0_i32_0 = arith.constant 0 : i32
    %c0_i32_1 = arith.constant 0 : i32
    return %c0_i32, %c0_i32_0 : i32, i32
  }
  func.func @transform_3(%arg0: i32) -> (i32, i32) {
    %c0_i32 = arith.constant 0 : i32
    %c0_i32_0 = arith.constant 0 : i32
    %c0_i32_1 = arith.constant 0 : i32
    return %c0_i32, %c0_i32_0 : i32, i32
  }
  func.func @transform_4(%arg0: i32) -> (i32, i32, i32) {
    %c0_i32 = arith.constant 0 : i32
    %c0_i32_0 = arith.constant 0 : i32
    %c0_i32_1 = arith.constant 0 : i32
    return %arg0, %c0_i32, %c0_i32_0 : i32, i32, i32
  }
  func.func @transform_5(%arg0: i32) -> (i32, i32) {
    %c0_i32 = arith.constant 0 : i32
    %c0_i32_0 = arith.constant 0 : i32
    %c0_i32_1 = arith.constant 0 : i32
    return %c0_i32, %c0_i32_0 : i32, i32
  }
  func.func @transform_6(%arg0: i32) -> (i32, i32) {
    %c0_i32 = arith.constant 0 : i32
    %c0_i32_0 = arith.constant 0 : i32
    %c0_i32_1 = arith.constant 0 : i32
    return %c0_i32, %c0_i32_0 : i32, i32
  }
  func.func @transform_7(%arg0: i32) -> (i32, i32, i32, i32) {
    %c0_i32 = arith.constant 0 : i32
    %c0_i32_0 = arith.constant 0 : i32
    %c0_i32_1 = arith.constant 0 : i32
    %c0_i32_2 = arith.constant 0 : i32
    return %arg0, %c0_i32, %c0_i32_0, %c0_i32_1 : i32, i32, i32, i32
  }
  func.func @transform_8(%arg0: i32) -> (i32, i32, i32) {
    %c0_i32 = arith.constant 0 : i32
    %c0_i32_0 = arith.constant 0 : i32
    %c0_i32_1 = arith.constant 0 : i32
    return %arg0, %c0_i32, %c0_i32_0 : i32, i32, i32
  }
}

module attributes {stable_mosaic.version = 11 : i64} {
  func.func @_level_kernel(%arg0: i32, %arg1: memref<1x8x4xbf16, #tpu.memory_space<vmem>>, %arg2: memref<8x72xbf16, #tpu.memory_space<vmem>>, %arg3: memref<8x1xf32, #tpu.memory_space<vmem>>, %arg4: memref<4x16xbf16, #tpu.memory_space<vmem>>, %arg5: memref<1x8x16xf32, #tpu.memory_space<vmem>>, %arg6: memref<8x8xbf16, #tpu.memory_space<vmem>>, %arg7: memref<8x1xf32, #tpu.memory_space<vmem>>, %arg8: memref<1x2x8x16xf32, #tpu.memory_space<vmem>>, %arg9: memref<1x8x16xbf16, #tpu.memory_space<vmem>>) attributes {dimension_semantics = [#tpu.dimension_semantics<parallel>], iteration_bounds = array<i64: 2>, scalar_prefetch = 0 : i64, scratch_operands = 0 : i64, tpu.core_type = #tpu.core_type<tc>, window_params = [{transform_indices = @transform_0, window_bounds = array<i64: 1, 8, 4>}, {pipeline_mode = #tpu.pipeline_mode<synchronous>, transform_indices = @transform_1, window_bounds = array<i64: 8, 72>}, {pipeline_mode = #tpu.pipeline_mode<synchronous>, transform_indices = @transform_2, window_bounds = array<i64: 8, 1>}, {pipeline_mode = #tpu.pipeline_mode<synchronous>, transform_indices = @transform_3, window_bounds = array<i64: 4, 16>}, {transform_indices = @transform_4, window_bounds = array<i64: 1, 8, 16>}, {pipeline_mode = #tpu.pipeline_mode<synchronous>, transform_indices = @transform_5, window_bounds = array<i64: 8, 8>}, {pipeline_mode = #tpu.pipeline_mode<synchronous>, transform_indices = @transform_6, window_bounds = array<i64: 8, 1>}, {transform_indices = @transform_7, window_bounds = array<i64: 1, 2, 8, 16>}, {transform_indices = @transform_8, window_bounds = array<i64: 1, 8, 16>}]} {
    %c0 = arith.constant 0 : index
    %c0_0 = arith.constant 0 : index
    %c0_1 = arith.constant 0 : index
    %0 = vector.load %arg1[%c0, %c0_0, %c0_1] : memref<1x8x4xbf16, #tpu.memory_space<vmem>>, vector<1x8x4xbf16>
    %1 = vector.shape_cast %0 : vector<1x8x4xbf16> to vector<8x4xbf16>
    %2 = arith.extf %1 : vector<8x4xbf16> to vector<8x4xf32>
    %cst = arith.constant 0.000000e+00 : f32
    %3 = vector.broadcast %cst : f32 to vector<8x3xf32>
    %4 = tpu.concatenate %3, %2, %3 in 1 : vector<8x3xf32>, vector<8x4xf32>, vector<8x3xf32> -> vector<8x10xf32>
    %5 = tpu.iota {dimensions = array<i32: 1>} : vector<1x4xi32>
    %c2_i32 = arith.constant 2 : i32
    %c0_i32 = arith.constant 0 : i32
    %6 = arith.cmpi eq, %c2_i32, %c0_i32 : i32
    %c1_i32 = arith.constant 1 : i32
    %7 = arith.select %6, %c1_i32, %c2_i32 : i32
    %8 = vector.broadcast %7 : i32 to vector<1x4xi32>
    %9 = arith.remsi %5, %8 : vector<1x4xi32>
    %c0_i32_2 = arith.constant 0 : i32
    %10 = vector.broadcast %c0_i32_2 : i32 to vector<1x4xi32>
    %11 = arith.cmpi ne, %9, %10 : vector<1x4xi32>
    %c0_i32_3 = arith.constant 0 : i32
    %12 = vector.broadcast %c0_i32_3 : i32 to vector<1x4xi32>
    %13 = arith.cmpi slt, %9, %12 : vector<1x4xi32>
    %c0_i32_4 = arith.constant 0 : i32
    %14 = arith.cmpi slt, %7, %c0_i32_4 : i32
    %15 = vector.broadcast %14 : i1 to vector<1x4xi1>
    %16 = vector.broadcast %15 : vector<1x4xi1> to vector<1x4xi1>
    %17 = arith.xori %13, %16 : vector<1x4xi1>
    %18 = arith.andi %17, %11 : vector<1x4xi1>
    %19 = vector.broadcast %7 : i32 to vector<1x4xi32>
    %20 = arith.addi %9, %19 : vector<1x4xi32>
    %21 = arith.select %18, %20, %9 : vector<1x4xi1>, vector<1x4xi32>
    %cst_5 = arith.constant 0.000000e+00 : f32
    %22 = vector.broadcast %cst_5 : f32 to vector<8x4xf32>
    %23 = vector.extract_strided_slice %4 {offsets = [0, 0], sizes = [8, 4], strides = [1, 1]} : vector<8x10xf32> to vector<8x4xf32>
    %c-1_i32 = arith.constant -1 : i32
    %24 = vector.broadcast %c-1_i32 : i32 to vector<1x4xi32>
    %25 = arith.addi %21, %24 : vector<1x4xi32>
    %c0_i32_6 = arith.constant 0 : i32
    %26 = vector.broadcast %c0_i32_6 : i32 to vector<1x4xi32>
    %27 = arith.cmpi sge, %25, %26 : vector<1x4xi32>
    %c-1_i32_7 = arith.constant -1 : i32
    %28 = vector.broadcast %c-1_i32_7 : i32 to vector<1x4xi32>
    %29 = arith.addi %21, %28 : vector<1x4xi32>
    %c2_i32_8 = arith.constant 2 : i32
    %30 = vector.broadcast %c2_i32_8 : i32 to vector<1x4xi32>
    %31 = arith.cmpi slt, %29, %30 : vector<1x4xi32>
    %32 = arith.andi %27, %31 : vector<1x4xi1>
    %cst_9 = arith.constant 0.000000e+00 : f32
    %33 = vector.shape_cast %32 : vector<1x4xi1> to vector<1x4xi1>
    %34 = vector.broadcast %33 : vector<1x4xi1> to vector<8x4xi1>
    %35 = vector.broadcast %cst_9 : f32 to vector<8x4xf32>
    %36 = arith.select %34, %23, %35 : vector<8x4xi1>, vector<8x4xf32>
    %c0_10 = arith.constant 0 : index
    %c0_11 = arith.constant 0 : index
    %37 = vector.load %arg2[%c0_10, %c0_11] : memref<8x72xbf16, #tpu.memory_space<vmem>>, vector<8x8xbf16>
    %38 = arith.truncf %36 : vector<8x4xf32> to vector<8x4xbf16>
    %cst_12 = arith.constant dense<0.000000e+00> : vector<8x4xf32>
    %39 = tpu.matmul %37, %38, %cst_12 {dimension_numbers = #tpu.dot_dimension_numbers<[1], [0], [0], [1], [0, 0, 1, 1], [], []>} : vector<8x8xbf16>, vector<8x4xbf16>, vector<8x4xf32> -> vector<8x4xf32>
    %40 = arith.addf %22, %39 : vector<8x4xf32>
    %41 = vector.extract_strided_slice %4 {offsets = [0, 1], sizes = [8, 4], strides = [1, 1]} : vector<8x10xf32> to vector<8x4xf32>
    %c0_13 = arith.constant 0 : index
    %c8 = arith.constant 8 : index
    %42 = vector.load %arg2[%c0_13, %c8] : memref<8x72xbf16, #tpu.memory_space<vmem>>, vector<8x8xbf16>
    %43 = arith.truncf %41 : vector<8x4xf32> to vector<8x4xbf16>
    %cst_14 = arith.constant dense<0.000000e+00> : vector<8x4xf32>
    %44 = tpu.matmul %42, %43, %cst_14 {dimension_numbers = #tpu.dot_dimension_numbers<[1], [0], [0], [1], [0, 0, 1, 1], [], []>} : vector<8x8xbf16>, vector<8x4xbf16>, vector<8x4xf32> -> vector<8x4xf32>
    %45 = arith.addf %40, %44 : vector<8x4xf32>
    %46 = vector.extract_strided_slice %4 {offsets = [0, 2], sizes = [8, 4], strides = [1, 1]} : vector<8x10xf32> to vector<8x4xf32>
    %c1_i32_15 = arith.constant 1 : i32
    %47 = vector.broadcast %c1_i32_15 : i32 to vector<1x4xi32>
    %48 = arith.addi %21, %47 : vector<1x4xi32>
    %c0_i32_16 = arith.constant 0 : i32
    %49 = vector.broadcast %c0_i32_16 : i32 to vector<1x4xi32>
    %50 = arith.cmpi sge, %48, %49 : vector<1x4xi32>
    %c1_i32_17 = arith.constant 1 : i32
    %51 = vector.broadcast %c1_i32_17 : i32 to vector<1x4xi32>
    %52 = arith.addi %21, %51 : vector<1x4xi32>
    %c2_i32_18 = arith.constant 2 : i32
    %53 = vector.broadcast %c2_i32_18 : i32 to vector<1x4xi32>
    %54 = arith.cmpi slt, %52, %53 : vector<1x4xi32>
    %55 = arith.andi %50, %54 : vector<1x4xi1>
    %cst_19 = arith.constant 0.000000e+00 : f32
    %56 = vector.shape_cast %55 : vector<1x4xi1> to vector<1x4xi1>
    %57 = vector.broadcast %56 : vector<1x4xi1> to vector<8x4xi1>
    %58 = vector.broadcast %cst_19 : f32 to vector<8x4xf32>
    %59 = arith.select %57, %46, %58 : vector<8x4xi1>, vector<8x4xf32>
    %c0_20 = arith.constant 0 : index
    %c16 = arith.constant 16 : index
    %60 = vector.load %arg2[%c0_20, %c16] : memref<8x72xbf16, #tpu.memory_space<vmem>>, vector<8x8xbf16>
    %61 = arith.truncf %59 : vector<8x4xf32> to vector<8x4xbf16>
    %cst_21 = arith.constant dense<0.000000e+00> : vector<8x4xf32>
    %62 = tpu.matmul %60, %61, %cst_21 {dimension_numbers = #tpu.dot_dimension_numbers<[1], [0], [0], [1], [0, 0, 1, 1], [], []>} : vector<8x8xbf16>, vector<8x4xbf16>, vector<8x4xf32> -> vector<8x4xf32>
    %63 = arith.addf %45, %62 : vector<8x4xf32>
    %64 = vector.extract_strided_slice %4 {offsets = [0, 2], sizes = [8, 4], strides = [1, 1]} : vector<8x10xf32> to vector<8x4xf32>
    %c-1_i32_22 = arith.constant -1 : i32
    %65 = vector.broadcast %c-1_i32_22 : i32 to vector<1x4xi32>
    %66 = arith.addi %21, %65 : vector<1x4xi32>
    %c0_i32_23 = arith.constant 0 : i32
    %67 = vector.broadcast %c0_i32_23 : i32 to vector<1x4xi32>
    %68 = arith.cmpi sge, %66, %67 : vector<1x4xi32>
    %c-1_i32_24 = arith.constant -1 : i32
    %69 = vector.broadcast %c-1_i32_24 : i32 to vector<1x4xi32>
    %70 = arith.addi %21, %69 : vector<1x4xi32>
    %c2_i32_25 = arith.constant 2 : i32
    %71 = vector.broadcast %c2_i32_25 : i32 to vector<1x4xi32>
    %72 = arith.cmpi slt, %70, %71 : vector<1x4xi32>
    %73 = arith.andi %68, %72 : vector<1x4xi1>
    %cst_26 = arith.constant 0.000000e+00 : f32
    %74 = vector.shape_cast %73 : vector<1x4xi1> to vector<1x4xi1>
    %75 = vector.broadcast %74 : vector<1x4xi1> to vector<8x4xi1>
    %76 = vector.broadcast %cst_26 : f32 to vector<8x4xf32>
    %77 = arith.select %75, %64, %76 : vector<8x4xi1>, vector<8x4xf32>
    %c0_27 = arith.constant 0 : index
    %c24 = arith.constant 24 : index
    %78 = vector.load %arg2[%c0_27, %c24] : memref<8x72xbf16, #tpu.memory_space<vmem>>, vector<8x8xbf16>
    %79 = arith.truncf %77 : vector<8x4xf32> to vector<8x4xbf16>
    %cst_28 = arith.constant dense<0.000000e+00> : vector<8x4xf32>
    %80 = tpu.matmul %78, %79, %cst_28 {dimension_numbers = #tpu.dot_dimension_numbers<[1], [0], [0], [1], [0, 0, 1, 1], [], []>} : vector<8x8xbf16>, vector<8x4xbf16>, vector<8x4xf32> -> vector<8x4xf32>
    %81 = arith.addf %63, %80 : vector<8x4xf32>
    %82 = vector.extract_strided_slice %4 {offsets = [0, 3], sizes = [8, 4], strides = [1, 1]} : vector<8x10xf32> to vector<8x4xf32>
    %c0_29 = arith.constant 0 : index
    %c32 = arith.constant 32 : index
    %83 = vector.load %arg2[%c0_29, %c32] : memref<8x72xbf16, #tpu.memory_space<vmem>>, vector<8x8xbf16>
    %84 = arith.truncf %82 : vector<8x4xf32> to vector<8x4xbf16>
    %cst_30 = arith.constant dense<0.000000e+00> : vector<8x4xf32>
    %85 = tpu.matmul %83, %84, %cst_30 {dimension_numbers = #tpu.dot_dimension_numbers<[1], [0], [0], [1], [0, 0, 1, 1], [], []>} : vector<8x8xbf16>, vector<8x4xbf16>, vector<8x4xf32> -> vector<8x4xf32>
    %86 = arith.addf %81, %85 : vector<8x4xf32>
    %87 = vector.extract_strided_slice %4 {offsets = [0, 4], sizes = [8, 4], strides = [1, 1]} : vector<8x10xf32> to vector<8x4xf32>
    %c1_i32_31 = arith.constant 1 : i32
    %88 = vector.broadcast %c1_i32_31 : i32 to vector<1x4xi32>
    %89 = arith.addi %21, %88 : vector<1x4xi32>
    %c0_i32_32 = arith.constant 0 : i32
    %90 = vector.broadcast %c0_i32_32 : i32 to vector<1x4xi32>
    %91 = arith.cmpi sge, %89, %90 : vector<1x4xi32>
    %c1_i32_33 = arith.constant 1 : i32
    %92 = vector.broadcast %c1_i32_33 : i32 to vector<1x4xi32>
    %93 = arith.addi %21, %92 : vector<1x4xi32>
    %c2_i32_34 = arith.constant 2 : i32
    %94 = vector.broadcast %c2_i32_34 : i32 to vector<1x4xi32>
    %95 = arith.cmpi slt, %93, %94 : vector<1x4xi32>
    %96 = arith.andi %91, %95 : vector<1x4xi1>
    %cst_35 = arith.constant 0.000000e+00 : f32
    %97 = vector.shape_cast %96 : vector<1x4xi1> to vector<1x4xi1>
    %98 = vector.broadcast %97 : vector<1x4xi1> to vector<8x4xi1>
    %99 = vector.broadcast %cst_35 : f32 to vector<8x4xf32>
    %100 = arith.select %98, %87, %99 : vector<8x4xi1>, vector<8x4xf32>
    %c0_36 = arith.constant 0 : index
    %c40 = arith.constant 40 : index
    %101 = vector.load %arg2[%c0_36, %c40] : memref<8x72xbf16, #tpu.memory_space<vmem>>, vector<8x8xbf16>
    %102 = arith.truncf %100 : vector<8x4xf32> to vector<8x4xbf16>
    %cst_37 = arith.constant dense<0.000000e+00> : vector<8x4xf32>
    %103 = tpu.matmul %101, %102, %cst_37 {dimension_numbers = #tpu.dot_dimension_numbers<[1], [0], [0], [1], [0, 0, 1, 1], [], []>} : vector<8x8xbf16>, vector<8x4xbf16>, vector<8x4xf32> -> vector<8x4xf32>
    %104 = arith.addf %86, %103 : vector<8x4xf32>
    %105 = vector.extract_strided_slice %4 {offsets = [0, 4], sizes = [8, 4], strides = [1, 1]} : vector<8x10xf32> to vector<8x4xf32>
    %c-1_i32_38 = arith.constant -1 : i32
    %106 = vector.broadcast %c-1_i32_38 : i32 to vector<1x4xi32>
    %107 = arith.addi %21, %106 : vector<1x4xi32>
    %c0_i32_39 = arith.constant 0 : i32
    %108 = vector.broadcast %c0_i32_39 : i32 to vector<1x4xi32>
    %109 = arith.cmpi sge, %107, %108 : vector<1x4xi32>
    %c-1_i32_40 = arith.constant -1 : i32
    %110 = vector.broadcast %c-1_i32_40 : i32 to vector<1x4xi32>
    %111 = arith.addi %21, %110 : vector<1x4xi32>
    %c2_i32_41 = arith.constant 2 : i32
    %112 = vector.broadcast %c2_i32_41 : i32 to vector<1x4xi32>
    %113 = arith.cmpi slt, %111, %112 : vector<1x4xi32>
    %114 = arith.andi %109, %113 : vector<1x4xi1>
    %cst_42 = arith.constant 0.000000e+00 : f32
    %115 = vector.shape_cast %114 : vector<1x4xi1> to vector<1x4xi1>
    %116 = vector.broadcast %115 : vector<1x4xi1> to vector<8x4xi1>
    %117 = vector.broadcast %cst_42 : f32 to vector<8x4xf32>
    %118 = arith.select %116, %105, %117 : vector<8x4xi1>, vector<8x4xf32>
    %c0_43 = arith.constant 0 : index
    %c48 = arith.constant 48 : index
    %119 = vector.load %arg2[%c0_43, %c48] : memref<8x72xbf16, #tpu.memory_space<vmem>>, vector<8x8xbf16>
    %120 = arith.truncf %118 : vector<8x4xf32> to vector<8x4xbf16>
    %cst_44 = arith.constant dense<0.000000e+00> : vector<8x4xf32>
    %121 = tpu.matmul %119, %120, %cst_44 {dimension_numbers = #tpu.dot_dimension_numbers<[1], [0], [0], [1], [0, 0, 1, 1], [], []>} : vector<8x8xbf16>, vector<8x4xbf16>, vector<8x4xf32> -> vector<8x4xf32>
    %122 = arith.addf %104, %121 : vector<8x4xf32>
    %123 = vector.extract_strided_slice %4 {offsets = [0, 5], sizes = [8, 4], strides = [1, 1]} : vector<8x10xf32> to vector<8x4xf32>
    %c0_45 = arith.constant 0 : index
    %c56 = arith.constant 56 : index
    %124 = vector.load %arg2[%c0_45, %c56] : memref<8x72xbf16, #tpu.memory_space<vmem>>, vector<8x8xbf16>
    %125 = arith.truncf %123 : vector<8x4xf32> to vector<8x4xbf16>
    %cst_46 = arith.constant dense<0.000000e+00> : vector<8x4xf32>
    %126 = tpu.matmul %124, %125, %cst_46 {dimension_numbers = #tpu.dot_dimension_numbers<[1], [0], [0], [1], [0, 0, 1, 1], [], []>} : vector<8x8xbf16>, vector<8x4xbf16>, vector<8x4xf32> -> vector<8x4xf32>
    %127 = arith.addf %122, %126 : vector<8x4xf32>
    %128 = vector.extract_strided_slice %4 {offsets = [0, 6], sizes = [8, 4], strides = [1, 1]} : vector<8x10xf32> to vector<8x4xf32>
    %c1_i32_47 = arith.constant 1 : i32
    %129 = vector.broadcast %c1_i32_47 : i32 to vector<1x4xi32>
    %130 = arith.addi %21, %129 : vector<1x4xi32>
    %c0_i32_48 = arith.constant 0 : i32
    %131 = vector.broadcast %c0_i32_48 : i32 to vector<1x4xi32>
    %132 = arith.cmpi sge, %130, %131 : vector<1x4xi32>
    %c1_i32_49 = arith.constant 1 : i32
    %133 = vector.broadcast %c1_i32_49 : i32 to vector<1x4xi32>
    %134 = arith.addi %21, %133 : vector<1x4xi32>
    %c2_i32_50 = arith.constant 2 : i32
    %135 = vector.broadcast %c2_i32_50 : i32 to vector<1x4xi32>
    %136 = arith.cmpi slt, %134, %135 : vector<1x4xi32>
    %137 = arith.andi %132, %136 : vector<1x4xi1>
    %cst_51 = arith.constant 0.000000e+00 : f32
    %138 = vector.shape_cast %137 : vector<1x4xi1> to vector<1x4xi1>
    %139 = vector.broadcast %138 : vector<1x4xi1> to vector<8x4xi1>
    %140 = vector.broadcast %cst_51 : f32 to vector<8x4xf32>
    %141 = arith.select %139, %128, %140 : vector<8x4xi1>, vector<8x4xf32>
    %c0_52 = arith.constant 0 : index
    %c64 = arith.constant 64 : index
    %142 = vector.load %arg2[%c0_52, %c64] : memref<8x72xbf16, #tpu.memory_space<vmem>>, vector<8x8xbf16>
    %143 = arith.truncf %141 : vector<8x4xf32> to vector<8x4xbf16>
    %cst_53 = arith.constant dense<0.000000e+00> : vector<8x4xf32>
    %144 = tpu.matmul %142, %143, %cst_53 {dimension_numbers = #tpu.dot_dimension_numbers<[1], [0], [0], [1], [0, 0, 1, 1], [], []>} : vector<8x8xbf16>, vector<8x4xbf16>, vector<8x4xf32> -> vector<8x4xf32>
    %145 = arith.addf %127, %144 : vector<8x4xf32>
    %c0_54 = arith.constant 0 : index
    %c0_55 = arith.constant 0 : index
    %146 = vector.load %arg3[%c0_54, %c0_55] : memref<8x1xf32, #tpu.memory_space<vmem>>, vector<8x1xf32>
    %147 = vector.broadcast %146 : vector<8x1xf32> to vector<8x4xf32>
    %148 = arith.addf %145, %147 : vector<8x4xf32>
    %cst_56 = arith.constant 0.000000e+00 : f32
    %149 = vector.broadcast %cst_56 : f32 to vector<8x4xf32>
    %150 = arith.maximumf %148, %149 : vector<8x4xf32>
    %151 = arith.truncf %150 : vector<8x4xf32> to vector<8x4xbf16>
    %c0_57 = arith.constant 0 : index
    %c0_58 = arith.constant 0 : index
    %152 = vector.load %arg4[%c0_57, %c0_58] : memref<4x16xbf16, #tpu.memory_space<vmem>>, vector<4x16xbf16>
    %cst_59 = arith.constant dense<0.000000e+00> : vector<8x16xf32>
    %153 = tpu.matmul %151, %152, %cst_59 {dimension_numbers = #tpu.dot_dimension_numbers<[1], [0], [0], [1], [0, 0, 1, 1], [], []>} : vector<8x4xbf16>, vector<4x16xbf16>, vector<8x16xf32> -> vector<8x16xf32>
    %c0_60 = arith.constant 0 : index
    %c0_61 = arith.constant 0 : index
    %c0_62 = arith.constant 0 : index
    %154 = vector.load %arg5[%c0_60, %c0_61, %c0_62] : memref<1x8x16xf32, #tpu.memory_space<vmem>>, vector<1x8x16xf32>
    %155 = vector.shape_cast %154 : vector<1x8x16xf32> to vector<8x16xf32>
    %156 = arith.truncf %155 : vector<8x16xf32> to vector<8x16xbf16>
    %c0_63 = arith.constant 0 : index
    %c0_64 = arith.constant 0 : index
    %157 = vector.load %arg7[%c0_63, %c0_64] : memref<8x1xf32, #tpu.memory_space<vmem>>, vector<8x1xf32>
    %158 = vector.broadcast %157 : vector<8x1xf32> to vector<8x16xf32>
    %159 = arith.addf %153, %158 : vector<8x16xf32>
    %c0_65 = arith.constant 0 : index
    %c0_66 = arith.constant 0 : index
    %160 = vector.load %arg6[%c0_65, %c0_66] : memref<8x8xbf16, #tpu.memory_space<vmem>>, vector<8x8xbf16>
    %cst_67 = arith.constant dense<0.000000e+00> : vector<8x16xf32>
    %161 = tpu.matmul %160, %156, %cst_67 {dimension_numbers = #tpu.dot_dimension_numbers<[1], [0], [0], [1], [0, 0, 1, 1], [], []>} : vector<8x8xbf16>, vector<8x16xbf16>, vector<8x16xf32> -> vector<8x16xf32>
    %162 = arith.addf %159, %161 : vector<8x16xf32>
    %cst_68 = arith.constant dense<0.000000e+00> : vector<8xf32>
    %163 = vector.multi_reduction <add>, %162, %cst_68 [1] : vector<8x16xf32> to vector<8xf32>
    %164 = vector.shape_cast %163 : vector<8xf32> to vector<8x1xf32>
    %cst_69 = arith.constant 1.600000e+01 : f32
    %165 = vector.broadcast %cst_69 : f32 to vector<8x1xf32>
    %166 = arith.divf %164, %165 : vector<8x1xf32>
    %167 = vector.broadcast %166 : vector<8x1xf32> to vector<8x16xf32>
    %168 = arith.subf %162, %167 : vector<8x16xf32>
    %169 = arith.mulf %168, %168 : vector<8x16xf32>
    %cst_70 = arith.constant dense<0.000000e+00> : vector<8xf32>
    %170 = vector.multi_reduction <add>, %169, %cst_70 [1] : vector<8x16xf32> to vector<8xf32>
    %171 = vector.shape_cast %170 : vector<8xf32> to vector<8x1xf32>
    %cst_71 = arith.constant 1.600000e+01 : f32
    %172 = vector.broadcast %cst_71 : f32 to vector<8x1xf32>
    %173 = arith.divf %171, %172 : vector<8x1xf32>
    %174 = vector.broadcast %166 : vector<8x1xf32> to vector<8x16xf32>
    %175 = arith.subf %162, %174 : vector<8x16xf32>
    %cst_72 = arith.constant 9.99999974E-6 : f32
    %176 = vector.broadcast %cst_72 : f32 to vector<8x1xf32>
    %177 = arith.addf %173, %176 : vector<8x1xf32>
    %178 = math.rsqrt %177 : vector<8x1xf32>
    %179 = vector.broadcast %178 : vector<8x1xf32> to vector<8x16xf32>
    %180 = arith.mulf %175, %179 : vector<8x16xf32>
    %c0_73 = arith.constant 0 : index
    %c0_74 = arith.constant 0 : index
    %c0_75 = arith.constant 0 : index
    %c0_76 = arith.constant 0 : index
    %181 = vector.load %arg8[%c0_73, %c0_74, %c0_75, %c0_76] : memref<1x2x8x16xf32, #tpu.memory_space<vmem>>, vector<1x2x8x16xf32>
    %182 = vector.extract_strided_slice %181 {offsets = [0, 0, 0, 0], sizes = [1, 1, 8, 16], strides = [1, 1, 1, 1]} : vector<1x2x8x16xf32> to vector<1x1x8x16xf32>
    %183 = vector.shape_cast %182 : vector<1x1x8x16xf32> to vector<8x16xf32>
    %184 = arith.mulf %183, %180 : vector<8x16xf32>
    %185 = vector.extract_strided_slice %181 {offsets = [0, 1, 0, 0], sizes = [1, 1, 8, 16], strides = [1, 1, 1, 1]} : vector<1x2x8x16xf32> to vector<1x1x8x16xf32>
    %186 = vector.shape_cast %185 : vector<1x1x8x16xf32> to vector<8x16xf32>
    %187 = arith.addf %184, %186 : vector<8x16xf32>
    %188 = arith.truncf %187 : vector<8x16xf32> to vector<8x16xbf16>
    %c0_77 = arith.constant 0 : index
    %c0_78 = arith.constant 0 : index
    %c0_79 = arith.constant 0 : index
    %189 = vector.load %arg9[%c0_77, %c0_78, %c0_79] : memref<1x8x16xbf16, #tpu.memory_space<vmem>>, vector<1x8x16xbf16>
    %190 = vector.shape_cast %189 : vector<1x8x16xbf16> to vector<8x16xbf16>
    %191 = vector.shape_cast %188 : vector<8x16xbf16> to vector<1x8x16xbf16>
    tpu.vector_store %arg9[%c0_77, %c0_78, %c0_79], %191 {strides = array<i32>} : memref<1x8x16xbf16, #tpu.memory_space<vmem>>, vector<1x8x16xbf16>,
    return
  }
  func.func @transform_0(%arg0: i32) -> (i32, i32, i32) {
    %c0_i32 = arith.constant 0 : i32
    %c0_i32_0 = arith.constant 0 : i32
    %c0_i32_1 = arith.constant 0 : i32
    return %arg0, %c0_i32, %c0_i32_0 : i32, i32, i32
  }
  func.func @transform_1(%arg0: i32) -> (i32, i32) {
    %c0_i32 = arith.constant 0 : i32
    %c0_i32_0 = arith.constant 0 : i32
    %c0_i32_1 = arith.constant 0 : i32
    return %c0_i32, %c0_i32_0 : i32, i32
  }
  func.func @transform_2(%arg0: i32) -> (i32, i32) {
    %c0_i32 = arith.constant 0 : i32
    %c0_i32_0 = arith.constant 0 : i32
    %c0_i32_1 = arith.constant 0 : i32
    return %c0_i32, %c0_i32_0 : i32, i32
  }
  func.func @transform_3(%arg0: i32) -> (i32, i32) {
    %c0_i32 = arith.constant 0 : i32
    %c0_i32_0 = arith.constant 0 : i32
    %c0_i32_1 = arith.constant 0 : i32
    return %c0_i32, %c0_i32_0 : i32, i32
  }
  func.func @transform_4(%arg0: i32) -> (i32, i32, i32) {
    %c0_i32 = arith.constant 0 : i32
    %c0_i32_0 = arith.constant 0 : i32
    %c0_i32_1 = arith.constant 0 : i32
    return %arg0, %c0_i32, %c0_i32_0 : i32, i32, i32
  }
  func.func @transform_5(%arg0: i32) -> (i32, i32) {
    %c0_i32 = arith.constant 0 : i32
    %c0_i32_0 = arith.constant 0 : i32
    %c0_i32_1 = arith.constant 0 : i32
    return %c0_i32, %c0_i32_0 : i32, i32
  }
  func.func @transform_6(%arg0: i32) -> (i32, i32) {
    %c0_i32 = arith.constant 0 : i32
    %c0_i32_0 = arith.constant 0 : i32
    %c0_i32_1 = arith.constant 0 : i32
    return %c0_i32, %c0_i32_0 : i32, i32
  }
  func.func @transform_7(%arg0: i32) -> (i32, i32, i32, i32) {
    %c0_i32 = arith.constant 0 : i32
    %c0_i32_0 = arith.constant 0 : i32
    %c0_i32_1 = arith.constant 0 : i32
    %c0_i32_2 = arith.constant 0 : i32
    return %arg0, %c0_i32, %c0_i32_0, %c0_i32_1 : i32, i32, i32, i32
  }
  func.func @transform_8(%arg0: i32) -> (i32, i32, i32) {
    %c0_i32 = arith.constant 0 : i32
    %c0_i32_0 = arith.constant 0 : i32
    %c0_i32_1 = arith.constant 0 : i32
    return %arg0, %c0_i32, %c0_i32_0 : i32, i32, i32
  }
}

module attributes {stable_mosaic.version = 11 : i64} {
  func.func @_level_kernel(%arg0: i32, %arg1: memref<1x4x64xbf16, #tpu.memory_space<vmem>>, %arg2: memref<4x36xbf16, #tpu.memory_space<vmem>>, %arg3: memref<4x1xf32, #tpu.memory_space<vmem>>, %arg4: memref<64x256xbf16, #tpu.memory_space<vmem>>, %arg5: memref<1x4x256xf32, #tpu.memory_space<vmem>>, %arg6: memref<4x4xbf16, #tpu.memory_space<vmem>>, %arg7: memref<4x1xf32, #tpu.memory_space<vmem>>, %arg8: memref<1x2x4x256xf32, #tpu.memory_space<vmem>>, %arg9: memref<1x4x256xbf16, #tpu.memory_space<vmem>>) attributes {dimension_semantics = [#tpu.dimension_semantics<parallel>], iteration_bounds = array<i64: 2>, scalar_prefetch = 0 : i64, scratch_operands = 0 : i64, tpu.core_type = #tpu.core_type<tc>, window_params = [{transform_indices = @transform_0, window_bounds = array<i64: 1, 4, 64>}, {pipeline_mode = #tpu.pipeline_mode<synchronous>, transform_indices = @transform_1, window_bounds = array<i64: 4, 36>}, {pipeline_mode = #tpu.pipeline_mode<synchronous>, transform_indices = @transform_2, window_bounds = array<i64: 4, 1>}, {pipeline_mode = #tpu.pipeline_mode<synchronous>, transform_indices = @transform_3, window_bounds = array<i64: 64, 256>}, {transform_indices = @transform_4, window_bounds = array<i64: 1, 4, 256>}, {pipeline_mode = #tpu.pipeline_mode<synchronous>, transform_indices = @transform_5, window_bounds = array<i64: 4, 4>}, {pipeline_mode = #tpu.pipeline_mode<synchronous>, transform_indices = @transform_6, window_bounds = array<i64: 4, 1>}, {transform_indices = @transform_7, window_bounds = array<i64: 1, 2, 4, 256>}, {transform_indices = @transform_8, window_bounds = array<i64: 1, 4, 256>}]} {
    %c0 = arith.constant 0 : index
    %c0_0 = arith.constant 0 : index
    %c0_1 = arith.constant 0 : index
    %0 = vector.load %arg1[%c0, %c0_0, %c0_1] : memref<1x4x64xbf16, #tpu.memory_space<vmem>>, vector<1x4x64xbf16>
    %1 = vector.shape_cast %0 : vector<1x4x64xbf16> to vector<4x64xbf16>
    %2 = arith.extf %1 : vector<4x64xbf16> to vector<4x64xf32>
    %cst = arith.constant 0.000000e+00 : f32
    %3 = vector.broadcast %cst : f32 to vector<4x9xf32>
    %4 = tpu.concatenate %3, %2, %3 in 1 : vector<4x9xf32>, vector<4x64xf32>, vector<4x9xf32> -> vector<4x82xf32>
    %5 = tpu.iota {dimensions = array<i32: 1>} : vector<1x64xi32>
    %c8_i32 = arith.constant 8 : i32
    %c0_i32 = arith.constant 0 : i32
    %6 = arith.cmpi eq, %c8_i32, %c0_i32 : i32
    %c1_i32 = arith.constant 1 : i32
    %7 = arith.select %6, %c1_i32, %c8_i32 : i32
    %8 = vector.broadcast %7 : i32 to vector<1x64xi32>
    %9 = arith.remsi %5, %8 : vector<1x64xi32>
    %c0_i32_2 = arith.constant 0 : i32
    %10 = vector.broadcast %c0_i32_2 : i32 to vector<1x64xi32>
    %11 = arith.cmpi ne, %9, %10 : vector<1x64xi32>
    %c0_i32_3 = arith.constant 0 : i32
    %12 = vector.broadcast %c0_i32_3 : i32 to vector<1x64xi32>
    %13 = arith.cmpi slt, %9, %12 : vector<1x64xi32>
    %c0_i32_4 = arith.constant 0 : i32
    %14 = arith.cmpi slt, %7, %c0_i32_4 : i32
    %15 = vector.broadcast %14 : i1 to vector<1x64xi1>
    %16 = vector.broadcast %15 : vector<1x64xi1> to vector<1x64xi1>
    %17 = arith.xori %13, %16 : vector<1x64xi1>
    %18 = arith.andi %17, %11 : vector<1x64xi1>
    %19 = vector.broadcast %7 : i32 to vector<1x64xi32>
    %20 = arith.addi %9, %19 : vector<1x64xi32>
    %21 = arith.select %18, %20, %9 : vector<1x64xi1>, vector<1x64xi32>
    %cst_5 = arith.constant 0.000000e+00 : f32
    %22 = vector.broadcast %cst_5 : f32 to vector<4x64xf32>
    %23 = vector.extract_strided_slice %4 {offsets = [0, 0], sizes = [4, 64], strides = [1, 1]} : vector<4x82xf32> to vector<4x64xf32>
    %c-1_i32 = arith.constant -1 : i32
    %24 = vector.broadcast %c-1_i32 : i32 to vector<1x64xi32>
    %25 = arith.addi %21, %24 : vector<1x64xi32>
    %c0_i32_6 = arith.constant 0 : i32
    %26 = vector.broadcast %c0_i32_6 : i32 to vector<1x64xi32>
    %27 = arith.cmpi sge, %25, %26 : vector<1x64xi32>
    %c-1_i32_7 = arith.constant -1 : i32
    %28 = vector.broadcast %c-1_i32_7 : i32 to vector<1x64xi32>
    %29 = arith.addi %21, %28 : vector<1x64xi32>
    %c8_i32_8 = arith.constant 8 : i32
    %30 = vector.broadcast %c8_i32_8 : i32 to vector<1x64xi32>
    %31 = arith.cmpi slt, %29, %30 : vector<1x64xi32>
    %32 = arith.andi %27, %31 : vector<1x64xi1>
    %cst_9 = arith.constant 0.000000e+00 : f32
    %33 = vector.shape_cast %32 : vector<1x64xi1> to vector<1x64xi1>
    %34 = vector.broadcast %33 : vector<1x64xi1> to vector<4x64xi1>
    %35 = vector.broadcast %cst_9 : f32 to vector<4x64xf32>
    %36 = arith.select %34, %23, %35 : vector<4x64xi1>, vector<4x64xf32>
    %c0_10 = arith.constant 0 : index
    %c0_11 = arith.constant 0 : index
    %37 = vector.load %arg2[%c0_10, %c0_11] : memref<4x36xbf16, #tpu.memory_space<vmem>>, vector<4x4xbf16>
    %38 = arith.truncf %36 : vector<4x64xf32> to vector<4x64xbf16>
    %cst_12 = arith.constant dense<0.000000e+00> : vector<4x64xf32>
    %39 = tpu.matmul %37, %38, %cst_12 {dimension_numbers = #tpu.dot_dimension_numbers<[1], [0], [0], [1], [0, 0, 1, 1], [], []>} : vector<4x4xbf16>, vector<4x64xbf16>, vector<4x64xf32> -> vector<4x64xf32>
    %40 = arith.addf %22, %39 : vector<4x64xf32>
    %41 = vector.extract_strided_slice %4 {offsets = [0, 1], sizes = [4, 64], strides = [1, 1]} : vector<4x82xf32> to vector<4x64xf32>
    %c0_13 = arith.constant 0 : index
    %c4 = arith.constant 4 : index
    %42 = vector.load %arg2[%c0_13, %c4] : memref<4x36xbf16, #tpu.memory_space<vmem>>, vector<4x4xbf16>
    %43 = arith.truncf %41 : vector<4x64xf32> to vector<4x64xbf16>
    %cst_14 = arith.constant dense<0.000000e+00> : vector<4x64xf32>
    %44 = tpu.matmul %42, %43, %cst_14 {dimension_numbers = #tpu.dot_dimension_numbers<[1], [0], [0], [1], [0, 0, 1, 1], [], []>} : vector<4x4xbf16>, vector<4x64xbf16>, vector<4x64xf32> -> vector<4x64xf32>
    %45 = arith.addf %40, %44 : vector<4x64xf32>
    %46 = vector.extract_strided_slice %4 {offsets = [0, 2], sizes = [4, 64], strides = [1, 1]} : vector<4x82xf32> to vector<4x64xf32>
    %c1_i32_15 = arith.constant 1 : i32
    %47 = vector.broadcast %c1_i32_15 : i32 to vector<1x64xi32>
    %48 = arith.addi %21, %47 : vector<1x64xi32>
    %c0_i32_16 = arith.constant 0 : i32
    %49 = vector.broadcast %c0_i32_16 : i32 to vector<1x64xi32>
    %50 = arith.cmpi sge, %48, %49 : vector<1x64xi32>
    %c1_i32_17 = arith.constant 1 : i32
    %51 = vector.broadcast %c1_i32_17 : i32 to vector<1x64xi32>
    %52 = arith.addi %21, %51 : vector<1x64xi32>
    %c8_i32_18 = arith.constant 8 : i32
    %53 = vector.broadcast %c8_i32_18 : i32 to vector<1x64xi32>
    %54 = arith.cmpi slt, %52, %53 : vector<1x64xi32>
    %55 = arith.andi %50, %54 : vector<1x64xi1>
    %cst_19 = arith.constant 0.000000e+00 : f32
    %56 = vector.shape_cast %55 : vector<1x64xi1> to vector<1x64xi1>
    %57 = vector.broadcast %56 : vector<1x64xi1> to vector<4x64xi1>
    %58 = vector.broadcast %cst_19 : f32 to vector<4x64xf32>
    %59 = arith.select %57, %46, %58 : vector<4x64xi1>, vector<4x64xf32>
    %c0_20 = arith.constant 0 : index
    %c8 = arith.constant 8 : index
    %60 = vector.load %arg2[%c0_20, %c8] : memref<4x36xbf16, #tpu.memory_space<vmem>>, vector<4x4xbf16>
    %61 = arith.truncf %59 : vector<4x64xf32> to vector<4x64xbf16>
    %cst_21 = arith.constant dense<0.000000e+00> : vector<4x64xf32>
    %62 = tpu.matmul %60, %61, %cst_21 {dimension_numbers = #tpu.dot_dimension_numbers<[1], [0], [0], [1], [0, 0, 1, 1], [], []>} : vector<4x4xbf16>, vector<4x64xbf16>, vector<4x64xf32> -> vector<4x64xf32>
    %63 = arith.addf %45, %62 : vector<4x64xf32>
    %64 = vector.extract_strided_slice %4 {offsets = [0, 8], sizes = [4, 64], strides = [1, 1]} : vector<4x82xf32> to vector<4x64xf32>
    %c-1_i32_22 = arith.constant -1 : i32
    %65 = vector.broadcast %c-1_i32_22 : i32 to vector<1x64xi32>
    %66 = arith.addi %21, %65 : vector<1x64xi32>
    %c0_i32_23 = arith.constant 0 : i32
    %67 = vector.broadcast %c0_i32_23 : i32 to vector<1x64xi32>
    %68 = arith.cmpi sge, %66, %67 : vector<1x64xi32>
    %c-1_i32_24 = arith.constant -1 : i32
    %69 = vector.broadcast %c-1_i32_24 : i32 to vector<1x64xi32>
    %70 = arith.addi %21, %69 : vector<1x64xi32>
    %c8_i32_25 = arith.constant 8 : i32
    %71 = vector.broadcast %c8_i32_25 : i32 to vector<1x64xi32>
    %72 = arith.cmpi slt, %70, %71 : vector<1x64xi32>
    %73 = arith.andi %68, %72 : vector<1x64xi1>
    %cst_26 = arith.constant 0.000000e+00 : f32
    %74 = vector.shape_cast %73 : vector<1x64xi1> to vector<1x64xi1>
    %75 = vector.broadcast %74 : vector<1x64xi1> to vector<4x64xi1>
    %76 = vector.broadcast %cst_26 : f32 to vector<4x64xf32>
    %77 = arith.select %75, %64, %76 : vector<4x64xi1>, vector<4x64xf32>
    %c0_27 = arith.constant 0 : index
    %c12 = arith.constant 12 : index
    %78 = vector.load %arg2[%c0_27, %c12] : memref<4x36xbf16, #tpu.memory_space<vmem>>, vector<4x4xbf16>
    %79 = arith.truncf %77 : vector<4x64xf32> to vector<4x64xbf16>
    %cst_28 = arith.constant dense<0.000000e+00> : vector<4x64xf32>
    %80 = tpu.matmul %78, %79, %cst_28 {dimension_numbers = #tpu.dot_dimension_numbers<[1], [0], [0], [1], [0, 0, 1, 1], [], []>} : vector<4x4xbf16>, vector<4x64xbf16>, vector<4x64xf32> -> vector<4x64xf32>
    %81 = arith.addf %63, %80 : vector<4x64xf32>
    %82 = vector.extract_strided_slice %4 {offsets = [0, 9], sizes = [4, 64], strides = [1, 1]} : vector<4x82xf32> to vector<4x64xf32>
    %c0_29 = arith.constant 0 : index
    %c16 = arith.constant 16 : index
    %83 = vector.load %arg2[%c0_29, %c16] : memref<4x36xbf16, #tpu.memory_space<vmem>>, vector<4x4xbf16>
    %84 = arith.truncf %82 : vector<4x64xf32> to vector<4x64xbf16>
    %cst_30 = arith.constant dense<0.000000e+00> : vector<4x64xf32>
    %85 = tpu.matmul %83, %84, %cst_30 {dimension_numbers = #tpu.dot_dimension_numbers<[1], [0], [0], [1], [0, 0, 1, 1], [], []>} : vector<4x4xbf16>, vector<4x64xbf16>, vector<4x64xf32> -> vector<4x64xf32>
    %86 = arith.addf %81, %85 : vector<4x64xf32>
    %87 = vector.extract_strided_slice %4 {offsets = [0, 10], sizes = [4, 64], strides = [1, 1]} : vector<4x82xf32> to vector<4x64xf32>
    %c1_i32_31 = arith.constant 1 : i32
    %88 = vector.broadcast %c1_i32_31 : i32 to vector<1x64xi32>
    %89 = arith.addi %21, %88 : vector<1x64xi32>
    %c0_i32_32 = arith.constant 0 : i32
    %90 = vector.broadcast %c0_i32_32 : i32 to vector<1x64xi32>
    %91 = arith.cmpi sge, %89, %90 : vector<1x64xi32>
    %c1_i32_33 = arith.constant 1 : i32
    %92 = vector.broadcast %c1_i32_33 : i32 to vector<1x64xi32>
    %93 = arith.addi %21, %92 : vector<1x64xi32>
    %c8_i32_34 = arith.constant 8 : i32
    %94 = vector.broadcast %c8_i32_34 : i32 to vector<1x64xi32>
    %95 = arith.cmpi slt, %93, %94 : vector<1x64xi32>
    %96 = arith.andi %91, %95 : vector<1x64xi1>
    %cst_35 = arith.constant 0.000000e+00 : f32
    %97 = vector.shape_cast %96 : vector<1x64xi1> to vector<1x64xi1>
    %98 = vector.broadcast %97 : vector<1x64xi1> to vector<4x64xi1>
    %99 = vector.broadcast %cst_35 : f32 to vector<4x64xf32>
    %100 = arith.select %98, %87, %99 : vector<4x64xi1>, vector<4x64xf32>
    %c0_36 = arith.constant 0 : index
    %c20 = arith.constant 20 : index
    %101 = vector.load %arg2[%c0_36, %c20] : memref<4x36xbf16, #tpu.memory_space<vmem>>, vector<4x4xbf16>
    %102 = arith.truncf %100 : vector<4x64xf32> to vector<4x64xbf16>
    %cst_37 = arith.constant dense<0.000000e+00> : vector<4x64xf32>
    %103 = tpu.matmul %101, %102, %cst_37 {dimension_numbers = #tpu.dot_dimension_numbers<[1], [0], [0], [1], [0, 0, 1, 1], [], []>} : vector<4x4xbf16>, vector<4x64xbf16>, vector<4x64xf32> -> vector<4x64xf32>
    %104 = arith.addf %86, %103 : vector<4x64xf32>
    %105 = vector.extract_strided_slice %4 {offsets = [0, 16], sizes = [4, 64], strides = [1, 1]} : vector<4x82xf32> to vector<4x64xf32>
    %c-1_i32_38 = arith.constant -1 : i32
    %106 = vector.broadcast %c-1_i32_38 : i32 to vector<1x64xi32>
    %107 = arith.addi %21, %106 : vector<1x64xi32>
    %c0_i32_39 = arith.constant 0 : i32
    %108 = vector.broadcast %c0_i32_39 : i32 to vector<1x64xi32>
    %109 = arith.cmpi sge, %107, %108 : vector<1x64xi32>
    %c-1_i32_40 = arith.constant -1 : i32
    %110 = vector.broadcast %c-1_i32_40 : i32 to vector<1x64xi32>
    %111 = arith.addi %21, %110 : vector<1x64xi32>
    %c8_i32_41 = arith.constant 8 : i32
    %112 = vector.broadcast %c8_i32_41 : i32 to vector<1x64xi32>
    %113 = arith.cmpi slt, %111, %112 : vector<1x64xi32>
    %114 = arith.andi %109, %113 : vector<1x64xi1>
    %cst_42 = arith.constant 0.000000e+00 : f32
    %115 = vector.shape_cast %114 : vector<1x64xi1> to vector<1x64xi1>
    %116 = vector.broadcast %115 : vector<1x64xi1> to vector<4x64xi1>
    %117 = vector.broadcast %cst_42 : f32 to vector<4x64xf32>
    %118 = arith.select %116, %105, %117 : vector<4x64xi1>, vector<4x64xf32>
    %c0_43 = arith.constant 0 : index
    %c24 = arith.constant 24 : index
    %119 = vector.load %arg2[%c0_43, %c24] : memref<4x36xbf16, #tpu.memory_space<vmem>>, vector<4x4xbf16>
    %120 = arith.truncf %118 : vector<4x64xf32> to vector<4x64xbf16>
    %cst_44 = arith.constant dense<0.000000e+00> : vector<4x64xf32>
    %121 = tpu.matmul %119, %120, %cst_44 {dimension_numbers = #tpu.dot_dimension_numbers<[1], [0], [0], [1], [0, 0, 1, 1], [], []>} : vector<4x4xbf16>, vector<4x64xbf16>, vector<4x64xf32> -> vector<4x64xf32>
    %122 = arith.addf %104, %121 : vector<4x64xf32>
    %123 = vector.extract_strided_slice %4 {offsets = [0, 17], sizes = [4, 64], strides = [1, 1]} : vector<4x82xf32> to vector<4x64xf32>
    %c0_45 = arith.constant 0 : index
    %c28 = arith.constant 28 : index
    %124 = vector.load %arg2[%c0_45, %c28] : memref<4x36xbf16, #tpu.memory_space<vmem>>, vector<4x4xbf16>
    %125 = arith.truncf %123 : vector<4x64xf32> to vector<4x64xbf16>
    %cst_46 = arith.constant dense<0.000000e+00> : vector<4x64xf32>
    %126 = tpu.matmul %124, %125, %cst_46 {dimension_numbers = #tpu.dot_dimension_numbers<[1], [0], [0], [1], [0, 0, 1, 1], [], []>} : vector<4x4xbf16>, vector<4x64xbf16>, vector<4x64xf32> -> vector<4x64xf32>
    %127 = arith.addf %122, %126 : vector<4x64xf32>
    %128 = vector.extract_strided_slice %4 {offsets = [0, 18], sizes = [4, 64], strides = [1, 1]} : vector<4x82xf32> to vector<4x64xf32>
    %c1_i32_47 = arith.constant 1 : i32
    %129 = vector.broadcast %c1_i32_47 : i32 to vector<1x64xi32>
    %130 = arith.addi %21, %129 : vector<1x64xi32>
    %c0_i32_48 = arith.constant 0 : i32
    %131 = vector.broadcast %c0_i32_48 : i32 to vector<1x64xi32>
    %132 = arith.cmpi sge, %130, %131 : vector<1x64xi32>
    %c1_i32_49 = arith.constant 1 : i32
    %133 = vector.broadcast %c1_i32_49 : i32 to vector<1x64xi32>
    %134 = arith.addi %21, %133 : vector<1x64xi32>
    %c8_i32_50 = arith.constant 8 : i32
    %135 = vector.broadcast %c8_i32_50 : i32 to vector<1x64xi32>
    %136 = arith.cmpi slt, %134, %135 : vector<1x64xi32>
    %137 = arith.andi %132, %136 : vector<1x64xi1>
    %cst_51 = arith.constant 0.000000e+00 : f32
    %138 = vector.shape_cast %137 : vector<1x64xi1> to vector<1x64xi1>
    %139 = vector.broadcast %138 : vector<1x64xi1> to vector<4x64xi1>
    %140 = vector.broadcast %cst_51 : f32 to vector<4x64xf32>
    %141 = arith.select %139, %128, %140 : vector<4x64xi1>, vector<4x64xf32>
    %c0_52 = arith.constant 0 : index
    %c32 = arith.constant 32 : index
    %142 = vector.load %arg2[%c0_52, %c32] : memref<4x36xbf16, #tpu.memory_space<vmem>>, vector<4x4xbf16>
    %143 = arith.truncf %141 : vector<4x64xf32> to vector<4x64xbf16>
    %cst_53 = arith.constant dense<0.000000e+00> : vector<4x64xf32>
    %144 = tpu.matmul %142, %143, %cst_53 {dimension_numbers = #tpu.dot_dimension_numbers<[1], [0], [0], [1], [0, 0, 1, 1], [], []>} : vector<4x4xbf16>, vector<4x64xbf16>, vector<4x64xf32> -> vector<4x64xf32>
    %145 = arith.addf %127, %144 : vector<4x64xf32>
    %c0_54 = arith.constant 0 : index
    %c0_55 = arith.constant 0 : index
    %146 = vector.load %arg3[%c0_54, %c0_55] : memref<4x1xf32, #tpu.memory_space<vmem>>, vector<4x1xf32>
    %147 = vector.broadcast %146 : vector<4x1xf32> to vector<4x64xf32>
    %148 = arith.addf %145, %147 : vector<4x64xf32>
    %cst_56 = arith.constant 0.000000e+00 : f32
    %149 = vector.broadcast %cst_56 : f32 to vector<4x64xf32>
    %150 = arith.maximumf %148, %149 : vector<4x64xf32>
    %151 = arith.truncf %150 : vector<4x64xf32> to vector<4x64xbf16>
    %c0_57 = arith.constant 0 : index
    %c0_58 = arith.constant 0 : index
    %152 = vector.load %arg4[%c0_57, %c0_58] : memref<64x256xbf16, #tpu.memory_space<vmem>>, vector<64x256xbf16>
    %cst_59 = arith.constant dense<0.000000e+00> : vector<4x256xf32>
    %153 = tpu.matmul %151, %152, %cst_59 {dimension_numbers = #tpu.dot_dimension_numbers<[1], [0], [0], [1], [0, 0, 1, 1], [], []>} : vector<4x64xbf16>, vector<64x256xbf16>, vector<4x256xf32> -> vector<4x256xf32>
    %c0_60 = arith.constant 0 : index
    %c0_61 = arith.constant 0 : index
    %c0_62 = arith.constant 0 : index
    %154 = vector.load %arg5[%c0_60, %c0_61, %c0_62] : memref<1x4x256xf32, #tpu.memory_space<vmem>>, vector<1x4x256xf32>
    %155 = vector.shape_cast %154 : vector<1x4x256xf32> to vector<4x256xf32>
    %156 = arith.truncf %155 : vector<4x256xf32> to vector<4x256xbf16>
    %c0_63 = arith.constant 0 : index
    %c0_64 = arith.constant 0 : index
    %157 = vector.load %arg7[%c0_63, %c0_64] : memref<4x1xf32, #tpu.memory_space<vmem>>, vector<4x1xf32>
    %158 = vector.broadcast %157 : vector<4x1xf32> to vector<4x256xf32>
    %159 = arith.addf %153, %158 : vector<4x256xf32>
    %c0_65 = arith.constant 0 : index
    %c0_66 = arith.constant 0 : index
    %160 = vector.load %arg6[%c0_65, %c0_66] : memref<4x4xbf16, #tpu.memory_space<vmem>>, vector<4x4xbf16>
    %cst_67 = arith.constant dense<0.000000e+00> : vector<4x256xf32>
    %161 = tpu.matmul %160, %156, %cst_67 {dimension_numbers = #tpu.dot_dimension_numbers<[1], [0], [0], [1], [0, 0, 1, 1], [], []>} : vector<4x4xbf16>, vector<4x256xbf16>, vector<4x256xf32> -> vector<4x256xf32>
    %162 = arith.addf %159, %161 : vector<4x256xf32>
    %cst_68 = arith.constant dense<0.000000e+00> : vector<4xf32>
    %163 = vector.multi_reduction <add>, %162, %cst_68 [1] : vector<4x256xf32> to vector<4xf32>
    %164 = vector.shape_cast %163 : vector<4xf32> to vector<4x1xf32>
    %cst_69 = arith.constant 2.560000e+02 : f32
    %165 = vector.broadcast %cst_69 : f32 to vector<4x1xf32>
    %166 = arith.divf %164, %165 : vector<4x1xf32>
    %167 = vector.broadcast %166 : vector<4x1xf32> to vector<4x256xf32>
    %168 = arith.subf %162, %167 : vector<4x256xf32>
    %169 = arith.mulf %168, %168 : vector<4x256xf32>
    %cst_70 = arith.constant dense<0.000000e+00> : vector<4xf32>
    %170 = vector.multi_reduction <add>, %169, %cst_70 [1] : vector<4x256xf32> to vector<4xf32>
    %171 = vector.shape_cast %170 : vector<4xf32> to vector<4x1xf32>
    %cst_71 = arith.constant 2.560000e+02 : f32
    %172 = vector.broadcast %cst_71 : f32 to vector<4x1xf32>
    %173 = arith.divf %171, %172 : vector<4x1xf32>
    %174 = vector.broadcast %166 : vector<4x1xf32> to vector<4x256xf32>
    %175 = arith.subf %162, %174 : vector<4x256xf32>
    %cst_72 = arith.constant 9.99999974E-6 : f32
    %176 = vector.broadcast %cst_72 : f32 to vector<4x1xf32>
    %177 = arith.addf %173, %176 : vector<4x1xf32>
    %178 = math.rsqrt %177 : vector<4x1xf32>
    %179 = vector.broadcast %178 : vector<4x1xf32> to vector<4x256xf32>
    %180 = arith.mulf %175, %179 : vector<4x256xf32>
    %c0_73 = arith.constant 0 : index
    %c0_74 = arith.constant 0 : index
    %c0_75 = arith.constant 0 : index
    %c0_76 = arith.constant 0 : index
    %181 = vector.load %arg8[%c0_73, %c0_74, %c0_75, %c0_76] : memref<1x2x4x256xf32, #tpu.memory_space<vmem>>, vector<1x2x4x256xf32>
    %182 = vector.extract_strided_slice %181 {offsets = [0, 0, 0, 0], sizes = [1, 1, 4, 256], strides = [1, 1, 1, 1]} : vector<1x2x4x256xf32> to vector<1x1x4x256xf32>
    %183 = vector.shape_cast %182 : vector<1x1x4x256xf32> to vector<4x256xf32>
    %184 = arith.mulf %183, %180 : vector<4x256xf32>
    %185 = vector.extract_strided_slice %181 {offsets = [0, 1, 0, 0], sizes = [1, 1, 4, 256], strides = [1, 1, 1, 1]} : vector<1x2x4x256xf32> to vector<1x1x4x256xf32>
    %186 = vector.shape_cast %185 : vector<1x1x4x256xf32> to vector<4x256xf32>
    %187 = arith.addf %184, %186 : vector<4x256xf32>
    %188 = arith.truncf %187 : vector<4x256xf32> to vector<4x256xbf16>
    %c0_77 = arith.constant 0 : index
    %c0_78 = arith.constant 0 : index
    %c0_79 = arith.constant 0 : index
    %189 = vector.load %arg9[%c0_77, %c0_78, %c0_79] : memref<1x4x256xbf16, #tpu.memory_space<vmem>>, vector<1x4x256xbf16>
    %190 = vector.shape_cast %189 : vector<1x4x256xbf16> to vector<4x256xbf16>
    %191 = vector.shape_cast %188 : vector<4x256xbf16> to vector<1x4x256xbf16>
    tpu.vector_store %arg9[%c0_77, %c0_78, %c0_79], %191 {strides = array<i32>} : memref<1x4x256xbf16, #tpu.memory_space<vmem>>, vector<1x4x256xbf16>,
    return
  }
  func.func @transform_0(%arg0: i32) -> (i32, i32, i32) {
    %c0_i32 = arith.constant 0 : i32
    %c0_i32_0 = arith.constant 0 : i32
    %c0_i32_1 = arith.constant 0 : i32
    return %arg0, %c0_i32, %c0_i32_0 : i32, i32, i32
  }
  func.func @transform_1(%arg0: i32) -> (i32, i32) {
    %c0_i32 = arith.constant 0 : i32
    %c0_i32_0 = arith.constant 0 : i32
    %c0_i32_1 = arith.constant 0 : i32
    return %c0_i32, %c0_i32_0 : i32, i32
  }
  func.func @transform_2(%arg0: i32) -> (i32, i32) {
    %c0_i32 = arith.constant 0 : i32
    %c0_i32_0 = arith.constant 0 : i32
    %c0_i32_1 = arith.constant 0 : i32
    return %c0_i32, %c0_i32_0 : i32, i32
  }
  func.func @transform_3(%arg0: i32) -> (i32, i32) {
    %c0_i32 = arith.constant 0 : i32
    %c0_i32_0 = arith.constant 0 : i32
    %c0_i32_1 = arith.constant 0 : i32
    return %c0_i32, %c0_i32_0 : i32, i32
  }
  func.func @transform_4(%arg0: i32) -> (i32, i32, i32) {
    %c0_i32 = arith.constant 0 : i32
    %c0_i32_0 = arith.constant 0 : i32
    %c0_i32_1 = arith.constant 0 : i32
    return %arg0, %c0_i32, %c0_i32_0 : i32, i32, i32
  }
  func.func @transform_5(%arg0: i32) -> (i32, i32) {
    %c0_i32 = arith.constant 0 : i32
    %c0_i32_0 = arith.constant 0 : i32
    %c0_i32_1 = arith.constant 0 : i32
    return %c0_i32, %c0_i32_0 : i32, i32
  }
  func.func @transform_6(%arg0: i32) -> (i32, i32) {
    %c0_i32 = arith.constant 0 : i32
    %c0_i32_0 = arith.constant 0 : i32
    %c0_i32_1 = arith.constant 0 : i32
    return %c0_i32, %c0_i32_0 : i32, i32
  }
  func.func @transform_7(%arg0: i32) -> (i32, i32, i32, i32) {
    %c0_i32 = arith.constant 0 : i32
    %c0_i32_0 = arith.constant 0 : i32
    %c0_i32_1 = arith.constant 0 : i32
    %c0_i32_2 = arith.constant 0 : i32
    return %arg0, %c0_i32, %c0_i32_0, %c0_i32_1 : i32, i32, i32, i32
  }
  func.func @transform_8(%arg0: i32) -> (i32, i32, i32) {
    %c0_i32 = arith.constant 0 : i32
    %c0_i32_0 = arith.constant 0 : i32
    %c0_i32_1 = arith.constant 0 : i32
    return %arg0, %c0_i32, %c0_i32_0 : i32, i32, i32
  }
}

module attributes {stable_mosaic.version = 11 : i64} {
  func.func @_level_kernel(%arg0: i32, %arg1: memref<1x8x16xbf16, #tpu.memory_space<vmem>>, %arg2: memref<4x72xbf16, #tpu.memory_space<vmem>>, %arg3: memref<4x1xf32, #tpu.memory_space<vmem>>, %arg4: memref<16x64xbf16, #tpu.memory_space<vmem>>, %arg5: memref<1x4x64xf32, #tpu.memory_space<vmem>>, %arg6: memref<4x4xbf16, #tpu.memory_space<vmem>>, %arg7: memref<4x1xf32, #tpu.memory_space<vmem>>, %arg8: memref<1x2x4x64xf32, #tpu.memory_space<vmem>>, %arg9: memref<1x4x64xbf16, #tpu.memory_space<vmem>>) attributes {dimension_semantics = [#tpu.dimension_semantics<parallel>], iteration_bounds = array<i64: 2>, scalar_prefetch = 0 : i64, scratch_operands = 0 : i64, tpu.core_type = #tpu.core_type<tc>, window_params = [{transform_indices = @transform_0, window_bounds = array<i64: 1, 8, 16>}, {pipeline_mode = #tpu.pipeline_mode<synchronous>, transform_indices = @transform_1, window_bounds = array<i64: 4, 72>}, {pipeline_mode = #tpu.pipeline_mode<synchronous>, transform_indices = @transform_2, window_bounds = array<i64: 4, 1>}, {pipeline_mode = #tpu.pipeline_mode<synchronous>, transform_indices = @transform_3, window_bounds = array<i64: 16, 64>}, {transform_indices = @transform_4, window_bounds = array<i64: 1, 4, 64>}, {pipeline_mode = #tpu.pipeline_mode<synchronous>, transform_indices = @transform_5, window_bounds = array<i64: 4, 4>}, {pipeline_mode = #tpu.pipeline_mode<synchronous>, transform_indices = @transform_6, window_bounds = array<i64: 4, 1>}, {transform_indices = @transform_7, window_bounds = array<i64: 1, 2, 4, 64>}, {transform_indices = @transform_8, window_bounds = array<i64: 1, 4, 64>}]} {
    %c0 = arith.constant 0 : index
    %c0_0 = arith.constant 0 : index
    %c0_1 = arith.constant 0 : index
    %0 = vector.load %arg1[%c0, %c0_0, %c0_1] : memref<1x8x16xbf16, #tpu.memory_space<vmem>>, vector<1x8x16xbf16>
    %1 = vector.shape_cast %0 : vector<1x8x16xbf16> to vector<8x16xbf16>
    %2 = arith.extf %1 : vector<8x16xbf16> to vector<8x16xf32>
    %cst = arith.constant 0.000000e+00 : f32
    %3 = vector.broadcast %cst : f32 to vector<8x5xf32>
    %4 = tpu.concatenate %3, %2, %3 in 1 : vector<8x5xf32>, vector<8x16xf32>, vector<8x5xf32> -> vector<8x26xf32>
    %5 = tpu.iota {dimensions = array<i32: 1>} : vector<1x16xi32>
    %c4_i32 = arith.constant 4 : i32
    %c0_i32 = arith.constant 0 : i32
    %6 = arith.cmpi eq, %c4_i32, %c0_i32 : i32
    %c1_i32 = arith.constant 1 : i32
    %7 = arith.select %6, %c1_i32, %c4_i32 : i32
    %8 = vector.broadcast %7 : i32 to vector<1x16xi32>
    %9 = arith.remsi %5, %8 : vector<1x16xi32>
    %c0_i32_2 = arith.constant 0 : i32
    %10 = vector.broadcast %c0_i32_2 : i32 to vector<1x16xi32>
    %11 = arith.cmpi ne, %9, %10 : vector<1x16xi32>
    %c0_i32_3 = arith.constant 0 : i32
    %12 = vector.broadcast %c0_i32_3 : i32 to vector<1x16xi32>
    %13 = arith.cmpi slt, %9, %12 : vector<1x16xi32>
    %c0_i32_4 = arith.constant 0 : i32
    %14 = arith.cmpi slt, %7, %c0_i32_4 : i32
    %15 = vector.broadcast %14 : i1 to vector<1x16xi1>
    %16 = vector.broadcast %15 : vector<1x16xi1> to vector<1x16xi1>
    %17 = arith.xori %13, %16 : vector<1x16xi1>
    %18 = arith.andi %17, %11 : vector<1x16xi1>
    %19 = vector.broadcast %7 : i32 to vector<1x16xi32>
    %20 = arith.addi %9, %19 : vector<1x16xi32>
    %21 = arith.select %18, %20, %9 : vector<1x16xi1>, vector<1x16xi32>
    %cst_5 = arith.constant 0.000000e+00 : f32
    %22 = vector.broadcast %cst_5 : f32 to vector<4x16xf32>
    %23 = vector.extract_strided_slice %4 {offsets = [0, 0], sizes = [8, 16], strides = [1, 1]} : vector<8x26xf32> to vector<8x16xf32>
    %c-1_i32 = arith.constant -1 : i32
    %24 = vector.broadcast %c-1_i32 : i32 to vector<1x16xi32>
    %25 = arith.addi %21, %24 : vector<1x16xi32>
    %c0_i32_6 = arith.constant 0 : i32
    %26 = vector.broadcast %c0_i32_6 : i32 to vector<1x16xi32>
    %27 = arith.cmpi sge, %25, %26 : vector<1x16xi32>
    %c-1_i32_7 = arith.constant -1 : i32
    %28 = vector.broadcast %c-1_i32_7 : i32 to vector<1x16xi32>
    %29 = arith.addi %21, %28 : vector<1x16xi32>
    %c4_i32_8 = arith.constant 4 : i32
    %30 = vector.broadcast %c4_i32_8 : i32 to vector<1x16xi32>
    %31 = arith.cmpi slt, %29, %30 : vector<1x16xi32>
    %32 = arith.andi %27, %31 : vector<1x16xi1>
    %cst_9 = arith.constant 0.000000e+00 : f32
    %33 = vector.shape_cast %32 : vector<1x16xi1> to vector<1x16xi1>
    %34 = vector.broadcast %33 : vector<1x16xi1> to vector<8x16xi1>
    %35 = vector.broadcast %cst_9 : f32 to vector<8x16xf32>
    %36 = arith.select %34, %23, %35 : vector<8x16xi1>, vector<8x16xf32>
    %c0_10 = arith.constant 0 : index
    %c0_11 = arith.constant 0 : index
    %37 = vector.load %arg2[%c0_10, %c0_11] : memref<4x72xbf16, #tpu.memory_space<vmem>>, vector<4x8xbf16>
    %38 = arith.truncf %36 : vector<8x16xf32> to vector<8x16xbf16>
    %cst_12 = arith.constant dense<0.000000e+00> : vector<4x16xf32>
    %39 = tpu.matmul %37, %38, %cst_12 {dimension_numbers = #tpu.dot_dimension_numbers<[1], [0], [0], [1], [0, 0, 1, 1], [], []>} : vector<4x8xbf16>, vector<8x16xbf16>, vector<4x16xf32> -> vector<4x16xf32>
    %40 = arith.addf %22, %39 : vector<4x16xf32>
    %41 = vector.extract_strided_slice %4 {offsets = [0, 1], sizes = [8, 16], strides = [1, 1]} : vector<8x26xf32> to vector<8x16xf32>
    %c0_13 = arith.constant 0 : index
    %c8 = arith.constant 8 : index
    %42 = vector.load %arg2[%c0_13, %c8] : memref<4x72xbf16, #tpu.memory_space<vmem>>, vector<4x8xbf16>
    %43 = arith.truncf %41 : vector<8x16xf32> to vector<8x16xbf16>
    %cst_14 = arith.constant dense<0.000000e+00> : vector<4x16xf32>
    %44 = tpu.matmul %42, %43, %cst_14 {dimension_numbers = #tpu.dot_dimension_numbers<[1], [0], [0], [1], [0, 0, 1, 1], [], []>} : vector<4x8xbf16>, vector<8x16xbf16>, vector<4x16xf32> -> vector<4x16xf32>
    %45 = arith.addf %40, %44 : vector<4x16xf32>
    %46 = vector.extract_strided_slice %4 {offsets = [0, 2], sizes = [8, 16], strides = [1, 1]} : vector<8x26xf32> to vector<8x16xf32>
    %c1_i32_15 = arith.constant 1 : i32
    %47 = vector.broadcast %c1_i32_15 : i32 to vector<1x16xi32>
    %48 = arith.addi %21, %47 : vector<1x16xi32>
    %c0_i32_16 = arith.constant 0 : i32
    %49 = vector.broadcast %c0_i32_16 : i32 to vector<1x16xi32>
    %50 = arith.cmpi sge, %48, %49 : vector<1x16xi32>
    %c1_i32_17 = arith.constant 1 : i32
    %51 = vector.broadcast %c1_i32_17 : i32 to vector<1x16xi32>
    %52 = arith.addi %21, %51 : vector<1x16xi32>
    %c4_i32_18 = arith.constant 4 : i32
    %53 = vector.broadcast %c4_i32_18 : i32 to vector<1x16xi32>
    %54 = arith.cmpi slt, %52, %53 : vector<1x16xi32>
    %55 = arith.andi %50, %54 : vector<1x16xi1>
    %cst_19 = arith.constant 0.000000e+00 : f32
    %56 = vector.shape_cast %55 : vector<1x16xi1> to vector<1x16xi1>
    %57 = vector.broadcast %56 : vector<1x16xi1> to vector<8x16xi1>
    %58 = vector.broadcast %cst_19 : f32 to vector<8x16xf32>
    %59 = arith.select %57, %46, %58 : vector<8x16xi1>, vector<8x16xf32>
    %c0_20 = arith.constant 0 : index
    %c16 = arith.constant 16 : index
    %60 = vector.load %arg2[%c0_20, %c16] : memref<4x72xbf16, #tpu.memory_space<vmem>>, vector<4x8xbf16>
    %61 = arith.truncf %59 : vector<8x16xf32> to vector<8x16xbf16>
    %cst_21 = arith.constant dense<0.000000e+00> : vector<4x16xf32>
    %62 = tpu.matmul %60, %61, %cst_21 {dimension_numbers = #tpu.dot_dimension_numbers<[1], [0], [0], [1], [0, 0, 1, 1], [], []>} : vector<4x8xbf16>, vector<8x16xbf16>, vector<4x16xf32> -> vector<4x16xf32>
    %63 = arith.addf %45, %62 : vector<4x16xf32>
    %64 = vector.extract_strided_slice %4 {offsets = [0, 4], sizes = [8, 16], strides = [1, 1]} : vector<8x26xf32> to vector<8x16xf32>
    %c-1_i32_22 = arith.constant -1 : i32
    %65 = vector.broadcast %c-1_i32_22 : i32 to vector<1x16xi32>
    %66 = arith.addi %21, %65 : vector<1x16xi32>
    %c0_i32_23 = arith.constant 0 : i32
    %67 = vector.broadcast %c0_i32_23 : i32 to vector<1x16xi32>
    %68 = arith.cmpi sge, %66, %67 : vector<1x16xi32>
    %c-1_i32_24 = arith.constant -1 : i32
    %69 = vector.broadcast %c-1_i32_24 : i32 to vector<1x16xi32>
    %70 = arith.addi %21, %69 : vector<1x16xi32>
    %c4_i32_25 = arith.constant 4 : i32
    %71 = vector.broadcast %c4_i32_25 : i32 to vector<1x16xi32>
    %72 = arith.cmpi slt, %70, %71 : vector<1x16xi32>
    %73 = arith.andi %68, %72 : vector<1x16xi1>
    %cst_26 = arith.constant 0.000000e+00 : f32
    %74 = vector.shape_cast %73 : vector<1x16xi1> to vector<1x16xi1>
    %75 = vector.broadcast %74 : vector<1x16xi1> to vector<8x16xi1>
    %76 = vector.broadcast %cst_26 : f32 to vector<8x16xf32>
    %77 = arith.select %75, %64, %76 : vector<8x16xi1>, vector<8x16xf32>
    %c0_27 = arith.constant 0 : index
    %c24 = arith.constant 24 : index
    %78 = vector.load %arg2[%c0_27, %c24] : memref<4x72xbf16, #tpu.memory_space<vmem>>, vector<4x8xbf16>
    %79 = arith.truncf %77 : vector<8x16xf32> to vector<8x16xbf16>
    %cst_28 = arith.constant dense<0.000000e+00> : vector<4x16xf32>
    %80 = tpu.matmul %78, %79, %cst_28 {dimension_numbers = #tpu.dot_dimension_numbers<[1], [0], [0], [1], [0, 0, 1, 1], [], []>} : vector<4x8xbf16>, vector<8x16xbf16>, vector<4x16xf32> -> vector<4x16xf32>
    %81 = arith.addf %63, %80 : vector<4x16xf32>
    %82 = vector.extract_strided_slice %4 {offsets = [0, 5], sizes = [8, 16], strides = [1, 1]} : vector<8x26xf32> to vector<8x16xf32>
    %c0_29 = arith.constant 0 : index
    %c32 = arith.constant 32 : index
    %83 = vector.load %arg2[%c0_29, %c32] : memref<4x72xbf16, #tpu.memory_space<vmem>>, vector<4x8xbf16>
    %84 = arith.truncf %82 : vector<8x16xf32> to vector<8x16xbf16>
    %cst_30 = arith.constant dense<0.000000e+00> : vector<4x16xf32>
    %85 = tpu.matmul %83, %84, %cst_30 {dimension_numbers = #tpu.dot_dimension_numbers<[1], [0], [0], [1], [0, 0, 1, 1], [], []>} : vector<4x8xbf16>, vector<8x16xbf16>, vector<4x16xf32> -> vector<4x16xf32>
    %86 = arith.addf %81, %85 : vector<4x16xf32>
    %87 = vector.extract_strided_slice %4 {offsets = [0, 6], sizes = [8, 16], strides = [1, 1]} : vector<8x26xf32> to vector<8x16xf32>
    %c1_i32_31 = arith.constant 1 : i32
    %88 = vector.broadcast %c1_i32_31 : i32 to vector<1x16xi32>
    %89 = arith.addi %21, %88 : vector<1x16xi32>
    %c0_i32_32 = arith.constant 0 : i32
    %90 = vector.broadcast %c0_i32_32 : i32 to vector<1x16xi32>
    %91 = arith.cmpi sge, %89, %90 : vector<1x16xi32>
    %c1_i32_33 = arith.constant 1 : i32
    %92 = vector.broadcast %c1_i32_33 : i32 to vector<1x16xi32>
    %93 = arith.addi %21, %92 : vector<1x16xi32>
    %c4_i32_34 = arith.constant 4 : i32
    %94 = vector.broadcast %c4_i32_34 : i32 to vector<1x16xi32>
    %95 = arith.cmpi slt, %93, %94 : vector<1x16xi32>
    %96 = arith.andi %91, %95 : vector<1x16xi1>
    %cst_35 = arith.constant 0.000000e+00 : f32
    %97 = vector.shape_cast %96 : vector<1x16xi1> to vector<1x16xi1>
    %98 = vector.broadcast %97 : vector<1x16xi1> to vector<8x16xi1>
    %99 = vector.broadcast %cst_35 : f32 to vector<8x16xf32>
    %100 = arith.select %98, %87, %99 : vector<8x16xi1>, vector<8x16xf32>
    %c0_36 = arith.constant 0 : index
    %c40 = arith.constant 40 : index
    %101 = vector.load %arg2[%c0_36, %c40] : memref<4x72xbf16, #tpu.memory_space<vmem>>, vector<4x8xbf16>
    %102 = arith.truncf %100 : vector<8x16xf32> to vector<8x16xbf16>
    %cst_37 = arith.constant dense<0.000000e+00> : vector<4x16xf32>
    %103 = tpu.matmul %101, %102, %cst_37 {dimension_numbers = #tpu.dot_dimension_numbers<[1], [0], [0], [1], [0, 0, 1, 1], [], []>} : vector<4x8xbf16>, vector<8x16xbf16>, vector<4x16xf32> -> vector<4x16xf32>
    %104 = arith.addf %86, %103 : vector<4x16xf32>
    %105 = vector.extract_strided_slice %4 {offsets = [0, 8], sizes = [8, 16], strides = [1, 1]} : vector<8x26xf32> to vector<8x16xf32>
    %c-1_i32_38 = arith.constant -1 : i32
    %106 = vector.broadcast %c-1_i32_38 : i32 to vector<1x16xi32>
    %107 = arith.addi %21, %106 : vector<1x16xi32>
    %c0_i32_39 = arith.constant 0 : i32
    %108 = vector.broadcast %c0_i32_39 : i32 to vector<1x16xi32>
    %109 = arith.cmpi sge, %107, %108 : vector<1x16xi32>
    %c-1_i32_40 = arith.constant -1 : i32
    %110 = vector.broadcast %c-1_i32_40 : i32 to vector<1x16xi32>
    %111 = arith.addi %21, %110 : vector<1x16xi32>
    %c4_i32_41 = arith.constant 4 : i32
    %112 = vector.broadcast %c4_i32_41 : i32 to vector<1x16xi32>
    %113 = arith.cmpi slt, %111, %112 : vector<1x16xi32>
    %114 = arith.andi %109, %113 : vector<1x16xi1>
    %cst_42 = arith.constant 0.000000e+00 : f32
    %115 = vector.shape_cast %114 : vector<1x16xi1> to vector<1x16xi1>
    %116 = vector.broadcast %115 : vector<1x16xi1> to vector<8x16xi1>
    %117 = vector.broadcast %cst_42 : f32 to vector<8x16xf32>
    %118 = arith.select %116, %105, %117 : vector<8x16xi1>, vector<8x16xf32>
    %c0_43 = arith.constant 0 : index
    %c48 = arith.constant 48 : index
    %119 = vector.load %arg2[%c0_43, %c48] : memref<4x72xbf16, #tpu.memory_space<vmem>>, vector<4x8xbf16>
    %120 = arith.truncf %118 : vector<8x16xf32> to vector<8x16xbf16>
    %cst_44 = arith.constant dense<0.000000e+00> : vector<4x16xf32>
    %121 = tpu.matmul %119, %120, %cst_44 {dimension_numbers = #tpu.dot_dimension_numbers<[1], [0], [0], [1], [0, 0, 1, 1], [], []>} : vector<4x8xbf16>, vector<8x16xbf16>, vector<4x16xf32> -> vector<4x16xf32>
    %122 = arith.addf %104, %121 : vector<4x16xf32>
    %123 = vector.extract_strided_slice %4 {offsets = [0, 9], sizes = [8, 16], strides = [1, 1]} : vector<8x26xf32> to vector<8x16xf32>
    %c0_45 = arith.constant 0 : index
    %c56 = arith.constant 56 : index
    %124 = vector.load %arg2[%c0_45, %c56] : memref<4x72xbf16, #tpu.memory_space<vmem>>, vector<4x8xbf16>
    %125 = arith.truncf %123 : vector<8x16xf32> to vector<8x16xbf16>
    %cst_46 = arith.constant dense<0.000000e+00> : vector<4x16xf32>
    %126 = tpu.matmul %124, %125, %cst_46 {dimension_numbers = #tpu.dot_dimension_numbers<[1], [0], [0], [1], [0, 0, 1, 1], [], []>} : vector<4x8xbf16>, vector<8x16xbf16>, vector<4x16xf32> -> vector<4x16xf32>
    %127 = arith.addf %122, %126 : vector<4x16xf32>
    %128 = vector.extract_strided_slice %4 {offsets = [0, 10], sizes = [8, 16], strides = [1, 1]} : vector<8x26xf32> to vector<8x16xf32>
    %c1_i32_47 = arith.constant 1 : i32
    %129 = vector.broadcast %c1_i32_47 : i32 to vector<1x16xi32>
    %130 = arith.addi %21, %129 : vector<1x16xi32>
    %c0_i32_48 = arith.constant 0 : i32
    %131 = vector.broadcast %c0_i32_48 : i32 to vector<1x16xi32>
    %132 = arith.cmpi sge, %130, %131 : vector<1x16xi32>
    %c1_i32_49 = arith.constant 1 : i32
    %133 = vector.broadcast %c1_i32_49 : i32 to vector<1x16xi32>
    %134 = arith.addi %21, %133 : vector<1x16xi32>
    %c4_i32_50 = arith.constant 4 : i32
    %135 = vector.broadcast %c4_i32_50 : i32 to vector<1x16xi32>
    %136 = arith.cmpi slt, %134, %135 : vector<1x16xi32>
    %137 = arith.andi %132, %136 : vector<1x16xi1>
    %cst_51 = arith.constant 0.000000e+00 : f32
    %138 = vector.shape_cast %137 : vector<1x16xi1> to vector<1x16xi1>
    %139 = vector.broadcast %138 : vector<1x16xi1> to vector<8x16xi1>
    %140 = vector.broadcast %cst_51 : f32 to vector<8x16xf32>
    %141 = arith.select %139, %128, %140 : vector<8x16xi1>, vector<8x16xf32>
    %c0_52 = arith.constant 0 : index
    %c64 = arith.constant 64 : index
    %142 = vector.load %arg2[%c0_52, %c64] : memref<4x72xbf16, #tpu.memory_space<vmem>>, vector<4x8xbf16>
    %143 = arith.truncf %141 : vector<8x16xf32> to vector<8x16xbf16>
    %cst_53 = arith.constant dense<0.000000e+00> : vector<4x16xf32>
    %144 = tpu.matmul %142, %143, %cst_53 {dimension_numbers = #tpu.dot_dimension_numbers<[1], [0], [0], [1], [0, 0, 1, 1], [], []>} : vector<4x8xbf16>, vector<8x16xbf16>, vector<4x16xf32> -> vector<4x16xf32>
    %145 = arith.addf %127, %144 : vector<4x16xf32>
    %c0_54 = arith.constant 0 : index
    %c0_55 = arith.constant 0 : index
    %146 = vector.load %arg3[%c0_54, %c0_55] : memref<4x1xf32, #tpu.memory_space<vmem>>, vector<4x1xf32>
    %147 = vector.broadcast %146 : vector<4x1xf32> to vector<4x16xf32>
    %148 = arith.addf %145, %147 : vector<4x16xf32>
    %cst_56 = arith.constant 0.000000e+00 : f32
    %149 = vector.broadcast %cst_56 : f32 to vector<4x16xf32>
    %150 = arith.maximumf %148, %149 : vector<4x16xf32>
    %151 = arith.truncf %150 : vector<4x16xf32> to vector<4x16xbf16>
    %c0_57 = arith.constant 0 : index
    %c0_58 = arith.constant 0 : index
    %152 = vector.load %arg4[%c0_57, %c0_58] : memref<16x64xbf16, #tpu.memory_space<vmem>>, vector<16x64xbf16>
    %cst_59 = arith.constant dense<0.000000e+00> : vector<4x64xf32>
    %153 = tpu.matmul %151, %152, %cst_59 {dimension_numbers = #tpu.dot_dimension_numbers<[1], [0], [0], [1], [0, 0, 1, 1], [], []>} : vector<4x16xbf16>, vector<16x64xbf16>, vector<4x64xf32> -> vector<4x64xf32>
    %c0_60 = arith.constant 0 : index
    %c0_61 = arith.constant 0 : index
    %c0_62 = arith.constant 0 : index
    %154 = vector.load %arg5[%c0_60, %c0_61, %c0_62] : memref<1x4x64xf32, #tpu.memory_space<vmem>>, vector<1x4x64xf32>
    %155 = vector.shape_cast %154 : vector<1x4x64xf32> to vector<4x64xf32>
    %156 = arith.truncf %155 : vector<4x64xf32> to vector<4x64xbf16>
    %c0_63 = arith.constant 0 : index
    %c0_64 = arith.constant 0 : index
    %157 = vector.load %arg7[%c0_63, %c0_64] : memref<4x1xf32, #tpu.memory_space<vmem>>, vector<4x1xf32>
    %158 = vector.broadcast %157 : vector<4x1xf32> to vector<4x64xf32>
    %159 = arith.addf %153, %158 : vector<4x64xf32>
    %c0_65 = arith.constant 0 : index
    %c0_66 = arith.constant 0 : index
    %160 = vector.load %arg6[%c0_65, %c0_66] : memref<4x4xbf16, #tpu.memory_space<vmem>>, vector<4x4xbf16>
    %cst_67 = arith.constant dense<0.000000e+00> : vector<4x64xf32>
    %161 = tpu.matmul %160, %156, %cst_67 {dimension_numbers = #tpu.dot_dimension_numbers<[1], [0], [0], [1], [0, 0, 1, 1], [], []>} : vector<4x4xbf16>, vector<4x64xbf16>, vector<4x64xf32> -> vector<4x64xf32>
    %162 = arith.addf %159, %161 : vector<4x64xf32>
    %cst_68 = arith.constant dense<0.000000e+00> : vector<4xf32>
    %163 = vector.multi_reduction <add>, %162, %cst_68 [1] : vector<4x64xf32> to vector<4xf32>
    %164 = vector.shape_cast %163 : vector<4xf32> to vector<4x1xf32>
    %cst_69 = arith.constant 6.400000e+01 : f32
    %165 = vector.broadcast %cst_69 : f32 to vector<4x1xf32>
    %166 = arith.divf %164, %165 : vector<4x1xf32>
    %167 = vector.broadcast %166 : vector<4x1xf32> to vector<4x64xf32>
    %168 = arith.subf %162, %167 : vector<4x64xf32>
    %169 = arith.mulf %168, %168 : vector<4x64xf32>
    %cst_70 = arith.constant dense<0.000000e+00> : vector<4xf32>
    %170 = vector.multi_reduction <add>, %169, %cst_70 [1] : vector<4x64xf32> to vector<4xf32>
    %171 = vector.shape_cast %170 : vector<4xf32> to vector<4x1xf32>
    %cst_71 = arith.constant 6.400000e+01 : f32
    %172 = vector.broadcast %cst_71 : f32 to vector<4x1xf32>
    %173 = arith.divf %171, %172 : vector<4x1xf32>
    %174 = vector.broadcast %166 : vector<4x1xf32> to vector<4x64xf32>
    %175 = arith.subf %162, %174 : vector<4x64xf32>
    %cst_72 = arith.constant 9.99999974E-6 : f32
    %176 = vector.broadcast %cst_72 : f32 to vector<4x1xf32>
    %177 = arith.addf %173, %176 : vector<4x1xf32>
    %178 = math.rsqrt %177 : vector<4x1xf32>
    %179 = vector.broadcast %178 : vector<4x1xf32> to vector<4x64xf32>
    %180 = arith.mulf %175, %179 : vector<4x64xf32>
    %c0_73 = arith.constant 0 : index
    %c0_74 = arith.constant 0 : index
    %c0_75 = arith.constant 0 : index
    %c0_76 = arith.constant 0 : index
    %181 = vector.load %arg8[%c0_73, %c0_74, %c0_75, %c0_76] : memref<1x2x4x64xf32, #tpu.memory_space<vmem>>, vector<1x2x4x64xf32>
    %182 = vector.extract_strided_slice %181 {offsets = [0, 0, 0, 0], sizes = [1, 1, 4, 64], strides = [1, 1, 1, 1]} : vector<1x2x4x64xf32> to vector<1x1x4x64xf32>
    %183 = vector.shape_cast %182 : vector<1x1x4x64xf32> to vector<4x64xf32>
    %184 = arith.mulf %183, %180 : vector<4x64xf32>
    %185 = vector.extract_strided_slice %181 {offsets = [0, 1, 0, 0], sizes = [1, 1, 4, 64], strides = [1, 1, 1, 1]} : vector<1x2x4x64xf32> to vector<1x1x4x64xf32>
    %186 = vector.shape_cast %185 : vector<1x1x4x64xf32> to vector<4x64xf32>
    %187 = arith.addf %184, %186 : vector<4x64xf32>
    %188 = arith.truncf %187 : vector<4x64xf32> to vector<4x64xbf16>
    %c0_77 = arith.constant 0 : index
    %c0_78 = arith.constant 0 : index
    %c0_79 = arith.constant 0 : index
    %189 = vector.load %arg9[%c0_77, %c0_78, %c0_79] : memref<1x4x64xbf16, #tpu.memory_space<vmem>>, vector<1x4x64xbf16>
    %190 = vector.shape_cast %189 : vector<1x4x64xbf16> to vector<4x64xbf16>
    %191 = vector.shape_cast %188 : vector<4x64xbf16> to vector<1x4x64xbf16>
    tpu.vector_store %arg9[%c0_77, %c0_78, %c0_79], %191 {strides = array<i32>} : memref<1x4x64xbf16, #tpu.memory_space<vmem>>, vector<1x4x64xbf16>,
    return
  }
  func.func @transform_0(%arg0: i32) -> (i32, i32, i32) {
    %c0_i32 = arith.constant 0 : i32
    %c0_i32_0 = arith.constant 0 : i32
    %c0_i32_1 = arith.constant 0 : i32
    return %arg0, %c0_i32, %c0_i32_0 : i32, i32, i32
  }
  func.func @transform_1(%arg0: i32) -> (i32, i32) {
    %c0_i32 = arith.constant 0 : i32
    %c0_i32_0 = arith.constant 0 : i32
    %c0_i32_1 = arith.constant 0 : i32
    return %c0_i32, %c0_i32_0 : i32, i32
  }
  func.func @transform_2(%arg0: i32) -> (i32, i32) {
    %c0_i32 = arith.constant 0 : i32
    %c0_i32_0 = arith.constant 0 : i32
    %c0_i32_1 = arith.constant 0 : i32
    return %c0_i32, %c0_i32_0 : i32, i32
  }
  func.func @transform_3(%arg0: i32) -> (i32, i32) {
    %c0_i32 = arith.constant 0 : i32
    %c0_i32_0 = arith.constant 0 : i32
    %c0_i32_1 = arith.constant 0 : i32
    return %c0_i32, %c0_i32_0 : i32, i32
  }
  func.func @transform_4(%arg0: i32) -> (i32, i32, i32) {
    %c0_i32 = arith.constant 0 : i32
    %c0_i32_0 = arith.constant 0 : i32
    %c0_i32_1 = arith.constant 0 : i32
    return %arg0, %c0_i32, %c0_i32_0 : i32, i32, i32
  }
  func.func @transform_5(%arg0: i32) -> (i32, i32) {
    %c0_i32 = arith.constant 0 : i32
    %c0_i32_0 = arith.constant 0 : i32
    %c0_i32_1 = arith.constant 0 : i32
    return %c0_i32, %c0_i32_0 : i32, i32
  }
  func.func @transform_6(%arg0: i32) -> (i32, i32) {
    %c0_i32 = arith.constant 0 : i32
    %c0_i32_0 = arith.constant 0 : i32
    %c0_i32_1 = arith.constant 0 : i32
    return %c0_i32, %c0_i32_0 : i32, i32
  }
  func.func @transform_7(%arg0: i32) -> (i32, i32, i32, i32) {
    %c0_i32 = arith.constant 0 : i32
    %c0_i32_0 = arith.constant 0 : i32
    %c0_i32_1 = arith.constant 0 : i32
    %c0_i32_2 = arith.constant 0 : i32
    return %arg0, %c0_i32, %c0_i32_0, %c0_i32_1 : i32, i32, i32, i32
  }
  func.func @transform_8(%arg0: i32) -> (i32, i32, i32) {
    %c0_i32 = arith.constant 0 : i32
    %c0_i32_0 = arith.constant 0 : i32
    %c0_i32_1 = arith.constant 0 : i32
    return %arg0, %c0_i32, %c0_i32_0 : i32, i32, i32
  }
}

module attributes {stable_mosaic.version = 11 : i64} {
  func.func @_level_kernel(%arg0: i32, %arg1: memref<1x4x256xbf16, #tpu.memory_space<vmem>>, %arg2: memref<2x36xbf16, #tpu.memory_space<vmem>>, %arg3: memref<2x1xf32, #tpu.memory_space<vmem>>, %arg4: memref<256x1024xbf16, #tpu.memory_space<vmem>>, %arg5: memref<1x2x1024xf32, #tpu.memory_space<vmem>>, %arg6: memref<2x2xbf16, #tpu.memory_space<vmem>>, %arg7: memref<2x1xf32, #tpu.memory_space<vmem>>, %arg8: memref<1x2x2x1024xf32, #tpu.memory_space<vmem>>, %arg9: memref<4x2xbf16, #tpu.memory_space<vmem>>, %arg10: memref<4x1xf32, #tpu.memory_space<vmem>>, %arg11: memref<1x4x1024xf32, #tpu.memory_space<vmem>>) attributes {dimension_semantics = [#tpu.dimension_semantics<parallel>], iteration_bounds = array<i64: 2>, scalar_prefetch = 0 : i64, scratch_operands = 0 : i64, tpu.core_type = #tpu.core_type<tc>, window_params = [{transform_indices = @transform_0, window_bounds = array<i64: 1, 4, 256>}, {pipeline_mode = #tpu.pipeline_mode<synchronous>, transform_indices = @transform_1, window_bounds = array<i64: 2, 36>}, {pipeline_mode = #tpu.pipeline_mode<synchronous>, transform_indices = @transform_2, window_bounds = array<i64: 2, 1>}, {pipeline_mode = #tpu.pipeline_mode<synchronous>, transform_indices = @transform_3, window_bounds = array<i64: 256, 1024>}, {transform_indices = @transform_4, window_bounds = array<i64: 1, 2, 1024>}, {pipeline_mode = #tpu.pipeline_mode<synchronous>, transform_indices = @transform_5, window_bounds = array<i64: 2, 2>}, {pipeline_mode = #tpu.pipeline_mode<synchronous>, transform_indices = @transform_6, window_bounds = array<i64: 2, 1>}, {transform_indices = @transform_7, window_bounds = array<i64: 1, 2, 2, 1024>}, {pipeline_mode = #tpu.pipeline_mode<synchronous>, transform_indices = @transform_8, window_bounds = array<i64: 4, 2>}, {pipeline_mode = #tpu.pipeline_mode<synchronous>, transform_indices = @transform_9, window_bounds = array<i64: 4, 1>}, {transform_indices = @transform_10, window_bounds = array<i64: 1, 4, 1024>}]} {
    %c0 = arith.constant 0 : index
    %c0_0 = arith.constant 0 : index
    %c0_1 = arith.constant 0 : index
    %0 = vector.load %arg1[%c0, %c0_0, %c0_1] : memref<1x4x256xbf16, #tpu.memory_space<vmem>>, vector<1x4x256xbf16>
    %1 = vector.shape_cast %0 : vector<1x4x256xbf16> to vector<4x256xbf16>
    %2 = arith.extf %1 : vector<4x256xbf16> to vector<4x256xf32>
    %cst = arith.constant 0.000000e+00 : f32
    %3 = vector.broadcast %cst : f32 to vector<4x17xf32>
    %4 = tpu.concatenate %3, %2, %3 in 1 : vector<4x17xf32>, vector<4x256xf32>, vector<4x17xf32> -> vector<4x290xf32>
    %5 = tpu.iota {dimensions = array<i32: 1>} : vector<1x256xi32>
    %c16_i32 = arith.constant 16 : i32
    %c0_i32 = arith.constant 0 : i32
    %6 = arith.cmpi eq, %c16_i32, %c0_i32 : i32
    %c1_i32 = arith.constant 1 : i32
    %7 = arith.select %6, %c1_i32, %c16_i32 : i32
    %8 = vector.broadcast %7 : i32 to vector<1x256xi32>
    %9 = arith.remsi %5, %8 : vector<1x256xi32>
    %c0_i32_2 = arith.constant 0 : i32
    %10 = vector.broadcast %c0_i32_2 : i32 to vector<1x256xi32>
    %11 = arith.cmpi ne, %9, %10 : vector<1x256xi32>
    %c0_i32_3 = arith.constant 0 : i32
    %12 = vector.broadcast %c0_i32_3 : i32 to vector<1x256xi32>
    %13 = arith.cmpi slt, %9, %12 : vector<1x256xi32>
    %c0_i32_4 = arith.constant 0 : i32
    %14 = arith.cmpi slt, %7, %c0_i32_4 : i32
    %15 = vector.broadcast %14 : i1 to vector<1x256xi1>
    %16 = vector.broadcast %15 : vector<1x256xi1> to vector<1x256xi1>
    %17 = arith.xori %13, %16 : vector<1x256xi1>
    %18 = arith.andi %17, %11 : vector<1x256xi1>
    %19 = vector.broadcast %7 : i32 to vector<1x256xi32>
    %20 = arith.addi %9, %19 : vector<1x256xi32>
    %21 = arith.select %18, %20, %9 : vector<1x256xi1>, vector<1x256xi32>
    %cst_5 = arith.constant 0.000000e+00 : f32
    %22 = vector.broadcast %cst_5 : f32 to vector<2x256xf32>
    %23 = vector.extract_strided_slice %4 {offsets = [0, 0], sizes = [4, 256], strides = [1, 1]} : vector<4x290xf32> to vector<4x256xf32>
    %c-1_i32 = arith.constant -1 : i32
    %24 = vector.broadcast %c-1_i32 : i32 to vector<1x256xi32>
    %25 = arith.addi %21, %24 : vector<1x256xi32>
    %c0_i32_6 = arith.constant 0 : i32
    %26 = vector.broadcast %c0_i32_6 : i32 to vector<1x256xi32>
    %27 = arith.cmpi sge, %25, %26 : vector<1x256xi32>
    %c-1_i32_7 = arith.constant -1 : i32
    %28 = vector.broadcast %c-1_i32_7 : i32 to vector<1x256xi32>
    %29 = arith.addi %21, %28 : vector<1x256xi32>
    %c16_i32_8 = arith.constant 16 : i32
    %30 = vector.broadcast %c16_i32_8 : i32 to vector<1x256xi32>
    %31 = arith.cmpi slt, %29, %30 : vector<1x256xi32>
    %32 = arith.andi %27, %31 : vector<1x256xi1>
    %cst_9 = arith.constant 0.000000e+00 : f32
    %33 = vector.shape_cast %32 : vector<1x256xi1> to vector<1x256xi1>
    %34 = vector.broadcast %33 : vector<1x256xi1> to vector<4x256xi1>
    %35 = vector.broadcast %cst_9 : f32 to vector<4x256xf32>
    %36 = arith.select %34, %23, %35 : vector<4x256xi1>, vector<4x256xf32>
    %c0_10 = arith.constant 0 : index
    %c0_11 = arith.constant 0 : index
    %37 = vector.load %arg2[%c0_10, %c0_11] : memref<2x36xbf16, #tpu.memory_space<vmem>>, vector<2x4xbf16>
    %38 = arith.truncf %36 : vector<4x256xf32> to vector<4x256xbf16>
    %cst_12 = arith.constant dense<0.000000e+00> : vector<2x256xf32>
    %39 = tpu.matmul %37, %38, %cst_12 {dimension_numbers = #tpu.dot_dimension_numbers<[1], [0], [0], [1], [0, 0, 1, 1], [], []>} : vector<2x4xbf16>, vector<4x256xbf16>, vector<2x256xf32> -> vector<2x256xf32>
    %40 = arith.addf %22, %39 : vector<2x256xf32>
    %41 = vector.extract_strided_slice %4 {offsets = [0, 1], sizes = [4, 256], strides = [1, 1]} : vector<4x290xf32> to vector<4x256xf32>
    %c0_13 = arith.constant 0 : index
    %c4 = arith.constant 4 : index
    %42 = vector.load %arg2[%c0_13, %c4] : memref<2x36xbf16, #tpu.memory_space<vmem>>, vector<2x4xbf16>
    %43 = arith.truncf %41 : vector<4x256xf32> to vector<4x256xbf16>
    %cst_14 = arith.constant dense<0.000000e+00> : vector<2x256xf32>
    %44 = tpu.matmul %42, %43, %cst_14 {dimension_numbers = #tpu.dot_dimension_numbers<[1], [0], [0], [1], [0, 0, 1, 1], [], []>} : vector<2x4xbf16>, vector<4x256xbf16>, vector<2x256xf32> -> vector<2x256xf32>
    %45 = arith.addf %40, %44 : vector<2x256xf32>
    %46 = vector.extract_strided_slice %4 {offsets = [0, 2], sizes = [4, 256], strides = [1, 1]} : vector<4x290xf32> to vector<4x256xf32>
    %c1_i32_15 = arith.constant 1 : i32
    %47 = vector.broadcast %c1_i32_15 : i32 to vector<1x256xi32>
    %48 = arith.addi %21, %47 : vector<1x256xi32>
    %c0_i32_16 = arith.constant 0 : i32
    %49 = vector.broadcast %c0_i32_16 : i32 to vector<1x256xi32>
    %50 = arith.cmpi sge, %48, %49 : vector<1x256xi32>
    %c1_i32_17 = arith.constant 1 : i32
    %51 = vector.broadcast %c1_i32_17 : i32 to vector<1x256xi32>
    %52 = arith.addi %21, %51 : vector<1x256xi32>
    %c16_i32_18 = arith.constant 16 : i32
    %53 = vector.broadcast %c16_i32_18 : i32 to vector<1x256xi32>
    %54 = arith.cmpi slt, %52, %53 : vector<1x256xi32>
    %55 = arith.andi %50, %54 : vector<1x256xi1>
    %cst_19 = arith.constant 0.000000e+00 : f32
    %56 = vector.shape_cast %55 : vector<1x256xi1> to vector<1x256xi1>
    %57 = vector.broadcast %56 : vector<1x256xi1> to vector<4x256xi1>
    %58 = vector.broadcast %cst_19 : f32 to vector<4x256xf32>
    %59 = arith.select %57, %46, %58 : vector<4x256xi1>, vector<4x256xf32>
    %c0_20 = arith.constant 0 : index
    %c8 = arith.constant 8 : index
    %60 = vector.load %arg2[%c0_20, %c8] : memref<2x36xbf16, #tpu.memory_space<vmem>>, vector<2x4xbf16>
    %61 = arith.truncf %59 : vector<4x256xf32> to vector<4x256xbf16>
    %cst_21 = arith.constant dense<0.000000e+00> : vector<2x256xf32>
    %62 = tpu.matmul %60, %61, %cst_21 {dimension_numbers = #tpu.dot_dimension_numbers<[1], [0], [0], [1], [0, 0, 1, 1], [], []>} : vector<2x4xbf16>, vector<4x256xbf16>, vector<2x256xf32> -> vector<2x256xf32>
    %63 = arith.addf %45, %62 : vector<2x256xf32>
    %64 = vector.extract_strided_slice %4 {offsets = [0, 16], sizes = [4, 256], strides = [1, 1]} : vector<4x290xf32> to vector<4x256xf32>
    %c-1_i32_22 = arith.constant -1 : i32
    %65 = vector.broadcast %c-1_i32_22 : i32 to vector<1x256xi32>
    %66 = arith.addi %21, %65 : vector<1x256xi32>
    %c0_i32_23 = arith.constant 0 : i32
    %67 = vector.broadcast %c0_i32_23 : i32 to vector<1x256xi32>
    %68 = arith.cmpi sge, %66, %67 : vector<1x256xi32>
    %c-1_i32_24 = arith.constant -1 : i32
    %69 = vector.broadcast %c-1_i32_24 : i32 to vector<1x256xi32>
    %70 = arith.addi %21, %69 : vector<1x256xi32>
    %c16_i32_25 = arith.constant 16 : i32
    %71 = vector.broadcast %c16_i32_25 : i32 to vector<1x256xi32>
    %72 = arith.cmpi slt, %70, %71 : vector<1x256xi32>
    %73 = arith.andi %68, %72 : vector<1x256xi1>
    %cst_26 = arith.constant 0.000000e+00 : f32
    %74 = vector.shape_cast %73 : vector<1x256xi1> to vector<1x256xi1>
    %75 = vector.broadcast %74 : vector<1x256xi1> to vector<4x256xi1>
    %76 = vector.broadcast %cst_26 : f32 to vector<4x256xf32>
    %77 = arith.select %75, %64, %76 : vector<4x256xi1>, vector<4x256xf32>
    %c0_27 = arith.constant 0 : index
    %c12 = arith.constant 12 : index
    %78 = vector.load %arg2[%c0_27, %c12] : memref<2x36xbf16, #tpu.memory_space<vmem>>, vector<2x4xbf16>
    %79 = arith.truncf %77 : vector<4x256xf32> to vector<4x256xbf16>
    %cst_28 = arith.constant dense<0.000000e+00> : vector<2x256xf32>
    %80 = tpu.matmul %78, %79, %cst_28 {dimension_numbers = #tpu.dot_dimension_numbers<[1], [0], [0], [1], [0, 0, 1, 1], [], []>} : vector<2x4xbf16>, vector<4x256xbf16>, vector<2x256xf32> -> vector<2x256xf32>
    %81 = arith.addf %63, %80 : vector<2x256xf32>
    %82 = vector.extract_strided_slice %4 {offsets = [0, 17], sizes = [4, 256], strides = [1, 1]} : vector<4x290xf32> to vector<4x256xf32>
    %c0_29 = arith.constant 0 : index
    %c16 = arith.constant 16 : index
    %83 = vector.load %arg2[%c0_29, %c16] : memref<2x36xbf16, #tpu.memory_space<vmem>>, vector<2x4xbf16>
    %84 = arith.truncf %82 : vector<4x256xf32> to vector<4x256xbf16>
    %cst_30 = arith.constant dense<0.000000e+00> : vector<2x256xf32>
    %85 = tpu.matmul %83, %84, %cst_30 {dimension_numbers = #tpu.dot_dimension_numbers<[1], [0], [0], [1], [0, 0, 1, 1], [], []>} : vector<2x4xbf16>, vector<4x256xbf16>, vector<2x256xf32> -> vector<2x256xf32>
    %86 = arith.addf %81, %85 : vector<2x256xf32>
    %87 = vector.extract_strided_slice %4 {offsets = [0, 18], sizes = [4, 256], strides = [1, 1]} : vector<4x290xf32> to vector<4x256xf32>
    %c1_i32_31 = arith.constant 1 : i32
    %88 = vector.broadcast %c1_i32_31 : i32 to vector<1x256xi32>
    %89 = arith.addi %21, %88 : vector<1x256xi32>
    %c0_i32_32 = arith.constant 0 : i32
    %90 = vector.broadcast %c0_i32_32 : i32 to vector<1x256xi32>
    %91 = arith.cmpi sge, %89, %90 : vector<1x256xi32>
    %c1_i32_33 = arith.constant 1 : i32
    %92 = vector.broadcast %c1_i32_33 : i32 to vector<1x256xi32>
    %93 = arith.addi %21, %92 : vector<1x256xi32>
    %c16_i32_34 = arith.constant 16 : i32
    %94 = vector.broadcast %c16_i32_34 : i32 to vector<1x256xi32>
    %95 = arith.cmpi slt, %93, %94 : vector<1x256xi32>
    %96 = arith.andi %91, %95 : vector<1x256xi1>
    %cst_35 = arith.constant 0.000000e+00 : f32
    %97 = vector.shape_cast %96 : vector<1x256xi1> to vector<1x256xi1>
    %98 = vector.broadcast %97 : vector<1x256xi1> to vector<4x256xi1>
    %99 = vector.broadcast %cst_35 : f32 to vector<4x256xf32>
    %100 = arith.select %98, %87, %99 : vector<4x256xi1>, vector<4x256xf32>
    %c0_36 = arith.constant 0 : index
    %c20 = arith.constant 20 : index
    %101 = vector.load %arg2[%c0_36, %c20] : memref<2x36xbf16, #tpu.memory_space<vmem>>, vector<2x4xbf16>
    %102 = arith.truncf %100 : vector<4x256xf32> to vector<4x256xbf16>
    %cst_37 = arith.constant dense<0.000000e+00> : vector<2x256xf32>
    %103 = tpu.matmul %101, %102, %cst_37 {dimension_numbers = #tpu.dot_dimension_numbers<[1], [0], [0], [1], [0, 0, 1, 1], [], []>} : vector<2x4xbf16>, vector<4x256xbf16>, vector<2x256xf32> -> vector<2x256xf32>
    %104 = arith.addf %86, %103 : vector<2x256xf32>
    %105 = vector.extract_strided_slice %4 {offsets = [0, 32], sizes = [4, 256], strides = [1, 1]} : vector<4x290xf32> to vector<4x256xf32>
    %c-1_i32_38 = arith.constant -1 : i32
    %106 = vector.broadcast %c-1_i32_38 : i32 to vector<1x256xi32>
    %107 = arith.addi %21, %106 : vector<1x256xi32>
    %c0_i32_39 = arith.constant 0 : i32
    %108 = vector.broadcast %c0_i32_39 : i32 to vector<1x256xi32>
    %109 = arith.cmpi sge, %107, %108 : vector<1x256xi32>
    %c-1_i32_40 = arith.constant -1 : i32
    %110 = vector.broadcast %c-1_i32_40 : i32 to vector<1x256xi32>
    %111 = arith.addi %21, %110 : vector<1x256xi32>
    %c16_i32_41 = arith.constant 16 : i32
    %112 = vector.broadcast %c16_i32_41 : i32 to vector<1x256xi32>
    %113 = arith.cmpi slt, %111, %112 : vector<1x256xi32>
    %114 = arith.andi %109, %113 : vector<1x256xi1>
    %cst_42 = arith.constant 0.000000e+00 : f32
    %115 = vector.shape_cast %114 : vector<1x256xi1> to vector<1x256xi1>
    %116 = vector.broadcast %115 : vector<1x256xi1> to vector<4x256xi1>
    %117 = vector.broadcast %cst_42 : f32 to vector<4x256xf32>
    %118 = arith.select %116, %105, %117 : vector<4x256xi1>, vector<4x256xf32>
    %c0_43 = arith.constant 0 : index
    %c24 = arith.constant 24 : index
    %119 = vector.load %arg2[%c0_43, %c24] : memref<2x36xbf16, #tpu.memory_space<vmem>>, vector<2x4xbf16>
    %120 = arith.truncf %118 : vector<4x256xf32> to vector<4x256xbf16>
    %cst_44 = arith.constant dense<0.000000e+00> : vector<2x256xf32>
    %121 = tpu.matmul %119, %120, %cst_44 {dimension_numbers = #tpu.dot_dimension_numbers<[1], [0], [0], [1], [0, 0, 1, 1], [], []>} : vector<2x4xbf16>, vector<4x256xbf16>, vector<2x256xf32> -> vector<2x256xf32>
    %122 = arith.addf %104, %121 : vector<2x256xf32>
    %123 = vector.extract_strided_slice %4 {offsets = [0, 33], sizes = [4, 256], strides = [1, 1]} : vector<4x290xf32> to vector<4x256xf32>
    %c0_45 = arith.constant 0 : index
    %c28 = arith.constant 28 : index
    %124 = vector.load %arg2[%c0_45, %c28] : memref<2x36xbf16, #tpu.memory_space<vmem>>, vector<2x4xbf16>
    %125 = arith.truncf %123 : vector<4x256xf32> to vector<4x256xbf16>
    %cst_46 = arith.constant dense<0.000000e+00> : vector<2x256xf32>
    %126 = tpu.matmul %124, %125, %cst_46 {dimension_numbers = #tpu.dot_dimension_numbers<[1], [0], [0], [1], [0, 0, 1, 1], [], []>} : vector<2x4xbf16>, vector<4x256xbf16>, vector<2x256xf32> -> vector<2x256xf32>
    %127 = arith.addf %122, %126 : vector<2x256xf32>
    %128 = vector.extract_strided_slice %4 {offsets = [0, 34], sizes = [4, 256], strides = [1, 1]} : vector<4x290xf32> to vector<4x256xf32>
    %c1_i32_47 = arith.constant 1 : i32
    %129 = vector.broadcast %c1_i32_47 : i32 to vector<1x256xi32>
    %130 = arith.addi %21, %129 : vector<1x256xi32>
    %c0_i32_48 = arith.constant 0 : i32
    %131 = vector.broadcast %c0_i32_48 : i32 to vector<1x256xi32>
    %132 = arith.cmpi sge, %130, %131 : vector<1x256xi32>
    %c1_i32_49 = arith.constant 1 : i32
    %133 = vector.broadcast %c1_i32_49 : i32 to vector<1x256xi32>
    %134 = arith.addi %21, %133 : vector<1x256xi32>
    %c16_i32_50 = arith.constant 16 : i32
    %135 = vector.broadcast %c16_i32_50 : i32 to vector<1x256xi32>
    %136 = arith.cmpi slt, %134, %135 : vector<1x256xi32>
    %137 = arith.andi %132, %136 : vector<1x256xi1>
    %cst_51 = arith.constant 0.000000e+00 : f32
    %138 = vector.shape_cast %137 : vector<1x256xi1> to vector<1x256xi1>
    %139 = vector.broadcast %138 : vector<1x256xi1> to vector<4x256xi1>
    %140 = vector.broadcast %cst_51 : f32 to vector<4x256xf32>
    %141 = arith.select %139, %128, %140 : vector<4x256xi1>, vector<4x256xf32>
    %c0_52 = arith.constant 0 : index
    %c32 = arith.constant 32 : index
    %142 = vector.load %arg2[%c0_52, %c32] : memref<2x36xbf16, #tpu.memory_space<vmem>>, vector<2x4xbf16>
    %143 = arith.truncf %141 : vector<4x256xf32> to vector<4x256xbf16>
    %cst_53 = arith.constant dense<0.000000e+00> : vector<2x256xf32>
    %144 = tpu.matmul %142, %143, %cst_53 {dimension_numbers = #tpu.dot_dimension_numbers<[1], [0], [0], [1], [0, 0, 1, 1], [], []>} : vector<2x4xbf16>, vector<4x256xbf16>, vector<2x256xf32> -> vector<2x256xf32>
    %145 = arith.addf %127, %144 : vector<2x256xf32>
    %c0_54 = arith.constant 0 : index
    %c0_55 = arith.constant 0 : index
    %146 = vector.load %arg3[%c0_54, %c0_55] : memref<2x1xf32, #tpu.memory_space<vmem>>, vector<2x1xf32>
    %147 = vector.broadcast %146 : vector<2x1xf32> to vector<2x256xf32>
    %148 = arith.addf %145, %147 : vector<2x256xf32>
    %cst_56 = arith.constant 0.000000e+00 : f32
    %149 = vector.broadcast %cst_56 : f32 to vector<2x256xf32>
    %150 = arith.maximumf %148, %149 : vector<2x256xf32>
    %151 = arith.truncf %150 : vector<2x256xf32> to vector<2x256xbf16>
    %c0_57 = arith.constant 0 : index
    %c0_58 = arith.constant 0 : index
    %152 = vector.load %arg4[%c0_57, %c0_58] : memref<256x1024xbf16, #tpu.memory_space<vmem>>, vector<256x1024xbf16>
    %cst_59 = arith.constant dense<0.000000e+00> : vector<2x1024xf32>
    %153 = tpu.matmul %151, %152, %cst_59 {dimension_numbers = #tpu.dot_dimension_numbers<[1], [0], [0], [1], [0, 0, 1, 1], [], []>} : vector<2x256xbf16>, vector<256x1024xbf16>, vector<2x1024xf32> -> vector<2x1024xf32>
    %c0_60 = arith.constant 0 : index
    %c0_61 = arith.constant 0 : index
    %c0_62 = arith.constant 0 : index
    %154 = vector.load %arg5[%c0_60, %c0_61, %c0_62] : memref<1x2x1024xf32, #tpu.memory_space<vmem>>, vector<1x2x1024xf32>
    %155 = vector.shape_cast %154 : vector<1x2x1024xf32> to vector<2x1024xf32>
    %156 = arith.truncf %155 : vector<2x1024xf32> to vector<2x1024xbf16>
    %c0_63 = arith.constant 0 : index
    %c0_64 = arith.constant 0 : index
    %157 = vector.load %arg7[%c0_63, %c0_64] : memref<2x1xf32, #tpu.memory_space<vmem>>, vector<2x1xf32>
    %158 = vector.broadcast %157 : vector<2x1xf32> to vector<2x1024xf32>
    %159 = arith.addf %153, %158 : vector<2x1024xf32>
    %c0_65 = arith.constant 0 : index
    %c0_66 = arith.constant 0 : index
    %160 = vector.load %arg6[%c0_65, %c0_66] : memref<2x2xbf16, #tpu.memory_space<vmem>>, vector<2x2xbf16>
    %cst_67 = arith.constant dense<0.000000e+00> : vector<2x1024xf32>
    %161 = tpu.matmul %160, %156, %cst_67 {dimension_numbers = #tpu.dot_dimension_numbers<[1], [0], [0], [1], [0, 0, 1, 1], [], []>} : vector<2x2xbf16>, vector<2x1024xbf16>, vector<2x1024xf32> -> vector<2x1024xf32>
    %162 = arith.addf %159, %161 : vector<2x1024xf32>
    %cst_68 = arith.constant dense<0.000000e+00> : vector<2xf32>
    %163 = vector.multi_reduction <add>, %162, %cst_68 [1] : vector<2x1024xf32> to vector<2xf32>
    %164 = vector.shape_cast %163 : vector<2xf32> to vector<2x1xf32>
    %cst_69 = arith.constant 1.024000e+03 : f32
    %165 = vector.broadcast %cst_69 : f32 to vector<2x1xf32>
    %166 = arith.divf %164, %165 : vector<2x1xf32>
    %167 = vector.broadcast %166 : vector<2x1xf32> to vector<2x1024xf32>
    %168 = arith.subf %162, %167 : vector<2x1024xf32>
    %169 = arith.mulf %168, %168 : vector<2x1024xf32>
    %cst_70 = arith.constant dense<0.000000e+00> : vector<2xf32>
    %170 = vector.multi_reduction <add>, %169, %cst_70 [1] : vector<2x1024xf32> to vector<2xf32>
    %171 = vector.shape_cast %170 : vector<2xf32> to vector<2x1xf32>
    %cst_71 = arith.constant 1.024000e+03 : f32
    %172 = vector.broadcast %cst_71 : f32 to vector<2x1xf32>
    %173 = arith.divf %171, %172 : vector<2x1xf32>
    %174 = vector.broadcast %166 : vector<2x1xf32> to vector<2x1024xf32>
    %175 = arith.subf %162, %174 : vector<2x1024xf32>
    %cst_72 = arith.constant 9.99999974E-6 : f32
    %176 = vector.broadcast %cst_72 : f32 to vector<2x1xf32>
    %177 = arith.addf %173, %176 : vector<2x1xf32>
    %178 = math.rsqrt %177 : vector<2x1xf32>
    %179 = vector.broadcast %178 : vector<2x1xf32> to vector<2x1024xf32>
    %180 = arith.mulf %175, %179 : vector<2x1024xf32>
    %c0_73 = arith.constant 0 : index
    %c0_74 = arith.constant 0 : index
    %c0_75 = arith.constant 0 : index
    %c0_76 = arith.constant 0 : index
    %181 = vector.load %arg8[%c0_73, %c0_74, %c0_75, %c0_76] : memref<1x2x2x1024xf32, #tpu.memory_space<vmem>>, vector<1x2x2x1024xf32>
    %182 = vector.extract_strided_slice %181 {offsets = [0, 0, 0, 0], sizes = [1, 1, 2, 1024], strides = [1, 1, 1, 1]} : vector<1x2x2x1024xf32> to vector<1x1x2x1024xf32>
    %183 = vector.shape_cast %182 : vector<1x1x2x1024xf32> to vector<2x1024xf32>
    %184 = arith.mulf %183, %180 : vector<2x1024xf32>
    %185 = vector.extract_strided_slice %181 {offsets = [0, 1, 0, 0], sizes = [1, 1, 2, 1024], strides = [1, 1, 1, 1]} : vector<1x2x2x1024xf32> to vector<1x1x2x1024xf32>
    %186 = vector.shape_cast %185 : vector<1x1x2x1024xf32> to vector<2x1024xf32>
    %187 = arith.addf %184, %186 : vector<2x1024xf32>
    %c0_77 = arith.constant 0 : index
    %c0_78 = arith.constant 0 : index
    %188 = vector.load %arg9[%c0_77, %c0_78] : memref<4x2xbf16, #tpu.memory_space<vmem>>, vector<4x2xbf16>
    %189 = arith.truncf %187 : vector<2x1024xf32> to vector<2x1024xbf16>
    %cst_79 = arith.constant dense<0.000000e+00> : vector<4x1024xf32>
    %190 = tpu.matmul %188, %189, %cst_79 {dimension_numbers = #tpu.dot_dimension_numbers<[1], [0], [0], [1], [0, 0, 1, 1], [], []>} : vector<4x2xbf16>, vector<2x1024xbf16>, vector<4x1024xf32> -> vector<4x1024xf32>
    %c0_80 = arith.constant 0 : index
    %c0_81 = arith.constant 0 : index
    %191 = vector.load %arg10[%c0_80, %c0_81] : memref<4x1xf32, #tpu.memory_space<vmem>>, vector<4x1xf32>
    %192 = vector.broadcast %191 : vector<4x1xf32> to vector<4x1024xf32>
    %193 = arith.addf %190, %192 : vector<4x1024xf32>
    %c0_82 = arith.constant 0 : index
    %c0_83 = arith.constant 0 : index
    %c0_84 = arith.constant 0 : index
    %194 = vector.load %arg11[%c0_82, %c0_83, %c0_84] : memref<1x4x1024xf32, #tpu.memory_space<vmem>>, vector<1x4x1024xf32>
    %195 = vector.shape_cast %194 : vector<1x4x1024xf32> to vector<4x1024xf32>
    %196 = vector.shape_cast %193 : vector<4x1024xf32> to vector<1x4x1024xf32>
    tpu.vector_store %arg11[%c0_82, %c0_83, %c0_84], %196 {strides = array<i32>} : memref<1x4x1024xf32, #tpu.memory_space<vmem>>, vector<1x4x1024xf32>,
    return
  }
  func.func @transform_0(%arg0: i32) -> (i32, i32, i32) {
    %c0_i32 = arith.constant 0 : i32
    %c0_i32_0 = arith.constant 0 : i32
    %c0_i32_1 = arith.constant 0 : i32
    return %arg0, %c0_i32, %c0_i32_0 : i32, i32, i32
  }
  func.func @transform_1(%arg0: i32) -> (i32, i32) {
    %c0_i32 = arith.constant 0 : i32
    %c0_i32_0 = arith.constant 0 : i32
    %c0_i32_1 = arith.constant 0 : i32
    return %c0_i32, %c0_i32_0 : i32, i32
  }
  func.func @transform_2(%arg0: i32) -> (i32, i32) {
    %c0_i32 = arith.constant 0 : i32
    %c0_i32_0 = arith.constant 0 : i32
    %c0_i32_1 = arith.constant 0 : i32
    return %c0_i32, %c0_i32_0 : i32, i32
  }
  func.func @transform_3(%arg0: i32) -> (i32, i32) {
    %c0_i32 = arith.constant 0 : i32
    %c0_i32_0 = arith.constant 0 : i32
    %c0_i32_1 = arith.constant 0 : i32
    return %c0_i32, %c0_i32_0 : i32, i32
  }
  func.func @transform_4(%arg0: i32) -> (i32, i32, i32) {
    %c0_i32 = arith.constant 0 : i32
    %c0_i32_0 = arith.constant 0 : i32
    %c0_i32_1 = arith.constant 0 : i32
    return %arg0, %c0_i32, %c0_i32_0 : i32, i32, i32
  }
  func.func @transform_5(%arg0: i32) -> (i32, i32) {
    %c0_i32 = arith.constant 0 : i32
    %c0_i32_0 = arith.constant 0 : i32
    %c0_i32_1 = arith.constant 0 : i32
    return %c0_i32, %c0_i32_0 : i32, i32
  }
  func.func @transform_6(%arg0: i32) -> (i32, i32) {
    %c0_i32 = arith.constant 0 : i32
    %c0_i32_0 = arith.constant 0 : i32
    %c0_i32_1 = arith.constant 0 : i32
    return %c0_i32, %c0_i32_0 : i32, i32
  }
  func.func @transform_7(%arg0: i32) -> (i32, i32, i32, i32) {
    %c0_i32 = arith.constant 0 : i32
    %c0_i32_0 = arith.constant 0 : i32
    %c0_i32_1 = arith.constant 0 : i32
    %c0_i32_2 = arith.constant 0 : i32
    return %arg0, %c0_i32, %c0_i32_0, %c0_i32_1 : i32, i32, i32, i32
  }
  func.func @transform_8(%arg0: i32) -> (i32, i32) {
    %c0_i32 = arith.constant 0 : i32
    %c0_i32_0 = arith.constant 0 : i32
    %c0_i32_1 = arith.constant 0 : i32
    return %c0_i32, %c0_i32_0 : i32, i32
  }
  func.func @transform_9(%arg0: i32) -> (i32, i32) {
    %c0_i32 = arith.constant 0 : i32
    %c0_i32_0 = arith.constant 0 : i32
    %c0_i32_1 = arith.constant 0 : i32
    return %c0_i32, %c0_i32_0 : i32, i32
  }
  func.func @transform_10(%arg0: i32) -> (i32, i32, i32) {
    %c0_i32 = arith.constant 0 : i32
    %c0_i32_0 = arith.constant 0 : i32
    %c0_i32_1 = arith.constant 0 : i32
    return %arg0, %c0_i32, %c0_i32_0 : i32, i32, i32
  }
}

</mosaic_0001>

<llo_original>
// kernel: style_decoder_forward.8
$region0: #{style_decoder_forward.8}
  #allocation0 [shape = 'u32[]', space=smem, size = 0x4, offset = 0x4, fixed_abs, tag = 'smem constant byte address 0x4 - core index']
  #allocation1 [shape = 'u32[144,128]{1,0:T(1,128)}', space=vmem, size = 0x12000, scoped, tag = 'internal scratch']
  %s0 = inlined_call_operand.vmem [shape: f32[8,1], index: 0, kind: input, shape index: {}]
  %s1 = inlined_call_operand.vmem [shape: f32[2,8,1], index: 1, kind: input, shape index: {}]
  %s2 = inlined_call_operand.vmem [shape: bf16[8,8], index: 2, kind: input, shape index: {}]
  %s3 = inlined_call_operand.vmem [shape: f32[8,1], index: 3, kind: input, shape index: {}]
  %s4 = inlined_call_operand.vmem [shape: f32[2,2,8,1], index: 4, kind: input, shape index: {}]
  %s5 = inlined_call_operand.vmem [shape: bf16[2,8,1], index: 5, kind: output, shape index: {}]
  %s6 = sld [smem:[#allocation0]]
  $region53: #{style_decoder_forward.8} parent=0
    _
  %s8 = ssub.s32 1, %s6
  %s9 = scalar_select 0, %s8, %s6
  loop: start=0, step=1, limit=4
  $region2: #{style_decoder_forward.8} parent=0 // loop_pre_header
    _
  $region3: #{style_decoder_forward.8} parent=0 // loop_header
    %s11 = sphi 0, %s15
    %p12 = scmp.ge.s32.totalorder %s11, 4
    %s19 = sphi 0, %s19
    %s21 = sphi 0, %s19
    %s22 = sphi 0, %s21
    %s36 = sphi 0, %s22
    %s42 = sphi 0, %s44
    %s45 = sphi 0, %s42
    %s46 = sphi 0, %s45
    %s62 = sphi 0, %s46
    %s66 = sphi 0, %s66
    %s68 = sphi 0, %s66
    %s69 = sphi 0, %s68
    %s83 = sphi 0, %s69
    %s87 = sphi 0, %s87
    %s89 = sphi 0, %s87
    %s90 = sphi 0, %s89
    %s104 = sphi 0, %s90
    %s110 = sphi 0, %s112
    %s113 = sphi 0, %s110
    %s114 = sphi 0, %s113
    %s130 = sphi 0, %s114
    %s136 = sphi 0, %s138
    %s139 = sphi 0, %s136
    %s140 = sphi 0, %s139
    %s156 = sphi 0, %s140
  $region4: #{style_decoder_forward.8} parent=0 // loop_header_branch
    %14 = sbr.rel (%p12) target = $region8
  $region5: #{style_decoder_forward.8} parent=0 // loop_body
    %s16 = ssub.s32 %s11, 1
    %s17 = ssub.s32 %s11, 2
    %s18 = sadd.s32 %s11, 1
    %s20 = sadd.s32 %s19, 1
    %p23 = scmp.eq.s32.totalorder %s11, 1
    %p24 = scmp.ne.s32.totalorder %s19, %s21
    %p25 = scmp.eq.s32.totalorder %s11, 0
    %p26 = por %p24, %p25
    %p27 = scmp.ne.s32.totalorder %s19, %s21
    %p28 = scmp.eq.s32.totalorder %s16, 1
    %p29 = por %p27, %p28
    %p30 = scmp.ne.s32.totalorder %s21, %s22
    %p31 = scmp.eq.s32.totalorder %s16, 0
    %p32 = por %p30, %p31
    %p33 = scmp.ne.s32.totalorder %s21, %s22
    %p34 = scmp.eq.s32.totalorder %s17, 1
    %p35 = por %p33, %p34
    %p37 = scmp.ne.s32.totalorder %s22, %s36
    %p38 = scmp.eq.s32.totalorder %s17, 0
    %p39 = por %p37, %p38
    %s40 = ssub.s32 %s11, %s18
    %p41 = scmp.eq.s32.totalorder %s40, 0
    %s43 = sadd.s32 %s42, 1
    %s44 = scalar_select %p41, %s42, %s43
    %p47 = pneg %p41
    %p48 = scmp.eq.s32.totalorder %s11, 1
    %p49 = por %p47, %p48
    %p50 = scmp.ne.s32.totalorder %s42, %s45
    %p51 = scmp.eq.s32.totalorder %s11, 0
    %p52 = por %p50, %p51
    %p53 = scmp.ne.s32.totalorder %s42, %s45
    %p54 = scmp.eq.s32.totalorder %s16, 1
    %p55 = por %p53, %p54
    %p56 = scmp.ne.s32.totalorder %s45, %s46
    %p57 = scmp.eq.s32.totalorder %s16, 0
    %p58 = por %p56, %p57
    %p59 = scmp.ne.s32.totalorder %s45, %s46
    %p60 = scmp.eq.s32.totalorder %s17, 1
    %p61 = por %p59, %p60
    %p63 = scmp.ne.s32.totalorder %s46, %s62
    %p64 = scmp.eq.s32.totalorder %s17, 0
    %p65 = por %p63, %p64
    %s67 = sadd.s32 %s66, 1
    %p70 = scmp.eq.s32.totalorder %s11, 1
    %p71 = scmp.ne.s32.totalorder %s66, %s68
    %p72 = scmp.eq.s32.totalorder %s11, 0
    %p73 = por %p71, %p72
    %p74 = scmp.ne.s32.totalorder %s66, %s68
    %p75 = scmp.eq.s32.totalorder %s16, 1
    %p76 = por %p74, %p75
    %p77 = scmp.ne.s32.totalorder %s68, %s69
    %p78 = scmp.eq.s32.totalorder %s16, 0
    %p79 = por %p77, %p78
    %p80 = scmp.ne.s32.totalorder %s68, %s69
    %p81 = scmp.eq.s32.totalorder %s17, 1
    %p82 = por %p80, %p81
    %p84 = scmp.ne.s32.totalorder %s69, %s83
    %p85 = scmp.eq.s32.totalorder %s17, 0
    %p86 = por %p84, %p85
    %s88 = sadd.s32 %s87, 1
    %p91 = scmp.eq.s32.totalorder %s11, 1
    %p92 = scmp.ne.s32.totalorder %s87, %s89
    %p93 = scmp.eq.s32.totalorder %s11, 0
    %p94 = por %p92, %p93
    %p95 = scmp.ne.s32.totalorder %s87, %s89
    %p96 = scmp.eq.s32.totalorder %s16, 1
    %p97 = por %p95, %p96
    %p98 = scmp.ne.s32.totalorder %s89, %s90
    %p99 = scmp.eq.s32.totalorder %s16, 0
    %p100 = por %p98, %p99
    %p101 = scmp.ne.s32.totalorder %s89, %s90
    %p102 = scmp.eq.s32.totalorder %s17, 1
    %p103 = por %p101, %p102
    %p105 = scmp.ne.s32.totalorder %s90, %s104
    %p106 = scmp.eq.s32.totalorder %s17, 0
    %p107 = por %p105, %p106
    %s108 = ssub.s32 %s11, %s18
    %p109 = scmp.eq.s32.totalorder %s108, 0
    %s111 = sadd.s32 %s110, 1
    %s112 = scalar_select %p109, %s110, %s111
    %p115 = pneg %p109
    %p116 = scmp.eq.s32.totalorder %s11, 1
    %p117 = por %p115, %p116
    %p118 = scmp.ne.s32.totalorder %s110, %s113
    %p119 = scmp.eq.s32.totalorder %s11, 0
    %p120 = por %p118, %p119
    %p121 = scmp.ne.s32.totalorder %s110, %s113
    %p122 = scmp.eq.s32.totalorder %s16, 1
    %p123 = por %p121, %p122
    %p124 = scmp.ne.s32.totalorder %s113, %s114
    %p125 = scmp.eq.s32.totalorder %s16, 0
    %p126 = por %p124, %p125
    %p127 = scmp.ne.s32.totalorder %s113, %s114
    %p128 = scmp.eq.s32.totalorder %s17, 1
    %p129 = por %p127, %p128
    %p131 = scmp.ne.s32.totalorder %s114, %s130
    %p132 = scmp.eq.s32.totalorder %s17, 0
    %p133 = por %p131, %p132
    %s134 = ssub.s32 %s11, %s18
    %p135 = scmp.eq.s32.totalorder %s134, 0
    %s137 = sadd.s32 %s136, 1
    %s138 = scalar_select %p135, %s136, %s137
    %p141 = pneg %p135
    %p142 = scmp.eq.s32.totalorder %s11, 1
    %p143 = por %p141, %p142
    %p144 = scmp.ne.s32.totalorder %s136, %s139
    %p145 = scmp.eq.s32.totalorder %s11, 0
    %p146 = por %p144, %p145
    %p147 = scmp.ne.s32.totalorder %s136, %s139
    %p148 = scmp.eq.s32.totalorder %s16, 1
    %p149 = por %p147, %p148
    %p150 = scmp.ne.s32.totalorder %s139, %s140
    %p151 = scmp.eq.s32.totalorder %s16, 0
    %p152 = por %p150, %p151
    %p153 = scmp.ne.s32.totalorder %s139, %s140
    %p154 = scmp.eq.s32.totalorder %s17, 1
    %p155 = por %p153, %p154
    %p157 = scmp.ne.s32.totalorder %s140, %s156
    %p158 = scmp.eq.s32.totalorder %s17, 0
    %p159 = por %p157, %p158
    %p160 = scmp.le.s32.totalorder 1, %s11
    %p161 = scmp.lt.s32.totalorder %s11, 3
    %p162 = pnand %p160, %p161
    %p163 = pneg %p162
    // Predicated region
    $region9: #{style_decoder_forward.8} parent=5 // pred_check
      _
    $region10: #{style_decoder_forward.8} parent=5 // pred_check_branch
      %165 = sbr.rel (%p162) target = $region12
    $region11: #{style_decoder_forward.8} parent=5 // pred_region
      %s166 = ssub.s32 %s11, 1
      // Predicated region
      $region13: #{style_decoder_forward.8} parent=11 // pred_check
        %p167 = pneg %p32
      $region14: #{style_decoder_forward.8} parent=11 // pred_check_branch
        %169 = sbr.rel (%p167) target = $region16
      $region15: #{style_decoder_forward.8} parent=11 // pred_region
        _
      $region16: #{style_decoder_forward.8} parent=11 // pred_fallthru
        _
      // Predicated region
      $region17: #{style_decoder_forward.8} parent=11 // pred_check
        %p170 = pneg %p79
      $region18: #{style_decoder_forward.8} parent=11 // pred_check_branch
        %172 = sbr.rel (%p170) target = $region20
      $region19: #{style_decoder_forward.8} parent=11 // pred_region
        _
      $region20: #{style_decoder_forward.8} parent=11 // pred_fallthru
        _
      // Predicated region
      $region21: #{style_decoder_forward.8} parent=11 // pred_check
        %p173 = pneg %p100
      $region22: #{style_decoder_forward.8} parent=11 // pred_check_branch
        %175 = sbr.rel (%p173) target = $region24
      $region23: #{style_decoder_forward.8} parent=11 // pred_region
        _
      $region24: #{style_decoder_forward.8} parent=11 // pred_fallthru
        _
    $region12: #{style_decoder_forward.8} parent=5 // pred_fallthru
      _
    %p176 = scmp.lt.s32.totalorder %s11, 2
    // Predicated region
    $region25: #{style_decoder_forward.8} parent=5 // pred_check
      %p177 = pneg %p176
    $region26: #{style_decoder_forward.8} parent=5 // pred_check_branch
      %179 = sbr.rel (%p177) target = $region28
    $region27: #{style_decoder_forward.8} parent=5 // pred_region
      // Predicated region
      $region29: #{style_decoder_forward.8} parent=27 // pred_check
        %p180 = pneg %p52
      $region30: #{style_decoder_forward.8} parent=27 // pred_check_branch
        %182 = sbr.rel (%p180) target = $region32
      $region31: #{style_decoder_forward.8} parent=27 // pred_region
        %p183 = scmp.lt.s32.totalorder %s11, 1
        %s184 = scalar_select %p183, %s11, 1
        %s185 = smul.addr %s184, 8
        %s186 = scalar_lea.vmem %s1, %s185
      $region32: #{style_decoder_forward.8} parent=27 // pred_fallthru
        _
      // Predicated region
      $region33: #{style_decoder_forward.8} parent=27 // pred_check
        %p187 = pneg %p120
      $region34: #{style_decoder_forward.8} parent=27 // pred_check_branch
        %189 = sbr.rel (%p187) target = $region36
      $region35: #{style_decoder_forward.8} parent=27 // pred_region
        %p190 = scmp.lt.s32.totalorder %s11, 1
        %s191 = scalar_select %p190, %s11, 1
        %s192 = smul.addr %s191, 2
        %s193 = smul.addr %s192, 8
        %s194 = scalar_lea.vmem %s4, %s193
      $region36: #{style_decoder_forward.8} parent=27 // pred_fallthru
        _
    $region28: #{style_decoder_forward.8} parent=5 // pred_fallthru
      _
    %p195 = scmp.le.s32.totalorder 1, %s11
    %p196 = scmp.lt.s32.totalorder %s11, 3
    %p197 = pnand %p195, %p196
    %p198 = pneg %p197
    // Predicated region
    $region37: #{style_decoder_forward.8} parent=5 // pred_check
      _
    $region38: #{style_decoder_forward.8} parent=5 // pred_check_branch
      %200 = sbr.rel (%p197) target = $region40
    $region39: #{style_decoder_forward.8} parent=5 // pred_region
      %s201 = ssub.s32 %s11, 1
      %p202 = pneg %p32
      %p203 = pneg %p29
      %p204 = scmp.lt.s32.totalorder %s16, 1
      %s205 = scalar_select %p204, %s16, 1
      %s206 = smul.addr %s205, 8
      %s207 = scalar_lea.vmem %s1, %s206
      %p208 = pneg %p58
      %p209 = pneg %p55
      %p210 = pneg %p79
      %p211 = pneg %p76
      %p212 = pneg %p100
      %p213 = pneg %p97
      %p214 = scmp.lt.s32.totalorder %s16, 1
      %s215 = scalar_select %p214, %s16, 1
      %s216 = smul.addr %s215, 2
      %s217 = smul.addr %s216, 8
      %s218 = scalar_lea.vmem %s4, %s217
      %p219 = pneg %p126
      %p220 = pneg %p123
      %p221 = pneg %p152
      %p222 = pneg %p149
      %p223 = scmp.lt.s32.totalorder %s16, 1
      %s224 = scalar_select %p223, %s16, 1
      %s225 = smul.addr %s224, 4
      %s226 = scalar_lea.vmem %s5, %s225
      %p227 = scmp.lt.s32.totalorder %s16, 1
      %s228 = scalar_select %p227, %s16, 1
      %s229 = smul.addr %s228, 8
      %s230 = scalar_lea.vmem %s1, %s229
      %p231 = scmp.lt.s32.totalorder %s16, 1
      %s232 = scalar_select %p231, %s16, 1
      %s233 = smul.addr %s232, 2
      %s234 = smul.addr %s233, 8
      %s235 = scalar_lea.vmem %s4, %s234
      %p236 = scmp.lt.s32.totalorder %s16, 1
      %s237 = scalar_select %p236, %s16, 1
      %s238 = smul.addr %s237, 4
      %s239 = scalar_lea.vmem %s5, %s238
      %v241 = vld [vmem:[%s230] sm:$0xff]
      %v242 = vpack.c.bf16 %v241, %v241
      %v243 = vld [vmem:[%s0] sm:$0xff]
      %v244 = vld [vmem:[%s3] sm:$0xff]
      %v245 = vadd.f32 %v243, %v244
      %v246 = vld [vmem:[%s2] sm:$0xf]
      %vm247 = vcmask 64512
      %v249 = vsel %vm247, %v246, 0
      %vm251 = vcmask 1043456
      %v253 = vsel %vm251, %v242, 0
      %255 = vmatprep.subr.bf16.mxu0 0
      %256 = vmatpush1.bf16.msra.mxu0 %v253
      %257 = vmatprep.subr.bf16.mxu0 0
      %258 = vmatpush1.bf16.msra.mxu0 0
      %259 = vmatprep.subr.bf16.mxu0 0
      %260 = vmatpush1.bf16.msra.mxu0 0
      %261 = vmatprep.subr.bf16.mxu0 0
      %262 = vmatpush1.bf16.msra.mxu0 0
      %263 = vmatprep.subr.bf16.mxu0 0
      %264 = vmatpush1.bf16.msra.mxu0 0
      %265 = vmatprep.subr.bf16.mxu0 0
      %266 = vmatpush1.bf16.msra.mxu0 0
      %267 = vmatprep.subr.bf16.mxu0 0
      %268 = vmatpush1.bf16.msra.mxu0 0
      %269 = vmatprep.subr.bf16.mxu0 0
      %270 = vmatpush1.bf16.msra.mxu0 0
      %271 = vmatprep.subr.bf16.mxu0 0
      %272 = vmatpush1.bf16.msra.mxu0 0
      %273 = vmatprep.subr.bf16.mxu0 0
      %274 = vmatpush1.bf16.msra.mxu0 0
      %275 = vmatprep.subr.bf16.mxu0 0
      %276 = vmatpush1.bf16.msra.mxu0 0
      %277 = vmatprep.subr.bf16.mxu0 0
      %278 = vmatpush1.bf16.msra.mxu0 0
      %279 = vmatprep.subr.bf16.mxu0 0
      %280 = vmatpush1.bf16.msra.mxu0 0
      %281 = vmatprep.subr.bf16.mxu0 0
      %282 = vmatpush1.bf16.msra.mxu0 0
      %283 = vmatprep.subr.bf16.mxu0 0
      %284 = vmatpush1.bf16.msra.mxu0 0
      %285 = vmatprep.subr.bf16.mxu0 0
      %286 = vmatpush1.bf16.msra.mxu0 0
      %287 = vmatprep.mubr.bf16.mxu0 0
      %288 = vmatmul.mubr.bf16.gmra.mrb[0].mxu0 %v249
      %v289 = vpop.f32.mrb[0].mxu0
      %v290 = vadd.f32 0.0, %v289
      %v291 = vpop.f32.mrb[0].mxu0
      %v292 = vpop.f32.mrb[0].mxu0
      %v293 = vpop.f32.mrb[0].mxu0
      %294 = vdwg.mxu0
      %v295 = vadd.f32 %v245, %v290
      %v296 = vadd.f32 %v295, 0.0
      %v297 = vsub.f32 %v295, %v296
      %v298 = vmul.f32 %v297, %v297
      %v299 = vadd.f32 %v298, 0.0
      %v300 = vadd.f32 %v299, 1e-05
      %v301 = vrsqrt.pop %v300
      %v302 = vmul.f32 %v297, %v301
      %v303 = vld [vmem:[%s235] sm:$0xff]
      %v304 = vld [vmem:[%s235 + $0x8] sm:$0xff]
      %v305 = vmul.f32 %v303, %v302
      %v306 = vadd.f32 %v305, %v304
      %v307 = vpack.c.bf16 %v306, %v306
      %vm308 = vcmask 3072
      %309 = vst.msk [vmem:[%s239] sm:$0xf] %vm308, %v307
      %p310 = scmp.lt.s32.totalorder %s16, 1
      %s311 = scalar_select %p310, %s16, 1
      %s312 = smul.addr %s311, 4
      %s313 = scalar_lea.vmem %s5, %s312
      // Predicated region
      $region41: #{style_decoder_forward.8} parent=39 // pred_check
        %p314 = pneg %p149
      $region42: #{style_decoder_forward.8} parent=39 // pred_check_branch
        %316 = sbr.rel (%p314) target = $region44
      $region43: #{style_decoder_forward.8} parent=39 // pred_region
        _
      $region44: #{style_decoder_forward.8} parent=39 // pred_fallthru
        _
    $region40: #{style_decoder_forward.8} parent=5 // pred_fallthru
      _
    %p317 = scmp.le.s32.totalorder 2, %s11
    // Predicated region
    $region45: #{style_decoder_forward.8} parent=5 // pred_check
      %p318 = pneg %p317
    $region46: #{style_decoder_forward.8} parent=5 // pred_check_branch
      %320 = sbr.rel (%p318) target = $region48
    $region47: #{style_decoder_forward.8} parent=5 // pred_region
      %s321 = ssub.s32 %s11, 2
      // Predicated region
      $region49: #{style_decoder_forward.8} parent=47 // pred_check
        %p322 = pneg %p155
      $region50: #{style_decoder_forward.8} parent=47 // pred_check_branch
        %324 = sbr.rel (%p322) target = $region52
      $region51: #{style_decoder_forward.8} parent=47 // pred_region
        %p325 = scmp.lt.s32.totalorder %s17, 1
        %s326 = scalar_select %p325, %s17, 1
        %s327 = smul.addr %s326, 4
        %s328 = scalar_lea.vmem %s5, %s327
      $region52: #{style_decoder_forward.8} parent=47 // pred_fallthru
        _
    $region48: #{style_decoder_forward.8} parent=5 // pred_fallthru
      _
  $region6: #{style_decoder_forward.8} parent=0 // loop_footer
    %s15 = sadd.s32 1, %s11
  $region7: #{style_decoder_forward.8} parent=0 // loop_footer_branch
    %10 = sbr.rel target = $region3
  $region8: #{style_decoder_forward.8} parent=0 // loop_exit
    _

// kernel: style_decoder_forward.7
$region0: #{style_decoder_forward.7}
  #allocation0 [shape = 'u32[]', space=smem, size = 0x4, offset = 0x4, fixed_abs, tag = 'smem constant byte address 0x4 - core index']
  #allocation1 [shape = 'u32[144,128]{1,0:T(1,128)}', space=vmem, size = 0x12000, scoped, tag = 'internal scratch']
  %s0 = inlined_call_operand.vmem [shape: f32[2,32], index: 0, kind: input, shape index: {}]
  %s1 = inlined_call_operand.vmem [shape: bf16[3,32,32], index: 1, kind: input, shape index: {}]
  %s2 = inlined_call_operand.vmem [shape: f32[3,1,32], index: 2, kind: input, shape index: {}]
  %s3 = inlined_call_operand.hbm [shape: bf16[32,7168], index: 3, kind: input, shape index: {}]
  %s4 = inlined_call_operand.vmem [shape: f32[1,7168], index: 4, kind: input, shape index: {}]
  %s5 = inlined_call_operand.vmem [shape: f32[2,7168], index: 5, kind: output, shape index: {}]
  %s6 = sld [smem:[#allocation0]]
  $region57: #{style_decoder_forward.7} parent=0
    _
  %s8 = ssub.s32 1, %s6
  %s9 = scalar_select 0, %s8, %s6
  $region1: #{style_decoder_forward.7} parent=0
    #allocation2 [shape = 'u8[131072]{0}', space=vmem, size = 0x20000, scoped, tag = 'input window, operand 3']
    #allocation3 [shape = 's32[2]{0}', space=sflag, size = 0x8, scoped, tag = 'scoped memory for style_decoder_forward.7']
    %10 = vsyncpa [#allocation3], 0
    %s11 = scalar_lea.sflag [#allocation3], 1
    %12 = vsyncpa %s11, 0
    loop: start=0, step=1, limit=9
    $region2: #{style_decoder_forward.7} parent=1 // loop_pre_header
      _
    $region3: #{style_decoder_forward.7} parent=1 // loop_header
      %s14 = sphi 0, %s18
      %p15 = scmp.ge.s32.totalorder %s14, 9
      %s22 = sphi 0, %s22
      %s24 = sphi 0, %s22
      %s25 = sphi 0, %s24
      %s39 = sphi 0, %s25
      %s43 = sphi 0, %s43
      %s45 = sphi 0, %s43
      %s46 = sphi 0, %s45
      %s60 = sphi 0, %s46
      %s64 = sphi 0, %s64
      %s66 = sphi 0, %s64
      %s67 = sphi 0, %s66
      %s81 = sphi 0, %s67
      %s87 = sphi 0, %s89
      %s90 = sphi 0, %s87
      %s91 = sphi 0, %s90
      %s107 = sphi 0, %s91
      %s113 = sphi 0, %s115
      %s116 = sphi 0, %s113
      %s117 = sphi 0, %s116
      %s133 = sphi 0, %s117
      %s139 = sphi 0, %s141
      %s142 = sphi 0, %s139
      %s143 = sphi 0, %s142
      %s159 = sphi 0, %s143
    $region4: #{style_decoder_forward.7} parent=1 // loop_header_branch
      %17 = sbr.rel (%p15) target = $region8
    $region5: #{style_decoder_forward.7} parent=1 // loop_body
      %s19 = ssub.s32 %s14, 1
      %s20 = ssub.s32 %s14, 2
      %s21 = sadd.s32 %s14, 1
      %s23 = sadd.s32 %s22, 1
      %p26 = scmp.eq.s32.totalorder %s14, 6
      %p27 = scmp.ne.s32.totalorder %s22, %s24
      %p28 = scmp.eq.s32.totalorder %s14, 0
      %p29 = por %p27, %p28
      %p30 = scmp.ne.s32.totalorder %s22, %s24
      %p31 = scmp.eq.s32.totalorder %s19, 6
      %p32 = por %p30, %p31
      %p33 = scmp.ne.s32.totalorder %s24, %s25
      %p34 = scmp.eq.s32.totalorder %s19, 0
      %p35 = por %p33, %p34
      %p36 = scmp.ne.s32.totalorder %s24, %s25
      %p37 = scmp.eq.s32.totalorder %s20, 6
      %p38 = por %p36, %p37
      %p40 = scmp.ne.s32.totalorder %s25, %s39
      %p41 = scmp.eq.s32.totalorder %s20, 0
      %p42 = por %p40, %p41
      %s44 = sadd.s32 %s43, 1
      %p47 = scmp.eq.s32.totalorder %s14, 6
      %p48 = scmp.ne.s32.totalorder %s43, %s45
      %p49 = scmp.eq.s32.totalorder %s14, 0
      %p50 = por %p48, %p49
      %p51 = scmp.ne.s32.totalorder %s43, %s45
      %p52 = scmp.eq.s32.totalorder %s19, 6
      %p53 = por %p51, %p52
      %p54 = scmp.ne.s32.totalorder %s45, %s46
      %p55 = scmp.eq.s32.totalorder %s19, 0
      %p56 = por %p54, %p55
      %p57 = scmp.ne.s32.totalorder %s45, %s46
      %p58 = scmp.eq.s32.totalorder %s20, 6
      %p59 = por %p57, %p58
      %p61 = scmp.ne.s32.totalorder %s46, %s60
      %p62 = scmp.eq.s32.totalorder %s20, 0
      %p63 = por %p61, %p62
      %s65 = sadd.s32 %s64, 1
      %p68 = scmp.eq.s32.totalorder %s14, 6
      %p69 = scmp.ne.s32.totalorder %s64, %s66
      %p70 = scmp.eq.s32.totalorder %s14, 0
      %p71 = por %p69, %p70
      %p72 = scmp.ne.s32.totalorder %s64, %s66
      %p73 = scmp.eq.s32.totalorder %s19, 6
      %p74 = por %p72, %p73
      %p75 = scmp.ne.s32.totalorder %s66, %s67
      %p76 = scmp.eq.s32.totalorder %s19, 0
      %p77 = por %p75, %p76
      %p78 = scmp.ne.s32.totalorder %s66, %s67
      %p79 = scmp.eq.s32.totalorder %s20, 6
      %p80 = por %p78, %p79
      %p82 = scmp.ne.s32.totalorder %s67, %s81
      %p83 = scmp.eq.s32.totalorder %s20, 0
      %p84 = por %p82, %p83
      %s85 = ssub.s32 %s14, %s21
      %p86 = scmp.eq.s32.totalorder %s85, 0
      %s88 = sadd.s32 %s87, 1
      %s89 = scalar_select %p86, %s87, %s88
      %p92 = pneg %p86
      %p93 = scmp.eq.s32.totalorder %s14, 6
      %p94 = por %p92, %p93
      %p95 = scmp.ne.s32.totalorder %s87, %s90
      %p96 = scmp.eq.s32.totalorder %s14, 0
      %p97 = por %p95, %p96
      %p98 = scmp.ne.s32.totalorder %s87, %s90
      %p99 = scmp.eq.s32.totalorder %s19, 6
      %p100 = por %p98, %p99
      %p101 = scmp.ne.s32.totalorder %s90, %s91
      %p102 = scmp.eq.s32.totalorder %s19, 0
      %p103 = por %p101, %p102
      %p104 = scmp.ne.s32.totalorder %s90, %s91
      %p105 = scmp.eq.s32.totalorder %s20, 6
      %p106 = por %p104, %p105
      %p108 = scmp.ne.s32.totalorder %s91, %s107
      %p109 = scmp.eq.s32.totalorder %s20, 0
      %p110 = por %p108, %p109
      %s111 = ssub.s32 %s14, %s21
      %p112 = scmp.eq.s32.totalorder %s111, 0
      %s114 = sadd.s32 %s113, 1
      %s115 = scalar_select %p112, %s113, %s114
      %p118 = pneg %p112
      %p119 = scmp.eq.s32.totalorder %s14, 6
      %p120 = por %p118, %p119
      %p121 = scmp.ne.s32.totalorder %s113, %s116
      %p122 = scmp.eq.s32.totalorder %s14, 0
      %p123 = por %p121, %p122
      %p124 = scmp.ne.s32.totalorder %s113, %s116
      %p125 = scmp.eq.s32.totalorder %s19, 6
      %p126 = por %p124, %p125
      %p127 = scmp.ne.s32.totalorder %s116, %s117
      %p128 = scmp.eq.s32.totalorder %s19, 0
      %p129 = por %p127, %p128
      %p130 = scmp.ne.s32.totalorder %s116, %s117
      %p131 = scmp.eq.s32.totalorder %s20, 6
      %p132 = por %p130, %p131
      %p134 = scmp.ne.s32.totalorder %s117, %s133
      %p135 = scmp.eq.s32.totalorder %s20, 0
      %p136 = por %p134, %p135
      %s137 = ssub.s32 %s14, %s21
      %p138 = scmp.eq.s32.totalorder %s137, 0
      %s140 = sadd.s32 %s139, 1
      %s141 = scalar_select %p138, %s139, %s140
      %p144 = pneg %p138
      %p145 = scmp.eq.s32.totalorder %s14, 6
      %p146 = por %p144, %p145
      %p147 = scmp.ne.s32.totalorder %s139, %s142
      %p148 = scmp.eq.s32.totalorder %s14, 0
      %p149 = por %p147, %p148
      %p150 = scmp.ne.s32.totalorder %s139, %s142
      %p151 = scmp.eq.s32.totalorder %s19, 6
      %p152 = por %p150, %p151
      %p153 = scmp.ne.s32.totalorder %s142, %s143
      %p154 = scmp.eq.s32.totalorder %s19, 0
      %p155 = por %p153, %p154
      %p156 = scmp.ne.s32.totalorder %s142, %s143
      %p157 = scmp.eq.s32.totalorder %s20, 6
      %p158 = por %p156, %p157
      %p160 = scmp.ne.s32.totalorder %s143, %s159
      %p161 = scmp.eq.s32.totalorder %s20, 0
      %p162 = por %p160, %p161
      %p163 = scmp.le.s32.totalorder 1, %s14
      %p164 = scmp.lt.s32.totalorder %s14, 8
      %p165 = pnand %p163, %p164
      %p166 = pneg %p165
      // Predicated region
      $region9: #{style_decoder_forward.7} parent=5 // pred_check
        _
      $region10: #{style_decoder_forward.7} parent=5 // pred_check_branch
        %168 = sbr.rel (%p165) target = $region12
      $region11: #{style_decoder_forward.7} parent=5 // pred_region
        %s169 = ssub.s32 %s14, 1
        // Predicated region
        $region13: #{style_decoder_forward.7} parent=11 // pred_check
          %p170 = pneg %p35
        $region14: #{style_decoder_forward.7} parent=11 // pred_check_branch
          %172 = sbr.rel (%p170) target = $region16
        $region15: #{style_decoder_forward.7} parent=11 // pred_region
          _
        $region16: #{style_decoder_forward.7} parent=11 // pred_fallthru
          _
        // Predicated region
        $region17: #{style_decoder_forward.7} parent=11 // pred_check
          %p173 = pneg %p56
        $region18: #{style_decoder_forward.7} parent=11 // pred_check_branch
          %175 = sbr.rel (%p173) target = $region20
        $region19: #{style_decoder_forward.7} parent=11 // pred_region
          _
        $region20: #{style_decoder_forward.7} parent=11 // pred_fallthru
          _
        // Predicated region
        $region21: #{style_decoder_forward.7} parent=11 // pred_check
          %p176 = pneg %p77
        $region22: #{style_decoder_forward.7} parent=11 // pred_check_branch
          %178 = sbr.rel (%p176) target = $region24
        $region23: #{style_decoder_forward.7} parent=11 // pred_region
          _
        $region24: #{style_decoder_forward.7} parent=11 // pred_fallthru
          _
      $region12: #{style_decoder_forward.7} parent=5 // pred_fallthru
        _
      %p179 = scmp.lt.s32.totalorder %s14, 7
      // Predicated region
      $region25: #{style_decoder_forward.7} parent=5 // pred_check
        %p180 = pneg %p179
      $region26: #{style_decoder_forward.7} parent=5 // pred_check_branch
        %182 = sbr.rel (%p180) target = $region28
      $region27: #{style_decoder_forward.7} parent=5 // pred_region
        // Predicated region
        $region29: #{style_decoder_forward.7} parent=27 // pred_check
          %p183 = pneg %p97
        $region30: #{style_decoder_forward.7} parent=27 // pred_check_branch
          %185 = sbr.rel (%p183) target = $region32
        $region31: #{style_decoder_forward.7} parent=27 // pred_region
          %s186 = sand.u32 %s87, 1
          %s187 = scalar_lea.sflag [#allocation3], %s186
          %s188 = sand.u32 %s87, 1
          %s189 = smul.addr %s188, 128
          %s190 = scalar_lea.vmem [#allocation2], %s189
          %s191 = smul.u32 8, %s14
          %s193 = ssub.s32 2048, 2048
          %194 = vsyncadd %s187, %s193
          %s195 = smul.addr %s191, 64
          %s196 = scalar_lea.hbm %s3, %s195
          %s197 = sshll.u32 %s190, 4
          %s198 = int_to_ptr.vmem [resolvable:$true] %s197
          %203 = dma.hbm_to_vmem [thread:$0]  %s196, 2048, %s198, %s187, 3584, 512, 32
        $region32: #{style_decoder_forward.7} parent=27 // pred_fallthru
          _
        // Predicated region
        $region33: #{style_decoder_forward.7} parent=27 // pred_check
          %p204 = pneg %p123
        $region34: #{style_decoder_forward.7} parent=27 // pred_check_branch
          %206 = sbr.rel (%p204) target = $region36
        $region35: #{style_decoder_forward.7} parent=27 // pred_region
          %s207 = smul.u32 8, %s14
          %p208 = scmp.lt.s32.totalorder %s207, 55
          %s209 = scalar_select %p208, %s207, 55
          %s210 = scalar_lea.vmem %s4, %s209
          %s211 = smul.u32 8, %s14
        $region36: #{style_decoder_forward.7} parent=27 // pred_fallthru
          _
      $region28: #{style_decoder_forward.7} parent=5 // pred_fallthru
        _
      %p212 = scmp.le.s32.totalorder 1, %s14
      %p213 = scmp.lt.s32.totalorder %s14, 8
      %p214 = pnand %p212, %p213
      %p215 = pneg %p214
      // Predicated region
      $region37: #{style_decoder_forward.7} parent=5 // pred_check
        _
      $region38: #{style_decoder_forward.7} parent=5 // pred_check_branch
        %217 = sbr.rel (%p214) target = $region40
      $region39: #{style_decoder_forward.7} parent=5 // pred_region
        %s218 = ssub.s32 %s14, 1
        %s219 = sand.u32 %s90, 1
        %s220 = scalar_lea.sflag [#allocation3], %s219
        %s221 = sand.u32 %s90, 1
        %s222 = smul.addr %s221, 128
        %s223 = scalar_lea.vmem [#allocation2], %s222
        // Predicated region
        $region41: #{style_decoder_forward.7} parent=39 // pred_check
          %p224 = pneg %p103
        $region42: #{style_decoder_forward.7} parent=39 // pred_check_branch
          %226 = sbr.rel (%p224) target = $region44
        $region43: #{style_decoder_forward.7} parent=39 // pred_region
          %227 = dma.done %s220, 2048
        $region44: #{style_decoder_forward.7} parent=39 // pred_fallthru
          _
        %p228 = pneg %p35
        %p229 = pneg %p32
        %p230 = pneg %p56
        %p231 = pneg %p53
        %p232 = pneg %p77
        %p233 = pneg %p74
        %s234 = sand.u32 %s90, 1
        %s235 = scalar_lea.sflag [#allocation3], %s234
        %s236 = sand.u32 %s90, 1
        %s237 = smul.addr %s236, 128
        %s238 = scalar_lea.vmem [#allocation2], %s237
        %p239 = pneg %p103
        %p240 = pneg %p100
        %s241 = smul.u32 8, %s19
        %p242 = scmp.lt.s32.totalorder %s241, 55
        %s243 = scalar_select %p242, %s241, 55
        %s244 = scalar_lea.vmem %s4, %s243
        %p245 = pneg %p129
        %p246 = pneg %p126
        %p247 = pneg %p155
        %p248 = pneg %p152
        %s249 = smul.u32 8, %s19
        %p250 = scmp.lt.s32.totalorder %s249, 55
        %s251 = scalar_select %p250, %s249, 55
        %s252 = smul.addr %s251, 2
        %s253 = scalar_lea.vmem %s5, %s252
        %s254 = smul.u32 8, %s19
        %s255 = smul.u32 8, %s19
        %p256 = scmp.lt.s32.totalorder %s255, 55
        %s257 = scalar_select %p256, %s255, 55
        %s258 = scalar_lea.vmem %s4, %s257
        %s259 = smul.u32 8, %s19
        %s260 = smul.u32 8, %s19
        %p261 = scmp.lt.s32.totalorder %s260, 55
        %s262 = scalar_select %p261, %s260, 55
        %s263 = smul.addr %s262, 2
        %s264 = scalar_lea.vmem %s5, %s263
        %s265 = smul.u32 8, %s19
        %v267 = vld [vmem:[%s0] sm:$0x3]
        %v268 = vld [vmem:[%s1] sm:$0xf]
        %v269 = vld [vmem:[%s1 + $0x4] sm:$0xf]
        %v270 = vld [vmem:[%s1 + $0x8] sm:$0xf]
        %v271 = vld [vmem:[%s1 + $0xc] sm:$0xf]
        %v272 = vld [vmem:[%s2] sm:$0x1]
        %v273 = vpack.c.bf16 %v267, %v267
        %v275 = vlaneseq
        %v276 = vshrl.u32 %v275, 7
        %v277 = vsub.s32 0, %v276
        %v278 = vrot.slane %v272, %v277
        %v284 = vunpack.c.l.b16 %v268
        %v285 = vunpack.c.l.b16 %v269
        %v286 = vunpack.c.l.b16 %v270
        %v287 = vunpack.c.l.b16 %v271
        %v288 = vpack.c.b16 %v285, %v284
        %v289 = vpack.c.b16 %v287, %v286
        %vm292 = vcmask 261120
        %v294 = vsel %vm292, %v273, 0
        %296 = vmatprep.subr.bf16.mxu0 0
        %297 = vmatpush1.bf16.msra.mxu0 %v288
        %298 = vmatprep.subr.bf16.mxu0 0
        %299 = vmatpush1.bf16.msra.mxu0 %v289
        %300 = vmatprep.subr.bf16.mxu0 0
        %301 = vmatpush1.bf16.msra.mxu0 0
        %302 = vmatprep.subr.bf16.mxu0 0
        %303 = vmatpush1.bf16.msra.mxu0 0
        %304 = vmatprep.subr.bf16.mxu0 0
        %305 = vmatpush1.bf16.msra.mxu0 0
        %306 = vmatprep.subr.bf16.mxu0 0
        %307 = vmatpush1.bf16.msra.mxu0 0
        %308 = vmatprep.subr.bf16.mxu0 0
        %309 = vmatpush1.bf16.msra.mxu0 0
        %310 = vmatprep.subr.bf16.mxu0 0
        %311 = vmatpush1.bf16.msra.mxu0 0
        %312 = vmatprep.subr.bf16.mxu0 0
        %313 = vmatpush1.bf16.msra.mxu0 0
        %314 = vmatprep.subr.bf16.mxu0 0
        %315 = vmatpush1.bf16.msra.mxu0 0
        %316 = vmatprep.subr.bf16.mxu0 0
        %317 = vmatpush1.bf16.msra.mxu0 0
        %318 = vmatprep.subr.bf16.mxu0 0
        %319 = vmatpush1.bf16.msra.mxu0 0
        %320 = vmatprep.subr.bf16.mxu0 0
        %321 = vmatpush1.bf16.msra.mxu0 0
        %322 = vmatprep.subr.bf16.mxu0 0
        %323 = vmatpush1.bf16.msra.mxu0 0
        %324 = vmatprep.subr.bf16.mxu0 0
        %325 = vmatpush1.bf16.msra.mxu0 0
        %326 = vmatprep.subr.bf16.mxu0 0
        %327 = vmatpush1.bf16.msra.mxu0 0
        %328 = vmatprep.mubr.bf16.mxu0 0
        %329 = vmatmul.mubr.bf16.gmra.mrb[0].mxu0 %v294
        %v330 = vpop.f32.mrb[0].mxu0
        %v331 = vadd.f32 %v278, %v330
        %v332 = vpop.f32.mrb[0].mxu0
        %v333 = vpop.f32.mrb[0].mxu0
        %v334 = vpop.f32.mrb[0].mxu0
        %335 = vdwg.mxu0
        %v336 = vmax.f32 %v331, 0.0
        %s337 = scalar_lea.vmem %s1, 16
        %v338 = vld [vmem:[%s337] sm:$0xf]
        %v339 = vld [vmem:[%s337 + $0x4] sm:$0xf]
        %v340 = vld [vmem:[%s337 + $0x8] sm:$0xf]
        %v341 = vld [vmem:[%s337 + $0xc] sm:$0xf]
        %s342 = scalar_lea.vmem %s2, 1
        %v343 = vld [vmem:[%s342] sm:$0x1]
        %v344 = vpack.c.bf16 %v336, %v336
        %v346 = vlaneseq
        %v347 = vshrl.u32 %v346, 7
        %v348 = vsub.s32 0, %v347
        %v349 = vrot.slane %v343, %v348
        %v355 = vunpack.c.l.b16 %v338
        %v356 = vunpack.c.l.b16 %v339
        %v357 = vunpack.c.l.b16 %v340
        %v358 = vunpack.c.l.b16 %v341
        %v359 = vpack.c.b16 %v356, %v355
        %v360 = vpack.c.b16 %v358, %v357
        %v364 = vsel %vm292, %v344, 0
        %366 = vmatprep.subr.bf16.mxu0 0
        %367 = vmatpush1.bf16.msra.mxu0 %v359
        %368 = vmatprep.subr.bf16.mxu0 0
        %369 = vmatpush1.bf16.msra.mxu0 %v360
        %370 = vmatprep.subr.bf16.mxu0 0
        %371 = vmatpush1.bf16.msra.mxu0 0
        %372 = vmatprep.subr.bf16.mxu0 0
        %373 = vmatpush1.bf16.msra.mxu0 0
        %374 = vmatprep.subr.bf16.mxu0 0
        %375 = vmatpush1.bf16.msra.mxu0 0
        %376 = vmatprep.subr.bf16.mxu0 0
        %377 = vmatpush1.bf16.msra.mxu0 0
        %378 = vmatprep.subr.bf16.mxu0 0
        %379 = vmatpush1.bf16.msra.mxu0 0
        %380 = vmatprep.subr.bf16.mxu0 0
        %381 = vmatpush1.bf16.msra.mxu0 0
        %382 = vmatprep.subr.bf16.mxu0 0
        %383 = vmatpush1.bf16.msra.mxu0 0
        %384 = vmatprep.subr.bf16.mxu0 0
        %385 = vmatpush1.bf16.msra.mxu0 0
        %386 = vmatprep.subr.bf16.mxu0 0
        %387 = vmatpush1.bf16.msra.mxu0 0
        %388 = vmatprep.subr.bf16.mxu0 0
        %389 = vmatpush1.bf16.msra.mxu0 0
        %390 = vmatprep.subr.bf16.mxu0 0
        %391 = vmatpush1.bf16.msra.mxu0 0
        %392 = vmatprep.subr.bf16.mxu0 0
        %393 = vmatpush1.bf16.msra.mxu0 0
        %394 = vmatprep.subr.bf16.mxu0 0
        %395 = vmatpush1.bf16.msra.mxu0 0
        %396 = vmatprep.subr.bf16.mxu0 0
        %397 = vmatpush1.bf16.msra.mxu0 0
        %398 = vmatprep.mubr.bf16.mxu0 0
        %399 = vmatmul.mubr.bf16.gmra.mrb[0].mxu0 %v364
        %v400 = vpop.f32.mrb[0].mxu0
        %v401 = vadd.f32 %v349, %v400
        %v402 = vpop.f32.mrb[0].mxu0
        %v403 = vpop.f32.mrb[0].mxu0
        %v404 = vpop.f32.mrb[0].mxu0
        %405 = vdwg.mxu0
        %v406 = vmax.f32 %v401, 0.0
        %s407 = scalar_lea.vmem %s1, 32
        %v408 = vld [vmem:[%s407] sm:$0xf]
        %v409 = vld [vmem:[%s407 + $0x4] sm:$0xf]
        %v410 = vld [vmem:[%s407 + $0x8] sm:$0xf]
        %v411 = vld [vmem:[%s407 + $0xc] sm:$0xf]
        %s412 = scalar_lea.vmem %s2, 2
        %v413 = vld [vmem:[%s412] sm:$0x1]
        %v414 = vpack.c.bf16 %v406, %v406
        %v416 = vlaneseq
        %v417 = vshrl.u32 %v416, 7
        %v418 = vsub.s32 0, %v417
        %v419 = vrot.slane %v413, %v418
        %v425 = vunpack.c.l.b16 %v408
        %v426 = vunpack.c.l.b16 %v409
        %v427 = vunpack.c.l.b16 %v410
        %v428 = vunpack.c.l.b16 %v411
        %v429 = vpack.c.b16 %v426, %v425
        %v430 = vpack.c.b16 %v428, %v427
        %v434 = vsel %vm292, %v414, 0
        %436 = vmatprep.subr.bf16.mxu0 0
        %437 = vmatpush1.bf16.msra.mxu0 %v429
        %438 = vmatprep.subr.bf16.mxu0 0
        %439 = vmatpush1.bf16.msra.mxu0 %v430
        %440 = vmatprep.subr.bf16.mxu0 0
        %441 = vmatpush1.bf16.msra.mxu0 0
        %442 = vmatprep.subr.bf16.mxu0 0
        %443 = vmatpush1.bf16.msra.mxu0 0
        %444 = vmatprep.subr.bf16.mxu0 0
        %445 = vmatpush1.bf16.msra.mxu0 0
        %446 = vmatprep.subr.bf16.mxu0 0
        %447 = vmatpush1.bf16.msra.mxu0 0
        %448 = vmatprep.subr.bf16.mxu0 0
        %449 = vmatpush1.bf16.msra.mxu0 0
        %450 = vmatprep.subr.bf16.mxu0 0
        %451 = vmatpush1.bf16.msra.mxu0 0
        %452 = vmatprep.subr.bf16.mxu0 0
        %453 = vmatpush1.bf16.msra.mxu0 0
        %454 = vmatprep.subr.bf16.mxu0 0
        %455 = vmatpush1.bf16.msra.mxu0 0
        %456 = vmatprep.subr.bf16.mxu0 0
        %457 = vmatpush1.bf16.msra.mxu0 0
        %458 = vmatprep.subr.bf16.mxu0 0
        %459 = vmatpush1.bf16.msra.mxu0 0
        %460 = vmatprep.subr.bf16.mxu0 0
        %461 = vmatpush1.bf16.msra.mxu0 0
        %462 = vmatprep.subr.bf16.mxu0 0
        %463 = vmatpush1.bf16.msra.mxu0 0
        %464 = vmatprep.subr.bf16.mxu0 0
        %465 = vmatpush1.bf16.msra.mxu0 0
        %466 = vmatprep.subr.bf16.mxu0 0
        %467 = vmatpush1.bf16.msra.mxu0 0
        %468 = vmatprep.mubr.bf16.mxu0 0
        %469 = vmatmul.mubr.bf16.gmra.mrb[0].mxu0 %v434
        %v470 = vpop.f32.mrb[0].mxu0
        %v471 = vadd.f32 %v419, %v470
        %v472 = vpop.f32.mrb[0].mxu0
        %v473 = vpop.f32.mrb[0].mxu0
        %v474 = vpop.f32.mrb[0].mxu0
        %475 = vdwg.mxu0
        %v476 = vmax.f32 %v471, 0.0
        %v477 = vpack.c.bf16 %v476, %v476
        %v478 = vld [vmem:[%s223] sm:$0xff]
        %v479 = vld [vmem:[%s223 + $0x8] sm:$0xff]
        %v480 = vld [vmem:[%s223 + $0x10] sm:$0xff]
        %v481 = vld [vmem:[%s223 + $0x18] sm:$0xff]
        %v482 = vld [vmem:[%s223 + $0x20] sm:$0xff]
        %v483 = vld [vmem:[%s223 + $0x28] sm:$0xff]
        %v484 = vld [vmem:[%s223 + $0x30] sm:$0xff]
        %v485 = vld [vmem:[%s223 + $0x38] sm:$0xff]
        %v486 = vld [vmem:[%s223 + $0x40] sm:$0xff]
        %v487 = vld [vmem:[%s223 + $0x48] sm:$0xff]
        %v488 = vld [vmem:[%s223 + $0x50] sm:$0xff]
        %v489 = vld [vmem:[%s223 + $0x58] sm:$0xff]
        %v490 = vld [vmem:[%s223 + $0x60] sm:$0xff]
        %v491 = vld [vmem:[%s223 + $0x68] sm:$0xff]
        %v492 = vld [vmem:[%s223 + $0x70] sm:$0xff]
        %v493 = vld [vmem:[%s223 + $0x78] sm:$0xff]
        %v494 = vld [vmem:[%s258] sm:$0xff]
        %v496 = vlaneseq
        %v497 = vshrl.u32 %v496, 7
        %v498 = vsub.s32 0, %v497
        %v499 = vrot.slane %v494, %v498
        %v500 = vlaneseq
        %v501 = vshrl.u32 %v500, 7
        %v502 = vsub.s32 1, %v501
        %v503 = vrot.slane %v494, %v502
        %v504 = vlaneseq
        %v505 = vshrl.u32 %v504, 7
        %v506 = vsub.s32 2, %v505
        %v507 = vrot.slane %v494, %v506
        %v508 = vlaneseq
        %v509 = vshrl.u32 %v508, 7
        %v510 = vsub.s32 3, %v509
        %v511 = vrot.slane %v494, %v510
        %v512 = vlaneseq
        %v513 = vshrl.u32 %v512, 7
        %v514 = vsub.s32 4, %v513
        %v515 = vrot.slane %v494, %v514
        %v516 = vlaneseq
        %v517 = vshrl.u32 %v516, 7
        %v518 = vsub.s32 5, %v517
        %v519 = vrot.slane %v494, %v518
        %v520 = vlaneseq
        %v521 = vshrl.u32 %v520, 7
        %v522 = vsub.s32 6, %v521
        %v523 = vrot.slane %v494, %v522
        %v524 = vlaneseq
        %v525 = vshrl.u32 %v524, 7
        %v526 = vsub.s32 7, %v525
        %v527 = vrot.slane %v494, %v526
        %v552 = vunpack.c.l.b16 %v478
        %v553 = vunpack.c.h.b16 %v478
        %v554 = vunpack.c.l.b16 %v479
        %v555 = vunpack.c.h.b16 %v479
        %v556 = vunpack.c.l.b16 %v480
        %v557 = vunpack.c.h.b16 %v480
        %v558 = vunpack.c.l.b16 %v481
        %v559 = vunpack.c.h.b16 %v481
        %v560 = vunpack.c.l.b16 %v482
        %v561 = vunpack.c.h.b16 %v482
        %v562 = vunpack.c.l.b16 %v483
        %v563 = vunpack.c.h.b16 %v483
        %v564 = vunpack.c.l.b16 %v484
        %v565 = vunpack.c.h.b16 %v484
        %v566 = vunpack.c.l.b16 %v485
        %v567 = vunpack.c.h.b16 %v485
        %v568 = vunpack.c.l.b16 %v486
        %v569 = vunpack.c.h.b16 %v486
        %v570 = vunpack.c.l.b16 %v487
        %v571 = vunpack.c.h.b16 %v487
        %v572 = vunpack.c.l.b16 %v488
        %v573 = vunpack.c.h.b16 %v488
        %v574 = vunpack.c.l.b16 %v489
        %v575 = vunpack.c.h.b16 %v489
        %v576 = vunpack.c.l.b16 %v490
        %v577 = vunpack.c.h.b16 %v490
        %v578 = vunpack.c.l.b16 %v491
        %v579 = vunpack.c.h.b16 %v491
        %v580 = vunpack.c.l.b16 %v492
        %v581 = vunpack.c.h.b16 %v492
        %v582 = vunpack.c.l.b16 %v493
        %v583 = vunpack.c.h.b16 %v493
        %v584 = vpack.c.b16 %v560, %v552
        %v585 = vpack.c.b16 %v561, %v553
        %v586 = vpack.c.b16 %v562, %v554
        %v587 = vpack.c.b16 %v563, %v555
        %v588 = vpack.c.b16 %v564, %v556
        %v589 = vpack.c.b16 %v565, %v557
        %v590 = vpack.c.b16 %v566, %v558
        %v591 = vpack.c.b16 %v567, %v559
        %v592 = vpack.c.b16 %v576, %v568
        %v593 = vpack.c.b16 %v577, %v569
        %v594 = vpack.c.b16 %v578, %v570
        %v595 = vpack.c.b16 %v579, %v571
        %v596 = vpack.c.b16 %v580, %v572
        %v597 = vpack.c.b16 %v581, %v573
        %v598 = vpack.c.b16 %v582, %v574
        %v599 = vpack.c.b16 %v583, %v575
        %v617 = vsel %vm292, %v477, 0
        %619 = vmatprep.subr.bf16.mxu0 %v585
        %620 = vmatpush1.bf16.msra.mxu0 %v584
        %621 = vmatprep.subr.bf16.mxu0 %v593
        %622 = vmatpush1.bf16.msra.mxu0 %v592
        %623 = vmatprep.subr.bf16.mxu0 0
        %624 = vmatpush1.bf16.msra.mxu0 0
        %625 = vmatprep.subr.bf16.mxu0 0
        %626 = vmatpush1.bf16.msra.mxu0 0
        %627 = vmatprep.subr.bf16.mxu0 0
        %628 = vmatpush1.bf16.msra.mxu0 0
        %629 = vmatprep.subr.bf16.mxu0 0
        %630 = vmatpush1.bf16.msra.mxu0 0
        %631 = vmatprep.subr.bf16.mxu0 0
        %632 = vmatpush1.bf16.msra.mxu0 0
        %633 = vmatprep.subr.bf16.mxu0 0
        %634 = vmatpush1.bf16.msra.mxu0 0
        %635 = vmatprep.subr.bf16.mxu0 0
        %636 = vmatpush1.bf16.msra.mxu0 0
        %637 = vmatprep.subr.bf16.mxu0 0
        %638 = vmatpush1.bf16.msra.mxu0 0
        %639 = vmatprep.subr.bf16.mxu0 0
        %640 = vmatpush1.bf16.msra.mxu0 0
        %641 = vmatprep.subr.bf16.mxu0 0
        %642 = vmatpush1.bf16.msra.mxu0 0
        %643 = vmatprep.subr.bf16.mxu0 0
        %644 = vmatpush1.bf16.msra.mxu0 0
        %645 = vmatprep.subr.bf16.mxu0 0
        %646 = vmatpush1.bf16.msra.mxu0 0
        %647 = vmatprep.subr.bf16.mxu0 0
        %648 = vmatpush1.bf16.msra.mxu0 0
        %649 = vmatprep.subr.bf16.mxu0 0
        %650 = vmatpush1.bf16.msra.mxu0 0
        %651 = vmatprep.mubr.bf16.mxu0 0
        %652 = vmatmul.mubr.bf16.gmra.mrb[0].mxu0 %v617
        %v653 = vpop.f32.mrb[0].mxu0
        %v654 = vadd.f32 %v499, %v653
        %v655 = vpop.f32.mrb[0].mxu0
        %v656 = vadd.f32 %v503, %v655
        %v657 = vpop.f32.mrb[0].mxu0
        %v658 = vpop.f32.mrb[0].mxu0
        %659 = vdwg.mxu0
        %660 = vmatprep.subr.bf16.mxu0 %v587
        %661 = vmatpush1.bf16.msra.mxu0 %v586
        %662 = vmatprep.subr.bf16.mxu0 %v595
        %663 = vmatpush1.bf16.msra.mxu0 %v594
        %664 = vmatprep.subr.bf16.mxu0 0
        %665 = vmatpush1.bf16.msra.mxu0 0
        %666 = vmatprep.subr.bf16.mxu0 0
        %667 = vmatpush1.bf16.msra.mxu0 0
        %668 = vmatprep.subr.bf16.mxu0 0
        %669 = vmatpush1.bf16.msra.mxu0 0
        %670 = vmatprep.subr.bf16.mxu0 0
        %671 = vmatpush1.bf16.msra.mxu0 0
        %672 = vmatprep.subr.bf16.mxu0 0
        %673 = vmatpush1.bf16.msra.mxu0 0
        %674 = vmatprep.subr.bf16.mxu0 0
        %675 = vmatpush1.bf16.msra.mxu0 0
        %676 = vmatprep.subr.bf16.mxu0 0
        %677 = vmatpush1.bf16.msra.mxu0 0
        %678 = vmatprep.subr.bf16.mxu0 0
        %679 = vmatpush1.bf16.msra.mxu0 0
        %680 = vmatprep.subr.bf16.mxu0 0
        %681 = vmatpush1.bf16.msra.mxu0 0
        %682 = vmatprep.subr.bf16.mxu0 0
        %683 = vmatpush1.bf16.msra.mxu0 0
        %684 = vmatprep.subr.bf16.mxu0 0
        %685 = vmatpush1.bf16.msra.mxu0 0
        %686 = vmatprep.subr.bf16.mxu0 0
        %687 = vmatpush1.bf16.msra.mxu0 0
        %688 = vmatprep.subr.bf16.mxu0 0
        %689 = vmatpush1.bf16.msra.mxu0 0
        %690 = vmatprep.subr.bf16.mxu0 0
        %691 = vmatpush1.bf16.msra.mxu0 0
        %692 = vmatprep.mubr.bf16.mxu0 0
        %693 = vmatmul.mubr.bf16.gmra.mrb[0].mxu0 %v617
        %v694 = vpop.f32.mrb[0].mxu0
        %v695 = vadd.f32 %v507, %v694
        %v696 = vpop.f32.mrb[0].mxu0
        %v697 = vadd.f32 %v511, %v696
        %v698 = vpop.f32.mrb[0].mxu0
        %v699 = vpop.f32.mrb[0].mxu0
        %700 = vdwg.mxu0
        %701 = vmatprep.subr.bf16.mxu0 %v589
        %702 = vmatpush1.bf16.msra.mxu0 %v588
        %703 = vmatprep.subr.bf16.mxu0 %v597
        %704 = vmatpush1.bf16.msra.mxu0 %v596
        %705 = vmatprep.subr.bf16.mxu0 0
        %706 = vmatpush1.bf16.msra.mxu0 0
        %707 = vmatprep.subr.bf16.mxu0 0
        %708 = vmatpush1.bf16.msra.mxu0 0
        %709 = vmatprep.subr.bf16.mxu0 0
        %710 = vmatpush1.bf16.msra.mxu0 0
        %711 = vmatprep.subr.bf16.mxu0 0
        %712 = vmatpush1.bf16.msra.mxu0 0
        %713 = vmatprep.subr.bf16.mxu0 0
        %714 = vmatpush1.bf16.msra.mxu0 0
        %715 = vmatprep.subr.bf16.mxu0 0
        %716 = vmatpush1.bf16.msra.mxu0 0
        %717 = vmatprep.subr.bf16.mxu0 0
        %718 = vmatpush1.bf16.msra.mxu0 0
        %719 = vmatprep.subr.bf16.mxu0 0
        %720 = vmatpush1.bf16.msra.mxu0 0
        %721 = vmatprep.subr.bf16.mxu0 0
        %722 = vmatpush1.bf16.msra.mxu0 0
        %723 = vmatprep.subr.bf16.mxu0 0
        %724 = vmatpush1.bf16.msra.mxu0 0
        %725 = vmatprep.subr.bf16.mxu0 0
        %726 = vmatpush1.bf16.msra.mxu0 0
        %727 = vmatprep.subr.bf16.mxu0 0
        %728 = vmatpush1.bf16.msra.mxu0 0
        %729 = vmatprep.subr.bf16.mxu0 0
        %730 = vmatpush1.bf16.msra.mxu0 0
        %731 = vmatprep.subr.bf16.mxu0 0
        %732 = vmatpush1.bf16.msra.mxu0 0
        %733 = vmatprep.mubr.bf16.mxu0 0
        %734 = vmatmul.mubr.bf16.gmra.mrb[0].mxu0 %v617
        %v735 = vpop.f32.mrb[0].mxu0
        %v736 = vadd.f32 %v515, %v735
        %v737 = vpop.f32.mrb[0].mxu0
        %v738 = vadd.f32 %v519, %v737
        %v739 = vpop.f32.mrb[0].mxu0
        %v740 = vpop.f32.mrb[0].mxu0
        %741 = vdwg.mxu0
        %742 = vmatprep.subr.bf16.mxu0 %v591
        %743 = vmatpush1.bf16.msra.mxu0 %v590
        %744 = vmatprep.subr.bf16.mxu0 %v599
        %745 = vmatpush1.bf16.msra.mxu0 %v598
        %746 = vmatprep.subr.bf16.mxu0 0
        %747 = vmatpush1.bf16.msra.mxu0 0
        %748 = vmatprep.subr.bf16.mxu0 0
        %749 = vmatpush1.bf16.msra.mxu0 0
        %750 = vmatprep.subr.bf16.mxu0 0
        %751 = vmatpush1.bf16.msra.mxu0 0
        %752 = vmatprep.subr.bf16.mxu0 0
        %753 = vmatpush1.bf16.msra.mxu0 0
        %754 = vmatprep.subr.bf16.mxu0 0
        %755 = vmatpush1.bf16.msra.mxu0 0
        %756 = vmatprep.subr.bf16.mxu0 0
        %757 = vmatpush1.bf16.msra.mxu0 0
        %758 = vmatprep.subr.bf16.mxu0 0
        %759 = vmatpush1.bf16.msra.mxu0 0
        %760 = vmatprep.subr.bf16.mxu0 0
        %761 = vmatpush1.bf16.msra.mxu0 0
        %762 = vmatprep.subr.bf16.mxu0 0
        %763 = vmatpush1.bf16.msra.mxu0 0
        %764 = vmatprep.subr.bf16.mxu0 0
        %765 = vmatpush1.bf16.msra.mxu0 0
        %766 = vmatprep.subr.bf16.mxu0 0
        %767 = vmatpush1.bf16.msra.mxu0 0
        %768 = vmatprep.subr.bf16.mxu0 0
        %769 = vmatpush1.bf16.msra.mxu0 0
        %770 = vmatprep.subr.bf16.mxu0 0
        %771 = vmatpush1.bf16.msra.mxu0 0
        %772 = vmatprep.subr.bf16.mxu0 0
        %773 = vmatpush1.bf16.msra.mxu0 0
        %774 = vmatprep.mubr.bf16.mxu0 0
        %775 = vmatmul.mubr.bf16.gmra.mrb[0].mxu0 %v617
        %v776 = vpop.f32.mrb[0].mxu0
        %v777 = vadd.f32 %v523, %v776
        %v778 = vpop.f32.mrb[0].mxu0
        %v779 = vadd.f32 %v527, %v778
        %v780 = vpop.f32.mrb[0].mxu0
        %v781 = vpop.f32.mrb[0].mxu0
        %782 = vdwg.mxu0
        %v791 = vcombine.low %v654, %v656
        %v792 = vcombine.low %v695, %v697
        %v794 = vunpack.c.l.s4 1983009808
        %v795 = vunpack.c.0.s8 %v794
        %v796 = vlaneseq
        %v797 = vshrl.u32 %v796, 7
        %v798 = vsub.s32 %v795, %v797
        %v799 = vrot.slane %v791, %v798
        %v801 = vunpack.c.l.s4 1983009808
        %v802 = vunpack.c.0.s8 %v801
        %v803 = vlaneseq
        %v804 = vshrl.u32 %v803, 7
        %v805 = vsub.s32 %v802, %v804
        %v806 = vrot.slane %v792, %v805
        %v807 = vcombine.low %v799, %v806
        %v808 = vcombine.low %v736, %v738
        %v809 = vcombine.low %v777, %v779
        %v811 = vunpack.c.l.s4 1983009808
        %v812 = vunpack.c.0.s8 %v811
        %v813 = vlaneseq
        %v814 = vshrl.u32 %v813, 7
        %v815 = vsub.s32 %v812, %v814
        %v816 = vrot.slane %v808, %v815
        %v818 = vunpack.c.l.s4 1983009808
        %v819 = vunpack.c.0.s8 %v818
        %v820 = vlaneseq
        %v821 = vshrl.u32 %v820, 7
        %v822 = vsub.s32 %v819, %v821
        %v823 = vrot.slane %v809, %v822
        %v824 = vcombine.low %v816, %v823
        %827 = vst [vmem:[%s264] sm:$0xff] %v807
        %828 = vst [vmem:[%s264 + $0x8] sm:$0xff] %v824
        %s829 = smul.u32 8, %s19
        %p830 = scmp.lt.s32.totalorder %s829, 55
        %s831 = scalar_select %p830, %s829, 55
        %s832 = smul.addr %s831, 2
        %s833 = scalar_lea.vmem %s5, %s832
        // Predicated region
        $region45: #{style_decoder_forward.7} parent=39 // pred_check
          %p834 = pneg %p152
        $region46: #{style_decoder_forward.7} parent=39 // pred_check_branch
          %836 = sbr.rel (%p834) target = $region48
        $region47: #{style_decoder_forward.7} parent=39 // pred_region
          %s837 = smul.u32 8, %s19
        $region48: #{style_decoder_forward.7} parent=39 // pred_fallthru
          _
      $region40: #{style_decoder_forward.7} parent=5 // pred_fallthru
        _
      %p838 = scmp.le.s32.totalorder 2, %s14
      // Predicated region
      $region49: #{style_decoder_forward.7} parent=5 // pred_check
        %p839 = pneg %p838
      $region50: #{style_decoder_forward.7} parent=5 // pred_check_branch
        %841 = sbr.rel (%p839) target = $region52
      $region51: #{style_decoder_forward.7} parent=5 // pred_region
        %s842 = ssub.s32 %s14, 2
        // Predicated region
        $region53: #{style_decoder_forward.7} parent=51 // pred_check
          %p843 = pneg %p158
        $region54: #{style_decoder_forward.7} parent=51 // pred_check_branch
          %845 = sbr.rel (%p843) target = $region56
        $region55: #{style_decoder_forward.7} parent=51 // pred_region
          %s846 = smul.u32 8, %s20
          %p847 = scmp.lt.s32.totalorder %s846, 55
          %s848 = scalar_select %p847, %s846, 55
          %s849 = smul.addr %s848, 2
          %s850 = scalar_lea.vmem %s5, %s849
        $region56: #{style_decoder_forward.7} parent=51 // pred_fallthru
          _
      $region52: #{style_decoder_forward.7} parent=5 // pred_fallthru
        _
    $region6: #{style_decoder_forward.7} parent=1 // loop_footer
      %s18 = sadd.s32 1, %s14
    $region7: #{style_decoder_forward.7} parent=1 // loop_footer_branch
      %13 = sbr.rel target = $region3
    $region8: #{style_decoder_forward.7} parent=1 // loop_exit
      _
    %851 = vsyncpa [#allocation3], 1
    %s852 = scalar_lea.sflag [#allocation3], 1
    %853 = vsyncpa %s852, 1

// kernel: style_decoder_forward.9
$region0: #{style_decoder_forward.9}
  #allocation0 [shape = 'u32[]', space=smem, size = 0x4, offset = 0x4, fixed_abs, tag = 'smem constant byte address 0x4 - core index']
  #allocation1 [shape = 'u32[144,128]{1,0:T(1,128)}', space=vmem, size = 0x12000, scoped, tag = 'internal scratch']
  %s0 = inlined_call_operand.vmem [shape: bf16[2,8,1], index: 0, kind: input, shape index: {}]
  %s1 = inlined_call_operand.vmem [shape: bf16[8,72], index: 1, kind: input, shape index: {}]
  %s2 = inlined_call_operand.vmem [shape: f32[8,1], index: 2, kind: input, shape index: {}]
  %s3 = inlined_call_operand.vmem [shape: bf16[1,4], index: 3, kind: input, shape index: {}]
  %s4 = inlined_call_operand.vmem [shape: f32[2,8,4], index: 4, kind: input, shape index: {}]
  %s5 = inlined_call_operand.vmem [shape: bf16[8,8], index: 5, kind: input, shape index: {}]
  %s6 = inlined_call_operand.vmem [shape: f32[8,1], index: 6, kind: input, shape index: {}]
  %s7 = inlined_call_operand.vmem [shape: f32[2,2,8,4], index: 7, kind: input, shape index: {}]
  %s8 = inlined_call_operand.vmem [shape: bf16[2,8,4], index: 8, kind: output, shape index: {}]
  %s9 = sld [smem:[#allocation0]]
  $region65: #{style_decoder_forward.9} parent=0
    _
  %s11 = ssub.s32 1, %s9
  %s12 = scalar_select 0, %s11, %s9
  loop: start=0, step=1, limit=4
  $region2: #{style_decoder_forward.9} parent=0 // loop_pre_header
    _
  $region3: #{style_decoder_forward.9} parent=0 // loop_header
    %s14 = sphi 0, %s18
    %p15 = scmp.ge.s32.totalorder %s14, 4
    %s24 = sphi 0, %s26
    %s27 = sphi 0, %s24
    %s28 = sphi 0, %s27
    %s44 = sphi 0, %s28
    %s48 = sphi 0, %s48
    %s50 = sphi 0, %s48
    %s51 = sphi 0, %s50
    %s65 = sphi 0, %s51
    %s69 = sphi 0, %s69
    %s71 = sphi 0, %s69
    %s72 = sphi 0, %s71
    %s86 = sphi 0, %s72
    %s90 = sphi 0, %s90
    %s92 = sphi 0, %s90
    %s93 = sphi 0, %s92
    %s107 = sphi 0, %s93
    %s113 = sphi 0, %s115
    %s116 = sphi 0, %s113
    %s117 = sphi 0, %s116
    %s133 = sphi 0, %s117
    %s137 = sphi 0, %s137
    %s139 = sphi 0, %s137
    %s140 = sphi 0, %s139
    %s154 = sphi 0, %s140
    %s158 = sphi 0, %s158
    %s160 = sphi 0, %s158
    %s161 = sphi 0, %s160
    %s175 = sphi 0, %s161
    %s181 = sphi 0, %s183
    %s184 = sphi 0, %s181
    %s185 = sphi 0, %s184
    %s201 = sphi 0, %s185
    %s207 = sphi 0, %s209
    %s210 = sphi 0, %s207
    %s211 = sphi 0, %s210
    %s227 = sphi 0, %s211
  $region4: #{style_decoder_forward.9} parent=0 // loop_header_branch
    %17 = sbr.rel (%p15) target = $region8
  $region5: #{style_decoder_forward.9} parent=0 // loop_body
    %s19 = ssub.s32 %s14, 1
    %s20 = ssub.s32 %s14, 2
    %s21 = sadd.s32 %s14, 1
    %s22 = ssub.s32 %s14, %s21
    %p23 = scmp.eq.s32.totalorder %s22, 0
    %s25 = sadd.s32 %s24, 1
    %s26 = scalar_select %p23, %s24, %s25
    %p29 = pneg %p23
    %p30 = scmp.eq.s32.totalorder %s14, 1
    %p31 = por %p29, %p30
    %p32 = scmp.ne.s32.totalorder %s24, %s27
    %p33 = scmp.eq.s32.totalorder %s14, 0
    %p34 = por %p32, %p33
    %p35 = scmp.ne.s32.totalorder %s24, %s27
    %p36 = scmp.eq.s32.totalorder %s19, 1
    %p37 = por %p35, %p36
    %p38 = scmp.ne.s32.totalorder %s27, %s28
    %p39 = scmp.eq.s32.totalorder %s19, 0
    %p40 = por %p38, %p39
    %p41 = scmp.ne.s32.totalorder %s27, %s28
    %p42 = scmp.eq.s32.totalorder %s20, 1
    %p43 = por %p41, %p42
    %p45 = scmp.ne.s32.totalorder %s28, %s44
    %p46 = scmp.eq.s32.totalorder %s20, 0
    %p47 = por %p45, %p46
    %s49 = sadd.s32 %s48, 1
    %p52 = scmp.eq.s32.totalorder %s14, 1
    %p53 = scmp.ne.s32.totalorder %s48, %s50
    %p54 = scmp.eq.s32.totalorder %s14, 0
    %p55 = por %p53, %p54
    %p56 = scmp.ne.s32.totalorder %s48, %s50
    %p57 = scmp.eq.s32.totalorder %s19, 1
    %p58 = por %p56, %p57
    %p59 = scmp.ne.s32.totalorder %s50, %s51
    %p60 = scmp.eq.s32.totalorder %s19, 0
    %p61 = por %p59, %p60
    %p62 = scmp.ne.s32.totalorder %s50, %s51
    %p63 = scmp.eq.s32.totalorder %s20, 1
    %p64 = por %p62, %p63
    %p66 = scmp.ne.s32.totalorder %s51, %s65
    %p67 = scmp.eq.s32.totalorder %s20, 0
    %p68 = por %p66, %p67
    %s70 = sadd.s32 %s69, 1
    %p73 = scmp.eq.s32.totalorder %s14, 1
    %p74 = scmp.ne.s32.totalorder %s69, %s71
    %p75 = scmp.eq.s32.totalorder %s14, 0
    %p76 = por %p74, %p75
    %p77 = scmp.ne.s32.totalorder %s69, %s71
    %p78 = scmp.eq.s32.totalorder %s19, 1
    %p79 = por %p77, %p78
    %p80 = scmp.ne.s32.totalorder %s71, %s72
    %p81 = scmp.eq.s32.totalorder %s19, 0
    %p82 = por %p80, %p81
    %p83 = scmp.ne.s32.totalorder %s71, %s72
    %p84 = scmp.eq.s32.totalorder %s20, 1
    %p85 = por %p83, %p84
    %p87 = scmp.ne.s32.totalorder %s72, %s86
    %p88 = scmp.eq.s32.totalorder %s20, 0
    %p89 = por %p87, %p88
    %s91 = sadd.s32 %s90, 1
    %p94 = scmp.eq.s32.totalorder %s14, 1
    %p95 = scmp.ne.s32.totalorder %s90, %s92
    %p96 = scmp.eq.s32.totalorder %s14, 0
    %p97 = por %p95, %p96
    %p98 = scmp.ne.s32.totalorder %s90, %s92
    %p99 = scmp.eq.s32.totalorder %s19, 1
    %p100 = por %p98, %p99
    %p101 = scmp.ne.s32.totalorder %s92, %s93
    %p102 = scmp.eq.s32.totalorder %s19, 0
    %p103 = por %p101, %p102
    %p104 = scmp.ne.s32.totalorder %s92, %s93
    %p105 = scmp.eq.s32.totalorder %s20, 1
    %p106 = por %p104, %p105
    %p108 = scmp.ne.s32.totalorder %s93, %s107
    %p109 = scmp.eq.s32.totalorder %s20, 0
    %p110 = por %p108, %p109
    %s111 = ssub.s32 %s14, %s21
    %p112 = scmp.eq.s32.totalorder %s111, 0
    %s114 = sadd.s32 %s113, 1
    %s115 = scalar_select %p112, %s113, %s114
    %p118 = pneg %p112
    %p119 = scmp.eq.s32.totalorder %s14, 1
    %p120 = por %p118, %p119
    %p121 = scmp.ne.s32.totalorder %s113, %s116
    %p122 = scmp.eq.s32.totalorder %s14, 0
    %p123 = por %p121, %p122
    %p124 = scmp.ne.s32.totalorder %s113, %s116
    %p125 = scmp.eq.s32.totalorder %s19, 1
    %p126 = por %p124, %p125
    %p127 = scmp.ne.s32.totalorder %s116, %s117
    %p128 = scmp.eq.s32.totalorder %s19, 0
    %p129 = por %p127, %p128
    %p130 = scmp.ne.s32.totalorder %s116, %s117
    %p131 = scmp.eq.s32.totalorder %s20, 1
    %p132 = por %p130, %p131
    %p134 = scmp.ne.s32.totalorder %s117, %s133
    %p135 = scmp.eq.s32.totalorder %s20, 0
    %p136 = por %p134, %p135
    %s138 = sadd.s32 %s137, 1
    %p141 = scmp.eq.s32.totalorder %s14, 1
    %p142 = scmp.ne.s32.totalorder %s137, %s139
    %p143 = scmp.eq.s32.totalorder %s14, 0
    %p144 = por %p142, %p143
    %p145 = scmp.ne.s32.totalorder %s137, %s139
    %p146 = scmp.eq.s32.totalorder %s19, 1
    %p147 = por %p145, %p146
    %p148 = scmp.ne.s32.totalorder %s139, %s140
    %p149 = scmp.eq.s32.totalorder %s19, 0
    %p150 = por %p148, %p149
    %p151 = scmp.ne.s32.totalorder %s139, %s140
    %p152 = scmp.eq.s32.totalorder %s20, 1
    %p153 = por %p151, %p152
    %p155 = scmp.ne.s32.totalorder %s140, %s154
    %p156 = scmp.eq.s32.totalorder %s20, 0
    %p157 = por %p155, %p156
    %s159 = sadd.s32 %s158, 1
    %p162 = scmp.eq.s32.totalorder %s14, 1
    %p163 = scmp.ne.s32.totalorder %s158, %s160
    %p164 = scmp.eq.s32.totalorder %s14, 0
    %p165 = por %p163, %p164
    %p166 = scmp.ne.s32.totalorder %s158, %s160
    %p167 = scmp.eq.s32.totalorder %s19, 1
    %p168 = por %p166, %p167
    %p169 = scmp.ne.s32.totalorder %s160, %s161
    %p170 = scmp.eq.s32.totalorder %s19, 0
    %p171 = por %p169, %p170
    %p172 = scmp.ne.s32.totalorder %s160, %s161
    %p173 = scmp.eq.s32.totalorder %s20, 1
    %p174 = por %p172, %p173
    %p176 = scmp.ne.s32.totalorder %s161, %s175
    %p177 = scmp.eq.s32.totalorder %s20, 0
    %p178 = por %p176, %p177
    %s179 = ssub.s32 %s14, %s21
    %p180 = scmp.eq.s32.totalorder %s179, 0
    %s182 = sadd.s32 %s181, 1
    %s183 = scalar_select %p180, %s181, %s182
    %p186 = pneg %p180
    %p187 = scmp.eq.s32.totalorder %s14, 1
    %p188 = por %p186, %p187
    %p189 = scmp.ne.s32.totalorder %s181, %s184
    %p190 = scmp.eq.s32.totalorder %s14, 0
    %p191 = por %p189, %p190
    %p192 = scmp.ne.s32.totalorder %s181, %s184
    %p193 = scmp.eq.s32.totalorder %s19, 1
    %p194 = por %p192, %p193
    %p195 = scmp.ne.s32.totalorder %s184, %s185
    %p196 = scmp.eq.s32.totalorder %s19, 0
    %p197 = por %p195, %p196
    %p198 = scmp.ne.s32.totalorder %s184, %s185
    %p199 = scmp.eq.s32.totalorder %s20, 1
    %p200 = por %p198, %p199
    %p202 = scmp.ne.s32.totalorder %s185, %s201
    %p203 = scmp.eq.s32.totalorder %s20, 0
    %p204 = por %p202, %p203
    %s205 = ssub.s32 %s14, %s21
    %p206 = scmp.eq.s32.totalorder %s205, 0
    %s208 = sadd.s32 %s207, 1
    %s209 = scalar_select %p206, %s207, %s208
    %p212 = pneg %p206
    %p213 = scmp.eq.s32.totalorder %s14, 1
    %p214 = por %p212, %p213
    %p215 = scmp.ne.s32.totalorder %s207, %s210
    %p216 = scmp.eq.s32.totalorder %s14, 0
    %p217 = por %p215, %p216
    %p218 = scmp.ne.s32.totalorder %s207, %s210
    %p219 = scmp.eq.s32.totalorder %s19, 1
    %p220 = por %p218, %p219
    %p221 = scmp.ne.s32.totalorder %s210, %s211
    %p222 = scmp.eq.s32.totalorder %s19, 0
    %p223 = por %p221, %p222
    %p224 = scmp.ne.s32.totalorder %s210, %s211
    %p225 = scmp.eq.s32.totalorder %s20, 1
    %p226 = por %p224, %p225
    %p228 = scmp.ne.s32.totalorder %s211, %s227
    %p229 = scmp.eq.s32.totalorder %s20, 0
    %p230 = por %p228, %p229
    %p231 = scmp.le.s32.totalorder 1, %s14
    %p232 = scmp.lt.s32.totalorder %s14, 3
    %p233 = pnand %p231, %p232
    %p234 = pneg %p233
    // Predicated region
    $region9: #{style_decoder_forward.9} parent=5 // pred_check
      _
    $region10: #{style_decoder_forward.9} parent=5 // pred_check_branch
      %236 = sbr.rel (%p233) target = $region12
    $region11: #{style_decoder_forward.9} parent=5 // pred_region
      %s237 = ssub.s32 %s14, 1
      // Predicated region
      $region13: #{style_decoder_forward.9} parent=11 // pred_check
        %p238 = pneg %p61
      $region14: #{style_decoder_forward.9} parent=11 // pred_check_branch
        %240 = sbr.rel (%p238) target = $region16
      $region15: #{style_decoder_forward.9} parent=11 // pred_region
        _
      $region16: #{style_decoder_forward.9} parent=11 // pred_fallthru
        _
      // Predicated region
      $region17: #{style_decoder_forward.9} parent=11 // pred_check
        %p241 = pneg %p82
      $region18: #{style_decoder_forward.9} parent=11 // pred_check_branch
        %243 = sbr.rel (%p241) target = $region20
      $region19: #{style_decoder_forward.9} parent=11 // pred_region
        _
      $region20: #{style_decoder_forward.9} parent=11 // pred_fallthru
        _
      // Predicated region
      $region21: #{style_decoder_forward.9} parent=11 // pred_check
        %p244 = pneg %p103
      $region22: #{style_decoder_forward.9} parent=11 // pred_check_branch
        %246 = sbr.rel (%p244) target = $region24
      $region23: #{style_decoder_forward.9} parent=11 // pred_region
        _
      $region24: #{style_decoder_forward.9} parent=11 // pred_fallthru
        _
      // Predicated region
      $region25: #{style_decoder_forward.9} parent=11 // pred_check
        %p247 = pneg %p150
      $region26: #{style_decoder_forward.9} parent=11 // pred_check_branch
        %249 = sbr.rel (%p247) target = $region28
      $region27: #{style_decoder_forward.9} parent=11 // pred_region
        _
      $region28: #{style_decoder_forward.9} parent=11 // pred_fallthru
        _
      // Predicated region
      $region29: #{style_decoder_forward.9} parent=11 // pred_check
        %p250 = pneg %p171
      $region30: #{style_decoder_forward.9} parent=11 // pred_check_branch
        %252 = sbr.rel (%p250) target = $region32
      $region31: #{style_decoder_forward.9} parent=11 // pred_region
        _
      $region32: #{style_decoder_forward.9} parent=11 // pred_fallthru
        _
    $region12: #{style_decoder_forward.9} parent=5 // pred_fallthru
      _
    %p253 = scmp.lt.s32.totalorder %s14, 2
    // Predicated region
    $region33: #{style_decoder_forward.9} parent=5 // pred_check
      %p254 = pneg %p253
    $region34: #{style_decoder_forward.9} parent=5 // pred_check_branch
      %256 = sbr.rel (%p254) target = $region36
    $region35: #{style_decoder_forward.9} parent=5 // pred_region
      // Predicated region
      $region37: #{style_decoder_forward.9} parent=35 // pred_check
        %p257 = pneg %p34
      $region38: #{style_decoder_forward.9} parent=35 // pred_check_branch
        %259 = sbr.rel (%p257) target = $region40
      $region39: #{style_decoder_forward.9} parent=35 // pred_region
        %p260 = scmp.lt.s32.totalorder %s14, 1
        %s261 = scalar_select %p260, %s14, 1
        %s262 = smul.addr %s261, 4
        %s263 = scalar_lea.vmem %s0, %s262
      $region40: #{style_decoder_forward.9} parent=35 // pred_fallthru
        _
      // Predicated region
      $region41: #{style_decoder_forward.9} parent=35 // pred_check
        %p264 = pneg %p123
      $region42: #{style_decoder_forward.9} parent=35 // pred_check_branch
        %266 = sbr.rel (%p264) target = $region44
      $region43: #{style_decoder_forward.9} parent=35 // pred_region
        %p267 = scmp.lt.s32.totalorder %s14, 1
        %s268 = scalar_select %p267, %s14, 1
        %s269 = smul.addr %s268, 8
        %s270 = scalar_lea.vmem %s4, %s269
      $region44: #{style_decoder_forward.9} parent=35 // pred_fallthru
        _
      // Predicated region
      $region45: #{style_decoder_forward.9} parent=35 // pred_check
        %p271 = pneg %p191
      $region46: #{style_decoder_forward.9} parent=35 // pred_check_branch
        %273 = sbr.rel (%p271) target = $region48
      $region47: #{style_decoder_forward.9} parent=35 // pred_region
        %p274 = scmp.lt.s32.totalorder %s14, 1
        %s275 = scalar_select %p274, %s14, 1
        %s276 = smul.addr %s275, 2
        %s277 = smul.addr %s276, 8
        %s278 = scalar_lea.vmem %s7, %s277
      $region48: #{style_decoder_forward.9} parent=35 // pred_fallthru
        _
    $region36: #{style_decoder_forward.9} parent=5 // pred_fallthru
      _
    %p279 = scmp.le.s32.totalorder 1, %s14
    %p280 = scmp.lt.s32.totalorder %s14, 3
    %p281 = pnand %p279, %p280
    %p282 = pneg %p281
    // Predicated region
    $region49: #{style_decoder_forward.9} parent=5 // pred_check
      _
    $region50: #{style_decoder_forward.9} parent=5 // pred_check_branch
      %284 = sbr.rel (%p281) target = $region52
    $region51: #{style_decoder_forward.9} parent=5 // pred_region
      %s285 = ssub.s32 %s14, 1
      %p286 = scmp.lt.s32.totalorder %s19, 1
      %s287 = scalar_select %p286, %s19, 1
      %s288 = smul.addr %s287, 4
      %s289 = scalar_lea.vmem %s0, %s288
      %p290 = pneg %p40
      %p291 = pneg %p37
      %p292 = pneg %p61
      %p293 = pneg %p58
      %p294 = pneg %p82
      %p295 = pneg %p79
      %p296 = pneg %p103
      %p297 = pneg %p100
      %p298 = scmp.lt.s32.totalorder %s19, 1
      %s299 = scalar_select %p298, %s19, 1
      %s300 = smul.addr %s299, 8
      %s301 = scalar_lea.vmem %s4, %s300
      %p302 = pneg %p129
      %p303 = pneg %p126
      %p304 = pneg %p150
      %p305 = pneg %p147
      %p306 = pneg %p171
      %p307 = pneg %p168
      %p308 = scmp.lt.s32.totalorder %s19, 1
      %s309 = scalar_select %p308, %s19, 1
      %s310 = smul.addr %s309, 2
      %s311 = smul.addr %s310, 8
      %s312 = scalar_lea.vmem %s7, %s311
      %p313 = pneg %p197
      %p314 = pneg %p194
      %p315 = pneg %p223
      %p316 = pneg %p220
      %p317 = scmp.lt.s32.totalorder %s19, 1
      %s318 = scalar_select %p317, %s19, 1
      %s319 = smul.addr %s318, 4
      %s320 = scalar_lea.vmem %s8, %s319
      %p321 = scmp.lt.s32.totalorder %s19, 1
      %s322 = scalar_select %p321, %s19, 1
      %s323 = smul.addr %s322, 4
      %s324 = scalar_lea.vmem %s0, %s323
      %p325 = scmp.lt.s32.totalorder %s19, 1
      %s326 = scalar_select %p325, %s19, 1
      %s327 = smul.addr %s326, 8
      %s328 = scalar_lea.vmem %s4, %s327
      %p329 = scmp.lt.s32.totalorder %s19, 1
      %s330 = scalar_select %p329, %s19, 1
      %s331 = smul.addr %s330, 2
      %s332 = smul.addr %s331, 8
      %s333 = scalar_lea.vmem %s7, %s332
      %p334 = scmp.lt.s32.totalorder %s19, 1
      %s335 = scalar_select %p334, %s19, 1
      %s336 = smul.addr %s335, 4
      %s337 = scalar_lea.vmem %s8, %s336
      %v339 = vld [vmem:[%s324] sm:$0xf]
      %v340 = vunpack.c.l.bf16 %v339
      %342 = vrot.lane.b32.xlu0 %v340, 2
      %v343 = vpop.permute.xlu0 %342
      %vm345 = vcmask 15360
      %v346 = vsel %vm345, 0.0, %v343
      %vm347 = vcmask 23552
      %v348 = vsel %vm347, %v346, 0.0
      %v349 = vld [vmem:[%s1] sm:$0xf]
      %v350 = vpack.c.bf16 %v348, %v348
      %v352 = vunpack.c.l.b16 %v349
      %v353 = vpack.c.b16 %v352, %v352
      %354 = vrot.lane.b32.xlu0 %v353, 120
      %v355 = vpop.permute.xlu0 %354
      %357 = vrot.lane.b32.xlu0 %v350, 127
      %v358 = vpop.permute.xlu0 %357
      %vm359 = vcmask 64512
      %v361 = vsel %vm359, %v355, 0
      %vm363 = vcmask 1043456
      %v365 = vsel %vm363, %v358, 0
      %367 = vmatprep.subr.bf16.mxu0 0
      %368 = vmatpush1.bf16.msra.mxu0 %v365
      %369 = vmatprep.subr.bf16.mxu0 0
      %370 = vmatpush1.bf16.msra.mxu0 0
      %371 = vmatprep.subr.bf16.mxu0 0
      %372 = vmatpush1.bf16.msra.mxu0 0
      %373 = vmatprep.subr.bf16.mxu0 0
      %374 = vmatpush1.bf16.msra.mxu0 0
      %375 = vmatprep.subr.bf16.mxu0 0
      %376 = vmatpush1.bf16.msra.mxu0 0
      %377 = vmatprep.subr.bf16.mxu0 0
      %378 = vmatpush1.bf16.msra.mxu0 0
      %379 = vmatprep.subr.bf16.mxu0 0
      %380 = vmatpush1.bf16.msra.mxu0 0
      %381 = vmatprep.subr.bf16.mxu0 0
      %382 = vmatpush1.bf16.msra.mxu0 0
      %383 = vmatprep.subr.bf16.mxu0 0
      %384 = vmatpush1.bf16.msra.mxu0 0
      %385 = vmatprep.subr.bf16.mxu0 0
      %386 = vmatpush1.bf16.msra.mxu0 0
      %387 = vmatprep.subr.bf16.mxu0 0
      %388 = vmatpush1.bf16.msra.mxu0 0
      %389 = vmatprep.subr.bf16.mxu0 0
      %390 = vmatpush1.bf16.msra.mxu0 0
      %391 = vmatprep.subr.bf16.mxu0 0
      %392 = vmatpush1.bf16.msra.mxu0 0
      %393 = vmatprep.subr.bf16.mxu0 0
      %394 = vmatpush1.bf16.msra.mxu0 0
      %395 = vmatprep.subr.bf16.mxu0 0
      %396 = vmatpush1.bf16.msra.mxu0 0
      %397 = vmatprep.subr.bf16.mxu0 0
      %398 = vmatpush1.bf16.msra.mxu0 0
      %399 = vmatprep.mubr.bf16.mxu0 0
      %400 = vmatmul.mubr.bf16.gmra.mrb[0].mxu0 %v361
      %v401 = vpop.f32.mrb[0].mxu0
      %v402 = vadd.f32 0.0, %v401
      %v403 = vpop.f32.mrb[0].mxu0
      %v404 = vpop.f32.mrb[0].mxu0
      %v405 = vpop.f32.mrb[0].mxu0
      %406 = vdwg.mxu0
      %v408 = vsel %vm359, %v349, 0
      %v411 = vsel %vm363, 0, 0
      %413 = vmatprep.subr.bf16.mxu0 0
      %414 = vmatpush1.bf16.msra.mxu0 %v411
      %415 = vmatprep.subr.bf16.mxu0 0
      %416 = vmatpush1.bf16.msra.mxu0 0
      %417 = vmatprep.subr.bf16.mxu0 0
      %418 = vmatpush1.bf16.msra.mxu0 0
      %419 = vmatprep.subr.bf16.mxu0 0
      %420 = vmatpush1.bf16.msra.mxu0 0
      %421 = vmatprep.subr.bf16.mxu0 0
      %422 = vmatpush1.bf16.msra.mxu0 0
      %423 = vmatprep.subr.bf16.mxu0 0
      %424 = vmatpush1.bf16.msra.mxu0 0
      %425 = vmatprep.subr.bf16.mxu0 0
      %426 = vmatpush1.bf16.msra.mxu0 0
      %427 = vmatprep.subr.bf16.mxu0 0
      %428 = vmatpush1.bf16.msra.mxu0 0
      %429 = vmatprep.subr.bf16.mxu0 0
      %430 = vmatpush1.bf16.msra.mxu0 0
      %431 = vmatprep.subr.bf16.mxu0 0
      %432 = vmatpush1.bf16.msra.mxu0 0
      %433 = vmatprep.subr.bf16.mxu0 0
      %434 = vmatpush1.bf16.msra.mxu0 0
      %435 = vmatprep.subr.bf16.mxu0 0
      %436 = vmatpush1.bf16.msra.mxu0 0
      %437 = vmatprep.subr.bf16.mxu0 0
      %438 = vmatpush1.bf16.msra.mxu0 0
      %439 = vmatprep.subr.bf16.mxu0 0
      %440 = vmatpush1.bf16.msra.mxu0 0
      %441 = vmatprep.subr.bf16.mxu0 0
      %442 = vmatpush1.bf16.msra.mxu0 0
      %443 = vmatprep.subr.bf16.mxu0 0
      %444 = vmatpush1.bf16.msra.mxu0 0
      %445 = vmatprep.mubr.bf16.mxu0 0
      %446 = vmatmul.mubr.bf16.gmra.mrb[0].mxu0 %v408
      %v447 = vpop.f32.mrb[0].mxu0
      %v448 = vadd.f32 %v402, %v447
      %v449 = vpop.f32.mrb[0].mxu0
      %v450 = vpop.f32.mrb[0].mxu0
      %v451 = vpop.f32.mrb[0].mxu0
      %452 = vdwg.mxu0
      %453 = vrot.lane.b32.xlu0 %v353, 112
      %v454 = vpop.permute.xlu0 %453
      %v456 = vsel %vm359, %v454, 0
      %458 = vmatprep.subr.bf16.mxu0 0
      %459 = vmatpush1.bf16.msra.mxu0 %v411
      %460 = vmatprep.subr.bf16.mxu0 0
      %461 = vmatpush1.bf16.msra.mxu0 0
      %462 = vmatprep.subr.bf16.mxu0 0
      %463 = vmatpush1.bf16.msra.mxu0 0
      %464 = vmatprep.subr.bf16.mxu0 0
      %465 = vmatpush1.bf16.msra.mxu0 0
      %466 = vmatprep.subr.bf16.mxu0 0
      %467 = vmatpush1.bf16.msra.mxu0 0
      %468 = vmatprep.subr.bf16.mxu0 0
      %469 = vmatpush1.bf16.msra.mxu0 0
      %470 = vmatprep.subr.bf16.mxu0 0
      %471 = vmatpush1.bf16.msra.mxu0 0
      %472 = vmatprep.subr.bf16.mxu0 0
      %473 = vmatpush1.bf16.msra.mxu0 0
      %474 = vmatprep.subr.bf16.mxu0 0
      %475 = vmatpush1.bf16.msra.mxu0 0
      %476 = vmatprep.subr.bf16.mxu0 0
      %477 = vmatpush1.bf16.msra.mxu0 0
      %478 = vmatprep.subr.bf16.mxu0 0
      %479 = vmatpush1.bf16.msra.mxu0 0
      %480 = vmatprep.subr.bf16.mxu0 0
      %481 = vmatpush1.bf16.msra.mxu0 0
      %482 = vmatprep.subr.bf16.mxu0 0
      %483 = vmatpush1.bf16.msra.mxu0 0
      %484 = vmatprep.subr.bf16.mxu0 0
      %485 = vmatpush1.bf16.msra.mxu0 0
      %486 = vmatprep.subr.bf16.mxu0 0
      %487 = vmatpush1.bf16.msra.mxu0 0
      %488 = vmatprep.subr.bf16.mxu0 0
      %489 = vmatpush1.bf16.msra.mxu0 0
      %490 = vmatprep.mubr.bf16.mxu0 0
      %491 = vmatmul.mubr.bf16.gmra.mrb[0].mxu0 %v456
      %v492 = vpop.f32.mrb[0].mxu0
      %v493 = vadd.f32 0.0, %v492
      %v494 = vpop.f32.mrb[0].mxu0
      %v495 = vpop.f32.mrb[0].mxu0
      %v496 = vpop.f32.mrb[0].mxu0
      %497 = vdwg.mxu0
      %v498 = vadd.f32 %v448, %v493
      %499 = vrot.lane.b32.xlu0 %v353, 104
      %v500 = vpop.permute.xlu0 %499
      %v502 = vsel %vm359, %v500, 0
      %504 = vmatprep.subr.bf16.mxu0 0
      %505 = vmatpush1.bf16.msra.mxu0 %v411
      %506 = vmatprep.subr.bf16.mxu0 0
      %507 = vmatpush1.bf16.msra.mxu0 0
      %508 = vmatprep.subr.bf16.mxu0 0
      %509 = vmatpush1.bf16.msra.mxu0 0
      %510 = vmatprep.subr.bf16.mxu0 0
      %511 = vmatpush1.bf16.msra.mxu0 0
      %512 = vmatprep.subr.bf16.mxu0 0
      %513 = vmatpush1.bf16.msra.mxu0 0
      %514 = vmatprep.subr.bf16.mxu0 0
      %515 = vmatpush1.bf16.msra.mxu0 0
      %516 = vmatprep.subr.bf16.mxu0 0
      %517 = vmatpush1.bf16.msra.mxu0 0
      %518 = vmatprep.subr.bf16.mxu0 0
      %519 = vmatpush1.bf16.msra.mxu0 0
      %520 = vmatprep.subr.bf16.mxu0 0
      %521 = vmatpush1.bf16.msra.mxu0 0
      %522 = vmatprep.subr.bf16.mxu0 0
      %523 = vmatpush1.bf16.msra.mxu0 0
      %524 = vmatprep.subr.bf16.mxu0 0
      %525 = vmatpush1.bf16.msra.mxu0 0
      %526 = vmatprep.subr.bf16.mxu0 0
      %527 = vmatpush1.bf16.msra.mxu0 0
      %528 = vmatprep.subr.bf16.mxu0 0
      %529 = vmatpush1.bf16.msra.mxu0 0
      %530 = vmatprep.subr.bf16.mxu0 0
      %531 = vmatpush1.bf16.msra.mxu0 0
      %532 = vmatprep.subr.bf16.mxu0 0
      %533 = vmatpush1.bf16.msra.mxu0 0
      %534 = vmatprep.subr.bf16.mxu0 0
      %535 = vmatpush1.bf16.msra.mxu0 0
      %536 = vmatprep.mubr.bf16.mxu0 0
      %537 = vmatmul.mubr.bf16.gmra.mrb[0].mxu0 %v502
      %v538 = vpop.f32.mrb[0].mxu0
      %v539 = vadd.f32 0.0, %v538
      %v540 = vpop.f32.mrb[0].mxu0
      %v541 = vpop.f32.mrb[0].mxu0
      %v542 = vpop.f32.mrb[0].mxu0
      %543 = vdwg.mxu0
      %v544 = vadd.f32 %v498, %v539
      %545 = vrot.lane.b32.xlu0 %v353, 96
      %v546 = vpop.permute.xlu0 %545
      %547 = vrot.lane.b32.xlu0 %v350, 126
      %v548 = vpop.permute.xlu0 %547
      %v550 = vsel %vm359, %v546, 0
      %v553 = vsel %vm363, %v548, 0
      %555 = vmatprep.subr.bf16.mxu0 0
      %556 = vmatpush1.bf16.msra.mxu0 %v553
      %557 = vmatprep.subr.bf16.mxu0 0
      %558 = vmatpush1.bf16.msra.mxu0 0
      %559 = vmatprep.subr.bf16.mxu0 0
      %560 = vmatpush1.bf16.msra.mxu0 0
      %561 = vmatprep.subr.bf16.mxu0 0
      %562 = vmatpush1.bf16.msra.mxu0 0
      %563 = vmatprep.subr.bf16.mxu0 0
      %564 = vmatpush1.bf16.msra.mxu0 0
      %565 = vmatprep.subr.bf16.mxu0 0
      %566 = vmatpush1.bf16.msra.mxu0 0
      %567 = vmatprep.subr.bf16.mxu0 0
      %568 = vmatpush1.bf16.msra.mxu0 0
      %569 = vmatprep.subr.bf16.mxu0 0
      %570 = vmatpush1.bf16.msra.mxu0 0
      %571 = vmatprep.subr.bf16.mxu0 0
      %572 = vmatpush1.bf16.msra.mxu0 0
      %573 = vmatprep.subr.bf16.mxu0 0
      %574 = vmatpush1.bf16.msra.mxu0 0
      %575 = vmatprep.subr.bf16.mxu0 0
      %576 = vmatpush1.bf16.msra.mxu0 0
      %577 = vmatprep.subr.bf16.mxu0 0
      %578 = vmatpush1.bf16.msra.mxu0 0
      %579 = vmatprep.subr.bf16.mxu0 0
      %580 = vmatpush1.bf16.msra.mxu0 0
      %581 = vmatprep.subr.bf16.mxu0 0
      %582 = vmatpush1.bf16.msra.mxu0 0
      %583 = vmatprep.subr.bf16.mxu0 0
      %584 = vmatpush1.bf16.msra.mxu0 0
      %585 = vmatprep.subr.bf16.mxu0 0
      %586 = vmatpush1.bf16.msra.mxu0 0
      %587 = vmatprep.mubr.bf16.mxu0 0
      %588 = vmatmul.mubr.bf16.gmra.mrb[0].mxu0 %v550
      %v589 = vpop.f32.mrb[0].mxu0
      %v590 = vadd.f32 0.0, %v589
      %v591 = vpop.f32.mrb[0].mxu0
      %v592 = vpop.f32.mrb[0].mxu0
      %v593 = vpop.f32.mrb[0].mxu0
      %594 = vdwg.mxu0
      %v595 = vadd.f32 %v544, %v590
      %596 = vrot.lane.b32.xlu0 %v353, 88
      %v597 = vpop.permute.xlu0 %596
      %v599 = vsel %vm359, %v597, 0
      %601 = vmatprep.subr.bf16.mxu0 0
      %602 = vmatpush1.bf16.msra.mxu0 %v411
      %603 = vmatprep.subr.bf16.mxu0 0
      %604 = vmatpush1.bf16.msra.mxu0 0
      %605 = vmatprep.subr.bf16.mxu0 0
      %606 = vmatpush1.bf16.msra.mxu0 0
      %607 = vmatprep.subr.bf16.mxu0 0
      %608 = vmatpush1.bf16.msra.mxu0 0
      %609 = vmatprep.subr.bf16.mxu0 0
      %610 = vmatpush1.bf16.msra.mxu0 0
      %611 = vmatprep.subr.bf16.mxu0 0
      %612 = vmatpush1.bf16.msra.mxu0 0
      %613 = vmatprep.subr.bf16.mxu0 0
      %614 = vmatpush1.bf16.msra.mxu0 0
      %615 = vmatprep.subr.bf16.mxu0 0
      %616 = vmatpush1.bf16.msra.mxu0 0
      %617 = vmatprep.subr.bf16.mxu0 0
      %618 = vmatpush1.bf16.msra.mxu0 0
      %619 = vmatprep.subr.bf16.mxu0 0
      %620 = vmatpush1.bf16.msra.mxu0 0
      %621 = vmatprep.subr.bf16.mxu0 0
      %622 = vmatpush1.bf16.msra.mxu0 0
      %623 = vmatprep.subr.bf16.mxu0 0
      %624 = vmatpush1.bf16.msra.mxu0 0
      %625 = vmatprep.subr.bf16.mxu0 0
      %626 = vmatpush1.bf16.msra.mxu0 0
      %627 = vmatprep.subr.bf16.mxu0 0
      %628 = vmatpush1.bf16.msra.mxu0 0
      %629 = vmatprep.subr.bf16.mxu0 0
      %630 = vmatpush1.bf16.msra.mxu0 0
      %631 = vmatprep.subr.bf16.mxu0 0
      %632 = vmatpush1.bf16.msra.mxu0 0
      %633 = vmatprep.mubr.bf16.mxu0 0
      %634 = vmatmul.mubr.bf16.gmra.mrb[0].mxu0 %v599
      %v635 = vpop.f32.mrb[0].mxu0
      %v636 = vadd.f32 0.0, %v635
      %v637 = vpop.f32.mrb[0].mxu0
      %v638 = vpop.f32.mrb[0].mxu0
      %v639 = vpop.f32.mrb[0].mxu0
      %640 = vdwg.mxu0
      %v641 = vadd.f32 %v595, %v636
      %642 = vrot.lane.b32.xlu0 %v353, 80
      %v643 = vpop.permute.xlu0 %642
      %v645 = vsel %vm359, %v643, 0
      %647 = vmatprep.subr.bf16.mxu0 0
      %648 = vmatpush1.bf16.msra.mxu0 %v411
      %649 = vmatprep.subr.bf16.mxu0 0
      %650 = vmatpush1.bf16.msra.mxu0 0
      %651 = vmatprep.subr.bf16.mxu0 0
      %652 = vmatpush1.bf16.msra.mxu0 0
      %653 = vmatprep.subr.bf16.mxu0 0
      %654 = vmatpush1.bf16.msra.mxu0 0
      %655 = vmatprep.subr.bf16.mxu0 0
      %656 = vmatpush1.bf16.msra.mxu0 0
      %657 = vmatprep.subr.bf16.mxu0 0
      %658 = vmatpush1.bf16.msra.mxu0 0
      %659 = vmatprep.subr.bf16.mxu0 0
      %660 = vmatpush1.bf16.msra.mxu0 0
      %661 = vmatprep.subr.bf16.mxu0 0
      %662 = vmatpush1.bf16.msra.mxu0 0
      %663 = vmatprep.subr.bf16.mxu0 0
      %664 = vmatpush1.bf16.msra.mxu0 0
      %665 = vmatprep.subr.bf16.mxu0 0
      %666 = vmatpush1.bf16.msra.mxu0 0
      %667 = vmatprep.subr.bf16.mxu0 0
      %668 = vmatpush1.bf16.msra.mxu0 0
      %669 = vmatprep.subr.bf16.mxu0 0
      %670 = vmatpush1.bf16.msra.mxu0 0
      %671 = vmatprep.subr.bf16.mxu0 0
      %672 = vmatpush1.bf16.msra.mxu0 0
      %673 = vmatprep.subr.bf16.mxu0 0
      %674 = vmatpush1.bf16.msra.mxu0 0
      %675 = vmatprep.subr.bf16.mxu0 0
      %676 = vmatpush1.bf16.msra.mxu0 0
      %677 = vmatprep.subr.bf16.mxu0 0
      %678 = vmatpush1.bf16.msra.mxu0 0
      %679 = vmatprep.mubr.bf16.mxu0 0
      %680 = vmatmul.mubr.bf16.gmra.mrb[0].mxu0 %v645
      %v681 = vpop.f32.mrb[0].mxu0
      %v682 = vadd.f32 0.0, %v681
      %v683 = vpop.f32.mrb[0].mxu0
      %v684 = vpop.f32.mrb[0].mxu0
      %v685 = vpop.f32.mrb[0].mxu0
      %686 = vdwg.mxu0
      %v687 = vadd.f32 %v641, %v682
      %688 = vrot.lane.b32.xlu0 %v353, 72
      %v689 = vpop.permute.xlu0 %688
      %690 = vrot.lane.b32.xlu0 %v350, 125
      %v691 = vpop.permute.xlu0 %690
      %v693 = vsel %vm359, %v689, 0
      %v696 = vsel %vm363, %v691, 0
      %698 = vmatprep.subr.bf16.mxu0 0
      %699 = vmatpush1.bf16.msra.mxu0 %v696
      %700 = vmatprep.subr.bf16.mxu0 0
      %701 = vmatpush1.bf16.msra.mxu0 0
      %702 = vmatprep.subr.bf16.mxu0 0
      %703 = vmatpush1.bf16.msra.mxu0 0
      %704 = vmatprep.subr.bf16.mxu0 0
      %705 = vmatpush1.bf16.msra.mxu0 0
      %706 = vmatprep.subr.bf16.mxu0 0
      %707 = vmatpush1.bf16.msra.mxu0 0
      %708 = vmatprep.subr.bf16.mxu0 0
      %709 = vmatpush1.bf16.msra.mxu0 0
      %710 = vmatprep.subr.bf16.mxu0 0
      %711 = vmatpush1.bf16.msra.mxu0 0
      %712 = vmatprep.subr.bf16.mxu0 0
      %713 = vmatpush1.bf16.msra.mxu0 0
      %714 = vmatprep.subr.bf16.mxu0 0
      %715 = vmatpush1.bf16.msra.mxu0 0
      %716 = vmatprep.subr.bf16.mxu0 0
      %717 = vmatpush1.bf16.msra.mxu0 0
      %718 = vmatprep.subr.bf16.mxu0 0
      %719 = vmatpush1.bf16.msra.mxu0 0
      %720 = vmatprep.subr.bf16.mxu0 0
      %721 = vmatpush1.bf16.msra.mxu0 0
      %722 = vmatprep.subr.bf16.mxu0 0
      %723 = vmatpush1.bf16.msra.mxu0 0
      %724 = vmatprep.subr.bf16.mxu0 0
      %725 = vmatpush1.bf16.msra.mxu0 0
      %726 = vmatprep.subr.bf16.mxu0 0
      %727 = vmatpush1.bf16.msra.mxu0 0
      %728 = vmatprep.subr.bf16.mxu0 0
      %729 = vmatpush1.bf16.msra.mxu0 0
      %730 = vmatprep.mubr.bf16.mxu0 0
      %731 = vmatmul.mubr.bf16.gmra.mrb[0].mxu0 %v693
      %v732 = vpop.f32.mrb[0].mxu0
      %v733 = vadd.f32 0.0, %v732
      %v734 = vpop.f32.mrb[0].mxu0
      %v735 = vpop.f32.mrb[0].mxu0
      %v736 = vpop.f32.mrb[0].mxu0
      %737 = vdwg.mxu0
      %v738 = vadd.f32 %v687, %v733
      %739 = vrot.lane.b32.xlu0 %v353, 64
      %v740 = vpop.permute.xlu0 %739
      %v742 = vsel %vm359, %v740, 0
      %744 = vmatprep.subr.bf16.mxu0 0
      %745 = vmatpush1.bf16.msra.mxu0 %v411
      %746 = vmatprep.subr.bf16.mxu0 0
      %747 = vmatpush1.bf16.msra.mxu0 0
      %748 = vmatprep.subr.bf16.mxu0 0
      %749 = vmatpush1.bf16.msra.mxu0 0
      %750 = vmatprep.subr.bf16.mxu0 0
      %751 = vmatpush1.bf16.msra.mxu0 0
      %752 = vmatprep.subr.bf16.mxu0 0
      %753 = vmatpush1.bf16.msra.mxu0 0
      %754 = vmatprep.subr.bf16.mxu0 0
      %755 = vmatpush1.bf16.msra.mxu0 0
      %756 = vmatprep.subr.bf16.mxu0 0
      %757 = vmatpush1.bf16.msra.mxu0 0
      %758 = vmatprep.subr.bf16.mxu0 0
      %759 = vmatpush1.bf16.msra.mxu0 0
      %760 = vmatprep.subr.bf16.mxu0 0
      %761 = vmatpush1.bf16.msra.mxu0 0
      %762 = vmatprep.subr.bf16.mxu0 0
      %763 = vmatpush1.bf16.msra.mxu0 0
      %764 = vmatprep.subr.bf16.mxu0 0
      %765 = vmatpush1.bf16.msra.mxu0 0
      %766 = vmatprep.subr.bf16.mxu0 0
      %767 = vmatpush1.bf16.msra.mxu0 0
      %768 = vmatprep.subr.bf16.mxu0 0
      %769 = vmatpush1.bf16.msra.mxu0 0
      %770 = vmatprep.subr.bf16.mxu0 0
      %771 = vmatpush1.bf16.msra.mxu0 0
      %772 = vmatprep.subr.bf16.mxu0 0
      %773 = vmatpush1.bf16.msra.mxu0 0
      %774 = vmatprep.subr.bf16.mxu0 0
      %775 = vmatpush1.bf16.msra.mxu0 0
      %776 = vmatprep.mubr.bf16.mxu0 0
      %777 = vmatmul.mubr.bf16.gmra.mrb[0].mxu0 %v742
      %v778 = vpop.f32.mrb[0].mxu0
      %v779 = vadd.f32 0.0, %v778
      %v780 = vpop.f32.mrb[0].mxu0
      %v781 = vpop.f32.mrb[0].mxu0
      %v782 = vpop.f32.mrb[0].mxu0
      %783 = vdwg.mxu0
      %v784 = vadd.f32 %v738, %v779
      %v785 = vld [vmem:[%s2] sm:$0xff]
      %v786 = vadd.f32 %v784, %v785
      %v787 = vmax.f32 %v786, 0.0
      %v788 = vpack.c.bf16 %v787, %v787
      %v789 = vld [vmem:[%s3] sm:$0x1]
      %v790 = vld [vmem:[%s328] sm:$0xff]
      %v791 = vpack.c.bf16 %v790, %v790
      %v792 = vld [vmem:[%s6] sm:$0xff]
      %794 = vset.pattern.permute.xlu0 0
      %795 = vperm.xlu0 %794, %v792
      %v796 = vpop.permute.xlu0 %795
      %vm798 = vcmask 7168
      %v800 = vsel %vm798, %v788, 0
      %vm802 = vcmask 1040384
      %v803 = vsel 0, 4294967295, 65535
      %v804 = vsel %vm802, %v803, 0
      %v806 = vand.u32 %v789, %v804
      %808 = vmatprep.subr.bf16.mxu0 0
      %809 = vmatpush1.bf16.msra.mxu0 %v806
      %810 = vmatprep.subr.bf16.mxu0 0
      %811 = vmatpush1.bf16.msra.mxu0 0
      %812 = vmatprep.subr.bf16.mxu0 0
      %813 = vmatpush1.bf16.msra.mxu0 0
      %814 = vmatprep.subr.bf16.mxu0 0
      %815 = vmatpush1.bf16.msra.mxu0 0
      %816 = vmatprep.subr.bf16.mxu0 0
      %817 = vmatpush1.bf16.msra.mxu0 0
      %818 = vmatprep.subr.bf16.mxu0 0
      %819 = vmatpush1.bf16.msra.mxu0 0
      %820 = vmatprep.subr.bf16.mxu0 0
      %821 = vmatpush1.bf16.msra.mxu0 0
      %822 = vmatprep.subr.bf16.mxu0 0
      %823 = vmatpush1.bf16.msra.mxu0 0
      %824 = vmatprep.subr.bf16.mxu0 0
      %825 = vmatpush1.bf16.msra.mxu0 0
      %826 = vmatprep.subr.bf16.mxu0 0
      %827 = vmatpush1.bf16.msra.mxu0 0
      %828 = vmatprep.subr.bf16.mxu0 0
      %829 = vmatpush1.bf16.msra.mxu0 0
      %830 = vmatprep.subr.bf16.mxu0 0
      %831 = vmatpush1.bf16.msra.mxu0 0
      %832 = vmatprep.subr.bf16.mxu0 0
      %833 = vmatpush1.bf16.msra.mxu0 0
      %834 = vmatprep.subr.bf16.mxu0 0
      %835 = vmatpush1.bf16.msra.mxu0 0
      %836 = vmatprep.subr.bf16.mxu0 0
      %837 = vmatpush1.bf16.msra.mxu0 0
      %838 = vmatprep.subr.bf16.mxu0 0
      %839 = vmatpush1.bf16.msra.mxu0 0
      %840 = vmatprep.mubr.bf16.mxu0 0
      %841 = vmatmul.mubr.bf16.gmra.mrb[0].mxu0 %v800
      %v842 = vpop.f32.mrb[0].mxu0
      %v843 = vadd.f32 %v796, %v842
      %v844 = vpop.f32.mrb[0].mxu0
      %v845 = vpop.f32.mrb[0].mxu0
      %v846 = vpop.f32.mrb[0].mxu0
      %847 = vdwg.mxu0
      %v848 = vld [vmem:[%s5] sm:$0xf]
      %v850 = vsel %vm359, %v848, 0
      %v853 = vsel %vm363, %v791, 0
      %855 = vmatprep.subr.bf16.mxu0 0
      %856 = vmatpush1.bf16.msra.mxu0 %v853
      %857 = vmatprep.subr.bf16.mxu0 0
      %858 = vmatpush1.bf16.msra.mxu0 0
      %859 = vmatprep.subr.bf16.mxu0 0
      %860 = vmatpush1.bf16.msra.mxu0 0
      %861 = vmatprep.subr.bf16.mxu0 0
      %862 = vmatpush1.bf16.msra.mxu0 0
      %863 = vmatprep.subr.bf16.mxu0 0
      %864 = vmatpush1.bf16.msra.mxu0 0
      %865 = vmatprep.subr.bf16.mxu0 0
      %866 = vmatpush1.bf16.msra.mxu0 0
      %867 = vmatprep.subr.bf16.mxu0 0
      %868 = vmatpush1.bf16.msra.mxu0 0
      %869 = vmatprep.subr.bf16.mxu0 0
      %870 = vmatpush1.bf16.msra.mxu0 0
      %871 = vmatprep.subr.bf16.mxu0 0
      %872 = vmatpush1.bf16.msra.mxu0 0
      %873 = vmatprep.subr.bf16.mxu0 0
      %874 = vmatpush1.bf16.msra.mxu0 0
      %875 = vmatprep.subr.bf16.mxu0 0
      %876 = vmatpush1.bf16.msra.mxu0 0
      %877 = vmatprep.subr.bf16.mxu0 0
      %878 = vmatpush1.bf16.msra.mxu0 0
      %879 = vmatprep.subr.bf16.mxu0 0
      %880 = vmatpush1.bf16.msra.mxu0 0
      %881 = vmatprep.subr.bf16.mxu0 0
      %882 = vmatpush1.bf16.msra.mxu0 0
      %883 = vmatprep.subr.bf16.mxu0 0
      %884 = vmatpush1.bf16.msra.mxu0 0
      %885 = vmatprep.subr.bf16.mxu0 0
      %886 = vmatpush1.bf16.msra.mxu0 0
      %887 = vmatprep.mubr.bf16.mxu0 0
      %888 = vmatmul.mubr.bf16.gmra.mrb[0].mxu0 %v850
      %v889 = vpop.f32.mrb[0].mxu0
      %v890 = vadd.f32 0.0, %v889
      %v891 = vpop.f32.mrb[0].mxu0
      %v892 = vpop.f32.mrb[0].mxu0
      %v893 = vpop.f32.mrb[0].mxu0
      %894 = vdwg.mxu0
      %v895 = vadd.f32 %v843, %v890
      %vm896 = vcmask 31744
      %v897 = vsel %vm896, %v895, 0.0
      %898 = vadd.xlane.f32.xlu0 %v897
      %v899 = vpop.xlane.xlu0 %898
      %v900 = vrcp.pop 4.0
      %v901 = vmul.f32 %v899, %v900
      %v902 = vsub.f32 %v895, %v901
      %v903 = vmul.f32 %v902, %v902
      %v904 = vsel %vm896, %v903, 0.0
      %905 = vadd.xlane.f32.xlu0 %v904
      %v906 = vpop.xlane.xlu0 %905
      %v907 = vmul.f32 %v906, %v900
      %v908 = vadd.f32 %v907, 1e-05
      %v909 = vrsqrt.pop %v908
      %v910 = vmul.f32 %v902, %v909
      %v911 = vld [vmem:[%s333] sm:$0xff]
      %v912 = vld [vmem:[%s333 + $0x8] sm:$0xff]
      %v913 = vmul.f32 %v911, %v910
      %v914 = vadd.f32 %v913, %v912
      %v915 = vpack.c.bf16 %v914, %v914
      %vm916 = vcmask 27648
      %917 = vst.msk [vmem:[%s337] sm:$0xf] %vm916, %v915
      %p918 = scmp.lt.s32.totalorder %s19, 1
      %s919 = scalar_select %p918, %s19, 1
      %s920 = smul.addr %s919, 4
      %s921 = scalar_lea.vmem %s8, %s920
      // Predicated region
      $region53: #{style_decoder_forward.9} parent=51 // pred_check
        %p922 = pneg %p220
      $region54: #{style_decoder_forward.9} parent=51 // pred_check_branch
        %924 = sbr.rel (%p922) target = $region56
      $region55: #{style_decoder_forward.9} parent=51 // pred_region
        _
      $region56: #{style_decoder_forward.9} parent=51 // pred_fallthru
        _
    $region52: #{style_decoder_forward.9} parent=5 // pred_fallthru
      _
    %p925 = scmp.le.s32.totalorder 2, %s14
    // Predicated region
    $region57: #{style_decoder_forward.9} parent=5 // pred_check
      %p926 = pneg %p925
    $region58: #{style_decoder_forward.9} parent=5 // pred_check_branch
      %928 = sbr.rel (%p926) target = $region60
    $region59: #{style_decoder_forward.9} parent=5 // pred_region
      %s929 = ssub.s32 %s14, 2
      // Predicated region
      $region61: #{style_decoder_forward.9} parent=59 // pred_check
        %p930 = pneg %p226
      $region62: #{style_decoder_forward.9} parent=59 // pred_check_branch
        %932 = sbr.rel (%p930) target = $region64
      $region63: #{style_decoder_forward.9} parent=59 // pred_region
        %p933 = scmp.lt.s32.totalorder %s20, 1
        %s934 = scalar_select %p933, %s20, 1
        %s935 = smul.addr %s934, 4
        %s936 = scalar_lea.vmem %s8, %s935
      $region64: #{style_decoder_forward.9} parent=59 // pred_fallthru
        _
    $region60: #{style_decoder_forward.9} parent=5 // pred_fallthru
      _
  $region6: #{style_decoder_forward.9} parent=0 // loop_footer
    %s18 = sadd.s32 1, %s14
  $region7: #{style_decoder_forward.9} parent=0 // loop_footer_branch
    %13 = sbr.rel target = $region3
  $region8: #{style_decoder_forward.9} parent=0 // loop_exit
    _

// kernel: style_decoder_forward.10
$region0: #{style_decoder_forward.10}
  #allocation0 [shape = 'u32[]', space=smem, size = 0x4, offset = 0x4, fixed_abs, tag = 'smem constant byte address 0x4 - core index']
  #allocation1 [shape = 'u32[144,128]{1,0:T(1,128)}', space=vmem, size = 0x12000, scoped, tag = 'internal scratch']
  %s0 = inlined_call_operand.vmem [shape: bf16[2,8,4], index: 0, kind: input, shape index: {}]
  %s1 = inlined_call_operand.vmem [shape: bf16[8,72], index: 1, kind: input, shape index: {}]
  %s2 = inlined_call_operand.vmem [shape: f32[8,1], index: 2, kind: input, shape index: {}]
  %s3 = inlined_call_operand.vmem [shape: bf16[4,16], index: 3, kind: input, shape index: {}]
  %s4 = inlined_call_operand.vmem [shape: f32[2,8,16], index: 4, kind: input, shape index: {}]
  %s5 = inlined_call_operand.vmem [shape: bf16[8,8], index: 5, kind: input, shape index: {}]
  %s6 = inlined_call_operand.vmem [shape: f32[8,1], index: 6, kind: input, shape index: {}]
  %s7 = inlined_call_operand.vmem [shape: f32[2,2,8,16], index: 7, kind: input, shape index: {}]
  %s8 = inlined_call_operand.vmem [shape: bf16[2,8,16], index: 8, kind: output, shape index: {}]
  %s9 = sld [smem:[#allocation0]]
  $region65: #{style_decoder_forward.10} parent=0
    _
  %s11 = ssub.s32 1, %s9
  %s12 = scalar_select 0, %s11, %s9
  loop: start=0, step=1, limit=4
  $region2: #{style_decoder_forward.10} parent=0 // loop_pre_header
    _
  $region3: #{style_decoder_forward.10} parent=0 // loop_header
    %s14 = sphi 0, %s18
    %p15 = scmp.ge.s32.totalorder %s14, 4
    %s24 = sphi 0, %s26
    %s27 = sphi 0, %s24
    %s28 = sphi 0, %s27
    %s44 = sphi 0, %s28
    %s48 = sphi 0, %s48
    %s50 = sphi 0, %s48
    %s51 = sphi 0, %s50
    %s65 = sphi 0, %s51
    %s69 = sphi 0, %s69
    %s71 = sphi 0, %s69
    %s72 = sphi 0, %s71
    %s86 = sphi 0, %s72
    %s90 = sphi 0, %s90
    %s92 = sphi 0, %s90
    %s93 = sphi 0, %s92
    %s107 = sphi 0, %s93
    %s113 = sphi 0, %s115
    %s116 = sphi 0, %s113
    %s117 = sphi 0, %s116
    %s133 = sphi 0, %s117
    %s137 = sphi 0, %s137
    %s139 = sphi 0, %s137
    %s140 = sphi 0, %s139
    %s154 = sphi 0, %s140
    %s158 = sphi 0, %s158
    %s160 = sphi 0, %s158
    %s161 = sphi 0, %s160
    %s175 = sphi 0, %s161
    %s181 = sphi 0, %s183
    %s184 = sphi 0, %s181
    %s185 = sphi 0, %s184
    %s201 = sphi 0, %s185
    %s207 = sphi 0, %s209
    %s210 = sphi 0, %s207
    %s211 = sphi 0, %s210
    %s227 = sphi 0, %s211
  $region4: #{style_decoder_forward.10} parent=0 // loop_header_branch
    %17 = sbr.rel (%p15) target = $region8
  $region5: #{style_decoder_forward.10} parent=0 // loop_body
    %s19 = ssub.s32 %s14, 1
    %s20 = ssub.s32 %s14, 2
    %s21 = sadd.s32 %s14, 1
    %s22 = ssub.s32 %s14, %s21
    %p23 = scmp.eq.s32.totalorder %s22, 0
    %s25 = sadd.s32 %s24, 1
    %s26 = scalar_select %p23, %s24, %s25
    %p29 = pneg %p23
    %p30 = scmp.eq.s32.totalorder %s14, 1
    %p31 = por %p29, %p30
    %p32 = scmp.ne.s32.totalorder %s24, %s27
    %p33 = scmp.eq.s32.totalorder %s14, 0
    %p34 = por %p32, %p33
    %p35 = scmp.ne.s32.totalorder %s24, %s27
    %p36 = scmp.eq.s32.totalorder %s19, 1
    %p37 = por %p35, %p36
    %p38 = scmp.ne.s32.totalorder %s27, %s28
    %p39 = scmp.eq.s32.totalorder %s19, 0
    %p40 = por %p38, %p39
    %p41 = scmp.ne.s32.totalorder %s27, %s28
    %p42 = scmp.eq.s32.totalorder %s20, 1
    %p43 = por %p41, %p42
    %p45 = scmp.ne.s32.totalorder %s28, %s44
    %p46 = scmp.eq.s32.totalorder %s20, 0
    %p47 = por %p45, %p46
    %s49 = sadd.s32 %s48, 1
    %p52 = scmp.eq.s32.totalorder %s14, 1
    %p53 = scmp.ne.s32.totalorder %s48, %s50
    %p54 = scmp.eq.s32.totalorder %s14, 0
    %p55 = por %p53, %p54
    %p56 = scmp.ne.s32.totalorder %s48, %s50
    %p57 = scmp.eq.s32.totalorder %s19, 1
    %p58 = por %p56, %p57
    %p59 = scmp.ne.s32.totalorder %s50, %s51
    %p60 = scmp.eq.s32.totalorder %s19, 0
    %p61 = por %p59, %p60
    %p62 = scmp.ne.s32.totalorder %s50, %s51
    %p63 = scmp.eq.s32.totalorder %s20, 1
    %p64 = por %p62, %p63
    %p66 = scmp.ne.s32.totalorder %s51, %s65
    %p67 = scmp.eq.s32.totalorder %s20, 0
    %p68 = por %p66, %p67
    %s70 = sadd.s32 %s69, 1
    %p73 = scmp.eq.s32.totalorder %s14, 1
    %p74 = scmp.ne.s32.totalorder %s69, %s71
    %p75 = scmp.eq.s32.totalorder %s14, 0
    %p76 = por %p74, %p75
    %p77 = scmp.ne.s32.totalorder %s69, %s71
    %p78 = scmp.eq.s32.totalorder %s19, 1
    %p79 = por %p77, %p78
    %p80 = scmp.ne.s32.totalorder %s71, %s72
    %p81 = scmp.eq.s32.totalorder %s19, 0
    %p82 = por %p80, %p81
    %p83 = scmp.ne.s32.totalorder %s71, %s72
    %p84 = scmp.eq.s32.totalorder %s20, 1
    %p85 = por %p83, %p84
    %p87 = scmp.ne.s32.totalorder %s72, %s86
    %p88 = scmp.eq.s32.totalorder %s20, 0
    %p89 = por %p87, %p88
    %s91 = sadd.s32 %s90, 1
    %p94 = scmp.eq.s32.totalorder %s14, 1
    %p95 = scmp.ne.s32.totalorder %s90, %s92
    %p96 = scmp.eq.s32.totalorder %s14, 0
    %p97 = por %p95, %p96
    %p98 = scmp.ne.s32.totalorder %s90, %s92
    %p99 = scmp.eq.s32.totalorder %s19, 1
    %p100 = por %p98, %p99
    %p101 = scmp.ne.s32.totalorder %s92, %s93
    %p102 = scmp.eq.s32.totalorder %s19, 0
    %p103 = por %p101, %p102
    %p104 = scmp.ne.s32.totalorder %s92, %s93
    %p105 = scmp.eq.s32.totalorder %s20, 1
    %p106 = por %p104, %p105
    %p108 = scmp.ne.s32.totalorder %s93, %s107
    %p109 = scmp.eq.s32.totalorder %s20, 0
    %p110 = por %p108, %p109
    %s111 = ssub.s32 %s14, %s21
    %p112 = scmp.eq.s32.totalorder %s111, 0
    %s114 = sadd.s32 %s113, 1
    %s115 = scalar_select %p112, %s113, %s114
    %p118 = pneg %p112
    %p119 = scmp.eq.s32.totalorder %s14, 1
    %p120 = por %p118, %p119
    %p121 = scmp.ne.s32.totalorder %s113, %s116
    %p122 = scmp.eq.s32.totalorder %s14, 0
    %p123 = por %p121, %p122
    %p124 = scmp.ne.s32.totalorder %s113, %s116
    %p125 = scmp.eq.s32.totalorder %s19, 1
    %p126 = por %p124, %p125
    %p127 = scmp.ne.s32.totalorder %s116, %s117
    %p128 = scmp.eq.s32.totalorder %s19, 0
    %p129 = por %p127, %p128
    %p130 = scmp.ne.s32.totalorder %s116, %s117
    %p131 = scmp.eq.s32.totalorder %s20, 1
    %p132 = por %p130, %p131
    %p134 = scmp.ne.s32.totalorder %s117, %s133
    %p135 = scmp.eq.s32.totalorder %s20, 0
    %p136 = por %p134, %p135
    %s138 = sadd.s32 %s137, 1
    %p141 = scmp.eq.s32.totalorder %s14, 1
    %p142 = scmp.ne.s32.totalorder %s137, %s139
    %p143 = scmp.eq.s32.totalorder %s14, 0
    %p144 = por %p142, %p143
    %p145 = scmp.ne.s32.totalorder %s137, %s139
    %p146 = scmp.eq.s32.totalorder %s19, 1
    %p147 = por %p145, %p146
    %p148 = scmp.ne.s32.totalorder %s139, %s140
    %p149 = scmp.eq.s32.totalorder %s19, 0
    %p150 = por %p148, %p149
    %p151 = scmp.ne.s32.totalorder %s139, %s140
    %p152 = scmp.eq.s32.totalorder %s20, 1
    %p153 = por %p151, %p152
    %p155 = scmp.ne.s32.totalorder %s140, %s154
    %p156 = scmp.eq.s32.totalorder %s20, 0
    %p157 = por %p155, %p156
    %s159 = sadd.s32 %s158, 1
    %p162 = scmp.eq.s32.totalorder %s14, 1
    %p163 = scmp.ne.s32.totalorder %s158, %s160
    %p164 = scmp.eq.s32.totalorder %s14, 0
    %p165 = por %p163, %p164
    %p166 = scmp.ne.s32.totalorder %s158, %s160
    %p167 = scmp.eq.s32.totalorder %s19, 1
    %p168 = por %p166, %p167
    %p169 = scmp.ne.s32.totalorder %s160, %s161
    %p170 = scmp.eq.s32.totalorder %s19, 0
    %p171 = por %p169, %p170
    %p172 = scmp.ne.s32.totalorder %s160, %s161
    %p173 = scmp.eq.s32.totalorder %s20, 1
    %p174 = por %p172, %p173
    %p176 = scmp.ne.s32.totalorder %s161, %s175
    %p177 = scmp.eq.s32.totalorder %s20, 0
    %p178 = por %p176, %p177
    %s179 = ssub.s32 %s14, %s21
    %p180 = scmp.eq.s32.totalorder %s179, 0
    %s182 = sadd.s32 %s181, 1
    %s183 = scalar_select %p180, %s181, %s182
    %p186 = pneg %p180
    %p187 = scmp.eq.s32.totalorder %s14, 1
    %p188 = por %p186, %p187
    %p189 = scmp.ne.s32.totalorder %s181, %s184
    %p190 = scmp.eq.s32.totalorder %s14, 0
    %p191 = por %p189, %p190
    %p192 = scmp.ne.s32.totalorder %s181, %s184
    %p193 = scmp.eq.s32.totalorder %s19, 1
    %p194 = por %p192, %p193
    %p195 = scmp.ne.s32.totalorder %s184, %s185
    %p196 = scmp.eq.s32.totalorder %s19, 0
    %p197 = por %p195, %p196
    %p198 = scmp.ne.s32.totalorder %s184, %s185
    %p199 = scmp.eq.s32.totalorder %s20, 1
    %p200 = por %p198, %p199
    %p202 = scmp.ne.s32.totalorder %s185, %s201
    %p203 = scmp.eq.s32.totalorder %s20, 0
    %p204 = por %p202, %p203
    %s205 = ssub.s32 %s14, %s21
    %p206 = scmp.eq.s32.totalorder %s205, 0
    %s208 = sadd.s32 %s207, 1
    %s209 = scalar_select %p206, %s207, %s208
    %p212 = pneg %p206
    %p213 = scmp.eq.s32.totalorder %s14, 1
    %p214 = por %p212, %p213
    %p215 = scmp.ne.s32.totalorder %s207, %s210
    %p216 = scmp.eq.s32.totalorder %s14, 0
    %p217 = por %p215, %p216
    %p218 = scmp.ne.s32.totalorder %s207, %s210
    %p219 = scmp.eq.s32.totalorder %s19, 1
    %p220 = por %p218, %p219
    %p221 = scmp.ne.s32.totalorder %s210, %s211
    %p222 = scmp.eq.s32.totalorder %s19, 0
    %p223 = por %p221, %p222
    %p224 = scmp.ne.s32.totalorder %s210, %s211
    %p225 = scmp.eq.s32.totalorder %s20, 1
    %p226 = por %p224, %p225
    %p228 = scmp.ne.s32.totalorder %s211, %s227
    %p229 = scmp.eq.s32.totalorder %s20, 0
    %p230 = por %p228, %p229
    %p231 = scmp.le.s32.totalorder 1, %s14
    %p232 = scmp.lt.s32.totalorder %s14, 3
    %p233 = pnand %p231, %p232
    %p234 = pneg %p233
    // Predicated region
    $region9: #{style_decoder_forward.10} parent=5 // pred_check
      _
    $region10: #{style_decoder_forward.10} parent=5 // pred_check_branch
      %236 = sbr.rel (%p233) target = $region12
    $region11: #{style_decoder_forward.10} parent=5 // pred_region
      %s237 = ssub.s32 %s14, 1
      // Predicated region
      $region13: #{style_decoder_forward.10} parent=11 // pred_check
        %p238 = pneg %p61
      $region14: #{style_decoder_forward.10} parent=11 // pred_check_branch
        %240 = sbr.rel (%p238) target = $region16
      $region15: #{style_decoder_forward.10} parent=11 // pred_region
        _
      $region16: #{style_decoder_forward.10} parent=11 // pred_fallthru
        _
      // Predicated region
      $region17: #{style_decoder_forward.10} parent=11 // pred_check
        %p241 = pneg %p82
      $region18: #{style_decoder_forward.10} parent=11 // pred_check_branch
        %243 = sbr.rel (%p241) target = $region20
      $region19: #{style_decoder_forward.10} parent=11 // pred_region
        _
      $region20: #{style_decoder_forward.10} parent=11 // pred_fallthru
        _
      // Predicated region
      $region21: #{style_decoder_forward.10} parent=11 // pred_check
        %p244 = pneg %p103
      $region22: #{style_decoder_forward.10} parent=11 // pred_check_branch
        %246 = sbr.rel (%p244) target = $region24
      $region23: #{style_decoder_forward.10} parent=11 // pred_region
        _
      $region24: #{style_decoder_forward.10} parent=11 // pred_fallthru
        _
      // Predicated region
      $region25: #{style_decoder_forward.10} parent=11 // pred_check
        %p247 = pneg %p150
      $region26: #{style_decoder_forward.10} parent=11 // pred_check_branch
        %249 = sbr.rel (%p247) target = $region28
      $region27: #{style_decoder_forward.10} parent=11 // pred_region
        _
      $region28: #{style_decoder_forward.10} parent=11 // pred_fallthru
        _
      // Predicated region
      $region29: #{style_decoder_forward.10} parent=11 // pred_check
        %p250 = pneg %p171
      $region30: #{style_decoder_forward.10} parent=11 // pred_check_branch
        %252 = sbr.rel (%p250) target = $region32
      $region31: #{style_decoder_forward.10} parent=11 // pred_region
        _
      $region32: #{style_decoder_forward.10} parent=11 // pred_fallthru
        _
    $region12: #{style_decoder_forward.10} parent=5 // pred_fallthru
      _
    %p253 = scmp.lt.s32.totalorder %s14, 2
    // Predicated region
    $region33: #{style_decoder_forward.10} parent=5 // pred_check
      %p254 = pneg %p253
    $region34: #{style_decoder_forward.10} parent=5 // pred_check_branch
      %256 = sbr.rel (%p254) target = $region36
    $region35: #{style_decoder_forward.10} parent=5 // pred_region
      // Predicated region
      $region37: #{style_decoder_forward.10} parent=35 // pred_check
        %p257 = pneg %p34
      $region38: #{style_decoder_forward.10} parent=35 // pred_check_branch
        %259 = sbr.rel (%p257) target = $region40
      $region39: #{style_decoder_forward.10} parent=35 // pred_region
        %p260 = scmp.lt.s32.totalorder %s14, 1
        %s261 = scalar_select %p260, %s14, 1
        %s262 = smul.addr %s261, 4
        %s263 = scalar_lea.vmem %s0, %s262
      $region40: #{style_decoder_forward.10} parent=35 // pred_fallthru
        _
      // Predicated region
      $region41: #{style_decoder_forward.10} parent=35 // pred_check
        %p264 = pneg %p123
      $region42: #{style_decoder_forward.10} parent=35 // pred_check_branch
        %266 = sbr.rel (%p264) target = $region44
      $region43: #{style_decoder_forward.10} parent=35 // pred_region
        %p267 = scmp.lt.s32.totalorder %s14, 1
        %s268 = scalar_select %p267, %s14, 1
        %s269 = smul.addr %s268, 8
        %s270 = scalar_lea.vmem %s4, %s269
      $region44: #{style_decoder_forward.10} parent=35 // pred_fallthru
        _
      // Predicated region
      $region45: #{style_decoder_forward.10} parent=35 // pred_check
        %p271 = pneg %p191
      $region46: #{style_decoder_forward.10} parent=35 // pred_check_branch
        %273 = sbr.rel (%p271) target = $region48
      $region47: #{style_decoder_forward.10} parent=35 // pred_region
        %p274 = scmp.lt.s32.totalorder %s14, 1
        %s275 = scalar_select %p274, %s14, 1
        %s276 = smul.addr %s275, 2
        %s277 = smul.addr %s276, 8
        %s278 = scalar_lea.vmem %s7, %s277
      $region48: #{style_decoder_forward.10} parent=35 // pred_fallthru
        _
    $region36: #{style_decoder_forward.10} parent=5 // pred_fallthru
      _
    %p279 = scmp.le.s32.totalorder 1, %s14
    %p280 = scmp.lt.s32.totalorder %s14, 3
    %p281 = pnand %p279, %p280
    %p282 = pneg %p281
    // Predicated region
    $region49: #{style_decoder_forward.10} parent=5 // pred_check
      _
    $region50: #{style_decoder_forward.10} parent=5 // pred_check_branch
      %284 = sbr.rel (%p281) target = $region52
    $region51: #{style_decoder_forward.10} parent=5 // pred_region
      %s285 = ssub.s32 %s14, 1
      %p286 = scmp.lt.s32.totalorder %s19, 1
      %s287 = scalar_select %p286, %s19, 1
      %s288 = smul.addr %s287, 4
      %s289 = scalar_lea.vmem %s0, %s288
      %p290 = pneg %p40
      %p291 = pneg %p37
      %p292 = pneg %p61
      %p293 = pneg %p58
      %p294 = pneg %p82
      %p295 = pneg %p79
      %p296 = pneg %p103
      %p297 = pneg %p100
      %p298 = scmp.lt.s32.totalorder %s19, 1
      %s299 = scalar_select %p298, %s19, 1
      %s300 = smul.addr %s299, 8
      %s301 = scalar_lea.vmem %s4, %s300
      %p302 = pneg %p129
      %p303 = pneg %p126
      %p304 = pneg %p150
      %p305 = pneg %p147
      %p306 = pneg %p171
      %p307 = pneg %p168
      %p308 = scmp.lt.s32.totalorder %s19, 1
      %s309 = scalar_select %p308, %s19, 1
      %s310 = smul.addr %s309, 2
      %s311 = smul.addr %s310, 8
      %s312 = scalar_lea.vmem %s7, %s311
      %p313 = pneg %p197
      %p314 = pneg %p194
      %p315 = pneg %p223
      %p316 = pneg %p220
      %p317 = scmp.lt.s32.totalorder %s19, 1
      %s318 = scalar_select %p317, %s19, 1
      %s319 = smul.addr %s318, 4
      %s320 = scalar_lea.vmem %s8, %s319
      %p321 = scmp.lt.s32.totalorder %s19, 1
      %s322 = scalar_select %p321, %s19, 1
      %s323 = smul.addr %s322, 4
      %s324 = scalar_lea.vmem %s0, %s323
      %p325 = scmp.lt.s32.totalorder %s19, 1
      %s326 = scalar_select %p325, %s19, 1
      %s327 = smul.addr %s326, 8
      %s328 = scalar_lea.vmem %s4, %s327
      %p329 = scmp.lt.s32.totalorder %s19, 1
      %s330 = scalar_select %p329, %s19, 1
      %s331 = smul.addr %s330, 2
      %s332 = smul.addr %s331, 8
      %s333 = scalar_lea.vmem %s7, %s332
      %p334 = scmp.lt.s32.totalorder %s19, 1
      %s335 = scalar_select %p334, %s19, 1
      %s336 = smul.addr %s335, 4
      %s337 = scalar_lea.vmem %s8, %s336
      %v339 = vld [vmem:[%s324] sm:$0xf]
      %v340 = vunpack.c.l.bf16 %v339
      %342 = vrot.lane.b32.xlu0 %v340, 3
      %v343 = vpop.permute.xlu0 %342
      %vm345 = vcmask 23552
      %v346 = vsel %vm345, 0.0, %v343
      %vm347 = vcmask 56320
      %v348 = vsel %vm347, %v346, 0.0
      %v349 = vlaneseq
      %v350 = vand.u32 %v349, 127
      %vm351 = vcmp.lt.s32.totalorder %v350, 0
      %v352 = vsub.s32 0, %v350
      %v353 = vsel %vm351, %v352, %v350
      %v354 = vshrl.u32 %v353, 1
      %v355 = vand.u32 %v353, 1
      %v356 = vsub.s32 0, %v355
      %v357 = vsel %vm351, %v356, %v355
      %vm358 = vcmp.ne.s32.totalorder %v357, 0
      %vm359 = vcmp.lt.s32.totalorder %v357, 0
      %vm360 = vmand %vm359, %vm358
      %v361 = vadd.s32 %v357, 2
      %v362 = vsel %vm360, %v361, %v357
      %v363 = vadd.s32 %v362, 4294967295
      %vm364 = vcmp.ge.s32.totalorder %v363, 0
      %vm365 = vcmp.lt.s32.totalorder %v363, 2
      %vm366 = vmand %vm364, %vm365
      %v367 = vsel %vm366, 1, 0
      %vm368 = vcmp.eq.s32.totalorder %v367, 1
      %v369 = vsel %vm368, %v348, 0.0
      %v370 = vld [vmem:[%s1] sm:$0xf]
      %v371 = vpack.c.bf16 %v369, %v369
      %v372 = vpack.c.bf16 %v348, %v348
      %v374 = vunpack.c.l.b16 %v370
      %v375 = vpack.c.b16 %v374, %v374
      %376 = vrot.lane.b32.xlu0 %v375, 120
      %v377 = vpop.permute.xlu0 %376
      %379 = vrot.lane.b32.xlu0 %v372, 127
      %v380 = vpop.permute.xlu0 %379
      %vm381 = vcmask 64512
      %v383 = vsel %vm381, %v377, 0
      %vm385 = vcmask 1043456
      %v387 = vsel %vm385, %v380, 0
      %389 = vmatprep.subr.bf16.mxu0 0
      %390 = vmatpush1.bf16.msra.mxu0 %v387
      %391 = vmatprep.subr.bf16.mxu0 0
      %392 = vmatpush1.bf16.msra.mxu0 0
      %393 = vmatprep.subr.bf16.mxu0 0
      %394 = vmatpush1.bf16.msra.mxu0 0
      %395 = vmatprep.subr.bf16.mxu0 0
      %396 = vmatpush1.bf16.msra.mxu0 0
      %397 = vmatprep.subr.bf16.mxu0 0
      %398 = vmatpush1.bf16.msra.mxu0 0
      %399 = vmatprep.subr.bf16.mxu0 0
      %400 = vmatpush1.bf16.msra.mxu0 0
      %401 = vmatprep.subr.bf16.mxu0 0
      %402 = vmatpush1.bf16.msra.mxu0 0
      %403 = vmatprep.subr.bf16.mxu0 0
      %404 = vmatpush1.bf16.msra.mxu0 0
      %405 = vmatprep.subr.bf16.mxu0 0
      %406 = vmatpush1.bf16.msra.mxu0 0
      %407 = vmatprep.subr.bf16.mxu0 0
      %408 = vmatpush1.bf16.msra.mxu0 0
      %409 = vmatprep.subr.bf16.mxu0 0
      %410 = vmatpush1.bf16.msra.mxu0 0
      %411 = vmatprep.subr.bf16.mxu0 0
      %412 = vmatpush1.bf16.msra.mxu0 0
      %413 = vmatprep.subr.bf16.mxu0 0
      %414 = vmatpush1.bf16.msra.mxu0 0
      %415 = vmatprep.subr.bf16.mxu0 0
      %416 = vmatpush1.bf16.msra.mxu0 0
      %417 = vmatprep.subr.bf16.mxu0 0
      %418 = vmatpush1.bf16.msra.mxu0 0
      %419 = vmatprep.subr.bf16.mxu0 0
      %420 = vmatpush1.bf16.msra.mxu0 0
      %421 = vmatprep.mubr.bf16.mxu0 0
      %422 = vmatmul.mubr.bf16.gmra.mrb[0].mxu0 %v383
      %v423 = vpop.f32.mrb[0].mxu0
      %v424 = vadd.f32 0.0, %v423
      %v425 = vpop.f32.mrb[0].mxu0
      %v426 = vpop.f32.mrb[0].mxu0
      %v427 = vpop.f32.mrb[0].mxu0
      %428 = vdwg.mxu0
      %v430 = vsel %vm381, %v370, 0
      %v433 = vsel %vm385, %v371, 0
      %435 = vmatprep.subr.bf16.mxu0 0
      %436 = vmatpush1.bf16.msra.mxu0 %v433
      %437 = vmatprep.subr.bf16.mxu0 0
      %438 = vmatpush1.bf16.msra.mxu0 0
      %439 = vmatprep.subr.bf16.mxu0 0
      %440 = vmatpush1.bf16.msra.mxu0 0
      %441 = vmatprep.subr.bf16.mxu0 0
      %442 = vmatpush1.bf16.msra.mxu0 0
      %443 = vmatprep.subr.bf16.mxu0 0
      %444 = vmatpush1.bf16.msra.mxu0 0
      %445 = vmatprep.subr.bf16.mxu0 0
      %446 = vmatpush1.bf16.msra.mxu0 0
      %447 = vmatprep.subr.bf16.mxu0 0
      %448 = vmatpush1.bf16.msra.mxu0 0
      %449 = vmatprep.subr.bf16.mxu0 0
      %450 = vmatpush1.bf16.msra.mxu0 0
      %451 = vmatprep.subr.bf16.mxu0 0
      %452 = vmatpush1.bf16.msra.mxu0 0
      %453 = vmatprep.subr.bf16.mxu0 0
      %454 = vmatpush1.bf16.msra.mxu0 0
      %455 = vmatprep.subr.bf16.mxu0 0
      %456 = vmatpush1.bf16.msra.mxu0 0
      %457 = vmatprep.subr.bf16.mxu0 0
      %458 = vmatpush1.bf16.msra.mxu0 0
      %459 = vmatprep.subr.bf16.mxu0 0
      %460 = vmatpush1.bf16.msra.mxu0 0
      %461 = vmatprep.subr.bf16.mxu0 0
      %462 = vmatpush1.bf16.msra.mxu0 0
      %463 = vmatprep.subr.bf16.mxu0 0
      %464 = vmatpush1.bf16.msra.mxu0 0
      %465 = vmatprep.subr.bf16.mxu0 0
      %466 = vmatpush1.bf16.msra.mxu0 0
      %467 = vmatprep.mubr.bf16.mxu0 0
      %468 = vmatmul.mubr.bf16.gmra.mrb[0].mxu0 %v430
      %v469 = vpop.f32.mrb[0].mxu0
      %v470 = vadd.f32 %v424, %v469
      %v471 = vpop.f32.mrb[0].mxu0
      %v472 = vpop.f32.mrb[0].mxu0
      %v473 = vpop.f32.mrb[0].mxu0
      %474 = vdwg.mxu0
      %v475 = vadd.s32 %v362, 1
      %vm476 = vcmp.ge.s32.totalorder %v475, 0
      %vm477 = vcmp.lt.s32.totalorder %v475, 2
      %vm478 = vmand %vm476, %vm477
      %v479 = vsel %vm478, 1, 0
      %vm480 = vcmp.eq.s32.totalorder %v479, 1
      %482 = vrot.lane.b32.xlu0 %v348, 126
      %v483 = vpop.permute.xlu0 %482
      %v485 = vsel %vm480, %v483, 0.0
      %v486 = vpack.c.bf16 %v485, %v485
      %487 = vrot.lane.b32.xlu0 %v375, 112
      %v488 = vpop.permute.xlu0 %487
      %v490 = vsel %vm381, %v488, 0
      %v493 = vsel %vm385, %v486, 0
      %495 = vmatprep.subr.bf16.mxu0 0
      %496 = vmatpush1.bf16.msra.mxu0 %v493
      %497 = vmatprep.subr.bf16.mxu0 0
      %498 = vmatpush1.bf16.msra.mxu0 0
      %499 = vmatprep.subr.bf16.mxu0 0
      %500 = vmatpush1.bf16.msra.mxu0 0
      %501 = vmatprep.subr.bf16.mxu0 0
      %502 = vmatpush1.bf16.msra.mxu0 0
      %503 = vmatprep.subr.bf16.mxu0 0
      %504 = vmatpush1.bf16.msra.mxu0 0
      %505 = vmatprep.subr.bf16.mxu0 0
      %506 = vmatpush1.bf16.msra.mxu0 0
      %507 = vmatprep.subr.bf16.mxu0 0
      %508 = vmatpush1.bf16.msra.mxu0 0
      %509 = vmatprep.subr.bf16.mxu0 0
      %510 = vmatpush1.bf16.msra.mxu0 0
      %511 = vmatprep.subr.bf16.mxu0 0
      %512 = vmatpush1.bf16.msra.mxu0 0
      %513 = vmatprep.subr.bf16.mxu0 0
      %514 = vmatpush1.bf16.msra.mxu0 0
      %515 = vmatprep.subr.bf16.mxu0 0
      %516 = vmatpush1.bf16.msra.mxu0 0
      %517 = vmatprep.subr.bf16.mxu0 0
      %518 = vmatpush1.bf16.msra.mxu0 0
      %519 = vmatprep.subr.bf16.mxu0 0
      %520 = vmatpush1.bf16.msra.mxu0 0
      %521 = vmatprep.subr.bf16.mxu0 0
      %522 = vmatpush1.bf16.msra.mxu0 0
      %523 = vmatprep.subr.bf16.mxu0 0
      %524 = vmatpush1.bf16.msra.mxu0 0
      %525 = vmatprep.subr.bf16.mxu0 0
      %526 = vmatpush1.bf16.msra.mxu0 0
      %527 = vmatprep.mubr.bf16.mxu0 0
      %528 = vmatmul.mubr.bf16.gmra.mrb[0].mxu0 %v490
      %v529 = vpop.f32.mrb[0].mxu0
      %v530 = vadd.f32 0.0, %v529
      %v531 = vpop.f32.mrb[0].mxu0
      %v532 = vpop.f32.mrb[0].mxu0
      %v533 = vpop.f32.mrb[0].mxu0
      %534 = vdwg.mxu0
      %v535 = vadd.f32 %v470, %v530
      %v536 = vsel %vm368, %v483, 0.0
      %v537 = vpack.c.bf16 %v536, %v536
      %538 = vrot.lane.b32.xlu0 %v375, 104
      %v539 = vpop.permute.xlu0 %538
      %v541 = vsel %vm381, %v539, 0
      %v544 = vsel %vm385, %v537, 0
      %546 = vmatprep.subr.bf16.mxu0 0
      %547 = vmatpush1.bf16.msra.mxu0 %v544
      %548 = vmatprep.subr.bf16.mxu0 0
      %549 = vmatpush1.bf16.msra.mxu0 0
      %550 = vmatprep.subr.bf16.mxu0 0
      %551 = vmatpush1.bf16.msra.mxu0 0
      %552 = vmatprep.subr.bf16.mxu0 0
      %553 = vmatpush1.bf16.msra.mxu0 0
      %554 = vmatprep.subr.bf16.mxu0 0
      %555 = vmatpush1.bf16.msra.mxu0 0
      %556 = vmatprep.subr.bf16.mxu0 0
      %557 = vmatpush1.bf16.msra.mxu0 0
      %558 = vmatprep.subr.bf16.mxu0 0
      %559 = vmatpush1.bf16.msra.mxu0 0
      %560 = vmatprep.subr.bf16.mxu0 0
      %561 = vmatpush1.bf16.msra.mxu0 0
      %562 = vmatprep.subr.bf16.mxu0 0
      %563 = vmatpush1.bf16.msra.mxu0 0
      %564 = vmatprep.subr.bf16.mxu0 0
      %565 = vmatpush1.bf16.msra.mxu0 0
      %566 = vmatprep.subr.bf16.mxu0 0
      %567 = vmatpush1.bf16.msra.mxu0 0
      %568 = vmatprep.subr.bf16.mxu0 0
      %569 = vmatpush1.bf16.msra.mxu0 0
      %570 = vmatprep.subr.bf16.mxu0 0
      %571 = vmatpush1.bf16.msra.mxu0 0
      %572 = vmatprep.subr.bf16.mxu0 0
      %573 = vmatpush1.bf16.msra.mxu0 0
      %574 = vmatprep.subr.bf16.mxu0 0
      %575 = vmatpush1.bf16.msra.mxu0 0
      %576 = vmatprep.subr.bf16.mxu0 0
      %577 = vmatpush1.bf16.msra.mxu0 0
      %578 = vmatprep.mubr.bf16.mxu0 0
      %579 = vmatmul.mubr.bf16.gmra.mrb[0].mxu0 %v541
      %v580 = vpop.f32.mrb[0].mxu0
      %v581 = vadd.f32 0.0, %v580
      %v582 = vpop.f32.mrb[0].mxu0
      %v583 = vpop.f32.mrb[0].mxu0
      %v584 = vpop.f32.mrb[0].mxu0
      %585 = vdwg.mxu0
      %v586 = vadd.f32 %v535, %v581
      %587 = vrot.lane.b32.xlu0 %v375, 96
      %v588 = vpop.permute.xlu0 %587
      %589 = vrot.lane.b32.xlu0 %v372, 125
      %v590 = vpop.permute.xlu0 %589
      %v592 = vsel %vm381, %v588, 0
      %v595 = vsel %vm385, %v590, 0
      %597 = vmatprep.subr.bf16.mxu0 0
      %598 = vmatpush1.bf16.msra.mxu0 %v595
      %599 = vmatprep.subr.bf16.mxu0 0
      %600 = vmatpush1.bf16.msra.mxu0 0
      %601 = vmatprep.subr.bf16.mxu0 0
      %602 = vmatpush1.bf16.msra.mxu0 0
      %603 = vmatprep.subr.bf16.mxu0 0
      %604 = vmatpush1.bf16.msra.mxu0 0
      %605 = vmatprep.subr.bf16.mxu0 0
      %606 = vmatpush1.bf16.msra.mxu0 0
      %607 = vmatprep.subr.bf16.mxu0 0
      %608 = vmatpush1.bf16.msra.mxu0 0
      %609 = vmatprep.subr.bf16.mxu0 0
      %610 = vmatpush1.bf16.msra.mxu0 0
      %611 = vmatprep.subr.bf16.mxu0 0
      %612 = vmatpush1.bf16.msra.mxu0 0
      %613 = vmatprep.subr.bf16.mxu0 0
      %614 = vmatpush1.bf16.msra.mxu0 0
      %615 = vmatprep.subr.bf16.mxu0 0
      %616 = vmatpush1.bf16.msra.mxu0 0
      %617 = vmatprep.subr.bf16.mxu0 0
      %618 = vmatpush1.bf16.msra.mxu0 0
      %619 = vmatprep.subr.bf16.mxu0 0
      %620 = vmatpush1.bf16.msra.mxu0 0
      %621 = vmatprep.subr.bf16.mxu0 0
      %622 = vmatpush1.bf16.msra.mxu0 0
      %623 = vmatprep.subr.bf16.mxu0 0
      %624 = vmatpush1.bf16.msra.mxu0 0
      %625 = vmatprep.subr.bf16.mxu0 0
      %626 = vmatpush1.bf16.msra.mxu0 0
      %627 = vmatprep.subr.bf16.mxu0 0
      %628 = vmatpush1.bf16.msra.mxu0 0
      %629 = vmatprep.mubr.bf16.mxu0 0
      %630 = vmatmul.mubr.bf16.gmra.mrb[0].mxu0 %v592
      %v631 = vpop.f32.mrb[0].mxu0
      %v632 = vadd.f32 0.0, %v631
      %v633 = vpop.f32.mrb[0].mxu0
      %v634 = vpop.f32.mrb[0].mxu0
      %v635 = vpop.f32.mrb[0].mxu0
      %636 = vdwg.mxu0
      %v637 = vadd.f32 %v586, %v632
      %638 = vrot.lane.b32.xlu0 %v348, 124
      %v639 = vpop.permute.xlu0 %638
      %v641 = vsel %vm480, %v639, 0.0
      %v642 = vpack.c.bf16 %v641, %v641
      %643 = vrot.lane.b32.xlu0 %v375, 88
      %v644 = vpop.permute.xlu0 %643
      %v646 = vsel %vm381, %v644, 0
      %v649 = vsel %vm385, %v642, 0
      %651 = vmatprep.subr.bf16.mxu0 0
      %652 = vmatpush1.bf16.msra.mxu0 %v649
      %653 = vmatprep.subr.bf16.mxu0 0
      %654 = vmatpush1.bf16.msra.mxu0 0
      %655 = vmatprep.subr.bf16.mxu0 0
      %656 = vmatpush1.bf16.msra.mxu0 0
      %657 = vmatprep.subr.bf16.mxu0 0
      %658 = vmatpush1.bf16.msra.mxu0 0
      %659 = vmatprep.subr.bf16.mxu0 0
      %660 = vmatpush1.bf16.msra.mxu0 0
      %661 = vmatprep.subr.bf16.mxu0 0
      %662 = vmatpush1.bf16.msra.mxu0 0
      %663 = vmatprep.subr.bf16.mxu0 0
      %664 = vmatpush1.bf16.msra.mxu0 0
      %665 = vmatprep.subr.bf16.mxu0 0
      %666 = vmatpush1.bf16.msra.mxu0 0
      %667 = vmatprep.subr.bf16.mxu0 0
      %668 = vmatpush1.bf16.msra.mxu0 0
      %669 = vmatprep.subr.bf16.mxu0 0
      %670 = vmatpush1.bf16.msra.mxu0 0
      %671 = vmatprep.subr.bf16.mxu0 0
      %672 = vmatpush1.bf16.msra.mxu0 0
      %673 = vmatprep.subr.bf16.mxu0 0
      %674 = vmatpush1.bf16.msra.mxu0 0
      %675 = vmatprep.subr.bf16.mxu0 0
      %676 = vmatpush1.bf16.msra.mxu0 0
      %677 = vmatprep.subr.bf16.mxu0 0
      %678 = vmatpush1.bf16.msra.mxu0 0
      %679 = vmatprep.subr.bf16.mxu0 0
      %680 = vmatpush1.bf16.msra.mxu0 0
      %681 = vmatprep.subr.bf16.mxu0 0
      %682 = vmatpush1.bf16.msra.mxu0 0
      %683 = vmatprep.mubr.bf16.mxu0 0
      %684 = vmatmul.mubr.bf16.gmra.mrb[0].mxu0 %v646
      %v685 = vpop.f32.mrb[0].mxu0
      %v686 = vadd.f32 0.0, %v685
      %v687 = vpop.f32.mrb[0].mxu0
      %v688 = vpop.f32.mrb[0].mxu0
      %v689 = vpop.f32.mrb[0].mxu0
      %690 = vdwg.mxu0
      %v691 = vadd.f32 %v637, %v686
      %v692 = vsel %vm368, %v639, 0.0
      %v693 = vpack.c.bf16 %v692, %v692
      %694 = vrot.lane.b32.xlu0 %v375, 80
      %v695 = vpop.permute.xlu0 %694
      %v697 = vsel %vm381, %v695, 0
      %v700 = vsel %vm385, %v693, 0
      %702 = vmatprep.subr.bf16.mxu0 0
      %703 = vmatpush1.bf16.msra.mxu0 %v700
      %704 = vmatprep.subr.bf16.mxu0 0
      %705 = vmatpush1.bf16.msra.mxu0 0
      %706 = vmatprep.subr.bf16.mxu0 0
      %707 = vmatpush1.bf16.msra.mxu0 0
      %708 = vmatprep.subr.bf16.mxu0 0
      %709 = vmatpush1.bf16.msra.mxu0 0
      %710 = vmatprep.subr.bf16.mxu0 0
      %711 = vmatpush1.bf16.msra.mxu0 0
      %712 = vmatprep.subr.bf16.mxu0 0
      %713 = vmatpush1.bf16.msra.mxu0 0
      %714 = vmatprep.subr.bf16.mxu0 0
      %715 = vmatpush1.bf16.msra.mxu0 0
      %716 = vmatprep.subr.bf16.mxu0 0
      %717 = vmatpush1.bf16.msra.mxu0 0
      %718 = vmatprep.subr.bf16.mxu0 0
      %719 = vmatpush1.bf16.msra.mxu0 0
      %720 = vmatprep.subr.bf16.mxu0 0
      %721 = vmatpush1.bf16.msra.mxu0 0
      %722 = vmatprep.subr.bf16.mxu0 0
      %723 = vmatpush1.bf16.msra.mxu0 0
      %724 = vmatprep.subr.bf16.mxu0 0
      %725 = vmatpush1.bf16.msra.mxu0 0
      %726 = vmatprep.subr.bf16.mxu0 0
      %727 = vmatpush1.bf16.msra.mxu0 0
      %728 = vmatprep.subr.bf16.mxu0 0
      %729 = vmatpush1.bf16.msra.mxu0 0
      %730 = vmatprep.subr.bf16.mxu0 0
      %731 = vmatpush1.bf16.msra.mxu0 0
      %732 = vmatprep.subr.bf16.mxu0 0
      %733 = vmatpush1.bf16.msra.mxu0 0
      %734 = vmatprep.mubr.bf16.mxu0 0
      %735 = vmatmul.mubr.bf16.gmra.mrb[0].mxu0 %v697
      %v736 = vpop.f32.mrb[0].mxu0
      %v737 = vadd.f32 0.0, %v736
      %v738 = vpop.f32.mrb[0].mxu0
      %v739 = vpop.f32.mrb[0].mxu0
      %v740 = vpop.f32.mrb[0].mxu0
      %741 = vdwg.mxu0
      %v742 = vadd.f32 %v691, %v737
      %743 = vrot.lane.b32.xlu0 %v375, 72
      %v744 = vpop.permute.xlu0 %743
      %745 = vrot.lane.b32.xlu0 %v372, 123
      %v746 = vpop.permute.xlu0 %745
      %v748 = vsel %vm381, %v744, 0
      %v751 = vsel %vm385, %v746, 0
      %753 = vmatprep.subr.bf16.mxu0 0
      %754 = vmatpush1.bf16.msra.mxu0 %v751
      %755 = vmatprep.subr.bf16.mxu0 0
      %756 = vmatpush1.bf16.msra.mxu0 0
      %757 = vmatprep.subr.bf16.mxu0 0
      %758 = vmatpush1.bf16.msra.mxu0 0
      %759 = vmatprep.subr.bf16.mxu0 0
      %760 = vmatpush1.bf16.msra.mxu0 0
      %761 = vmatprep.subr.bf16.mxu0 0
      %762 = vmatpush1.bf16.msra.mxu0 0
      %763 = vmatprep.subr.bf16.mxu0 0
      %764 = vmatpush1.bf16.msra.mxu0 0
      %765 = vmatprep.subr.bf16.mxu0 0
      %766 = vmatpush1.bf16.msra.mxu0 0
      %767 = vmatprep.subr.bf16.mxu0 0
      %768 = vmatpush1.bf16.msra.mxu0 0
      %769 = vmatprep.subr.bf16.mxu0 0
      %770 = vmatpush1.bf16.msra.mxu0 0
      %771 = vmatprep.subr.bf16.mxu0 0
      %772 = vmatpush1.bf16.msra.mxu0 0
      %773 = vmatprep.subr.bf16.mxu0 0
      %774 = vmatpush1.bf16.msra.mxu0 0
      %775 = vmatprep.subr.bf16.mxu0 0
      %776 = vmatpush1.bf16.msra.mxu0 0
      %777 = vmatprep.subr.bf16.mxu0 0
      %778 = vmatpush1.bf16.msra.mxu0 0
      %779 = vmatprep.subr.bf16.mxu0 0
      %780 = vmatpush1.bf16.msra.mxu0 0
      %781 = vmatprep.subr.bf16.mxu0 0
      %782 = vmatpush1.bf16.msra.mxu0 0
      %783 = vmatprep.subr.bf16.mxu0 0
      %784 = vmatpush1.bf16.msra.mxu0 0
      %785 = vmatprep.mubr.bf16.mxu0 0
      %786 = vmatmul.mubr.bf16.gmra.mrb[0].mxu0 %v748
      %v787 = vpop.f32.mrb[0].mxu0
      %v788 = vadd.f32 0.0, %v787
      %v789 = vpop.f32.mrb[0].mxu0
      %v790 = vpop.f32.mrb[0].mxu0
      %v791 = vpop.f32.mrb[0].mxu0
      %792 = vdwg.mxu0
      %v793 = vadd.f32 %v742, %v788
      %794 = vrot.lane.b32.xlu0 %v348, 122
      %v795 = vpop.permute.xlu0 %794
      %v797 = vsel %vm480, %v795, 0.0
      %v798 = vpack.c.bf16 %v797, %v797
      %799 = vrot.lane.b32.xlu0 %v375, 64
      %v800 = vpop.permute.xlu0 %799
      %v802 = vsel %vm381, %v800, 0
      %v805 = vsel %vm385, %v798, 0
      %807 = vmatprep.subr.bf16.mxu0 0
      %808 = vmatpush1.bf16.msra.mxu0 %v805
      %809 = vmatprep.subr.bf16.mxu0 0
      %810 = vmatpush1.bf16.msra.mxu0 0
      %811 = vmatprep.subr.bf16.mxu0 0
      %812 = vmatpush1.bf16.msra.mxu0 0
      %813 = vmatprep.subr.bf16.mxu0 0
      %814 = vmatpush1.bf16.msra.mxu0 0
      %815 = vmatprep.subr.bf16.mxu0 0
      %816 = vmatpush1.bf16.msra.mxu0 0
      %817 = vmatprep.subr.bf16.mxu0 0
      %818 = vmatpush1.bf16.msra.mxu0 0
      %819 = vmatprep.subr.bf16.mxu0 0
      %820 = vmatpush1.bf16.msra.mxu0 0
      %821 = vmatprep.subr.bf16.mxu0 0
      %822 = vmatpush1.bf16.msra.mxu0 0
      %823 = vmatprep.subr.bf16.mxu0 0
      %824 = vmatpush1.bf16.msra.mxu0 0
      %825 = vmatprep.subr.bf16.mxu0 0
      %826 = vmatpush1.bf16.msra.mxu0 0
      %827 = vmatprep.subr.bf16.mxu0 0
      %828 = vmatpush1.bf16.msra.mxu0 0
      %829 = vmatprep.subr.bf16.mxu0 0
      %830 = vmatpush1.bf16.msra.mxu0 0
      %831 = vmatprep.subr.bf16.mxu0 0
      %832 = vmatpush1.bf16.msra.mxu0 0
      %833 = vmatprep.subr.bf16.mxu0 0
      %834 = vmatpush1.bf16.msra.mxu0 0
      %835 = vmatprep.subr.bf16.mxu0 0
      %836 = vmatpush1.bf16.msra.mxu0 0
      %837 = vmatprep.subr.bf16.mxu0 0
      %838 = vmatpush1.bf16.msra.mxu0 0
      %839 = vmatprep.mubr.bf16.mxu0 0
      %840 = vmatmul.mubr.bf16.gmra.mrb[0].mxu0 %v802
      %v841 = vpop.f32.mrb[0].mxu0
      %v842 = vadd.f32 0.0, %v841
      %v843 = vpop.f32.mrb[0].mxu0
      %v844 = vpop.f32.mrb[0].mxu0
      %v845 = vpop.f32.mrb[0].mxu0
      %846 = vdwg.mxu0
      %v847 = vadd.f32 %v793, %v842
      %v848 = vld [vmem:[%s2] sm:$0xff]
      %850 = vset.pattern.permute.xlu0 0
      %851 = vperm.xlu0 %850, %v848
      %v852 = vpop.permute.xlu0 %851
      %v854 = vadd.f32 %v847, %v852
      %v855 = vmax.f32 %v854, 0.0
      %v856 = vpack.c.bf16 %v855, %v855
      %v857 = vld [vmem:[%s3] sm:$0x3]
      %v858 = vld [vmem:[%s328] sm:$0xff]
      %v859 = vpack.c.bf16 %v858, %v858
      %v860 = vld [vmem:[%s6] sm:$0xff]
      %862 = vset.pattern.permute.xlu0 0
      %863 = vperm.xlu0 %862, %v860
      %v864 = vpop.permute.xlu0 %863
      %vm866 = vcmask 31744
      %v868 = vsel %vm866, %v856, 0
      %vm870 = vcmask 1041408
      %v872 = vsel %vm870, %v857, 0
      %874 = vmatprep.subr.bf16.mxu0 0
      %875 = vmatpush1.bf16.msra.mxu0 %v872
      %876 = vmatprep.subr.bf16.mxu0 0
      %877 = vmatpush1.bf16.msra.mxu0 0
      %878 = vmatprep.subr.bf16.mxu0 0
      %879 = vmatpush1.bf16.msra.mxu0 0
      %880 = vmatprep.subr.bf16.mxu0 0
      %881 = vmatpush1.bf16.msra.mxu0 0
      %882 = vmatprep.subr.bf16.mxu0 0
      %883 = vmatpush1.bf16.msra.mxu0 0
      %884 = vmatprep.subr.bf16.mxu0 0
      %885 = vmatpush1.bf16.msra.mxu0 0
      %886 = vmatprep.subr.bf16.mxu0 0
      %887 = vmatpush1.bf16.msra.mxu0 0
      %888 = vmatprep.subr.bf16.mxu0 0
      %889 = vmatpush1.bf16.msra.mxu0 0
      %890 = vmatprep.subr.bf16.mxu0 0
      %891 = vmatpush1.bf16.msra.mxu0 0
      %892 = vmatprep.subr.bf16.mxu0 0
      %893 = vmatpush1.bf16.msra.mxu0 0
      %894 = vmatprep.subr.bf16.mxu0 0
      %895 = vmatpush1.bf16.msra.mxu0 0
      %896 = vmatprep.subr.bf16.mxu0 0
      %897 = vmatpush1.bf16.msra.mxu0 0
      %898 = vmatprep.subr.bf16.mxu0 0
      %899 = vmatpush1.bf16.msra.mxu0 0
      %900 = vmatprep.subr.bf16.mxu0 0
      %901 = vmatpush1.bf16.msra.mxu0 0
      %902 = vmatprep.subr.bf16.mxu0 0
      %903 = vmatpush1.bf16.msra.mxu0 0
      %904 = vmatprep.subr.bf16.mxu0 0
      %905 = vmatpush1.bf16.msra.mxu0 0
      %906 = vmatprep.mubr.bf16.mxu0 0
      %907 = vmatmul.mubr.bf16.gmra.mrb[0].mxu0 %v868
      %v908 = vpop.f32.mrb[0].mxu0
      %v909 = vadd.f32 %v864, %v908
      %v910 = vpop.f32.mrb[0].mxu0
      %v911 = vpop.f32.mrb[0].mxu0
      %v912 = vpop.f32.mrb[0].mxu0
      %913 = vdwg.mxu0
      %v914 = vld [vmem:[%s5] sm:$0xf]
      %v916 = vsel %vm381, %v914, 0
      %v919 = vsel %vm385, %v859, 0
      %921 = vmatprep.subr.bf16.mxu0 0
      %922 = vmatpush1.bf16.msra.mxu0 %v919
      %923 = vmatprep.subr.bf16.mxu0 0
      %924 = vmatpush1.bf16.msra.mxu0 0
      %925 = vmatprep.subr.bf16.mxu0 0
      %926 = vmatpush1.bf16.msra.mxu0 0
      %927 = vmatprep.subr.bf16.mxu0 0
      %928 = vmatpush1.bf16.msra.mxu0 0
      %929 = vmatprep.subr.bf16.mxu0 0
      %930 = vmatpush1.bf16.msra.mxu0 0
      %931 = vmatprep.subr.bf16.mxu0 0
      %932 = vmatpush1.bf16.msra.mxu0 0
      %933 = vmatprep.subr.bf16.mxu0 0
      %934 = vmatpush1.bf16.msra.mxu0 0
      %935 = vmatprep.subr.bf16.mxu0 0
      %936 = vmatpush1.bf16.msra.mxu0 0
      %937 = vmatprep.subr.bf16.mxu0 0
      %938 = vmatpush1.bf16.msra.mxu0 0
      %939 = vmatprep.subr.bf16.mxu0 0
      %940 = vmatpush1.bf16.msra.mxu0 0
      %941 = vmatprep.subr.bf16.mxu0 0
      %942 = vmatpush1.bf16.msra.mxu0 0
      %943 = vmatprep.subr.bf16.mxu0 0
      %944 = vmatpush1.bf16.msra.mxu0 0
      %945 = vmatprep.subr.bf16.mxu0 0
      %946 = vmatpush1.bf16.msra.mxu0 0
      %947 = vmatprep.subr.bf16.mxu0 0
      %948 = vmatpush1.bf16.msra.mxu0 0
      %949 = vmatprep.subr.bf16.mxu0 0
      %950 = vmatpush1.bf16.msra.mxu0 0
      %951 = vmatprep.subr.bf16.mxu0 0
      %952 = vmatpush1.bf16.msra.mxu0 0
      %953 = vmatprep.mubr.bf16.mxu0 0
      %954 = vmatmul.mubr.bf16.gmra.mrb[0].mxu0 %v916
      %v955 = vpop.f32.mrb[0].mxu0
      %v956 = vadd.f32 0.0, %v955
      %v957 = vpop.f32.mrb[0].mxu0
      %v958 = vpop.f32.mrb[0].mxu0
      %v959 = vpop.f32.mrb[0].mxu0
      %960 = vdwg.mxu0
      %v961 = vadd.f32 %v909, %v956
      %vm962 = vcmask 130048
      %v963 = vsel %vm962, %v961, 0.0
      %964 = vadd.xlane.f32.xlu0 %v963
      %v965 = vpop.xlane.xlu0 %964
      %v966 = vrcp.pop 16.0
      %v967 = vmul.f32 %v965, %v966
      %v968 = vsub.f32 %v961, %v967
      %v969 = vmul.f32 %v968, %v968
      %v970 = vsel %vm962, %v969, 0.0
      %971 = vadd.xlane.f32.xlu0 %v970
      %v972 = vpop.xlane.xlu0 %971
      %v973 = vmul.f32 %v972, %v966
      %v974 = vadd.f32 %v973, 1e-05
      %v975 = vrsqrt.pop %v974
      %v976 = vmul.f32 %v968, %v975
      %v977 = vld [vmem:[%s333] sm:$0xff]
      %v978 = vld [vmem:[%s333 + $0x8] sm:$0xff]
      %v979 = vmul.f32 %v977, %v976
      %v980 = vadd.f32 %v979, %v978
      %v981 = vpack.c.bf16 %v980, %v980
      %vm982 = vcmask 125952
      %983 = vst.msk [vmem:[%s337] sm:$0xf] %vm982, %v981
      %p984 = scmp.lt.s32.totalorder %s19, 1
      %s985 = scalar_select %p984, %s19, 1
      %s986 = smul.addr %s985, 4
      %s987 = scalar_lea.vmem %s8, %s986
      // Predicated region
      $region53: #{style_decoder_forward.10} parent=51 // pred_check
        %p988 = pneg %p220
      $region54: #{style_decoder_forward.10} parent=51 // pred_check_branch
        %990 = sbr.rel (%p988) target = $region56
      $region55: #{style_decoder_forward.10} parent=51 // pred_region
        _
      $region56: #{style_decoder_forward.10} parent=51 // pred_fallthru
        _
    $region52: #{style_decoder_forward.10} parent=5 // pred_fallthru
      _
    %p991 = scmp.le.s32.totalorder 2, %s14
    // Predicated region
    $region57: #{style_decoder_forward.10} parent=5 // pred_check
      %p992 = pneg %p991
    $region58: #{style_decoder_forward.10} parent=5 // pred_check_branch
      %994 = sbr.rel (%p992) target = $region60
    $region59: #{style_decoder_forward.10} parent=5 // pred_region
      %s995 = ssub.s32 %s14, 2
      // Predicated region
      $region61: #{style_decoder_forward.10} parent=59 // pred_check
        %p996 = pneg %p226
      $region62: #{style_decoder_forward.10} parent=59 // pred_check_branch
        %998 = sbr.rel (%p996) target = $region64
      $region63: #{style_decoder_forward.10} parent=59 // pred_region
        %p999 = scmp.lt.s32.totalorder %s20, 1
        %s1000 = scalar_select %p999, %s20, 1
        %s1001 = smul.addr %s1000, 4
        %s1002 = scalar_lea.vmem %s8, %s1001
      $region64: #{style_decoder_forward.10} parent=59 // pred_fallthru
        _
    $region60: #{style_decoder_forward.10} parent=5 // pred_fallthru
      _
  $region6: #{style_decoder_forward.10} parent=0 // loop_footer
    %s18 = sadd.s32 1, %s14
  $region7: #{style_decoder_forward.10} parent=0 // loop_footer_branch
    %13 = sbr.rel target = $region3
  $region8: #{style_decoder_forward.10} parent=0 // loop_exit
    _

// kernel: style_decoder_forward.12
$region0: #{style_decoder_forward.12}
  #allocation0 [shape = 'u32[]', space=smem, size = 0x4, offset = 0x4, fixed_abs, tag = 'smem constant byte address 0x4 - core index']
  #allocation1 [shape = 'u32[144,128]{1,0:T(1,128)}', space=vmem, size = 0x12000, scoped, tag = 'internal scratch']
  %s0 = inlined_call_operand.vmem [shape: bf16[2,4,64], index: 0, kind: input, shape index: {}]
  %s1 = inlined_call_operand.vmem [shape: bf16[4,36], index: 1, kind: input, shape index: {}]
  %s2 = inlined_call_operand.vmem [shape: f32[4,1], index: 2, kind: input, shape index: {}]
  %s3 = inlined_call_operand.vmem [shape: bf16[64,256], index: 3, kind: input, shape index: {}]
  %s4 = inlined_call_operand.vmem [shape: f32[2,4,256], index: 4, kind: input, shape index: {}]
  %s5 = inlined_call_operand.vmem [shape: bf16[4,4], index: 5, kind: input, shape index: {}]
  %s6 = inlined_call_operand.vmem [shape: f32[4,1], index: 6, kind: input, shape index: {}]
  %s7 = inlined_call_operand.vmem [shape: f32[2,2,4,256], index: 7, kind: input, shape index: {}]
  %s8 = inlined_call_operand.vmem [shape: bf16[2,4,256], index: 8, kind: output, shape index: {}]
  %s9 = sld [smem:[#allocation0]]
  $region65: #{style_decoder_forward.12} parent=0
    _
  %s11 = ssub.s32 1, %s9
  %s12 = scalar_select 0, %s11, %s9
  loop: start=0, step=1, limit=4
  $region2: #{style_decoder_forward.12} parent=0 // loop_pre_header
    _
  $region3: #{style_decoder_forward.12} parent=0 // loop_header
    %s14 = sphi 0, %s18
    %p15 = scmp.ge.s32.totalorder %s14, 4
    %s24 = sphi 0, %s26
    %s27 = sphi 0, %s24
    %s28 = sphi 0, %s27
    %s44 = sphi 0, %s28
    %s48 = sphi 0, %s48
    %s50 = sphi 0, %s48
    %s51 = sphi 0, %s50
    %s65 = sphi 0, %s51
    %s69 = sphi 0, %s69
    %s71 = sphi 0, %s69
    %s72 = sphi 0, %s71
    %s86 = sphi 0, %s72
    %s90 = sphi 0, %s90
    %s92 = sphi 0, %s90
    %s93 = sphi 0, %s92
    %s107 = sphi 0, %s93
    %s113 = sphi 0, %s115
    %s116 = sphi 0, %s113
    %s117 = sphi 0, %s116
    %s133 = sphi 0, %s117
    %s137 = sphi 0, %s137
    %s139 = sphi 0, %s137
    %s140 = sphi 0, %s139
    %s154 = sphi 0, %s140
    %s158 = sphi 0, %s158
    %s160 = sphi 0, %s158
    %s161 = sphi 0, %s160
    %s175 = sphi 0, %s161
    %s181 = sphi 0, %s183
    %s184 = sphi 0, %s181
    %s185 = sphi 0, %s184
    %s201 = sphi 0, %s185
    %s207 = sphi 0, %s209
    %s210 = sphi 0, %s207
    %s211 = sphi 0, %s210
    %s227 = sphi 0, %s211
  $region4: #{style_decoder_forward.12} parent=0 // loop_header_branch
    %17 = sbr.rel (%p15) target = $region8
  $region5: #{style_decoder_forward.12} parent=0 // loop_body
    %s19 = ssub.s32 %s14, 1
    %s20 = ssub.s32 %s14, 2
    %s21 = sadd.s32 %s14, 1
    %s22 = ssub.s32 %s14, %s21
    %p23 = scmp.eq.s32.totalorder %s22, 0
    %s25 = sadd.s32 %s24, 1
    %s26 = scalar_select %p23, %s24, %s25
    %p29 = pneg %p23
    %p30 = scmp.eq.s32.totalorder %s14, 1
    %p31 = por %p29, %p30
    %p32 = scmp.ne.s32.totalorder %s24, %s27
    %p33 = scmp.eq.s32.totalorder %s14, 0
    %p34 = por %p32, %p33
    %p35 = scmp.ne.s32.totalorder %s24, %s27
    %p36 = scmp.eq.s32.totalorder %s19, 1
    %p37 = por %p35, %p36
    %p38 = scmp.ne.s32.totalorder %s27, %s28
    %p39 = scmp.eq.s32.totalorder %s19, 0
    %p40 = por %p38, %p39
    %p41 = scmp.ne.s32.totalorder %s27, %s28
    %p42 = scmp.eq.s32.totalorder %s20, 1
    %p43 = por %p41, %p42
    %p45 = scmp.ne.s32.totalorder %s28, %s44
    %p46 = scmp.eq.s32.totalorder %s20, 0
    %p47 = por %p45, %p46
    %s49 = sadd.s32 %s48, 1
    %p52 = scmp.eq.s32.totalorder %s14, 1
    %p53 = scmp.ne.s32.totalorder %s48, %s50
    %p54 = scmp.eq.s32.totalorder %s14, 0
    %p55 = por %p53, %p54
    %p56 = scmp.ne.s32.totalorder %s48, %s50
    %p57 = scmp.eq.s32.totalorder %s19, 1
    %p58 = por %p56, %p57
    %p59 = scmp.ne.s32.totalorder %s50, %s51
    %p60 = scmp.eq.s32.totalorder %s19, 0
    %p61 = por %p59, %p60
    %p62 = scmp.ne.s32.totalorder %s50, %s51
    %p63 = scmp.eq.s32.totalorder %s20, 1
    %p64 = por %p62, %p63
    %p66 = scmp.ne.s32.totalorder %s51, %s65
    %p67 = scmp.eq.s32.totalorder %s20, 0
    %p68 = por %p66, %p67
    %s70 = sadd.s32 %s69, 1
    %p73 = scmp.eq.s32.totalorder %s14, 1
    %p74 = scmp.ne.s32.totalorder %s69, %s71
    %p75 = scmp.eq.s32.totalorder %s14, 0
    %p76 = por %p74, %p75
    %p77 = scmp.ne.s32.totalorder %s69, %s71
    %p78 = scmp.eq.s32.totalorder %s19, 1
    %p79 = por %p77, %p78
    %p80 = scmp.ne.s32.totalorder %s71, %s72
    %p81 = scmp.eq.s32.totalorder %s19, 0
    %p82 = por %p80, %p81
    %p83 = scmp.ne.s32.totalorder %s71, %s72
    %p84 = scmp.eq.s32.totalorder %s20, 1
    %p85 = por %p83, %p84
    %p87 = scmp.ne.s32.totalorder %s72, %s86
    %p88 = scmp.eq.s32.totalorder %s20, 0
    %p89 = por %p87, %p88
    %s91 = sadd.s32 %s90, 1
    %p94 = scmp.eq.s32.totalorder %s14, 1
    %p95 = scmp.ne.s32.totalorder %s90, %s92
    %p96 = scmp.eq.s32.totalorder %s14, 0
    %p97 = por %p95, %p96
    %p98 = scmp.ne.s32.totalorder %s90, %s92
    %p99 = scmp.eq.s32.totalorder %s19, 1
    %p100 = por %p98, %p99
    %p101 = scmp.ne.s32.totalorder %s92, %s93
    %p102 = scmp.eq.s32.totalorder %s19, 0
    %p103 = por %p101, %p102
    %p104 = scmp.ne.s32.totalorder %s92, %s93
    %p105 = scmp.eq.s32.totalorder %s20, 1
    %p106 = por %p104, %p105
    %p108 = scmp.ne.s32.totalorder %s93, %s107
    %p109 = scmp.eq.s32.totalorder %s20, 0
    %p110 = por %p108, %p109
    %s111 = ssub.s32 %s14, %s21
    %p112 = scmp.eq.s32.totalorder %s111, 0
    %s114 = sadd.s32 %s113, 1
    %s115 = scalar_select %p112, %s113, %s114
    %p118 = pneg %p112
    %p119 = scmp.eq.s32.totalorder %s14, 1
    %p120 = por %p118, %p119
    %p121 = scmp.ne.s32.totalorder %s113, %s116
    %p122 = scmp.eq.s32.totalorder %s14, 0
    %p123 = por %p121, %p122
    %p124 = scmp.ne.s32.totalorder %s113, %s116
    %p125 = scmp.eq.s32.totalorder %s19, 1
    %p126 = por %p124, %p125
    %p127 = scmp.ne.s32.totalorder %s116, %s117
    %p128 = scmp.eq.s32.totalorder %s19, 0
    %p129 = por %p127, %p128
    %p130 = scmp.ne.s32.totalorder %s116, %s117
    %p131 = scmp.eq.s32.totalorder %s20, 1
    %p132 = por %p130, %p131
    %p134 = scmp.ne.s32.totalorder %s117, %s133
    %p135 = scmp.eq.s32.totalorder %s20, 0
    %p136 = por %p134, %p135
    %s138 = sadd.s32 %s137, 1
    %p141 = scmp.eq.s32.totalorder %s14, 1
    %p142 = scmp.ne.s32.totalorder %s137, %s139
    %p143 = scmp.eq.s32.totalorder %s14, 0
    %p144 = por %p142, %p143
    %p145 = scmp.ne.s32.totalorder %s137, %s139
    %p146 = scmp.eq.s32.totalorder %s19, 1
    %p147 = por %p145, %p146
    %p148 = scmp.ne.s32.totalorder %s139, %s140
    %p149 = scmp.eq.s32.totalorder %s19, 0
    %p150 = por %p148, %p149
    %p151 = scmp.ne.s32.totalorder %s139, %s140
    %p152 = scmp.eq.s32.totalorder %s20, 1
    %p153 = por %p151, %p152
    %p155 = scmp.ne.s32.totalorder %s140, %s154
    %p156 = scmp.eq.s32.totalorder %s20, 0
    %p157 = por %p155, %p156
    %s159 = sadd.s32 %s158, 1
    %p162 = scmp.eq.s32.totalorder %s14, 1
    %p163 = scmp.ne.s32.totalorder %s158, %s160
    %p164 = scmp.eq.s32.totalorder %s14, 0
    %p165 = por %p163, %p164
    %p166 = scmp.ne.s32.totalorder %s158, %s160
    %p167 = scmp.eq.s32.totalorder %s19, 1
    %p168 = por %p166, %p167
    %p169 = scmp.ne.s32.totalorder %s160, %s161
    %p170 = scmp.eq.s32.totalorder %s19, 0
    %p171 = por %p169, %p170
    %p172 = scmp.ne.s32.totalorder %s160, %s161
    %p173 = scmp.eq.s32.totalorder %s20, 1
    %p174 = por %p172, %p173
    %p176 = scmp.ne.s32.totalorder %s161, %s175
    %p177 = scmp.eq.s32.totalorder %s20, 0
    %p178 = por %p176, %p177
    %s179 = ssub.s32 %s14, %s21
    %p180 = scmp.eq.s32.totalorder %s179, 0
    %s182 = sadd.s32 %s181, 1
    %s183 = scalar_select %p180, %s181, %s182
    %p186 = pneg %p180
    %p187 = scmp.eq.s32.totalorder %s14, 1
    %p188 = por %p186, %p187
    %p189 = scmp.ne.s32.totalorder %s181, %s184
    %p190 = scmp.eq.s32.totalorder %s14, 0
    %p191 = por %p189, %p190
    %p192 = scmp.ne.s32.totalorder %s181, %s184
    %p193 = scmp.eq.s32.totalorder %s19, 1
    %p194 = por %p192, %p193
    %p195 = scmp.ne.s32.totalorder %s184, %s185
    %p196 = scmp.eq.s32.totalorder %s19, 0
    %p197 = por %p195, %p196
    %p198 = scmp.ne.s32.totalorder %s184, %s185
    %p199 = scmp.eq.s32.totalorder %s20, 1
    %p200 = por %p198, %p199
    %p202 = scmp.ne.s32.totalorder %s185, %s201
    %p203 = scmp.eq.s32.totalorder %s20, 0
    %p204 = por %p202, %p203
    %s205 = ssub.s32 %s14, %s21
    %p206 = scmp.eq.s32.totalorder %s205, 0
    %s208 = sadd.s32 %s207, 1
    %s209 = scalar_select %p206, %s207, %s208
    %p212 = pneg %p206
    %p213 = scmp.eq.s32.totalorder %s14, 1
    %p214 = por %p212, %p213
    %p215 = scmp.ne.s32.totalorder %s207, %s210
    %p216 = scmp.eq.s32.totalorder %s14, 0
    %p217 = por %p215, %p216
    %p218 = scmp.ne.s32.totalorder %s207, %s210
    %p219 = scmp.eq.s32.totalorder %s19, 1
    %p220 = por %p218, %p219
    %p221 = scmp.ne.s32.totalorder %s210, %s211
    %p222 = scmp.eq.s32.totalorder %s19, 0
    %p223 = por %p221, %p222
    %p224 = scmp.ne.s32.totalorder %s210, %s211
    %p225 = scmp.eq.s32.totalorder %s20, 1
    %p226 = por %p224, %p225
    %p228 = scmp.ne.s32.totalorder %s211, %s227
    %p229 = scmp.eq.s32.totalorder %s20, 0
    %p230 = por %p228, %p229
    %p231 = scmp.le.s32.totalorder 1, %s14
    %p232 = scmp.lt.s32.totalorder %s14, 3
    %p233 = pnand %p231, %p232
    %p234 = pneg %p233
    // Predicated region
    $region9: #{style_decoder_forward.12} parent=5 // pred_check
      _
    $region10: #{style_decoder_forward.12} parent=5 // pred_check_branch
      %236 = sbr.rel (%p233) target = $region12
    $region11: #{style_decoder_forward.12} parent=5 // pred_region
      %s237 = ssub.s32 %s14, 1
      // Predicated region
      $region13: #{style_decoder_forward.12} parent=11 // pred_check
        %p238 = pneg %p61
      $region14: #{style_decoder_forward.12} parent=11 // pred_check_branch
        %240 = sbr.rel (%p238) target = $region16
      $region15: #{style_decoder_forward.12} parent=11 // pred_region
        _
      $region16: #{style_decoder_forward.12} parent=11 // pred_fallthru
        _
      // Predicated region
      $region17: #{style_decoder_forward.12} parent=11 // pred_check
        %p241 = pneg %p82
      $region18: #{style_decoder_forward.12} parent=11 // pred_check_branch
        %243 = sbr.rel (%p241) target = $region20
      $region19: #{style_decoder_forward.12} parent=11 // pred_region
        _
      $region20: #{style_decoder_forward.12} parent=11 // pred_fallthru
        _
      // Predicated region
      $region21: #{style_decoder_forward.12} parent=11 // pred_check
        %p244 = pneg %p103
      $region22: #{style_decoder_forward.12} parent=11 // pred_check_branch
        %246 = sbr.rel (%p244) target = $region24
      $region23: #{style_decoder_forward.12} parent=11 // pred_region
        _
      $region24: #{style_decoder_forward.12} parent=11 // pred_fallthru
        _
      // Predicated region
      $region25: #{style_decoder_forward.12} parent=11 // pred_check
        %p247 = pneg %p150
      $region26: #{style_decoder_forward.12} parent=11 // pred_check_branch
        %249 = sbr.rel (%p247) target = $region28
      $region27: #{style_decoder_forward.12} parent=11 // pred_region
        _
      $region28: #{style_decoder_forward.12} parent=11 // pred_fallthru
        _
      // Predicated region
      $region29: #{style_decoder_forward.12} parent=11 // pred_check
        %p250 = pneg %p171
      $region30: #{style_decoder_forward.12} parent=11 // pred_check_branch
        %252 = sbr.rel (%p250) target = $region32
      $region31: #{style_decoder_forward.12} parent=11 // pred_region
        _
      $region32: #{style_decoder_forward.12} parent=11 // pred_fallthru
        _
    $region12: #{style_decoder_forward.12} parent=5 // pred_fallthru
      _
    %p253 = scmp.lt.s32.totalorder %s14, 2
    // Predicated region
    $region33: #{style_decoder_forward.12} parent=5 // pred_check
      %p254 = pneg %p253
    $region34: #{style_decoder_forward.12} parent=5 // pred_check_branch
      %256 = sbr.rel (%p254) target = $region36
    $region35: #{style_decoder_forward.12} parent=5 // pred_region
      // Predicated region
      $region37: #{style_decoder_forward.12} parent=35 // pred_check
        %p257 = pneg %p34
      $region38: #{style_decoder_forward.12} parent=35 // pred_check_branch
        %259 = sbr.rel (%p257) target = $region40
      $region39: #{style_decoder_forward.12} parent=35 // pred_region
        %p260 = scmp.lt.s32.totalorder %s14, 1
        %s261 = scalar_select %p260, %s14, 1
        %s262 = smul.addr %s261, 2
        %s263 = scalar_lea.vmem %s0, %s262
      $region40: #{style_decoder_forward.12} parent=35 // pred_fallthru
        _
      // Predicated region
      $region41: #{style_decoder_forward.12} parent=35 // pred_check
        %p264 = pneg %p123
      $region42: #{style_decoder_forward.12} parent=35 // pred_check_branch
        %266 = sbr.rel (%p264) target = $region44
      $region43: #{style_decoder_forward.12} parent=35 // pred_region
        %p267 = scmp.lt.s32.totalorder %s14, 1
        %s268 = scalar_select %p267, %s14, 1
        %s269 = smul.addr %s268, 2
        %s270 = smul.addr %s269, 4
        %s271 = scalar_lea.vmem %s4, %s270
      $region44: #{style_decoder_forward.12} parent=35 // pred_fallthru
        _
      // Predicated region
      $region45: #{style_decoder_forward.12} parent=35 // pred_check
        %p272 = pneg %p191
      $region46: #{style_decoder_forward.12} parent=35 // pred_check_branch
        %274 = sbr.rel (%p272) target = $region48
      $region47: #{style_decoder_forward.12} parent=35 // pred_region
        %p275 = scmp.lt.s32.totalorder %s14, 1
        %s276 = scalar_select %p275, %s14, 1
        %s277 = smul.addr %s276, 4
        %s278 = smul.addr %s277, 4
        %s279 = scalar_lea.vmem %s7, %s278
      $region48: #{style_decoder_forward.12} parent=35 // pred_fallthru
        _
    $region36: #{style_decoder_forward.12} parent=5 // pred_fallthru
      _
    %p280 = scmp.le.s32.totalorder 1, %s14
    %p281 = scmp.lt.s32.totalorder %s14, 3
    %p282 = pnand %p280, %p281
    %p283 = pneg %p282
    // Predicated region
    $region49: #{style_decoder_forward.12} parent=5 // pred_check
      _
    $region50: #{style_decoder_forward.12} parent=5 // pred_check_branch
      %285 = sbr.rel (%p282) target = $region52
    $region51: #{style_decoder_forward.12} parent=5 // pred_region
      %s286 = ssub.s32 %s14, 1
      %p287 = scmp.lt.s32.totalorder %s19, 1
      %s288 = scalar_select %p287, %s19, 1
      %s289 = smul.addr %s288, 2
      %s290 = scalar_lea.vmem %s0, %s289
      %p291 = pneg %p40
      %p292 = pneg %p37
      %p293 = pneg %p61
      %p294 = pneg %p58
      %p295 = pneg %p82
      %p296 = pneg %p79
      %p297 = pneg %p103
      %p298 = pneg %p100
      %p299 = scmp.lt.s32.totalorder %s19, 1
      %s300 = scalar_select %p299, %s19, 1
      %s301 = smul.addr %s300, 2
      %s302 = smul.addr %s301, 4
      %s303 = scalar_lea.vmem %s4, %s302
      %p304 = pneg %p129
      %p305 = pneg %p126
      %p306 = pneg %p150
      %p307 = pneg %p147
      %p308 = pneg %p171
      %p309 = pneg %p168
      %p310 = scmp.lt.s32.totalorder %s19, 1
      %s311 = scalar_select %p310, %s19, 1
      %s312 = smul.addr %s311, 4
      %s313 = smul.addr %s312, 4
      %s314 = scalar_lea.vmem %s7, %s313
      %p315 = pneg %p197
      %p316 = pneg %p194
      %p317 = pneg %p223
      %p318 = pneg %p220
      %p319 = scmp.lt.s32.totalorder %s19, 1
      %s320 = scalar_select %p319, %s19, 1
      %s321 = smul.addr %s320, 2
      %s322 = smul.addr %s321, 2
      %s323 = scalar_lea.vmem %s8, %s322
      %p324 = scmp.lt.s32.totalorder %s19, 1
      %s325 = scalar_select %p324, %s19, 1
      %s326 = smul.addr %s325, 2
      %s327 = scalar_lea.vmem %s0, %s326
      %p328 = scmp.lt.s32.totalorder %s19, 1
      %s329 = scalar_select %p328, %s19, 1
      %s330 = smul.addr %s329, 2
      %s331 = smul.addr %s330, 4
      %s332 = scalar_lea.vmem %s4, %s331
      %p333 = scmp.lt.s32.totalorder %s19, 1
      %s334 = scalar_select %p333, %s19, 1
      %s335 = smul.addr %s334, 4
      %s336 = smul.addr %s335, 4
      %s337 = scalar_lea.vmem %s7, %s336
      %p338 = scmp.lt.s32.totalorder %s19, 1
      %s339 = scalar_select %p338, %s19, 1
      %s340 = smul.addr %s339, 2
      %s341 = smul.addr %s340, 2
      %s342 = scalar_lea.vmem %s8, %s341
      %v344 = vld [vmem:[%s327] sm:$0x3]
      %v345 = vunpack.c.l.bf16 %v344
      %347 = vrot.lane.b32.xlu0 %v345, 9
      %v348 = vpop.permute.xlu0 %347
      %vm350 = vcmask 72704
      %v351 = vsel %vm350, 0.0, %v348
      %vm352 = vcmask 596992
      %v353 = vsel %vm352, %v351, 0.0
      %v354 = vlaneseq
      %v355 = vand.u32 %v354, 127
      %vm356 = vcmp.lt.s32.totalorder %v355, 0
      %v357 = vsub.s32 0, %v355
      %v358 = vsel %vm356, %v357, %v355
      %v359 = vshrl.u32 %v358, 3
      %v360 = vand.u32 %v358, 7
      %v361 = vsub.s32 0, %v360
      %v362 = vsel %vm356, %v361, %v360
      %vm363 = vcmp.ne.s32.totalorder %v362, 0
      %vm364 = vcmp.lt.s32.totalorder %v362, 0
      %vm365 = vmand %vm364, %vm363
      %v366 = vadd.s32 %v362, 8
      %v367 = vsel %vm365, %v366, %v362
      %v368 = vadd.s32 %v367, 4294967295
      %vm369 = vcmp.ge.s32.totalorder %v368, 0
      %vm370 = vcmp.lt.s32.totalorder %v368, 8
      %vm371 = vmand %vm369, %vm370
      %v372 = vsel %vm371, 1, 0
      %vm373 = vcmp.eq.s32.totalorder %v372, 1
      %v374 = vsel %vm373, %v353, 0.0
      %v375 = vld [vmem:[%s1] sm:$0x3]
      %v376 = vpack.c.bf16 %v374, %v374
      %v377 = vpack.c.bf16 %v353, %v353
      %v380 = vunpack.c.l.s4 1983009808
      %v381 = vunpack.c.0.s8 %v380
      %v382 = vlaneseq
      %v383 = vshrl.u32 %v382, 7
      %v384 = vsub.s32 %v381, %v383
      %v385 = vrot.slane %v375, %v384
      %386 = vrot.lane.b32.xlu0 %v385, 124
      %v387 = vpop.permute.xlu0 %386
      %389 = vrot.lane.b32.xlu0 %v377, 127
      %v390 = vpop.permute.xlu0 %389
      %vm391 = vcmask 31744
      %v393 = vsel %vm391, %v387, 0
      %vm395 = vcmask 1041408
      %v397 = vsel %vm395, %v390, 0
      %399 = vmatprep.subr.bf16.mxu0 0
      %400 = vmatpush1.bf16.msra.mxu0 %v397
      %401 = vmatprep.subr.bf16.mxu0 0
      %402 = vmatpush1.bf16.msra.mxu0 0
      %403 = vmatprep.subr.bf16.mxu0 0
      %404 = vmatpush1.bf16.msra.mxu0 0
      %405 = vmatprep.subr.bf16.mxu0 0
      %406 = vmatpush1.bf16.msra.mxu0 0
      %407 = vmatprep.subr.bf16.mxu0 0
      %408 = vmatpush1.bf16.msra.mxu0 0
      %409 = vmatprep.subr.bf16.mxu0 0
      %410 = vmatpush1.bf16.msra.mxu0 0
      %411 = vmatprep.subr.bf16.mxu0 0
      %412 = vmatpush1.bf16.msra.mxu0 0
      %413 = vmatprep.subr.bf16.mxu0 0
      %414 = vmatpush1.bf16.msra.mxu0 0
      %415 = vmatprep.subr.bf16.mxu0 0
      %416 = vmatpush1.bf16.msra.mxu0 0
      %417 = vmatprep.subr.bf16.mxu0 0
      %418 = vmatpush1.bf16.msra.mxu0 0
      %419 = vmatprep.subr.bf16.mxu0 0
      %420 = vmatpush1.bf16.msra.mxu0 0
      %421 = vmatprep.subr.bf16.mxu0 0
      %422 = vmatpush1.bf16.msra.mxu0 0
      %423 = vmatprep.subr.bf16.mxu0 0
      %424 = vmatpush1.bf16.msra.mxu0 0
      %425 = vmatprep.subr.bf16.mxu0 0
      %426 = vmatpush1.bf16.msra.mxu0 0
      %427 = vmatprep.subr.bf16.mxu0 0
      %428 = vmatpush1.bf16.msra.mxu0 0
      %429 = vmatprep.subr.bf16.mxu0 0
      %430 = vmatpush1.bf16.msra.mxu0 0
      %431 = vmatprep.mubr.bf16.mxu0 0
      %432 = vmatmul.mubr.bf16.gmra.mrb[0].mxu0 %v393
      %v433 = vpop.f32.mrb[0].mxu0
      %v434 = vadd.f32 0.0, %v433
      %v435 = vpop.f32.mrb[0].mxu0
      %v436 = vpop.f32.mrb[0].mxu0
      %v437 = vpop.f32.mrb[0].mxu0
      %438 = vdwg.mxu0
      %v440 = vsel %vm391, %v375, 0
      %v443 = vsel %vm395, %v376, 0
      %445 = vmatprep.subr.bf16.mxu0 0
      %446 = vmatpush1.bf16.msra.mxu0 %v443
      %447 = vmatprep.subr.bf16.mxu0 0
      %448 = vmatpush1.bf16.msra.mxu0 0
      %449 = vmatprep.subr.bf16.mxu0 0
      %450 = vmatpush1.bf16.msra.mxu0 0
      %451 = vmatprep.subr.bf16.mxu0 0
      %452 = vmatpush1.bf16.msra.mxu0 0
      %453 = vmatprep.subr.bf16.mxu0 0
      %454 = vmatpush1.bf16.msra.mxu0 0
      %455 = vmatprep.subr.bf16.mxu0 0
      %456 = vmatpush1.bf16.msra.mxu0 0
      %457 = vmatprep.subr.bf16.mxu0 0
      %458 = vmatpush1.bf16.msra.mxu0 0
      %459 = vmatprep.subr.bf16.mxu0 0
      %460 = vmatpush1.bf16.msra.mxu0 0
      %461 = vmatprep.subr.bf16.mxu0 0
      %462 = vmatpush1.bf16.msra.mxu0 0
      %463 = vmatprep.subr.bf16.mxu0 0
      %464 = vmatpush1.bf16.msra.mxu0 0
      %465 = vmatprep.subr.bf16.mxu0 0
      %466 = vmatpush1.bf16.msra.mxu0 0
      %467 = vmatprep.subr.bf16.mxu0 0
      %468 = vmatpush1.bf16.msra.mxu0 0
      %469 = vmatprep.subr.bf16.mxu0 0
      %470 = vmatpush1.bf16.msra.mxu0 0
      %471 = vmatprep.subr.bf16.mxu0 0
      %472 = vmatpush1.bf16.msra.mxu0 0
      %473 = vmatprep.subr.bf16.mxu0 0
      %474 = vmatpush1.bf16.msra.mxu0 0
      %475 = vmatprep.subr.bf16.mxu0 0
      %476 = vmatpush1.bf16.msra.mxu0 0
      %477 = vmatprep.mubr.bf16.mxu0 0
      %478 = vmatmul.mubr.bf16.gmra.mrb[0].mxu0 %v440
      %v479 = vpop.f32.mrb[0].mxu0
      %v480 = vadd.f32 %v434, %v479
      %v481 = vpop.f32.mrb[0].mxu0
      %v482 = vpop.f32.mrb[0].mxu0
      %v483 = vpop.f32.mrb[0].mxu0
      %484 = vdwg.mxu0
      %v485 = vadd.s32 %v367, 1
      %vm486 = vcmp.ge.s32.totalorder %v485, 0
      %vm487 = vcmp.lt.s32.totalorder %v485, 8
      %vm488 = vmand %vm486, %vm487
      %v489 = vsel %vm488, 1, 0
      %vm490 = vcmp.eq.s32.totalorder %v489, 1
      %492 = vrot.lane.b32.xlu0 %v353, 126
      %v493 = vpop.permute.xlu0 %492
      %v495 = vsel %vm490, %v493, 0.0
      %v496 = vld [vmem:[%s1] sm:$0x3]
      %v497 = vpack.c.bf16 %v495, %v495
      %v500 = vunpack.c.l.s4 1983009808
      %v501 = vunpack.c.0.s8 %v500
      %v502 = vlaneseq
      %v503 = vshrl.u32 %v502, 7
      %v504 = vsub.s32 %v501, %v503
      %v505 = vrot.slane %v496, %v504
      %506 = vrot.lane.b32.xlu0 %v505, 120
      %v507 = vpop.permute.xlu0 %506
      %v509 = vsel %vm391, %v507, 0
      %v512 = vsel %vm395, %v497, 0
      %514 = vmatprep.subr.bf16.mxu0 0
      %515 = vmatpush1.bf16.msra.mxu0 %v512
      %516 = vmatprep.subr.bf16.mxu0 0
      %517 = vmatpush1.bf16.msra.mxu0 0
      %518 = vmatprep.subr.bf16.mxu0 0
      %519 = vmatpush1.bf16.msra.mxu0 0
      %520 = vmatprep.subr.bf16.mxu0 0
      %521 = vmatpush1.bf16.msra.mxu0 0
      %522 = vmatprep.subr.bf16.mxu0 0
      %523 = vmatpush1.bf16.msra.mxu0 0
      %524 = vmatprep.subr.bf16.mxu0 0
      %525 = vmatpush1.bf16.msra.mxu0 0
      %526 = vmatprep.subr.bf16.mxu0 0
      %527 = vmatpush1.bf16.msra.mxu0 0
      %528 = vmatprep.subr.bf16.mxu0 0
      %529 = vmatpush1.bf16.msra.mxu0 0
      %530 = vmatprep.subr.bf16.mxu0 0
      %531 = vmatpush1.bf16.msra.mxu0 0
      %532 = vmatprep.subr.bf16.mxu0 0
      %533 = vmatpush1.bf16.msra.mxu0 0
      %534 = vmatprep.subr.bf16.mxu0 0
      %535 = vmatpush1.bf16.msra.mxu0 0
      %536 = vmatprep.subr.bf16.mxu0 0
      %537 = vmatpush1.bf16.msra.mxu0 0
      %538 = vmatprep.subr.bf16.mxu0 0
      %539 = vmatpush1.bf16.msra.mxu0 0
      %540 = vmatprep.subr.bf16.mxu0 0
      %541 = vmatpush1.bf16.msra.mxu0 0
      %542 = vmatprep.subr.bf16.mxu0 0
      %543 = vmatpush1.bf16.msra.mxu0 0
      %544 = vmatprep.subr.bf16.mxu0 0
      %545 = vmatpush1.bf16.msra.mxu0 0
      %546 = vmatprep.mubr.bf16.mxu0 0
      %547 = vmatmul.mubr.bf16.gmra.mrb[0].mxu0 %v509
      %v548 = vpop.f32.mrb[0].mxu0
      %v549 = vadd.f32 0.0, %v548
      %v550 = vpop.f32.mrb[0].mxu0
      %v551 = vpop.f32.mrb[0].mxu0
      %v552 = vpop.f32.mrb[0].mxu0
      %553 = vdwg.mxu0
      %v554 = vadd.f32 %v480, %v549
      %555 = vrot.lane.b32.xlu0 %v353, 120
      %v556 = vpop.permute.xlu0 %555
      %v558 = vsel %vm373, %v556, 0.0
      %v559 = vld [vmem:[%s1] sm:$0x3]
      %v560 = vpack.c.bf16 %v558, %v558
      %v563 = vunpack.c.l.s4 1983009808
      %v564 = vunpack.c.0.s8 %v563
      %v565 = vlaneseq
      %v566 = vshrl.u32 %v565, 7
      %v567 = vsub.s32 %v564, %v566
      %v568 = vrot.slane %v559, %v567
      %569 = vrot.lane.b32.xlu0 %v568, 116
      %v570 = vpop.permute.xlu0 %569
      %v572 = vsel %vm391, %v570, 0
      %v575 = vsel %vm395, %v560, 0
      %577 = vmatprep.subr.bf16.mxu0 0
      %578 = vmatpush1.bf16.msra.mxu0 %v575
      %579 = vmatprep.subr.bf16.mxu0 0
      %580 = vmatpush1.bf16.msra.mxu0 0
      %581 = vmatprep.subr.bf16.mxu0 0
      %582 = vmatpush1.bf16.msra.mxu0 0
      %583 = vmatprep.subr.bf16.mxu0 0
      %584 = vmatpush1.bf16.msra.mxu0 0
      %585 = vmatprep.subr.bf16.mxu0 0
      %586 = vmatpush1.bf16.msra.mxu0 0
      %587 = vmatprep.subr.bf16.mxu0 0
      %588 = vmatpush1.bf16.msra.mxu0 0
      %589 = vmatprep.subr.bf16.mxu0 0
      %590 = vmatpush1.bf16.msra.mxu0 0
      %591 = vmatprep.subr.bf16.mxu0 0
      %592 = vmatpush1.bf16.msra.mxu0 0
      %593 = vmatprep.subr.bf16.mxu0 0
      %594 = vmatpush1.bf16.msra.mxu0 0
      %595 = vmatprep.subr.bf16.mxu0 0
      %596 = vmatpush1.bf16.msra.mxu0 0
      %597 = vmatprep.subr.bf16.mxu0 0
      %598 = vmatpush1.bf16.msra.mxu0 0
      %599 = vmatprep.subr.bf16.mxu0 0
      %600 = vmatpush1.bf16.msra.mxu0 0
      %601 = vmatprep.subr.bf16.mxu0 0
      %602 = vmatpush1.bf16.msra.mxu0 0
      %603 = vmatprep.subr.bf16.mxu0 0
      %604 = vmatpush1.bf16.msra.mxu0 0
      %605 = vmatprep.subr.bf16.mxu0 0
      %606 = vmatpush1.bf16.msra.mxu0 0
      %607 = vmatprep.subr.bf16.mxu0 0
      %608 = vmatpush1.bf16.msra.mxu0 0
      %609 = vmatprep.mubr.bf16.mxu0 0
      %610 = vmatmul.mubr.bf16.gmra.mrb[0].mxu0 %v572
      %v611 = vpop.f32.mrb[0].mxu0
      %v612 = vadd.f32 0.0, %v611
      %v613 = vpop.f32.mrb[0].mxu0
      %v614 = vpop.f32.mrb[0].mxu0
      %v615 = vpop.f32.mrb[0].mxu0
      %616 = vdwg.mxu0
      %v617 = vadd.f32 %v554, %v612
      %v618 = vld [vmem:[%s1] sm:$0x3]
      %v621 = vunpack.c.l.s4 1983009808
      %v622 = vunpack.c.0.s8 %v621
      %v623 = vlaneseq
      %v624 = vshrl.u32 %v623, 7
      %v625 = vsub.s32 %v622, %v624
      %v626 = vrot.slane %v618, %v625
      %627 = vrot.lane.b32.xlu0 %v626, 112
      %v628 = vpop.permute.xlu0 %627
      %629 = vrot.lane.b32.xlu0 %v377, 119
      %v630 = vpop.permute.xlu0 %629
      %v632 = vsel %vm391, %v628, 0
      %v635 = vsel %vm395, %v630, 0
      %637 = vmatprep.subr.bf16.mxu0 0
      %638 = vmatpush1.bf16.msra.mxu0 %v635
      %639 = vmatprep.subr.bf16.mxu0 0
      %640 = vmatpush1.bf16.msra.mxu0 0
      %641 = vmatprep.subr.bf16.mxu0 0
      %642 = vmatpush1.bf16.msra.mxu0 0
      %643 = vmatprep.subr.bf16.mxu0 0
      %644 = vmatpush1.bf16.msra.mxu0 0
      %645 = vmatprep.subr.bf16.mxu0 0
      %646 = vmatpush1.bf16.msra.mxu0 0
      %647 = vmatprep.subr.bf16.mxu0 0
      %648 = vmatpush1.bf16.msra.mxu0 0
      %649 = vmatprep.subr.bf16.mxu0 0
      %650 = vmatpush1.bf16.msra.mxu0 0
      %651 = vmatprep.subr.bf16.mxu0 0
      %652 = vmatpush1.bf16.msra.mxu0 0
      %653 = vmatprep.subr.bf16.mxu0 0
      %654 = vmatpush1.bf16.msra.mxu0 0
      %655 = vmatprep.subr.bf16.mxu0 0
      %656 = vmatpush1.bf16.msra.mxu0 0
      %657 = vmatprep.subr.bf16.mxu0 0
      %658 = vmatpush1.bf16.msra.mxu0 0
      %659 = vmatprep.subr.bf16.mxu0 0
      %660 = vmatpush1.bf16.msra.mxu0 0
      %661 = vmatprep.subr.bf16.mxu0 0
      %662 = vmatpush1.bf16.msra.mxu0 0
      %663 = vmatprep.subr.bf16.mxu0 0
      %664 = vmatpush1.bf16.msra.mxu0 0
      %665 = vmatprep.subr.bf16.mxu0 0
      %666 = vmatpush1.bf16.msra.mxu0 0
      %667 = vmatprep.subr.bf16.mxu0 0
      %668 = vmatpush1.bf16.msra.mxu0 0
      %669 = vmatprep.mubr.bf16.mxu0 0
      %670 = vmatmul.mubr.bf16.gmra.mrb[0].mxu0 %v632
      %v671 = vpop.f32.mrb[0].mxu0
      %v672 = vadd.f32 0.0, %v671
      %v673 = vpop.f32.mrb[0].mxu0
      %v674 = vpop.f32.mrb[0].mxu0
      %v675 = vpop.f32.mrb[0].mxu0
      %676 = vdwg.mxu0
      %v677 = vadd.f32 %v617, %v672
      %678 = vrot.lane.b32.xlu0 %v353, 118
      %v679 = vpop.permute.xlu0 %678
      %v681 = vsel %vm490, %v679, 0.0
      %v682 = vld [vmem:[%s1] sm:$0x3]
      %v683 = vpack.c.bf16 %v681, %v681
      %v686 = vunpack.c.l.s4 1983009808
      %v687 = vunpack.c.0.s8 %v686
      %v688 = vlaneseq
      %v689 = vshrl.u32 %v688, 7
      %v690 = vsub.s32 %v687, %v689
      %v691 = vrot.slane %v682, %v690
      %692 = vrot.lane.b32.xlu0 %v691, 108
      %v693 = vpop.permute.xlu0 %692
      %v695 = vsel %vm391, %v693, 0
      %v698 = vsel %vm395, %v683, 0
      %700 = vmatprep.subr.bf16.mxu0 0
      %701 = vmatpush1.bf16.msra.mxu0 %v698
      %702 = vmatprep.subr.bf16.mxu0 0
      %703 = vmatpush1.bf16.msra.mxu0 0
      %704 = vmatprep.subr.bf16.mxu0 0
      %705 = vmatpush1.bf16.msra.mxu0 0
      %706 = vmatprep.subr.bf16.mxu0 0
      %707 = vmatpush1.bf16.msra.mxu0 0
      %708 = vmatprep.subr.bf16.mxu0 0
      %709 = vmatpush1.bf16.msra.mxu0 0
      %710 = vmatprep.subr.bf16.mxu0 0
      %711 = vmatpush1.bf16.msra.mxu0 0
      %712 = vmatprep.subr.bf16.mxu0 0
      %713 = vmatpush1.bf16.msra.mxu0 0
      %714 = vmatprep.subr.bf16.mxu0 0
      %715 = vmatpush1.bf16.msra.mxu0 0
      %716 = vmatprep.subr.bf16.mxu0 0
      %717 = vmatpush1.bf16.msra.mxu0 0
      %718 = vmatprep.subr.bf16.mxu0 0
      %719 = vmatpush1.bf16.msra.mxu0 0
      %720 = vmatprep.subr.bf16.mxu0 0
      %721 = vmatpush1.bf16.msra.mxu0 0
      %722 = vmatprep.subr.bf16.mxu0 0
      %723 = vmatpush1.bf16.msra.mxu0 0
      %724 = vmatprep.subr.bf16.mxu0 0
      %725 = vmatpush1.bf16.msra.mxu0 0
      %726 = vmatprep.subr.bf16.mxu0 0
      %727 = vmatpush1.bf16.msra.mxu0 0
      %728 = vmatprep.subr.bf16.mxu0 0
      %729 = vmatpush1.bf16.msra.mxu0 0
      %730 = vmatprep.subr.bf16.mxu0 0
      %731 = vmatpush1.bf16.msra.mxu0 0
      %732 = vmatprep.mubr.bf16.mxu0 0
      %733 = vmatmul.mubr.bf16.gmra.mrb[0].mxu0 %v695
      %v734 = vpop.f32.mrb[0].mxu0
      %v735 = vadd.f32 0.0, %v734
      %v736 = vpop.f32.mrb[0].mxu0
      %v737 = vpop.f32.mrb[0].mxu0
      %v738 = vpop.f32.mrb[0].mxu0
      %739 = vdwg.mxu0
      %v740 = vadd.f32 %v677, %v735
      %741 = vrot.lane.b32.xlu0 %v353, 112
      %v742 = vpop.permute.xlu0 %741
      %v744 = vsel %vm373, %v742, 0.0
      %v745 = vld [vmem:[%s1] sm:$0x3]
      %v746 = vpack.c.bf16 %v744, %v744
      %v749 = vunpack.c.l.s4 1983009808
      %v750 = vunpack.c.0.s8 %v749
      %v751 = vlaneseq
      %v752 = vshrl.u32 %v751, 7
      %v753 = vsub.s32 %v750, %v752
      %v754 = vrot.slane %v745, %v753
      %755 = vrot.lane.b32.xlu0 %v754, 104
      %v756 = vpop.permute.xlu0 %755
      %v758 = vsel %vm391, %v756, 0
      %v761 = vsel %vm395, %v746, 0
      %763 = vmatprep.subr.bf16.mxu0 0
      %764 = vmatpush1.bf16.msra.mxu0 %v761
      %765 = vmatprep.subr.bf16.mxu0 0
      %766 = vmatpush1.bf16.msra.mxu0 0
      %767 = vmatprep.subr.bf16.mxu0 0
      %768 = vmatpush1.bf16.msra.mxu0 0
      %769 = vmatprep.subr.bf16.mxu0 0
      %770 = vmatpush1.bf16.msra.mxu0 0
      %771 = vmatprep.subr.bf16.mxu0 0
      %772 = vmatpush1.bf16.msra.mxu0 0
      %773 = vmatprep.subr.bf16.mxu0 0
      %774 = vmatpush1.bf16.msra.mxu0 0
      %775 = vmatprep.subr.bf16.mxu0 0
      %776 = vmatpush1.bf16.msra.mxu0 0
      %777 = vmatprep.subr.bf16.mxu0 0
      %778 = vmatpush1.bf16.msra.mxu0 0
      %779 = vmatprep.subr.bf16.mxu0 0
      %780 = vmatpush1.bf16.msra.mxu0 0
      %781 = vmatprep.subr.bf16.mxu0 0
      %782 = vmatpush1.bf16.msra.mxu0 0
      %783 = vmatprep.subr.bf16.mxu0 0
      %784 = vmatpush1.bf16.msra.mxu0 0
      %785 = vmatprep.subr.bf16.mxu0 0
      %786 = vmatpush1.bf16.msra.mxu0 0
      %787 = vmatprep.subr.bf16.mxu0 0
      %788 = vmatpush1.bf16.msra.mxu0 0
      %789 = vmatprep.subr.bf16.mxu0 0
      %790 = vmatpush1.bf16.msra.mxu0 0
      %791 = vmatprep.subr.bf16.mxu0 0
      %792 = vmatpush1.bf16.msra.mxu0 0
      %793 = vmatprep.subr.bf16.mxu0 0
      %794 = vmatpush1.bf16.msra.mxu0 0
      %795 = vmatprep.mubr.bf16.mxu0 0
      %796 = vmatmul.mubr.bf16.gmra.mrb[0].mxu0 %v758
      %v797 = vpop.f32.mrb[0].mxu0
      %v798 = vadd.f32 0.0, %v797
      %v799 = vpop.f32.mrb[0].mxu0
      %v800 = vpop.f32.mrb[0].mxu0
      %v801 = vpop.f32.mrb[0].mxu0
      %802 = vdwg.mxu0
      %v803 = vadd.f32 %v740, %v798
      %v804 = vld [vmem:[%s1] sm:$0x3]
      %v807 = vunpack.c.l.s4 1983009808
      %v808 = vunpack.c.0.s8 %v807
      %v809 = vlaneseq
      %v810 = vshrl.u32 %v809, 7
      %v811 = vsub.s32 %v808, %v810
      %v812 = vrot.slane %v804, %v811
      %813 = vrot.lane.b32.xlu0 %v812, 100
      %v814 = vpop.permute.xlu0 %813
      %815 = vrot.lane.b32.xlu0 %v377, 111
      %v816 = vpop.permute.xlu0 %815
      %v818 = vsel %vm391, %v814, 0
      %v821 = vsel %vm395, %v816, 0
      %823 = vmatprep.subr.bf16.mxu0 0
      %824 = vmatpush1.bf16.msra.mxu0 %v821
      %825 = vmatprep.subr.bf16.mxu0 0
      %826 = vmatpush1.bf16.msra.mxu0 0
      %827 = vmatprep.subr.bf16.mxu0 0
      %828 = vmatpush1.bf16.msra.mxu0 0
      %829 = vmatprep.subr.bf16.mxu0 0
      %830 = vmatpush1.bf16.msra.mxu0 0
      %831 = vmatprep.subr.bf16.mxu0 0
      %832 = vmatpush1.bf16.msra.mxu0 0
      %833 = vmatprep.subr.bf16.mxu0 0
      %834 = vmatpush1.bf16.msra.mxu0 0
      %835 = vmatprep.subr.bf16.mxu0 0
      %836 = vmatpush1.bf16.msra.mxu0 0
      %837 = vmatprep.subr.bf16.mxu0 0
      %838 = vmatpush1.bf16.msra.mxu0 0
      %839 = vmatprep.subr.bf16.mxu0 0
      %840 = vmatpush1.bf16.msra.mxu0 0
      %841 = vmatprep.subr.bf16.mxu0 0
      %842 = vmatpush1.bf16.msra.mxu0 0
      %843 = vmatprep.subr.bf16.mxu0 0
      %844 = vmatpush1.bf16.msra.mxu0 0
      %845 = vmatprep.subr.bf16.mxu0 0
      %846 = vmatpush1.bf16.msra.mxu0 0
      %847 = vmatprep.subr.bf16.mxu0 0
      %848 = vmatpush1.bf16.msra.mxu0 0
      %849 = vmatprep.subr.bf16.mxu0 0
      %850 = vmatpush1.bf16.msra.mxu0 0
      %851 = vmatprep.subr.bf16.mxu0 0
      %852 = vmatpush1.bf16.msra.mxu0 0
      %853 = vmatprep.subr.bf16.mxu0 0
      %854 = vmatpush1.bf16.msra.mxu0 0
      %855 = vmatprep.mubr.bf16.mxu0 0
      %856 = vmatmul.mubr.bf16.gmra.mrb[0].mxu0 %v818
      %v857 = vpop.f32.mrb[0].mxu0
      %v858 = vadd.f32 0.0, %v857
      %v859 = vpop.f32.mrb[0].mxu0
      %v860 = vpop.f32.mrb[0].mxu0
      %v861 = vpop.f32.mrb[0].mxu0
      %862 = vdwg.mxu0
      %v863 = vadd.f32 %v803, %v858
      %864 = vrot.lane.b32.xlu0 %v353, 110
      %v865 = vpop.permute.xlu0 %864
      %v867 = vsel %vm490, %v865, 0.0
      %v868 = vld [vmem:[%s1] sm:$0x3]
      %v869 = vpack.c.bf16 %v867, %v867
      %v872 = vunpack.c.l.s4 1983009808
      %v873 = vunpack.c.0.s8 %v872
      %v874 = vlaneseq
      %v875 = vshrl.u32 %v874, 7
      %v876 = vsub.s32 %v873, %v875
      %v877 = vrot.slane %v868, %v876
      %878 = vrot.lane.b32.xlu0 %v877, 96
      %v879 = vpop.permute.xlu0 %878
      %v881 = vsel %vm391, %v879, 0
      %v884 = vsel %vm395, %v869, 0
      %886 = vmatprep.subr.bf16.mxu0 0
      %887 = vmatpush1.bf16.msra.mxu0 %v884
      %888 = vmatprep.subr.bf16.mxu0 0
      %889 = vmatpush1.bf16.msra.mxu0 0
      %890 = vmatprep.subr.bf16.mxu0 0
      %891 = vmatpush1.bf16.msra.mxu0 0
      %892 = vmatprep.subr.bf16.mxu0 0
      %893 = vmatpush1.bf16.msra.mxu0 0
      %894 = vmatprep.subr.bf16.mxu0 0
      %895 = vmatpush1.bf16.msra.mxu0 0
      %896 = vmatprep.subr.bf16.mxu0 0
      %897 = vmatpush1.bf16.msra.mxu0 0
      %898 = vmatprep.subr.bf16.mxu0 0
      %899 = vmatpush1.bf16.msra.mxu0 0
      %900 = vmatprep.subr.bf16.mxu0 0
      %901 = vmatpush1.bf16.msra.mxu0 0
      %902 = vmatprep.subr.bf16.mxu0 0
      %903 = vmatpush1.bf16.msra.mxu0 0
      %904 = vmatprep.subr.bf16.mxu0 0
      %905 = vmatpush1.bf16.msra.mxu0 0
      %906 = vmatprep.subr.bf16.mxu0 0
      %907 = vmatpush1.bf16.msra.mxu0 0
      %908 = vmatprep.subr.bf16.mxu0 0
      %909 = vmatpush1.bf16.msra.mxu0 0
      %910 = vmatprep.subr.bf16.mxu0 0
      %911 = vmatpush1.bf16.msra.mxu0 0
      %912 = vmatprep.subr.bf16.mxu0 0
      %913 = vmatpush1.bf16.msra.mxu0 0
      %914 = vmatprep.subr.bf16.mxu0 0
      %915 = vmatpush1.bf16.msra.mxu0 0
      %916 = vmatprep.subr.bf16.mxu0 0
      %917 = vmatpush1.bf16.msra.mxu0 0
      %918 = vmatprep.mubr.bf16.mxu0 0
      %919 = vmatmul.mubr.bf16.gmra.mrb[0].mxu0 %v881
      %v920 = vpop.f32.mrb[0].mxu0
      %v921 = vadd.f32 0.0, %v920
      %v922 = vpop.f32.mrb[0].mxu0
      %v923 = vpop.f32.mrb[0].mxu0
      %v924 = vpop.f32.mrb[0].mxu0
      %925 = vdwg.mxu0
      %v926 = vadd.f32 %v863, %v921
      %v927 = vld [vmem:[%s2] sm:$0xf]
      %929 = vset.pattern.permute.xlu0 0
      %930 = vperm.xlu0 %929, %v927
      %v931 = vpop.permute.xlu0 %930
      %v933 = vadd.f32 %v926, %v931
      %v934 = vmax.f32 %v933, 0.0
      %v935 = vpack.c.bf16 %v934, %v934
      %v936 = vld [vmem:[%s3] sm:$0xff]
      %v937 = vld [vmem:[%s3 + $0x8] sm:$0xff]
      %v938 = vld [vmem:[%s3 + $0x10] sm:$0xff]
      %v939 = vld [vmem:[%s3 + $0x18] sm:$0xff]
      %v940 = vld [vmem:[%s3 + $0x20] sm:$0xff]
      %v941 = vld [vmem:[%s3 + $0x28] sm:$0xff]
      %v942 = vld [vmem:[%s3 + $0x30] sm:$0xff]
      %v943 = vld [vmem:[%s3 + $0x38] sm:$0xff]
      %v944 = vld [vmem:[%s332] sm:$0xff]
      %v946 = vcombine.high %v944, %v944
      %v948 = vpack.c.bf16 %v944, %v944
      %v949 = vpack.c.bf16 %v946, %v946
      %v950 = vld [vmem:[%s6] sm:$0xf]
      %952 = vset.pattern.permute.xlu0 0
      %953 = vperm.xlu0 %952, %v950
      %v954 = vpop.permute.xlu0 %953
      %v964 = vunpack.c.l.b16 %v936
      %v965 = vunpack.c.h.b16 %v936
      %v966 = vunpack.c.l.b16 %v937
      %v967 = vunpack.c.h.b16 %v937
      %v968 = vunpack.c.l.b16 %v938
      %v969 = vunpack.c.h.b16 %v938
      %v970 = vunpack.c.l.b16 %v939
      %v971 = vunpack.c.h.b16 %v939
      %v972 = vunpack.c.l.b16 %v940
      %v973 = vunpack.c.h.b16 %v940
      %v974 = vunpack.c.l.b16 %v941
      %v975 = vunpack.c.h.b16 %v941
      %v976 = vunpack.c.l.b16 %v942
      %v977 = vunpack.c.h.b16 %v942
      %v978 = vunpack.c.l.b16 %v943
      %v979 = vunpack.c.h.b16 %v943
      %v980 = vpack.c.b16 %v966, %v964
      %v981 = vpack.c.b16 %v967, %v965
      %v982 = vpack.c.b16 %v970, %v968
      %v983 = vpack.c.b16 %v971, %v969
      %v984 = vpack.c.b16 %v974, %v972
      %v985 = vpack.c.b16 %v975, %v973
      %v986 = vpack.c.b16 %v978, %v976
      %v987 = vpack.c.b16 %v979, %v977
      %vm996 = vcmask 523264
      %v998 = vsel %vm996, %v935, 0
      %1000 = vmatprep.subr.bf16.mxu0 %v981
      %1001 = vmatpush1.bf16.msra.mxu0 %v980
      %1002 = vmatprep.subr.bf16.mxu0 %v983
      %1003 = vmatpush1.bf16.msra.mxu0 %v982
      %1004 = vmatprep.subr.bf16.mxu0 %v985
      %1005 = vmatpush1.bf16.msra.mxu0 %v984
      %1006 = vmatprep.subr.bf16.mxu0 %v987
      %1007 = vmatpush1.bf16.msra.mxu0 %v986
      %1008 = vmatprep.subr.bf16.mxu0 0
      %1009 = vmatpush1.bf16.msra.mxu0 0
      %1010 = vmatprep.subr.bf16.mxu0 0
      %1011 = vmatpush1.bf16.msra.mxu0 0
      %1012 = vmatprep.subr.bf16.mxu0 0
      %1013 = vmatpush1.bf16.msra.mxu0 0
      %1014 = vmatprep.subr.bf16.mxu0 0
      %1015 = vmatpush1.bf16.msra.mxu0 0
      %1016 = vmatprep.subr.bf16.mxu0 0
      %1017 = vmatpush1.bf16.msra.mxu0 0
      %1018 = vmatprep.subr.bf16.mxu0 0
      %1019 = vmatpush1.bf16.msra.mxu0 0
      %1020 = vmatprep.subr.bf16.mxu0 0
      %1021 = vmatpush1.bf16.msra.mxu0 0
      %1022 = vmatprep.subr.bf16.mxu0 0
      %1023 = vmatpush1.bf16.msra.mxu0 0
      %1024 = vmatprep.subr.bf16.mxu0 0
      %1025 = vmatpush1.bf16.msra.mxu0 0
      %1026 = vmatprep.subr.bf16.mxu0 0
      %1027 = vmatpush1.bf16.msra.mxu0 0
      %1028 = vmatprep.subr.bf16.mxu0 0
      %1029 = vmatpush1.bf16.msra.mxu0 0
      %1030 = vmatprep.subr.bf16.mxu0 0
      %1031 = vmatpush1.bf16.msra.mxu0 0
      %1032 = vmatprep.mubr.bf16.mxu0 0
      %1033 = vmatmul.mubr.bf16.gmra.mrb[0].mxu0 %v998
      %v1034 = vpop.f32.mrb[0].mxu0
      %v1035 = vadd.f32 %v954, %v1034
      %v1036 = vpop.f32.mrb[0].mxu0
      %v1037 = vadd.f32 %v954, %v1036
      %v1038 = vpop.f32.mrb[0].mxu0
      %v1039 = vpop.f32.mrb[0].mxu0
      %1040 = vdwg.mxu0
      %v1041 = vld [vmem:[%s5] sm:$0x3]
      %v1043 = vsel %vm391, %v1041, 0
      %v1046 = vsel %vm395, %v948, 0
      %v1049 = vsel %vm395, %v949, 0
      %1051 = vmatprep.subr.bf16.mxu0 %v1049
      %1052 = vmatpush1.bf16.msra.mxu0 %v1046
      %1053 = vmatprep.subr.bf16.mxu0 0
      %1054 = vmatpush1.bf16.msra.mxu0 0
      %1055 = vmatprep.subr.bf16.mxu0 0
      %1056 = vmatpush1.bf16.msra.mxu0 0
      %1057 = vmatprep.subr.bf16.mxu0 0
      %1058 = vmatpush1.bf16.msra.mxu0 0
      %1059 = vmatprep.subr.bf16.mxu0 0
      %1060 = vmatpush1.bf16.msra.mxu0 0
      %1061 = vmatprep.subr.bf16.mxu0 0
      %1062 = vmatpush1.bf16.msra.mxu0 0
      %1063 = vmatprep.subr.bf16.mxu0 0
      %1064 = vmatpush1.bf16.msra.mxu0 0
      %1065 = vmatprep.subr.bf16.mxu0 0
      %1066 = vmatpush1.bf16.msra.mxu0 0
      %1067 = vmatprep.subr.bf16.mxu0 0
      %1068 = vmatpush1.bf16.msra.mxu0 0
      %1069 = vmatprep.subr.bf16.mxu0 0
      %1070 = vmatpush1.bf16.msra.mxu0 0
      %1071 = vmatprep.subr.bf16.mxu0 0
      %1072 = vmatpush1.bf16.msra.mxu0 0
      %1073 = vmatprep.subr.bf16.mxu0 0
      %1074 = vmatpush1.bf16.msra.mxu0 0
      %1075 = vmatprep.subr.bf16.mxu0 0
      %1076 = vmatpush1.bf16.msra.mxu0 0
      %1077 = vmatprep.subr.bf16.mxu0 0
      %1078 = vmatpush1.bf16.msra.mxu0 0
      %1079 = vmatprep.subr.bf16.mxu0 0
      %1080 = vmatpush1.bf16.msra.mxu0 0
      %1081 = vmatprep.subr.bf16.mxu0 0
      %1082 = vmatpush1.bf16.msra.mxu0 0
      %1083 = vmatprep.mubr.bf16.mxu0 0
      %1084 = vmatmul.mubr.bf16.gmra.mrb[0].mxu0 %v1043
      %v1085 = vpop.f32.mrb[0].mxu0
      %v1086 = vadd.f32 0.0, %v1085
      %v1087 = vpop.f32.mrb[0].mxu0
      %v1088 = vadd.f32 0.0, %v1087
      %v1089 = vpop.f32.mrb[0].mxu0
      %v1090 = vpop.f32.mrb[0].mxu0
      %1091 = vdwg.mxu0
      %v1092 = vadd.f32 %v1035, %v1086
      %v1093 = vadd.f32 %v1037, %v1088
      %vm1094 = vcmask 1043456
      %v1095 = vsel %vm1094, %v1092, 0.0
      %v1096 = vsel %vm1094, %v1093, 0.0
      %v1097 = vadd.f32 %v1095, %v1096
      %1098 = vadd.xlane.f32.xlu0 %v1097
      %v1099 = vpop.xlane.xlu0 %1098
      %v1100 = vrcp.pop 256.0
      %v1101 = vmul.f32 %v1099, %v1100
      %v1102 = vsub.f32 %v1092, %v1101
      %v1103 = vsub.f32 %v1093, %v1101
      %v1104 = vmul.f32 %v1102, %v1102
      %v1105 = vmul.f32 %v1103, %v1103
      %v1106 = vsel %vm1094, %v1104, 0.0
      %v1107 = vsel %vm1094, %v1105, 0.0
      %v1108 = vadd.f32 %v1106, %v1107
      %1109 = vadd.xlane.f32.xlu0 %v1108
      %v1110 = vpop.xlane.xlu0 %1109
      %v1111 = vmul.f32 %v1110, %v1100
      %v1112 = vadd.f32 %v1111, 1e-05
      %v1113 = vrsqrt.pop %v1112
      %v1114 = vmul.f32 %v1102, %v1113
      %v1115 = vmul.f32 %v1103, %v1113
      %v1116 = vld [vmem:[%s337] sm:$0xff]
      %v1117 = vld [vmem:[%s337 + $0x8] sm:$0xff]
      %v1120 = vcombine.low %v1114, %v1115
      %v1122 = vmul.f32 %v1116, %v1120
      %v1123 = vadd.f32 %v1122, %v1117
      %v1125 = vcombine.high %v1123, %v1123
      %v1127 = vpack.c.bf16 %v1123, %v1123
      %v1128 = vpack.c.bf16 %v1125, %v1125
      %v1131 = vcombine.low %v1127, %v1128
      %v1133 = vunpack.c.l.s4 1983009808
      %v1134 = vunpack.c.0.s8 %v1133
      %v1135 = vlaneseq
      %v1136 = vshrl.u32 %v1135, 7
      %v1137 = vsub.s32 %v1134, %v1136
      %v1138 = vrot.slane %v1131, %v1137
      %1140 = vst [vmem:[%s342] sm:$0xf] %v1138
      %p1141 = scmp.lt.s32.totalorder %s19, 1
      %s1142 = scalar_select %p1141, %s19, 1
      %s1143 = smul.addr %s1142, 2
      %s1144 = smul.addr %s1143, 2
      %s1145 = scalar_lea.vmem %s8, %s1144
      // Predicated region
      $region53: #{style_decoder_forward.12} parent=51 // pred_check
        %p1146 = pneg %p220
      $region54: #{style_decoder_forward.12} parent=51 // pred_check_branch
        %1148 = sbr.rel (%p1146) target = $region56
      $region55: #{style_decoder_forward.12} parent=51 // pred_region
        _
      $region56: #{style_decoder_forward.12} parent=51 // pred_fallthru
        _
    $region52: #{style_decoder_forward.12} parent=5 // pred_fallthru
      _
    %p1149 = scmp.le.s32.totalorder 2, %s14
    // Predicated region
    $region57: #{style_decoder_forward.12} parent=5 // pred_check
      %p1150 = pneg %p1149
    $region58: #{style_decoder_forward.12} parent=5 // pred_check_branch
      %1152 = sbr.rel (%p1150) target = $region60
    $region59: #{style_decoder_forward.12} parent=5 // pred_region
      %s1153 = ssub.s32 %s14, 2
      // Predicated region
      $region61: #{style_decoder_forward.12} parent=59 // pred_check
        %p1154 = pneg %p226
      $region62: #{style_decoder_forward.12} parent=59 // pred_check_branch
        %1156 = sbr.rel (%p1154) target = $region64
      $region63: #{style_decoder_forward.12} parent=59 // pred_region
        %p1157 = scmp.lt.s32.totalorder %s20, 1
        %s1158 = scalar_select %p1157, %s20, 1
        %s1159 = smul.addr %s1158, 2
        %s1160 = smul.addr %s1159, 2
        %s1161 = scalar_lea.vmem %s8, %s1160
      $region64: #{style_decoder_forward.12} parent=59 // pred_fallthru
        _
    $region60: #{style_decoder_forward.12} parent=5 // pred_fallthru
      _
  $region6: #{style_decoder_forward.12} parent=0 // loop_footer
    %s18 = sadd.s32 1, %s14
  $region7: #{style_decoder_forward.12} parent=0 // loop_footer_branch
    %13 = sbr.rel target = $region3
  $region8: #{style_decoder_forward.12} parent=0 // loop_exit
    _

// kernel: style_decoder_forward.11
$region0: #{style_decoder_forward.11}
  #allocation0 [shape = 'u32[]', space=smem, size = 0x4, offset = 0x4, fixed_abs, tag = 'smem constant byte address 0x4 - core index']
  #allocation1 [shape = 'u32[144,128]{1,0:T(1,128)}', space=vmem, size = 0x12000, scoped, tag = 'internal scratch']
  %s0 = inlined_call_operand.vmem [shape: bf16[2,8,16], index: 0, kind: input, shape index: {}]
  %s1 = inlined_call_operand.vmem [shape: bf16[4,72], index: 1, kind: input, shape index: {}]
  %s2 = inlined_call_operand.vmem [shape: f32[4,1], index: 2, kind: input, shape index: {}]
  %s3 = inlined_call_operand.vmem [shape: bf16[16,64], index: 3, kind: input, shape index: {}]
  %s4 = inlined_call_operand.vmem [shape: f32[2,4,64], index: 4, kind: input, shape index: {}]
  %s5 = inlined_call_operand.vmem [shape: bf16[4,4], index: 5, kind: input, shape index: {}]
  %s6 = inlined_call_operand.vmem [shape: f32[4,1], index: 6, kind: input, shape index: {}]
  %s7 = inlined_call_operand.vmem [shape: f32[2,2,4,64], index: 7, kind: input, shape index: {}]
  %s8 = inlined_call_operand.vmem [shape: bf16[2,4,64], index: 8, kind: output, shape index: {}]
  %s9 = sld [smem:[#allocation0]]
  $region65: #{style_decoder_forward.11} parent=0
    _
  %s11 = ssub.s32 1, %s9
  %s12 = scalar_select 0, %s11, %s9
  loop: start=0, step=1, limit=4
  $region2: #{style_decoder_forward.11} parent=0 // loop_pre_header
    _
  $region3: #{style_decoder_forward.11} parent=0 // loop_header
    %s14 = sphi 0, %s18
    %p15 = scmp.ge.s32.totalorder %s14, 4
    %s24 = sphi 0, %s26
    %s27 = sphi 0, %s24
    %s28 = sphi 0, %s27
    %s44 = sphi 0, %s28
    %s48 = sphi 0, %s48
    %s50 = sphi 0, %s48
    %s51 = sphi 0, %s50
    %s65 = sphi 0, %s51
    %s69 = sphi 0, %s69
    %s71 = sphi 0, %s69
    %s72 = sphi 0, %s71
    %s86 = sphi 0, %s72
    %s90 = sphi 0, %s90
    %s92 = sphi 0, %s90
    %s93 = sphi 0, %s92
    %s107 = sphi 0, %s93
    %s113 = sphi 0, %s115
    %s116 = sphi 0, %s113
    %s117 = sphi 0, %s116
    %s133 = sphi 0, %s117
    %s137 = sphi 0, %s137
    %s139 = sphi 0, %s137
    %s140 = sphi 0, %s139
    %s154 = sphi 0, %s140
    %s158 = sphi 0, %s158
    %s160 = sphi 0, %s158
    %s161 = sphi 0, %s160
    %s175 = sphi 0, %s161
    %s181 = sphi 0, %s183
    %s184 = sphi 0, %s181
    %s185 = sphi 0, %s184
    %s201 = sphi 0, %s185
    %s207 = sphi 0, %s209
    %s210 = sphi 0, %s207
    %s211 = sphi 0, %s210
    %s227 = sphi 0, %s211
  $region4: #{style_decoder_forward.11} parent=0 // loop_header_branch
    %17 = sbr.rel (%p15) target = $region8
  $region5: #{style_decoder_forward.11} parent=0 // loop_body
    %s19 = ssub.s32 %s14, 1
    %s20 = ssub.s32 %s14, 2
    %s21 = sadd.s32 %s14, 1
    %s22 = ssub.s32 %s14, %s21
    %p23 = scmp.eq.s32.totalorder %s22, 0
    %s25 = sadd.s32 %s24, 1
    %s26 = scalar_select %p23, %s24, %s25
    %p29 = pneg %p23
    %p30 = scmp.eq.s32.totalorder %s14, 1
    %p31 = por %p29, %p30
    %p32 = scmp.ne.s32.totalorder %s24, %s27
    %p33 = scmp.eq.s32.totalorder %s14, 0
    %p34 = por %p32, %p33
    %p35 = scmp.ne.s32.totalorder %s24, %s27
    %p36 = scmp.eq.s32.totalorder %s19, 1
    %p37 = por %p35, %p36
    %p38 = scmp.ne.s32.totalorder %s27, %s28
    %p39 = scmp.eq.s32.totalorder %s19, 0
    %p40 = por %p38, %p39
    %p41 = scmp.ne.s32.totalorder %s27, %s28
    %p42 = scmp.eq.s32.totalorder %s20, 1
    %p43 = por %p41, %p42
    %p45 = scmp.ne.s32.totalorder %s28, %s44
    %p46 = scmp.eq.s32.totalorder %s20, 0
    %p47 = por %p45, %p46
    %s49 = sadd.s32 %s48, 1
    %p52 = scmp.eq.s32.totalorder %s14, 1
    %p53 = scmp.ne.s32.totalorder %s48, %s50
    %p54 = scmp.eq.s32.totalorder %s14, 0
    %p55 = por %p53, %p54
    %p56 = scmp.ne.s32.totalorder %s48, %s50
    %p57 = scmp.eq.s32.totalorder %s19, 1
    %p58 = por %p56, %p57
    %p59 = scmp.ne.s32.totalorder %s50, %s51
    %p60 = scmp.eq.s32.totalorder %s19, 0
    %p61 = por %p59, %p60
    %p62 = scmp.ne.s32.totalorder %s50, %s51
    %p63 = scmp.eq.s32.totalorder %s20, 1
    %p64 = por %p62, %p63
    %p66 = scmp.ne.s32.totalorder %s51, %s65
    %p67 = scmp.eq.s32.totalorder %s20, 0
    %p68 = por %p66, %p67
    %s70 = sadd.s32 %s69, 1
    %p73 = scmp.eq.s32.totalorder %s14, 1
    %p74 = scmp.ne.s32.totalorder %s69, %s71
    %p75 = scmp.eq.s32.totalorder %s14, 0
    %p76 = por %p74, %p75
    %p77 = scmp.ne.s32.totalorder %s69, %s71
    %p78 = scmp.eq.s32.totalorder %s19, 1
    %p79 = por %p77, %p78
    %p80 = scmp.ne.s32.totalorder %s71, %s72
    %p81 = scmp.eq.s32.totalorder %s19, 0
    %p82 = por %p80, %p81
    %p83 = scmp.ne.s32.totalorder %s71, %s72
    %p84 = scmp.eq.s32.totalorder %s20, 1
    %p85 = por %p83, %p84
    %p87 = scmp.ne.s32.totalorder %s72, %s86
    %p88 = scmp.eq.s32.totalorder %s20, 0
    %p89 = por %p87, %p88
    %s91 = sadd.s32 %s90, 1
    %p94 = scmp.eq.s32.totalorder %s14, 1
    %p95 = scmp.ne.s32.totalorder %s90, %s92
    %p96 = scmp.eq.s32.totalorder %s14, 0
    %p97 = por %p95, %p96
    %p98 = scmp.ne.s32.totalorder %s90, %s92
    %p99 = scmp.eq.s32.totalorder %s19, 1
    %p100 = por %p98, %p99
    %p101 = scmp.ne.s32.totalorder %s92, %s93
    %p102 = scmp.eq.s32.totalorder %s19, 0
    %p103 = por %p101, %p102
    %p104 = scmp.ne.s32.totalorder %s92, %s93
    %p105 = scmp.eq.s32.totalorder %s20, 1
    %p106 = por %p104, %p105
    %p108 = scmp.ne.s32.totalorder %s93, %s107
    %p109 = scmp.eq.s32.totalorder %s20, 0
    %p110 = por %p108, %p109
    %s111 = ssub.s32 %s14, %s21
    %p112 = scmp.eq.s32.totalorder %s111, 0
    %s114 = sadd.s32 %s113, 1
    %s115 = scalar_select %p112, %s113, %s114
    %p118 = pneg %p112
    %p119 = scmp.eq.s32.totalorder %s14, 1
    %p120 = por %p118, %p119
    %p121 = scmp.ne.s32.totalorder %s113, %s116
    %p122 = scmp.eq.s32.totalorder %s14, 0
    %p123 = por %p121, %p122
    %p124 = scmp.ne.s32.totalorder %s113, %s116
    %p125 = scmp.eq.s32.totalorder %s19, 1
    %p126 = por %p124, %p125
    %p127 = scmp.ne.s32.totalorder %s116, %s117
    %p128 = scmp.eq.s32.totalorder %s19, 0
    %p129 = por %p127, %p128
    %p130 = scmp.ne.s32.totalorder %s116, %s117
    %p131 = scmp.eq.s32.totalorder %s20, 1
    %p132 = por %p130, %p131
    %p134 = scmp.ne.s32.totalorder %s117, %s133
    %p135 = scmp.eq.s32.totalorder %s20, 0
    %p136 = por %p134, %p135
    %s138 = sadd.s32 %s137, 1
    %p141 = scmp.eq.s32.totalorder %s14, 1
    %p142 = scmp.ne.s32.totalorder %s137, %s139
    %p143 = scmp.eq.s32.totalorder %s14, 0
    %p144 = por %p142, %p143
    %p145 = scmp.ne.s32.totalorder %s137, %s139
    %p146 = scmp.eq.s32.totalorder %s19, 1
    %p147 = por %p145, %p146
    %p148 = scmp.ne.s32.totalorder %s139, %s140
    %p149 = scmp.eq.s32.totalorder %s19, 0
    %p150 = por %p148, %p149
    %p151 = scmp.ne.s32.totalorder %s139, %s140
    %p152 = scmp.eq.s32.totalorder %s20, 1
    %p153 = por %p151, %p152
    %p155 = scmp.ne.s32.totalorder %s140, %s154
    %p156 = scmp.eq.s32.totalorder %s20, 0
    %p157 = por %p155, %p156
    %s159 = sadd.s32 %s158, 1
    %p162 = scmp.eq.s32.totalorder %s14, 1
    %p163 = scmp.ne.s32.totalorder %s158, %s160
    %p164 = scmp.eq.s32.totalorder %s14, 0
    %p165 = por %p163, %p164
    %p166 = scmp.ne.s32.totalorder %s158, %s160
    %p167 = scmp.eq.s32.totalorder %s19, 1
    %p168 = por %p166, %p167
    %p169 = scmp.ne.s32.totalorder %s160, %s161
    %p170 = scmp.eq.s32.totalorder %s19, 0
    %p171 = por %p169, %p170
    %p172 = scmp.ne.s32.totalorder %s160, %s161
    %p173 = scmp.eq.s32.totalorder %s20, 1
    %p174 = por %p172, %p173
    %p176 = scmp.ne.s32.totalorder %s161, %s175
    %p177 = scmp.eq.s32.totalorder %s20, 0
    %p178 = por %p176, %p177
    %s179 = ssub.s32 %s14, %s21
    %p180 = scmp.eq.s32.totalorder %s179, 0
    %s182 = sadd.s32 %s181, 1
    %s183 = scalar_select %p180, %s181, %s182
    %p186 = pneg %p180
    %p187 = scmp.eq.s32.totalorder %s14, 1
    %p188 = por %p186, %p187
    %p189 = scmp.ne.s32.totalorder %s181, %s184
    %p190 = scmp.eq.s32.totalorder %s14, 0
    %p191 = por %p189, %p190
    %p192 = scmp.ne.s32.totalorder %s181, %s184
    %p193 = scmp.eq.s32.totalorder %s19, 1
    %p194 = por %p192, %p193
    %p195 = scmp.ne.s32.totalorder %s184, %s185
    %p196 = scmp.eq.s32.totalorder %s19, 0
    %p197 = por %p195, %p196
    %p198 = scmp.ne.s32.totalorder %s184, %s185
    %p199 = scmp.eq.s32.totalorder %s20, 1
    %p200 = por %p198, %p199
    %p202 = scmp.ne.s32.totalorder %s185, %s201
    %p203 = scmp.eq.s32.totalorder %s20, 0
    %p204 = por %p202, %p203
    %s205 = ssub.s32 %s14, %s21
    %p206 = scmp.eq.s32.totalorder %s205, 0
    %s208 = sadd.s32 %s207, 1
    %s209 = scalar_select %p206, %s207, %s208
    %p212 = pneg %p206
    %p213 = scmp.eq.s32.totalorder %s14, 1
    %p214 = por %p212, %p213
    %p215 = scmp.ne.s32.totalorder %s207, %s210
    %p216 = scmp.eq.s32.totalorder %s14, 0
    %p217 = por %p215, %p216
    %p218 = scmp.ne.s32.totalorder %s207, %s210
    %p219 = scmp.eq.s32.totalorder %s19, 1
    %p220 = por %p218, %p219
    %p221 = scmp.ne.s32.totalorder %s210, %s211
    %p222 = scmp.eq.s32.totalorder %s19, 0
    %p223 = por %p221, %p222
    %p224 = scmp.ne.s32.totalorder %s210, %s211
    %p225 = scmp.eq.s32.totalorder %s20, 1
    %p226 = por %p224, %p225
    %p228 = scmp.ne.s32.totalorder %s211, %s227
    %p229 = scmp.eq.s32.totalorder %s20, 0
    %p230 = por %p228, %p229
    %p231 = scmp.le.s32.totalorder 1, %s14
    %p232 = scmp.lt.s32.totalorder %s14, 3
    %p233 = pnand %p231, %p232
    %p234 = pneg %p233
    // Predicated region
    $region9: #{style_decoder_forward.11} parent=5 // pred_check
      _
    $region10: #{style_decoder_forward.11} parent=5 // pred_check_branch
      %236 = sbr.rel (%p233) target = $region12
    $region11: #{style_decoder_forward.11} parent=5 // pred_region
      %s237 = ssub.s32 %s14, 1
      // Predicated region
      $region13: #{style_decoder_forward.11} parent=11 // pred_check
        %p238 = pneg %p61
      $region14: #{style_decoder_forward.11} parent=11 // pred_check_branch
        %240 = sbr.rel (%p238) target = $region16
      $region15: #{style_decoder_forward.11} parent=11 // pred_region
        _
      $region16: #{style_decoder_forward.11} parent=11 // pred_fallthru
        _
      // Predicated region
      $region17: #{style_decoder_forward.11} parent=11 // pred_check
        %p241 = pneg %p82
      $region18: #{style_decoder_forward.11} parent=11 // pred_check_branch
        %243 = sbr.rel (%p241) target = $region20
      $region19: #{style_decoder_forward.11} parent=11 // pred_region
        _
      $region20: #{style_decoder_forward.11} parent=11 // pred_fallthru
        _
      // Predicated region
      $region21: #{style_decoder_forward.11} parent=11 // pred_check
        %p244 = pneg %p103
      $region22: #{style_decoder_forward.11} parent=11 // pred_check_branch
        %246 = sbr.rel (%p244) target = $region24
      $region23: #{style_decoder_forward.11} parent=11 // pred_region
        _
      $region24: #{style_decoder_forward.11} parent=11 // pred_fallthru
        _
      // Predicated region
      $region25: #{style_decoder_forward.11} parent=11 // pred_check
        %p247 = pneg %p150
      $region26: #{style_decoder_forward.11} parent=11 // pred_check_branch
        %249 = sbr.rel (%p247) target = $region28
      $region27: #{style_decoder_forward.11} parent=11 // pred_region
        _
      $region28: #{style_decoder_forward.11} parent=11 // pred_fallthru
        _
      // Predicated region
      $region29: #{style_decoder_forward.11} parent=11 // pred_check
        %p250 = pneg %p171
      $region30: #{style_decoder_forward.11} parent=11 // pred_check_branch
        %252 = sbr.rel (%p250) target = $region32
      $region31: #{style_decoder_forward.11} parent=11 // pred_region
        _
      $region32: #{style_decoder_forward.11} parent=11 // pred_fallthru
        _
    $region12: #{style_decoder_forward.11} parent=5 // pred_fallthru
      _
    %p253 = scmp.lt.s32.totalorder %s14, 2
    // Predicated region
    $region33: #{style_decoder_forward.11} parent=5 // pred_check
      %p254 = pneg %p253
    $region34: #{style_decoder_forward.11} parent=5 // pred_check_branch
      %256 = sbr.rel (%p254) target = $region36
    $region35: #{style_decoder_forward.11} parent=5 // pred_region
      // Predicated region
      $region37: #{style_decoder_forward.11} parent=35 // pred_check
        %p257 = pneg %p34
      $region38: #{style_decoder_forward.11} parent=35 // pred_check_branch
        %259 = sbr.rel (%p257) target = $region40
      $region39: #{style_decoder_forward.11} parent=35 // pred_region
        %p260 = scmp.lt.s32.totalorder %s14, 1
        %s261 = scalar_select %p260, %s14, 1
        %s262 = smul.addr %s261, 4
        %s263 = scalar_lea.vmem %s0, %s262
      $region40: #{style_decoder_forward.11} parent=35 // pred_fallthru
        _
      // Predicated region
      $region41: #{style_decoder_forward.11} parent=35 // pred_check
        %p264 = pneg %p123
      $region42: #{style_decoder_forward.11} parent=35 // pred_check_branch
        %266 = sbr.rel (%p264) target = $region44
      $region43: #{style_decoder_forward.11} parent=35 // pred_region
        %p267 = scmp.lt.s32.totalorder %s14, 1
        %s268 = scalar_select %p267, %s14, 1
        %s269 = smul.addr %s268, 4
        %s270 = scalar_lea.vmem %s4, %s269
      $region44: #{style_decoder_forward.11} parent=35 // pred_fallthru
        _
      // Predicated region
      $region45: #{style_decoder_forward.11} parent=35 // pred_check
        %p271 = pneg %p191
      $region46: #{style_decoder_forward.11} parent=35 // pred_check_branch
        %273 = sbr.rel (%p271) target = $region48
      $region47: #{style_decoder_forward.11} parent=35 // pred_region
        %p274 = scmp.lt.s32.totalorder %s14, 1
        %s275 = scalar_select %p274, %s14, 1
        %s276 = smul.addr %s275, 2
        %s277 = smul.addr %s276, 4
        %s278 = scalar_lea.vmem %s7, %s277
      $region48: #{style_decoder_forward.11} parent=35 // pred_fallthru
        _
    $region36: #{style_decoder_forward.11} parent=5 // pred_fallthru
      _
    %p279 = scmp.le.s32.totalorder 1, %s14
    %p280 = scmp.lt.s32.totalorder %s14, 3
    %p281 = pnand %p279, %p280
    %p282 = pneg %p281
    // Predicated region
    $region49: #{style_decoder_forward.11} parent=5 // pred_check
      _
    $region50: #{style_decoder_forward.11} parent=5 // pred_check_branch
      %284 = sbr.rel (%p281) target = $region52
    $region51: #{style_decoder_forward.11} parent=5 // pred_region
      %s285 = ssub.s32 %s14, 1
      %p286 = scmp.lt.s32.totalorder %s19, 1
      %s287 = scalar_select %p286, %s19, 1
      %s288 = smul.addr %s287, 4
      %s289 = scalar_lea.vmem %s0, %s288
      %p290 = pneg %p40
      %p291 = pneg %p37
      %p292 = pneg %p61
      %p293 = pneg %p58
      %p294 = pneg %p82
      %p295 = pneg %p79
      %p296 = pneg %p103
      %p297 = pneg %p100
      %p298 = scmp.lt.s32.totalorder %s19, 1
      %s299 = scalar_select %p298, %s19, 1
      %s300 = smul.addr %s299, 4
      %s301 = scalar_lea.vmem %s4, %s300
      %p302 = pneg %p129
      %p303 = pneg %p126
      %p304 = pneg %p150
      %p305 = pneg %p147
      %p306 = pneg %p171
      %p307 = pneg %p168
      %p308 = scmp.lt.s32.totalorder %s19, 1
      %s309 = scalar_select %p308, %s19, 1
      %s310 = smul.addr %s309, 2
      %s311 = smul.addr %s310, 4
      %s312 = scalar_lea.vmem %s7, %s311
      %p313 = pneg %p197
      %p314 = pneg %p194
      %p315 = pneg %p223
      %p316 = pneg %p220
      %p317 = scmp.lt.s32.totalorder %s19, 1
      %s318 = scalar_select %p317, %s19, 1
      %s319 = smul.addr %s318, 2
      %s320 = scalar_lea.vmem %s8, %s319
      %p321 = scmp.lt.s32.totalorder %s19, 1
      %s322 = scalar_select %p321, %s19, 1
      %s323 = smul.addr %s322, 4
      %s324 = scalar_lea.vmem %s0, %s323
      %p325 = scmp.lt.s32.totalorder %s19, 1
      %s326 = scalar_select %p325, %s19, 1
      %s327 = smul.addr %s326, 4
      %s328 = scalar_lea.vmem %s4, %s327
      %p329 = scmp.lt.s32.totalorder %s19, 1
      %s330 = scalar_select %p329, %s19, 1
      %s331 = smul.addr %s330, 2
      %s332 = smul.addr %s331, 4
      %s333 = scalar_lea.vmem %s7, %s332
      %p334 = scmp.lt.s32.totalorder %s19, 1
      %s335 = scalar_select %p334, %s19, 1
      %s336 = smul.addr %s335, 2
      %s337 = scalar_lea.vmem %s8, %s336
      %v339 = vld [vmem:[%s324] sm:$0xf]
      %v340 = vunpack.c.l.bf16 %v339
      %342 = vrot.lane.b32.xlu0 %v340, 5
      %v343 = vpop.permute.xlu0 %342
      %vm345 = vcmask 39936
      %v346 = vsel %vm345, 0.0, %v343
      %vm347 = vcmask 171008
      %v348 = vsel %vm347, %v346, 0.0
      %v349 = vlaneseq
      %v350 = vand.u32 %v349, 127
      %vm351 = vcmp.lt.s32.totalorder %v350, 0
      %v352 = vsub.s32 0, %v350
      %v353 = vsel %vm351, %v352, %v350
      %v354 = vshrl.u32 %v353, 2
      %v355 = vand.u32 %v353, 3
      %v356 = vsub.s32 0, %v355
      %v357 = vsel %vm351, %v356, %v355
      %vm358 = vcmp.ne.s32.totalorder %v357, 0
      %vm359 = vcmp.lt.s32.totalorder %v357, 0
      %vm360 = vmand %vm359, %vm358
      %v361 = vadd.s32 %v357, 4
      %v362 = vsel %vm360, %v361, %v357
      %v363 = vadd.s32 %v362, 4294967295
      %vm364 = vcmp.ge.s32.totalorder %v363, 0
      %vm365 = vcmp.lt.s32.totalorder %v363, 4
      %vm366 = vmand %vm364, %vm365
      %v367 = vsel %vm366, 1, 0
      %vm368 = vcmp.eq.s32.totalorder %v367, 1
      %v369 = vsel %vm368, %v348, 0.0
      %v370 = vld [vmem:[%s1] sm:$0x3]
      %v371 = vpack.c.bf16 %v369, %v369
      %v372 = vpack.c.bf16 %v348, %v348
      %v375 = vunpack.c.l.s4 1983009808
      %v376 = vunpack.c.0.s8 %v375
      %v377 = vlaneseq
      %v378 = vshrl.u32 %v377, 7
      %v379 = vsub.s32 %v376, %v378
      %v380 = vrot.slane %v370, %v379
      %381 = vrot.lane.b32.xlu0 %v380, 120
      %v382 = vpop.permute.xlu0 %381
      %384 = vrot.lane.b32.xlu0 %v372, 127
      %v385 = vpop.permute.xlu0 %384
      %vm386 = vcmask 64512
      %v388 = vsel %vm386, %v382, 0
      %vm390 = vcmask 1043456
      %v392 = vsel %vm390, %v385, 0
      %394 = vmatprep.subr.bf16.mxu0 0
      %395 = vmatpush1.bf16.msra.mxu0 %v392
      %396 = vmatprep.subr.bf16.mxu0 0
      %397 = vmatpush1.bf16.msra.mxu0 0
      %398 = vmatprep.subr.bf16.mxu0 0
      %399 = vmatpush1.bf16.msra.mxu0 0
      %400 = vmatprep.subr.bf16.mxu0 0
      %401 = vmatpush1.bf16.msra.mxu0 0
      %402 = vmatprep.subr.bf16.mxu0 0
      %403 = vmatpush1.bf16.msra.mxu0 0
      %404 = vmatprep.subr.bf16.mxu0 0
      %405 = vmatpush1.bf16.msra.mxu0 0
      %406 = vmatprep.subr.bf16.mxu0 0
      %407 = vmatpush1.bf16.msra.mxu0 0
      %408 = vmatprep.subr.bf16.mxu0 0
      %409 = vmatpush1.bf16.msra.mxu0 0
      %410 = vmatprep.subr.bf16.mxu0 0
      %411 = vmatpush1.bf16.msra.mxu0 0
      %412 = vmatprep.subr.bf16.mxu0 0
      %413 = vmatpush1.bf16.msra.mxu0 0
      %414 = vmatprep.subr.bf16.mxu0 0
      %415 = vmatpush1.bf16.msra.mxu0 0
      %416 = vmatprep.subr.bf16.mxu0 0
      %417 = vmatpush1.bf16.msra.mxu0 0
      %418 = vmatprep.subr.bf16.mxu0 0
      %419 = vmatpush1.bf16.msra.mxu0 0
      %420 = vmatprep.subr.bf16.mxu0 0
      %421 = vmatpush1.bf16.msra.mxu0 0
      %422 = vmatprep.subr.bf16.mxu0 0
      %423 = vmatpush1.bf16.msra.mxu0 0
      %424 = vmatprep.subr.bf16.mxu0 0
      %425 = vmatpush1.bf16.msra.mxu0 0
      %426 = vmatprep.mubr.bf16.mxu0 0
      %427 = vmatmul.mubr.bf16.gmra.mrb[0].mxu0 %v388
      %v428 = vpop.f32.mrb[0].mxu0
      %v429 = vadd.f32 0.0, %v428
      %v430 = vpop.f32.mrb[0].mxu0
      %v431 = vpop.f32.mrb[0].mxu0
      %v432 = vpop.f32.mrb[0].mxu0
      %433 = vdwg.mxu0
      %v435 = vsel %vm386, %v370, 0
      %v438 = vsel %vm390, %v371, 0
      %440 = vmatprep.subr.bf16.mxu0 0
      %441 = vmatpush1.bf16.msra.mxu0 %v438
      %442 = vmatprep.subr.bf16.mxu0 0
      %443 = vmatpush1.bf16.msra.mxu0 0
      %444 = vmatprep.subr.bf16.mxu0 0
      %445 = vmatpush1.bf16.msra.mxu0 0
      %446 = vmatprep.subr.bf16.mxu0 0
      %447 = vmatpush1.bf16.msra.mxu0 0
      %448 = vmatprep.subr.bf16.mxu0 0
      %449 = vmatpush1.bf16.msra.mxu0 0
      %450 = vmatprep.subr.bf16.mxu0 0
      %451 = vmatpush1.bf16.msra.mxu0 0
      %452 = vmatprep.subr.bf16.mxu0 0
      %453 = vmatpush1.bf16.msra.mxu0 0
      %454 = vmatprep.subr.bf16.mxu0 0
      %455 = vmatpush1.bf16.msra.mxu0 0
      %456 = vmatprep.subr.bf16.mxu0 0
      %457 = vmatpush1.bf16.msra.mxu0 0
      %458 = vmatprep.subr.bf16.mxu0 0
      %459 = vmatpush1.bf16.msra.mxu0 0
      %460 = vmatprep.subr.bf16.mxu0 0
      %461 = vmatpush1.bf16.msra.mxu0 0
      %462 = vmatprep.subr.bf16.mxu0 0
      %463 = vmatpush1.bf16.msra.mxu0 0
      %464 = vmatprep.subr.bf16.mxu0 0
      %465 = vmatpush1.bf16.msra.mxu0 0
      %466 = vmatprep.subr.bf16.mxu0 0
      %467 = vmatpush1.bf16.msra.mxu0 0
      %468 = vmatprep.subr.bf16.mxu0 0
      %469 = vmatpush1.bf16.msra.mxu0 0
      %470 = vmatprep.subr.bf16.mxu0 0
      %471 = vmatpush1.bf16.msra.mxu0 0
      %472 = vmatprep.mubr.bf16.mxu0 0
      %473 = vmatmul.mubr.bf16.gmra.mrb[0].mxu0 %v435
      %v474 = vpop.f32.mrb[0].mxu0
      %v475 = vadd.f32 %v429, %v474
      %v476 = vpop.f32.mrb[0].mxu0
      %v477 = vpop.f32.mrb[0].mxu0
      %v478 = vpop.f32.mrb[0].mxu0
      %479 = vdwg.mxu0
      %v480 = vadd.s32 %v362, 1
      %vm481 = vcmp.ge.s32.totalorder %v480, 0
      %vm482 = vcmp.lt.s32.totalorder %v480, 4
      %vm483 = vmand %vm481, %vm482
      %v484 = vsel %vm483, 1, 0
      %vm485 = vcmp.eq.s32.totalorder %v484, 1
      %487 = vrot.lane.b32.xlu0 %v348, 126
      %v488 = vpop.permute.xlu0 %487
      %v490 = vsel %vm485, %v488, 0.0
      %v491 = vld [vmem:[%s1] sm:$0x3]
      %v492 = vpack.c.bf16 %v490, %v490
      %v495 = vunpack.c.l.s4 1983009808
      %v496 = vunpack.c.0.s8 %v495
      %v497 = vlaneseq
      %v498 = vshrl.u32 %v497, 7
      %v499 = vsub.s32 %v496, %v498
      %v500 = vrot.slane %v491, %v499
      %501 = vrot.lane.b32.xlu0 %v500, 112
      %v502 = vpop.permute.xlu0 %501
      %v504 = vsel %vm386, %v502, 0
      %v507 = vsel %vm390, %v492, 0
      %509 = vmatprep.subr.bf16.mxu0 0
      %510 = vmatpush1.bf16.msra.mxu0 %v507
      %511 = vmatprep.subr.bf16.mxu0 0
      %512 = vmatpush1.bf16.msra.mxu0 0
      %513 = vmatprep.subr.bf16.mxu0 0
      %514 = vmatpush1.bf16.msra.mxu0 0
      %515 = vmatprep.subr.bf16.mxu0 0
      %516 = vmatpush1.bf16.msra.mxu0 0
      %517 = vmatprep.subr.bf16.mxu0 0
      %518 = vmatpush1.bf16.msra.mxu0 0
      %519 = vmatprep.subr.bf16.mxu0 0
      %520 = vmatpush1.bf16.msra.mxu0 0
      %521 = vmatprep.subr.bf16.mxu0 0
      %522 = vmatpush1.bf16.msra.mxu0 0
      %523 = vmatprep.subr.bf16.mxu0 0
      %524 = vmatpush1.bf16.msra.mxu0 0
      %525 = vmatprep.subr.bf16.mxu0 0
      %526 = vmatpush1.bf16.msra.mxu0 0
      %527 = vmatprep.subr.bf16.mxu0 0
      %528 = vmatpush1.bf16.msra.mxu0 0
      %529 = vmatprep.subr.bf16.mxu0 0
      %530 = vmatpush1.bf16.msra.mxu0 0
      %531 = vmatprep.subr.bf16.mxu0 0
      %532 = vmatpush1.bf16.msra.mxu0 0
      %533 = vmatprep.subr.bf16.mxu0 0
      %534 = vmatpush1.bf16.msra.mxu0 0
      %535 = vmatprep.subr.bf16.mxu0 0
      %536 = vmatpush1.bf16.msra.mxu0 0
      %537 = vmatprep.subr.bf16.mxu0 0
      %538 = vmatpush1.bf16.msra.mxu0 0
      %539 = vmatprep.subr.bf16.mxu0 0
      %540 = vmatpush1.bf16.msra.mxu0 0
      %541 = vmatprep.mubr.bf16.mxu0 0
      %542 = vmatmul.mubr.bf16.gmra.mrb[0].mxu0 %v504
      %v543 = vpop.f32.mrb[0].mxu0
      %v544 = vadd.f32 0.0, %v543
      %v545 = vpop.f32.mrb[0].mxu0
      %v546 = vpop.f32.mrb[0].mxu0
      %v547 = vpop.f32.mrb[0].mxu0
      %548 = vdwg.mxu0
      %v549 = vadd.f32 %v475, %v544
      %550 = vrot.lane.b32.xlu0 %v348, 124
      %v551 = vpop.permute.xlu0 %550
      %v553 = vsel %vm368, %v551, 0.0
      %v554 = vld [vmem:[%s1] sm:$0x3]
      %v555 = vpack.c.bf16 %v553, %v553
      %v558 = vunpack.c.l.s4 1983009808
      %v559 = vunpack.c.0.s8 %v558
      %v560 = vlaneseq
      %v561 = vshrl.u32 %v560, 7
      %v562 = vsub.s32 %v559, %v561
      %v563 = vrot.slane %v554, %v562
      %564 = vrot.lane.b32.xlu0 %v563, 104
      %v565 = vpop.permute.xlu0 %564
      %v567 = vsel %vm386, %v565, 0
      %v570 = vsel %vm390, %v555, 0
      %572 = vmatprep.subr.bf16.mxu0 0
      %573 = vmatpush1.bf16.msra.mxu0 %v570
      %574 = vmatprep.subr.bf16.mxu0 0
      %575 = vmatpush1.bf16.msra.mxu0 0
      %576 = vmatprep.subr.bf16.mxu0 0
      %577 = vmatpush1.bf16.msra.mxu0 0
      %578 = vmatprep.subr.bf16.mxu0 0
      %579 = vmatpush1.bf16.msra.mxu0 0
      %580 = vmatprep.subr.bf16.mxu0 0
      %581 = vmatpush1.bf16.msra.mxu0 0
      %582 = vmatprep.subr.bf16.mxu0 0
      %583 = vmatpush1.bf16.msra.mxu0 0
      %584 = vmatprep.subr.bf16.mxu0 0
      %585 = vmatpush1.bf16.msra.mxu0 0
      %586 = vmatprep.subr.bf16.mxu0 0
      %587 = vmatpush1.bf16.msra.mxu0 0
      %588 = vmatprep.subr.bf16.mxu0 0
      %589 = vmatpush1.bf16.msra.mxu0 0
      %590 = vmatprep.subr.bf16.mxu0 0
      %591 = vmatpush1.bf16.msra.mxu0 0
      %592 = vmatprep.subr.bf16.mxu0 0
      %593 = vmatpush1.bf16.msra.mxu0 0
      %594 = vmatprep.subr.bf16.mxu0 0
      %595 = vmatpush1.bf16.msra.mxu0 0
      %596 = vmatprep.subr.bf16.mxu0 0
      %597 = vmatpush1.bf16.msra.mxu0 0
      %598 = vmatprep.subr.bf16.mxu0 0
      %599 = vmatpush1.bf16.msra.mxu0 0
      %600 = vmatprep.subr.bf16.mxu0 0
      %601 = vmatpush1.bf16.msra.mxu0 0
      %602 = vmatprep.subr.bf16.mxu0 0
      %603 = vmatpush1.bf16.msra.mxu0 0
      %604 = vmatprep.mubr.bf16.mxu0 0
      %605 = vmatmul.mubr.bf16.gmra.mrb[0].mxu0 %v567
      %v606 = vpop.f32.mrb[0].mxu0
      %v607 = vadd.f32 0.0, %v606
      %v608 = vpop.f32.mrb[0].mxu0
      %v609 = vpop.f32.mrb[0].mxu0
      %v610 = vpop.f32.mrb[0].mxu0
      %611 = vdwg.mxu0
      %v612 = vadd.f32 %v549, %v607
      %v613 = vld [vmem:[%s1] sm:$0x3]
      %v616 = vunpack.c.l.s4 1983009808
      %v617 = vunpack.c.0.s8 %v616
      %v618 = vlaneseq
      %v619 = vshrl.u32 %v618, 7
      %v620 = vsub.s32 %v617, %v619
      %v621 = vrot.slane %v613, %v620
      %622 = vrot.lane.b32.xlu0 %v621, 96
      %v623 = vpop.permute.xlu0 %622
      %624 = vrot.lane.b32.xlu0 %v372, 123
      %v625 = vpop.permute.xlu0 %624
      %v627 = vsel %vm386, %v623, 0
      %v630 = vsel %vm390, %v625, 0
      %632 = vmatprep.subr.bf16.mxu0 0
      %633 = vmatpush1.bf16.msra.mxu0 %v630
      %634 = vmatprep.subr.bf16.mxu0 0
      %635 = vmatpush1.bf16.msra.mxu0 0
      %636 = vmatprep.subr.bf16.mxu0 0
      %637 = vmatpush1.bf16.msra.mxu0 0
      %638 = vmatprep.subr.bf16.mxu0 0
      %639 = vmatpush1.bf16.msra.mxu0 0
      %640 = vmatprep.subr.bf16.mxu0 0
      %641 = vmatpush1.bf16.msra.mxu0 0
      %642 = vmatprep.subr.bf16.mxu0 0
      %643 = vmatpush1.bf16.msra.mxu0 0
      %644 = vmatprep.subr.bf16.mxu0 0
      %645 = vmatpush1.bf16.msra.mxu0 0
      %646 = vmatprep.subr.bf16.mxu0 0
      %647 = vmatpush1.bf16.msra.mxu0 0
      %648 = vmatprep.subr.bf16.mxu0 0
      %649 = vmatpush1.bf16.msra.mxu0 0
      %650 = vmatprep.subr.bf16.mxu0 0
      %651 = vmatpush1.bf16.msra.mxu0 0
      %652 = vmatprep.subr.bf16.mxu0 0
      %653 = vmatpush1.bf16.msra.mxu0 0
      %654 = vmatprep.subr.bf16.mxu0 0
      %655 = vmatpush1.bf16.msra.mxu0 0
      %656 = vmatprep.subr.bf16.mxu0 0
      %657 = vmatpush1.bf16.msra.mxu0 0
      %658 = vmatprep.subr.bf16.mxu0 0
      %659 = vmatpush1.bf16.msra.mxu0 0
      %660 = vmatprep.subr.bf16.mxu0 0
      %661 = vmatpush1.bf16.msra.mxu0 0
      %662 = vmatprep.subr.bf16.mxu0 0
      %663 = vmatpush1.bf16.msra.mxu0 0
      %664 = vmatprep.mubr.bf16.mxu0 0
      %665 = vmatmul.mubr.bf16.gmra.mrb[0].mxu0 %v627
      %v666 = vpop.f32.mrb[0].mxu0
      %v667 = vadd.f32 0.0, %v666
      %v668 = vpop.f32.mrb[0].mxu0
      %v669 = vpop.f32.mrb[0].mxu0
      %v670 = vpop.f32.mrb[0].mxu0
      %671 = vdwg.mxu0
      %v672 = vadd.f32 %v612, %v667
      %673 = vrot.lane.b32.xlu0 %v348, 122
      %v674 = vpop.permute.xlu0 %673
      %v676 = vsel %vm485, %v674, 0.0
      %v677 = vld [vmem:[%s1] sm:$0x3]
      %v678 = vpack.c.bf16 %v676, %v676
      %v681 = vunpack.c.l.s4 1983009808
      %v682 = vunpack.c.0.s8 %v681
      %v683 = vlaneseq
      %v684 = vshrl.u32 %v683, 7
      %v685 = vsub.s32 %v682, %v684
      %v686 = vrot.slane %v677, %v685
      %687 = vrot.lane.b32.xlu0 %v686, 88
      %v688 = vpop.permute.xlu0 %687
      %v690 = vsel %vm386, %v688, 0
      %v693 = vsel %vm390, %v678, 0
      %695 = vmatprep.subr.bf16.mxu0 0
      %696 = vmatpush1.bf16.msra.mxu0 %v693
      %697 = vmatprep.subr.bf16.mxu0 0
      %698 = vmatpush1.bf16.msra.mxu0 0
      %699 = vmatprep.subr.bf16.mxu0 0
      %700 = vmatpush1.bf16.msra.mxu0 0
      %701 = vmatprep.subr.bf16.mxu0 0
      %702 = vmatpush1.bf16.msra.mxu0 0
      %703 = vmatprep.subr.bf16.mxu0 0
      %704 = vmatpush1.bf16.msra.mxu0 0
      %705 = vmatprep.subr.bf16.mxu0 0
      %706 = vmatpush1.bf16.msra.mxu0 0
      %707 = vmatprep.subr.bf16.mxu0 0
      %708 = vmatpush1.bf16.msra.mxu0 0
      %709 = vmatprep.subr.bf16.mxu0 0
      %710 = vmatpush1.bf16.msra.mxu0 0
      %711 = vmatprep.subr.bf16.mxu0 0
      %712 = vmatpush1.bf16.msra.mxu0 0
      %713 = vmatprep.subr.bf16.mxu0 0
      %714 = vmatpush1.bf16.msra.mxu0 0
      %715 = vmatprep.subr.bf16.mxu0 0
      %716 = vmatpush1.bf16.msra.mxu0 0
      %717 = vmatprep.subr.bf16.mxu0 0
      %718 = vmatpush1.bf16.msra.mxu0 0
      %719 = vmatprep.subr.bf16.mxu0 0
      %720 = vmatpush1.bf16.msra.mxu0 0
      %721 = vmatprep.subr.bf16.mxu0 0
      %722 = vmatpush1.bf16.msra.mxu0 0
      %723 = vmatprep.subr.bf16.mxu0 0
      %724 = vmatpush1.bf16.msra.mxu0 0
      %725 = vmatprep.subr.bf16.mxu0 0
      %726 = vmatpush1.bf16.msra.mxu0 0
      %727 = vmatprep.mubr.bf16.mxu0 0
      %728 = vmatmul.mubr.bf16.gmra.mrb[0].mxu0 %v690
      %v729 = vpop.f32.mrb[0].mxu0
      %v730 = vadd.f32 0.0, %v729
      %v731 = vpop.f32.mrb[0].mxu0
      %v732 = vpop.f32.mrb[0].mxu0
      %v733 = vpop.f32.mrb[0].mxu0
      %734 = vdwg.mxu0
      %v735 = vadd.f32 %v672, %v730
      %736 = vrot.lane.b32.xlu0 %v348, 120
      %v737 = vpop.permute.xlu0 %736
      %v739 = vsel %vm368, %v737, 0.0
      %v740 = vld [vmem:[%s1] sm:$0x3]
      %v741 = vpack.c.bf16 %v739, %v739
      %v744 = vunpack.c.l.s4 1983009808
      %v745 = vunpack.c.0.s8 %v744
      %v746 = vlaneseq
      %v747 = vshrl.u32 %v746, 7
      %v748 = vsub.s32 %v745, %v747
      %v749 = vrot.slane %v740, %v748
      %750 = vrot.lane.b32.xlu0 %v749, 80
      %v751 = vpop.permute.xlu0 %750
      %v753 = vsel %vm386, %v751, 0
      %v756 = vsel %vm390, %v741, 0
      %758 = vmatprep.subr.bf16.mxu0 0
      %759 = vmatpush1.bf16.msra.mxu0 %v756
      %760 = vmatprep.subr.bf16.mxu0 0
      %761 = vmatpush1.bf16.msra.mxu0 0
      %762 = vmatprep.subr.bf16.mxu0 0
      %763 = vmatpush1.bf16.msra.mxu0 0
      %764 = vmatprep.subr.bf16.mxu0 0
      %765 = vmatpush1.bf16.msra.mxu0 0
      %766 = vmatprep.subr.bf16.mxu0 0
      %767 = vmatpush1.bf16.msra.mxu0 0
      %768 = vmatprep.subr.bf16.mxu0 0
      %769 = vmatpush1.bf16.msra.mxu0 0
      %770 = vmatprep.subr.bf16.mxu0 0
      %771 = vmatpush1.bf16.msra.mxu0 0
      %772 = vmatprep.subr.bf16.mxu0 0
      %773 = vmatpush1.bf16.msra.mxu0 0
      %774 = vmatprep.subr.bf16.mxu0 0
      %775 = vmatpush1.bf16.msra.mxu0 0
      %776 = vmatprep.subr.bf16.mxu0 0
      %777 = vmatpush1.bf16.msra.mxu0 0
      %778 = vmatprep.subr.bf16.mxu0 0
      %779 = vmatpush1.bf16.msra.mxu0 0
      %780 = vmatprep.subr.bf16.mxu0 0
      %781 = vmatpush1.bf16.msra.mxu0 0
      %782 = vmatprep.subr.bf16.mxu0 0
      %783 = vmatpush1.bf16.msra.mxu0 0
      %784 = vmatprep.subr.bf16.mxu0 0
      %785 = vmatpush1.bf16.msra.mxu0 0
      %786 = vmatprep.subr.bf16.mxu0 0
      %787 = vmatpush1.bf16.msra.mxu0 0
      %788 = vmatprep.subr.bf16.mxu0 0
      %789 = vmatpush1.bf16.msra.mxu0 0
      %790 = vmatprep.mubr.bf16.mxu0 0
      %791 = vmatmul.mubr.bf16.gmra.mrb[0].mxu0 %v753
      %v792 = vpop.f32.mrb[0].mxu0
      %v793 = vadd.f32 0.0, %v792
      %v794 = vpop.f32.mrb[0].mxu0
      %v795 = vpop.f32.mrb[0].mxu0
      %v796 = vpop.f32.mrb[0].mxu0
      %797 = vdwg.mxu0
      %v798 = vadd.f32 %v735, %v793
      %v799 = vld [vmem:[%s1] sm:$0x3]
      %v802 = vunpack.c.l.s4 1983009808
      %v803 = vunpack.c.0.s8 %v802
      %v804 = vlaneseq
      %v805 = vshrl.u32 %v804, 7
      %v806 = vsub.s32 %v803, %v805
      %v807 = vrot.slane %v799, %v806
      %808 = vrot.lane.b32.xlu0 %v807, 72
      %v809 = vpop.permute.xlu0 %808
      %810 = vrot.lane.b32.xlu0 %v372, 119
      %v811 = vpop.permute.xlu0 %810
      %v813 = vsel %vm386, %v809, 0
      %v816 = vsel %vm390, %v811, 0
      %818 = vmatprep.subr.bf16.mxu0 0
      %819 = vmatpush1.bf16.msra.mxu0 %v816
      %820 = vmatprep.subr.bf16.mxu0 0
      %821 = vmatpush1.bf16.msra.mxu0 0
      %822 = vmatprep.subr.bf16.mxu0 0
      %823 = vmatpush1.bf16.msra.mxu0 0
      %824 = vmatprep.subr.bf16.mxu0 0
      %825 = vmatpush1.bf16.msra.mxu0 0
      %826 = vmatprep.subr.bf16.mxu0 0
      %827 = vmatpush1.bf16.msra.mxu0 0
      %828 = vmatprep.subr.bf16.mxu0 0
      %829 = vmatpush1.bf16.msra.mxu0 0
      %830 = vmatprep.subr.bf16.mxu0 0
      %831 = vmatpush1.bf16.msra.mxu0 0
      %832 = vmatprep.subr.bf16.mxu0 0
      %833 = vmatpush1.bf16.msra.mxu0 0
      %834 = vmatprep.subr.bf16.mxu0 0
      %835 = vmatpush1.bf16.msra.mxu0 0
      %836 = vmatprep.subr.bf16.mxu0 0
      %837 = vmatpush1.bf16.msra.mxu0 0
      %838 = vmatprep.subr.bf16.mxu0 0
      %839 = vmatpush1.bf16.msra.mxu0 0
      %840 = vmatprep.subr.bf16.mxu0 0
      %841 = vmatpush1.bf16.msra.mxu0 0
      %842 = vmatprep.subr.bf16.mxu0 0
      %843 = vmatpush1.bf16.msra.mxu0 0
      %844 = vmatprep.subr.bf16.mxu0 0
      %845 = vmatpush1.bf16.msra.mxu0 0
      %846 = vmatprep.subr.bf16.mxu0 0
      %847 = vmatpush1.bf16.msra.mxu0 0
      %848 = vmatprep.subr.bf16.mxu0 0
      %849 = vmatpush1.bf16.msra.mxu0 0
      %850 = vmatprep.mubr.bf16.mxu0 0
      %851 = vmatmul.mubr.bf16.gmra.mrb[0].mxu0 %v813
      %v852 = vpop.f32.mrb[0].mxu0
      %v853 = vadd.f32 0.0, %v852
      %v854 = vpop.f32.mrb[0].mxu0
      %v855 = vpop.f32.mrb[0].mxu0
      %v856 = vpop.f32.mrb[0].mxu0
      %857 = vdwg.mxu0
      %v858 = vadd.f32 %v798, %v853
      %859 = vrot.lane.b32.xlu0 %v348, 118
      %v860 = vpop.permute.xlu0 %859
      %v862 = vsel %vm485, %v860, 0.0
      %v863 = vld [vmem:[%s1] sm:$0x3]
      %v864 = vpack.c.bf16 %v862, %v862
      %v867 = vunpack.c.l.s4 1983009808
      %v868 = vunpack.c.0.s8 %v867
      %v869 = vlaneseq
      %v870 = vshrl.u32 %v869, 7
      %v871 = vsub.s32 %v868, %v870
      %v872 = vrot.slane %v863, %v871
      %873 = vrot.lane.b32.xlu0 %v872, 64
      %v874 = vpop.permute.xlu0 %873
      %v876 = vsel %vm386, %v874, 0
      %v879 = vsel %vm390, %v864, 0
      %881 = vmatprep.subr.bf16.mxu0 0
      %882 = vmatpush1.bf16.msra.mxu0 %v879
      %883 = vmatprep.subr.bf16.mxu0 0
      %884 = vmatpush1.bf16.msra.mxu0 0
      %885 = vmatprep.subr.bf16.mxu0 0
      %886 = vmatpush1.bf16.msra.mxu0 0
      %887 = vmatprep.subr.bf16.mxu0 0
      %888 = vmatpush1.bf16.msra.mxu0 0
      %889 = vmatprep.subr.bf16.mxu0 0
      %890 = vmatpush1.bf16.msra.mxu0 0
      %891 = vmatprep.subr.bf16.mxu0 0
      %892 = vmatpush1.bf16.msra.mxu0 0
      %893 = vmatprep.subr.bf16.mxu0 0
      %894 = vmatpush1.bf16.msra.mxu0 0
      %895 = vmatprep.subr.bf16.mxu0 0
      %896 = vmatpush1.bf16.msra.mxu0 0
      %897 = vmatprep.subr.bf16.mxu0 0
      %898 = vmatpush1.bf16.msra.mxu0 0
      %899 = vmatprep.subr.bf16.mxu0 0
      %900 = vmatpush1.bf16.msra.mxu0 0
      %901 = vmatprep.subr.bf16.mxu0 0
      %902 = vmatpush1.bf16.msra.mxu0 0
      %903 = vmatprep.subr.bf16.mxu0 0
      %904 = vmatpush1.bf16.msra.mxu0 0
      %905 = vmatprep.subr.bf16.mxu0 0
      %906 = vmatpush1.bf16.msra.mxu0 0
      %907 = vmatprep.subr.bf16.mxu0 0
      %908 = vmatpush1.bf16.msra.mxu0 0
      %909 = vmatprep.subr.bf16.mxu0 0
      %910 = vmatpush1.bf16.msra.mxu0 0
      %911 = vmatprep.subr.bf16.mxu0 0
      %912 = vmatpush1.bf16.msra.mxu0 0
      %913 = vmatprep.mubr.bf16.mxu0 0
      %914 = vmatmul.mubr.bf16.gmra.mrb[0].mxu0 %v876
      %v915 = vpop.f32.mrb[0].mxu0
      %v916 = vadd.f32 0.0, %v915
      %v917 = vpop.f32.mrb[0].mxu0
      %v918 = vpop.f32.mrb[0].mxu0
      %v919 = vpop.f32.mrb[0].mxu0
      %920 = vdwg.mxu0
      %v921 = vadd.f32 %v858, %v916
      %v922 = vld [vmem:[%s2] sm:$0xf]
      %924 = vset.pattern.permute.xlu0 0
      %925 = vperm.xlu0 %924, %v922
      %v926 = vpop.permute.xlu0 %925
      %v928 = vadd.f32 %v921, %v926
      %v929 = vmax.f32 %v928, 0.0
      %v930 = vpack.c.bf16 %v929, %v929
      %v931 = vld [vmem:[%s3] sm:$0xf]
      %v932 = vld [vmem:[%s3 + $0x4] sm:$0xf]
      %v933 = vld [vmem:[%s328] sm:$0xf]
      %v934 = vpack.c.bf16 %v933, %v933
      %v935 = vld [vmem:[%s6] sm:$0xf]
      %937 = vset.pattern.permute.xlu0 0
      %938 = vperm.xlu0 %937, %v935
      %v939 = vpop.permute.xlu0 %938
      %v943 = vunpack.c.l.b16 %v931
      %v944 = vunpack.c.l.b16 %v932
      %v945 = vpack.c.b16 %v944, %v943
      %vm947 = vcmask 130048
      %v949 = vsel %vm947, %v930, 0
      %951 = vmatprep.subr.bf16.mxu0 0
      %952 = vmatpush1.bf16.msra.mxu0 %v945
      %953 = vmatprep.subr.bf16.mxu0 0
      %954 = vmatpush1.bf16.msra.mxu0 0
      %955 = vmatprep.subr.bf16.mxu0 0
      %956 = vmatpush1.bf16.msra.mxu0 0
      %957 = vmatprep.subr.bf16.mxu0 0
      %958 = vmatpush1.bf16.msra.mxu0 0
      %959 = vmatprep.subr.bf16.mxu0 0
      %960 = vmatpush1.bf16.msra.mxu0 0
      %961 = vmatprep.subr.bf16.mxu0 0
      %962 = vmatpush1.bf16.msra.mxu0 0
      %963 = vmatprep.subr.bf16.mxu0 0
      %964 = vmatpush1.bf16.msra.mxu0 0
      %965 = vmatprep.subr.bf16.mxu0 0
      %966 = vmatpush1.bf16.msra.mxu0 0
      %967 = vmatprep.subr.bf16.mxu0 0
      %968 = vmatpush1.bf16.msra.mxu0 0
      %969 = vmatprep.subr.bf16.mxu0 0
      %970 = vmatpush1.bf16.msra.mxu0 0
      %971 = vmatprep.subr.bf16.mxu0 0
      %972 = vmatpush1.bf16.msra.mxu0 0
      %973 = vmatprep.subr.bf16.mxu0 0
      %974 = vmatpush1.bf16.msra.mxu0 0
      %975 = vmatprep.subr.bf16.mxu0 0
      %976 = vmatpush1.bf16.msra.mxu0 0
      %977 = vmatprep.subr.bf16.mxu0 0
      %978 = vmatpush1.bf16.msra.mxu0 0
      %979 = vmatprep.subr.bf16.mxu0 0
      %980 = vmatpush1.bf16.msra.mxu0 0
      %981 = vmatprep.subr.bf16.mxu0 0
      %982 = vmatpush1.bf16.msra.mxu0 0
      %983 = vmatprep.mubr.bf16.mxu0 0
      %984 = vmatmul.mubr.bf16.gmra.mrb[0].mxu0 %v949
      %v985 = vpop.f32.mrb[0].mxu0
      %v986 = vadd.f32 %v939, %v985
      %v987 = vpop.f32.mrb[0].mxu0
      %v988 = vpop.f32.mrb[0].mxu0
      %v989 = vpop.f32.mrb[0].mxu0
      %990 = vdwg.mxu0
      %v991 = vld [vmem:[%s5] sm:$0x3]
      %vm992 = vcmask 31744
      %v994 = vsel %vm992, %v991, 0
      %vm996 = vcmask 1041408
      %v998 = vsel %vm996, %v934, 0
      %1000 = vmatprep.subr.bf16.mxu0 0
      %1001 = vmatpush1.bf16.msra.mxu0 %v998
      %1002 = vmatprep.subr.bf16.mxu0 0
      %1003 = vmatpush1.bf16.msra.mxu0 0
      %1004 = vmatprep.subr.bf16.mxu0 0
      %1005 = vmatpush1.bf16.msra.mxu0 0
      %1006 = vmatprep.subr.bf16.mxu0 0
      %1007 = vmatpush1.bf16.msra.mxu0 0
      %1008 = vmatprep.subr.bf16.mxu0 0
      %1009 = vmatpush1.bf16.msra.mxu0 0
      %1010 = vmatprep.subr.bf16.mxu0 0
      %1011 = vmatpush1.bf16.msra.mxu0 0
      %1012 = vmatprep.subr.bf16.mxu0 0
      %1013 = vmatpush1.bf16.msra.mxu0 0
      %1014 = vmatprep.subr.bf16.mxu0 0
      %1015 = vmatpush1.bf16.msra.mxu0 0
      %1016 = vmatprep.subr.bf16.mxu0 0
      %1017 = vmatpush1.bf16.msra.mxu0 0
      %1018 = vmatprep.subr.bf16.mxu0 0
      %1019 = vmatpush1.bf16.msra.mxu0 0
      %1020 = vmatprep.subr.bf16.mxu0 0
      %1021 = vmatpush1.bf16.msra.mxu0 0
      %1022 = vmatprep.subr.bf16.mxu0 0
      %1023 = vmatpush1.bf16.msra.mxu0 0
      %1024 = vmatprep.subr.bf16.mxu0 0
      %1025 = vmatpush1.bf16.msra.mxu0 0
      %1026 = vmatprep.subr.bf16.mxu0 0
      %1027 = vmatpush1.bf16.msra.mxu0 0
      %1028 = vmatprep.subr.bf16.mxu0 0
      %1029 = vmatpush1.bf16.msra.mxu0 0
      %1030 = vmatprep.subr.bf16.mxu0 0
      %1031 = vmatpush1.bf16.msra.mxu0 0
      %1032 = vmatprep.mubr.bf16.mxu0 0
      %1033 = vmatmul.mubr.bf16.gmra.mrb[0].mxu0 %v994
      %v1034 = vpop.f32.mrb[0].mxu0
      %v1035 = vadd.f32 0.0, %v1034
      %v1036 = vpop.f32.mrb[0].mxu0
      %v1037 = vpop.f32.mrb[0].mxu0
      %v1038 = vpop.f32.mrb[0].mxu0
      %1039 = vdwg.mxu0
      %v1040 = vadd.f32 %v986, %v1035
      %vm1041 = vcmask 519168
      %v1042 = vsel %vm1041, %v1040, 0.0
      %1043 = vadd.xlane.f32.xlu0 %v1042
      %v1044 = vpop.xlane.xlu0 %1043
      %v1045 = vrcp.pop 64.0
      %v1046 = vmul.f32 %v1044, %v1045
      %v1047 = vsub.f32 %v1040, %v1046
      %v1048 = vmul.f32 %v1047, %v1047
      %v1049 = vsel %vm1041, %v1048, 0.0
      %1050 = vadd.xlane.f32.xlu0 %v1049
      %v1051 = vpop.xlane.xlu0 %1050
      %v1052 = vmul.f32 %v1051, %v1045
      %v1053 = vadd.f32 %v1052, 1e-05
      %v1054 = vrsqrt.pop %v1053
      %v1055 = vmul.f32 %v1047, %v1054
      %v1056 = vld [vmem:[%s333] sm:$0xf]
      %v1057 = vld [vmem:[%s333 + $0x4] sm:$0xf]
      %v1058 = vmul.f32 %v1056, %v1055
      %v1059 = vadd.f32 %v1058, %v1057
      %v1060 = vpack.c.bf16 %v1059, %v1059
      %vm1061 = vcmask 517120
      %1062 = vst.msk [vmem:[%s337] sm:$0x3] %vm1061, %v1060
      %p1063 = scmp.lt.s32.totalorder %s19, 1
      %s1064 = scalar_select %p1063, %s19, 1
      %s1065 = smul.addr %s1064, 2
      %s1066 = scalar_lea.vmem %s8, %s1065
      // Predicated region
      $region53: #{style_decoder_forward.11} parent=51 // pred_check
        %p1067 = pneg %p220
      $region54: #{style_decoder_forward.11} parent=51 // pred_check_branch
        %1069 = sbr.rel (%p1067) target = $region56
      $region55: #{style_decoder_forward.11} parent=51 // pred_region
        _
      $region56: #{style_decoder_forward.11} parent=51 // pred_fallthru
        _
    $region52: #{style_decoder_forward.11} parent=5 // pred_fallthru
      _
    %p1070 = scmp.le.s32.totalorder 2, %s14
    // Predicated region
    $region57: #{style_decoder_forward.11} parent=5 // pred_check
      %p1071 = pneg %p1070
    $region58: #{style_decoder_forward.11} parent=5 // pred_check_branch
      %1073 = sbr.rel (%p1071) target = $region60
    $region59: #{style_decoder_forward.11} parent=5 // pred_region
      %s1074 = ssub.s32 %s14, 2
      // Predicated region
      $region61: #{style_decoder_forward.11} parent=59 // pred_check
        %p1075 = pneg %p226
      $region62: #{style_decoder_forward.11} parent=59 // pred_check_branch
        %1077 = sbr.rel (%p1075) target = $region64
      $region63: #{style_decoder_forward.11} parent=59 // pred_region
        %p1078 = scmp.lt.s32.totalorder %s20, 1
        %s1079 = scalar_select %p1078, %s20, 1
        %s1080 = smul.addr %s1079, 2
        %s1081 = scalar_lea.vmem %s8, %s1080
      $region64: #{style_decoder_forward.11} parent=59 // pred_fallthru
        _
    $region60: #{style_decoder_forward.11} parent=5 // pred_fallthru
      _
  $region6: #{style_decoder_forward.11} parent=0 // loop_footer
    %s18 = sadd.s32 1, %s14
  $region7: #{style_decoder_forward.11} parent=0 // loop_footer_branch
    %13 = sbr.rel target = $region3
  $region8: #{style_decoder_forward.11} parent=0 // loop_exit
    _

// kernel: style_decoder_forward.13
$region0: #{style_decoder_forward.13}
  #allocation0 [shape = 'u32[]', space=smem, size = 0x4, offset = 0x4, fixed_abs, tag = 'smem constant byte address 0x4 - core index']
  #allocation1 [shape = 'u32[144,128]{1,0:T(1,128)}', space=vmem, size = 0x12000, scoped, tag = 'internal scratch']
  %s0 = inlined_call_operand.vmem [shape: bf16[2,4,256], index: 0, kind: input, shape index: {}]
  %s1 = inlined_call_operand.vmem [shape: bf16[2,36], index: 1, kind: input, shape index: {}]
  %s2 = inlined_call_operand.vmem [shape: f32[2,1], index: 2, kind: input, shape index: {}]
  %s3 = inlined_call_operand.vmem [shape: bf16[256,1024], index: 3, kind: input, shape index: {}]
  %s4 = inlined_call_operand.vmem [shape: f32[2,2,1024], index: 4, kind: input, shape index: {}]
  %s5 = inlined_call_operand.vmem [shape: bf16[2,2], index: 5, kind: input, shape index: {}]
  %s6 = inlined_call_operand.vmem [shape: f32[2,1], index: 6, kind: input, shape index: {}]
  %s7 = inlined_call_operand.vmem [shape: f32[2,2,2,1024], index: 7, kind: input, shape index: {}]
  %s8 = inlined_call_operand.vmem [shape: bf16[4,2], index: 8, kind: input, shape index: {}]
  %s9 = inlined_call_operand.vmem [shape: f32[4,1], index: 9, kind: input, shape index: {}]
  %s10 = inlined_call_operand.vmem [shape: f32[2,4,1024], index: 10, kind: output, shape index: {}]
  %s11 = sld [smem:[#allocation0]]
  $region73: #{style_decoder_forward.13} parent=0
    _
  %s13 = ssub.s32 1, %s11
  %s14 = scalar_select 0, %s13, %s11
  loop: start=0, step=1, limit=4
  $region2: #{style_decoder_forward.13} parent=0 // loop_pre_header
    _
  $region3: #{style_decoder_forward.13} parent=0 // loop_header
    %s16 = sphi 0, %s20
    %p17 = scmp.ge.s32.totalorder %s16, 4
    %s26 = sphi 0, %s28
    %s29 = sphi 0, %s26
    %s30 = sphi 0, %s29
    %s46 = sphi 0, %s30
    %s50 = sphi 0, %s50
    %s52 = sphi 0, %s50
    %s53 = sphi 0, %s52
    %s67 = sphi 0, %s53
    %s71 = sphi 0, %s71
    %s73 = sphi 0, %s71
    %s74 = sphi 0, %s73
    %s88 = sphi 0, %s74
    %s92 = sphi 0, %s92
    %s94 = sphi 0, %s92
    %s95 = sphi 0, %s94
    %s109 = sphi 0, %s95
    %s115 = sphi 0, %s117
    %s118 = sphi 0, %s115
    %s119 = sphi 0, %s118
    %s135 = sphi 0, %s119
    %s139 = sphi 0, %s139
    %s141 = sphi 0, %s139
    %s142 = sphi 0, %s141
    %s156 = sphi 0, %s142
    %s160 = sphi 0, %s160
    %s162 = sphi 0, %s160
    %s163 = sphi 0, %s162
    %s177 = sphi 0, %s163
    %s183 = sphi 0, %s185
    %s186 = sphi 0, %s183
    %s187 = sphi 0, %s186
    %s203 = sphi 0, %s187
    %s207 = sphi 0, %s207
    %s209 = sphi 0, %s207
    %s210 = sphi 0, %s209
    %s224 = sphi 0, %s210
    %s228 = sphi 0, %s228
    %s230 = sphi 0, %s228
    %s231 = sphi 0, %s230
    %s245 = sphi 0, %s231
    %s251 = sphi 0, %s253
    %s254 = sphi 0, %s251
    %s255 = sphi 0, %s254
    %s271 = sphi 0, %s255
  $region4: #{style_decoder_forward.13} parent=0 // loop_header_branch
    %19 = sbr.rel (%p17) target = $region8
  $region5: #{style_decoder_forward.13} parent=0 // loop_body
    %s21 = ssub.s32 %s16, 1
    %s22 = ssub.s32 %s16, 2
    %s23 = sadd.s32 %s16, 1
    %s24 = ssub.s32 %s16, %s23
    %p25 = scmp.eq.s32.totalorder %s24, 0
    %s27 = sadd.s32 %s26, 1
    %s28 = scalar_select %p25, %s26, %s27
    %p31 = pneg %p25
    %p32 = scmp.eq.s32.totalorder %s16, 1
    %p33 = por %p31, %p32
    %p34 = scmp.ne.s32.totalorder %s26, %s29
    %p35 = scmp.eq.s32.totalorder %s16, 0
    %p36 = por %p34, %p35
    %p37 = scmp.ne.s32.totalorder %s26, %s29
    %p38 = scmp.eq.s32.totalorder %s21, 1
    %p39 = por %p37, %p38
    %p40 = scmp.ne.s32.totalorder %s29, %s30
    %p41 = scmp.eq.s32.totalorder %s21, 0
    %p42 = por %p40, %p41
    %p43 = scmp.ne.s32.totalorder %s29, %s30
    %p44 = scmp.eq.s32.totalorder %s22, 1
    %p45 = por %p43, %p44
    %p47 = scmp.ne.s32.totalorder %s30, %s46
    %p48 = scmp.eq.s32.totalorder %s22, 0
    %p49 = por %p47, %p48
    %s51 = sadd.s32 %s50, 1
    %p54 = scmp.eq.s32.totalorder %s16, 1
    %p55 = scmp.ne.s32.totalorder %s50, %s52
    %p56 = scmp.eq.s32.totalorder %s16, 0
    %p57 = por %p55, %p56
    %p58 = scmp.ne.s32.totalorder %s50, %s52
    %p59 = scmp.eq.s32.totalorder %s21, 1
    %p60 = por %p58, %p59
    %p61 = scmp.ne.s32.totalorder %s52, %s53
    %p62 = scmp.eq.s32.totalorder %s21, 0
    %p63 = por %p61, %p62
    %p64 = scmp.ne.s32.totalorder %s52, %s53
    %p65 = scmp.eq.s32.totalorder %s22, 1
    %p66 = por %p64, %p65
    %p68 = scmp.ne.s32.totalorder %s53, %s67
    %p69 = scmp.eq.s32.totalorder %s22, 0
    %p70 = por %p68, %p69
    %s72 = sadd.s32 %s71, 1
    %p75 = scmp.eq.s32.totalorder %s16, 1
    %p76 = scmp.ne.s32.totalorder %s71, %s73
    %p77 = scmp.eq.s32.totalorder %s16, 0
    %p78 = por %p76, %p77
    %p79 = scmp.ne.s32.totalorder %s71, %s73
    %p80 = scmp.eq.s32.totalorder %s21, 1
    %p81 = por %p79, %p80
    %p82 = scmp.ne.s32.totalorder %s73, %s74
    %p83 = scmp.eq.s32.totalorder %s21, 0
    %p84 = por %p82, %p83
    %p85 = scmp.ne.s32.totalorder %s73, %s74
    %p86 = scmp.eq.s32.totalorder %s22, 1
    %p87 = por %p85, %p86
    %p89 = scmp.ne.s32.totalorder %s74, %s88
    %p90 = scmp.eq.s32.totalorder %s22, 0
    %p91 = por %p89, %p90
    %s93 = sadd.s32 %s92, 1
    %p96 = scmp.eq.s32.totalorder %s16, 1
    %p97 = scmp.ne.s32.totalorder %s92, %s94
    %p98 = scmp.eq.s32.totalorder %s16, 0
    %p99 = por %p97, %p98
    %p100 = scmp.ne.s32.totalorder %s92, %s94
    %p101 = scmp.eq.s32.totalorder %s21, 1
    %p102 = por %p100, %p101
    %p103 = scmp.ne.s32.totalorder %s94, %s95
    %p104 = scmp.eq.s32.totalorder %s21, 0
    %p105 = por %p103, %p104
    %p106 = scmp.ne.s32.totalorder %s94, %s95
    %p107 = scmp.eq.s32.totalorder %s22, 1
    %p108 = por %p106, %p107
    %p110 = scmp.ne.s32.totalorder %s95, %s109
    %p111 = scmp.eq.s32.totalorder %s22, 0
    %p112 = por %p110, %p111
    %s113 = ssub.s32 %s16, %s23
    %p114 = scmp.eq.s32.totalorder %s113, 0
    %s116 = sadd.s32 %s115, 1
    %s117 = scalar_select %p114, %s115, %s116
    %p120 = pneg %p114
    %p121 = scmp.eq.s32.totalorder %s16, 1
    %p122 = por %p120, %p121
    %p123 = scmp.ne.s32.totalorder %s115, %s118
    %p124 = scmp.eq.s32.totalorder %s16, 0
    %p125 = por %p123, %p124
    %p126 = scmp.ne.s32.totalorder %s115, %s118
    %p127 = scmp.eq.s32.totalorder %s21, 1
    %p128 = por %p126, %p127
    %p129 = scmp.ne.s32.totalorder %s118, %s119
    %p130 = scmp.eq.s32.totalorder %s21, 0
    %p131 = por %p129, %p130
    %p132 = scmp.ne.s32.totalorder %s118, %s119
    %p133 = scmp.eq.s32.totalorder %s22, 1
    %p134 = por %p132, %p133
    %p136 = scmp.ne.s32.totalorder %s119, %s135
    %p137 = scmp.eq.s32.totalorder %s22, 0
    %p138 = por %p136, %p137
    %s140 = sadd.s32 %s139, 1
    %p143 = scmp.eq.s32.totalorder %s16, 1
    %p144 = scmp.ne.s32.totalorder %s139, %s141
    %p145 = scmp.eq.s32.totalorder %s16, 0
    %p146 = por %p144, %p145
    %p147 = scmp.ne.s32.totalorder %s139, %s141
    %p148 = scmp.eq.s32.totalorder %s21, 1
    %p149 = por %p147, %p148
    %p150 = scmp.ne.s32.totalorder %s141, %s142
    %p151 = scmp.eq.s32.totalorder %s21, 0
    %p152 = por %p150, %p151
    %p153 = scmp.ne.s32.totalorder %s141, %s142
    %p154 = scmp.eq.s32.totalorder %s22, 1
    %p155 = por %p153, %p154
    %p157 = scmp.ne.s32.totalorder %s142, %s156
    %p158 = scmp.eq.s32.totalorder %s22, 0
    %p159 = por %p157, %p158
    %s161 = sadd.s32 %s160, 1
    %p164 = scmp.eq.s32.totalorder %s16, 1
    %p165 = scmp.ne.s32.totalorder %s160, %s162
    %p166 = scmp.eq.s32.totalorder %s16, 0
    %p167 = por %p165, %p166
    %p168 = scmp.ne.s32.totalorder %s160, %s162
    %p169 = scmp.eq.s32.totalorder %s21, 1
    %p170 = por %p168, %p169
    %p171 = scmp.ne.s32.totalorder %s162, %s163
    %p172 = scmp.eq.s32.totalorder %s21, 0
    %p173 = por %p171, %p172
    %p174 = scmp.ne.s32.totalorder %s162, %s163
    %p175 = scmp.eq.s32.totalorder %s22, 1
    %p176 = por %p174, %p175
    %p178 = scmp.ne.s32.totalorder %s163, %s177
    %p179 = scmp.eq.s32.totalorder %s22, 0
    %p180 = por %p178, %p179
    %s181 = ssub.s32 %s16, %s23
    %p182 = scmp.eq.s32.totalorder %s181, 0
    %s184 = sadd.s32 %s183, 1
    %s185 = scalar_select %p182, %s183, %s184
    %p188 = pneg %p182
    %p189 = scmp.eq.s32.totalorder %s16, 1
    %p190 = por %p188, %p189
    %p191 = scmp.ne.s32.totalorder %s183, %s186
    %p192 = scmp.eq.s32.totalorder %s16, 0
    %p193 = por %p191, %p192
    %p194 = scmp.ne.s32.totalorder %s183, %s186
    %p195 = scmp.eq.s32.totalorder %s21, 1
    %p196 = por %p194, %p195
    %p197 = scmp.ne.s32.totalorder %s186, %s187
    %p198 = scmp.eq.s32.totalorder %s21, 0
    %p199 = por %p197, %p198
    %p200 = scmp.ne.s32.totalorder %s186, %s187
    %p201 = scmp.eq.s32.totalorder %s22, 1
    %p202 = por %p200, %p201
    %p204 = scmp.ne.s32.totalorder %s187, %s203
    %p205 = scmp.eq.s32.totalorder %s22, 0
    %p206 = por %p204, %p205
    %s208 = sadd.s32 %s207, 1
    %p211 = scmp.eq.s32.totalorder %s16, 1
    %p212 = scmp.ne.s32.totalorder %s207, %s209
    %p213 = scmp.eq.s32.totalorder %s16, 0
    %p214 = por %p212, %p213
    %p215 = scmp.ne.s32.totalorder %s207, %s209
    %p216 = scmp.eq.s32.totalorder %s21, 1
    %p217 = por %p215, %p216
    %p218 = scmp.ne.s32.totalorder %s209, %s210
    %p219 = scmp.eq.s32.totalorder %s21, 0
    %p220 = por %p218, %p219
    %p221 = scmp.ne.s32.totalorder %s209, %s210
    %p222 = scmp.eq.s32.totalorder %s22, 1
    %p223 = por %p221, %p222
    %p225 = scmp.ne.s32.totalorder %s210, %s224
    %p226 = scmp.eq.s32.totalorder %s22, 0
    %p227 = por %p225, %p226
    %s229 = sadd.s32 %s228, 1
    %p232 = scmp.eq.s32.totalorder %s16, 1
    %p233 = scmp.ne.s32.totalorder %s228, %s230
    %p234 = scmp.eq.s32.totalorder %s16, 0
    %p235 = por %p233, %p234
    %p236 = scmp.ne.s32.totalorder %s228, %s230
    %p237 = scmp.eq.s32.totalorder %s21, 1
    %p238 = por %p236, %p237
    %p239 = scmp.ne.s32.totalorder %s230, %s231
    %p240 = scmp.eq.s32.totalorder %s21, 0
    %p241 = por %p239, %p240
    %p242 = scmp.ne.s32.totalorder %s230, %s231
    %p243 = scmp.eq.s32.totalorder %s22, 1
    %p244 = por %p242, %p243
    %p246 = scmp.ne.s32.totalorder %s231, %s245
    %p247 = scmp.eq.s32.totalorder %s22, 0
    %p248 = por %p246, %p247
    %s249 = ssub.s32 %s16, %s23
    %p250 = scmp.eq.s32.totalorder %s249, 0
    %s252 = sadd.s32 %s251, 1
    %s253 = scalar_select %p250, %s251, %s252
    %p256 = pneg %p250
    %p257 = scmp.eq.s32.totalorder %s16, 1
    %p258 = por %p256, %p257
    %p259 = scmp.ne.s32.totalorder %s251, %s254
    %p260 = scmp.eq.s32.totalorder %s16, 0
    %p261 = por %p259, %p260
    %p262 = scmp.ne.s32.totalorder %s251, %s254
    %p263 = scmp.eq.s32.totalorder %s21, 1
    %p264 = por %p262, %p263
    %p265 = scmp.ne.s32.totalorder %s254, %s255
    %p266 = scmp.eq.s32.totalorder %s21, 0
    %p267 = por %p265, %p266
    %p268 = scmp.ne.s32.totalorder %s254, %s255
    %p269 = scmp.eq.s32.totalorder %s22, 1
    %p270 = por %p268, %p269
    %p272 = scmp.ne.s32.totalorder %s255, %s271
    %p273 = scmp.eq.s32.totalorder %s22, 0
    %p274 = por %p272, %p273
    %p275 = scmp.le.s32.totalorder 1, %s16
    %p276 = scmp.lt.s32.totalorder %s16, 3
    %p277 = pnand %p275, %p276
    %p278 = pneg %p277
    // Predicated region
    $region9: #{style_decoder_forward.13} parent=5 // pred_check
      _
    $region10: #{style_decoder_forward.13} parent=5 // pred_check_branch
      %280 = sbr.rel (%p277) target = $region12
    $region11: #{style_decoder_forward.13} parent=5 // pred_region
      %s281 = ssub.s32 %s16, 1
      // Predicated region
      $region13: #{style_decoder_forward.13} parent=11 // pred_check
        %p282 = pneg %p63
      $region14: #{style_decoder_forward.13} parent=11 // pred_check_branch
        %284 = sbr.rel (%p282) target = $region16
      $region15: #{style_decoder_forward.13} parent=11 // pred_region
        _
      $region16: #{style_decoder_forward.13} parent=11 // pred_fallthru
        _
      // Predicated region
      $region17: #{style_decoder_forward.13} parent=11 // pred_check
        %p285 = pneg %p84
      $region18: #{style_decoder_forward.13} parent=11 // pred_check_branch
        %287 = sbr.rel (%p285) target = $region20
      $region19: #{style_decoder_forward.13} parent=11 // pred_region
        _
      $region20: #{style_decoder_forward.13} parent=11 // pred_fallthru
        _
      // Predicated region
      $region21: #{style_decoder_forward.13} parent=11 // pred_check
        %p288 = pneg %p105
      $region22: #{style_decoder_forward.13} parent=11 // pred_check_branch
        %290 = sbr.rel (%p288) target = $region24
      $region23: #{style_decoder_forward.13} parent=11 // pred_region
        _
      $region24: #{style_decoder_forward.13} parent=11 // pred_fallthru
        _
      // Predicated region
      $region25: #{style_decoder_forward.13} parent=11 // pred_check
        %p291 = pneg %p152
      $region26: #{style_decoder_forward.13} parent=11 // pred_check_branch
        %293 = sbr.rel (%p291) target = $region28
      $region27: #{style_decoder_forward.13} parent=11 // pred_region
        _
      $region28: #{style_decoder_forward.13} parent=11 // pred_fallthru
        _
      // Predicated region
      $region29: #{style_decoder_forward.13} parent=11 // pred_check
        %p294 = pneg %p173
      $region30: #{style_decoder_forward.13} parent=11 // pred_check_branch
        %296 = sbr.rel (%p294) target = $region32
      $region31: #{style_decoder_forward.13} parent=11 // pred_region
        _
      $region32: #{style_decoder_forward.13} parent=11 // pred_fallthru
        _
      // Predicated region
      $region33: #{style_decoder_forward.13} parent=11 // pred_check
        %p297 = pneg %p220
      $region34: #{style_decoder_forward.13} parent=11 // pred_check_branch
        %299 = sbr.rel (%p297) target = $region36
      $region35: #{style_decoder_forward.13} parent=11 // pred_region
        _
      $region36: #{style_decoder_forward.13} parent=11 // pred_fallthru
        _
      // Predicated region
      $region37: #{style_decoder_forward.13} parent=11 // pred_check
        %p300 = pneg %p241
      $region38: #{style_decoder_forward.13} parent=11 // pred_check_branch
        %302 = sbr.rel (%p300) target = $region40
      $region39: #{style_decoder_forward.13} parent=11 // pred_region
        _
      $region40: #{style_decoder_forward.13} parent=11 // pred_fallthru
        _
    $region12: #{style_decoder_forward.13} parent=5 // pred_fallthru
      _
    %p303 = scmp.lt.s32.totalorder %s16, 2
    // Predicated region
    $region41: #{style_decoder_forward.13} parent=5 // pred_check
      %p304 = pneg %p303
    $region42: #{style_decoder_forward.13} parent=5 // pred_check_branch
      %306 = sbr.rel (%p304) target = $region44
    $region43: #{style_decoder_forward.13} parent=5 // pred_region
      // Predicated region
      $region45: #{style_decoder_forward.13} parent=43 // pred_check
        %p307 = pneg %p36
      $region46: #{style_decoder_forward.13} parent=43 // pred_check_branch
        %309 = sbr.rel (%p307) target = $region48
      $region47: #{style_decoder_forward.13} parent=43 // pred_region
        %p310 = scmp.lt.s32.totalorder %s16, 1
        %s311 = scalar_select %p310, %s16, 1
        %s312 = smul.addr %s311, 2
        %s313 = smul.addr %s312, 2
        %s314 = scalar_lea.vmem %s0, %s313
      $region48: #{style_decoder_forward.13} parent=43 // pred_fallthru
        _
      // Predicated region
      $region49: #{style_decoder_forward.13} parent=43 // pred_check
        %p315 = pneg %p125
      $region50: #{style_decoder_forward.13} parent=43 // pred_check_branch
        %317 = sbr.rel (%p315) target = $region52
      $region51: #{style_decoder_forward.13} parent=43 // pred_region
        %p318 = scmp.lt.s32.totalorder %s16, 1
        %s319 = scalar_select %p318, %s16, 1
        %s320 = smul.addr %s319, 8
        %s321 = smul.addr %s320, 2
        %s322 = scalar_lea.vmem %s4, %s321
      $region52: #{style_decoder_forward.13} parent=43 // pred_fallthru
        _
      // Predicated region
      $region53: #{style_decoder_forward.13} parent=43 // pred_check
        %p323 = pneg %p193
      $region54: #{style_decoder_forward.13} parent=43 // pred_check_branch
        %325 = sbr.rel (%p323) target = $region56
      $region55: #{style_decoder_forward.13} parent=43 // pred_region
        %p326 = scmp.lt.s32.totalorder %s16, 1
        %s327 = scalar_select %p326, %s16, 1
        %s328 = smul.addr %s327, 16
        %s329 = smul.addr %s328, 2
        %s330 = scalar_lea.vmem %s7, %s329
      $region56: #{style_decoder_forward.13} parent=43 // pred_fallthru
        _
    $region44: #{style_decoder_forward.13} parent=5 // pred_fallthru
      _
    %p331 = scmp.le.s32.totalorder 1, %s16
    %p332 = scmp.lt.s32.totalorder %s16, 3
    %p333 = pnand %p331, %p332
    %p334 = pneg %p333
    // Predicated region
    $region57: #{style_decoder_forward.13} parent=5 // pred_check
      _
    $region58: #{style_decoder_forward.13} parent=5 // pred_check_branch
      %336 = sbr.rel (%p333) target = $region60
    $region59: #{style_decoder_forward.13} parent=5 // pred_region
      %s337 = ssub.s32 %s16, 1
      %p338 = scmp.lt.s32.totalorder %s21, 1
      %s339 = scalar_select %p338, %s21, 1
      %s340 = smul.addr %s339, 2
      %s341 = smul.addr %s340, 2
      %s342 = scalar_lea.vmem %s0, %s341
      %p343 = pneg %p42
      %p344 = pneg %p39
      %p345 = pneg %p63
      %p346 = pneg %p60
      %p347 = pneg %p84
      %p348 = pneg %p81
      %p349 = pneg %p105
      %p350 = pneg %p102
      %p351 = scmp.lt.s32.totalorder %s21, 1
      %s352 = scalar_select %p351, %s21, 1
      %s353 = smul.addr %s352, 8
      %s354 = smul.addr %s353, 2
      %s355 = scalar_lea.vmem %s4, %s354
      %p356 = pneg %p131
      %p357 = pneg %p128
      %p358 = pneg %p152
      %p359 = pneg %p149
      %p360 = pneg %p173
      %p361 = pneg %p170
      %p362 = scmp.lt.s32.totalorder %s21, 1
      %s363 = scalar_select %p362, %s21, 1
      %s364 = smul.addr %s363, 16
      %s365 = smul.addr %s364, 2
      %s366 = scalar_lea.vmem %s7, %s365
      %p367 = pneg %p199
      %p368 = pneg %p196
      %p369 = pneg %p220
      %p370 = pneg %p217
      %p371 = pneg %p241
      %p372 = pneg %p238
      %p373 = pneg %p267
      %p374 = pneg %p264
      %p375 = scmp.lt.s32.totalorder %s21, 1
      %s376 = scalar_select %p375, %s21, 1
      %s377 = smul.addr %s376, 8
      %s378 = smul.addr %s377, 4
      %s379 = scalar_lea.vmem %s10, %s378
      %p380 = scmp.lt.s32.totalorder %s21, 1
      %s381 = scalar_select %p380, %s21, 1
      %s382 = smul.addr %s381, 2
      %s383 = smul.addr %s382, 2
      %s384 = scalar_lea.vmem %s0, %s383
      %p385 = scmp.lt.s32.totalorder %s21, 1
      %s386 = scalar_select %p385, %s21, 1
      %s387 = smul.addr %s386, 8
      %s388 = smul.addr %s387, 2
      %s389 = scalar_lea.vmem %s4, %s388
      %p390 = scmp.lt.s32.totalorder %s21, 1
      %s391 = scalar_select %p390, %s21, 1
      %s392 = smul.addr %s391, 16
      %s393 = smul.addr %s392, 2
      %s394 = scalar_lea.vmem %s7, %s393
      %p395 = scmp.lt.s32.totalorder %s21, 1
      %s396 = scalar_select %p395, %s21, 1
      %s397 = smul.addr %s396, 8
      %s398 = smul.addr %s397, 4
      %s399 = scalar_lea.vmem %s10, %s398
      %v401 = vld [vmem:[%s384] sm:$0xf]
      %v402 = vunpack.c.l.bf16 %v401
      %v404 = vcombine.high %v402, %v402
      %405 = vrot.lane.b32.xlu0 %v402, 17
      %v406 = vpop.permute.xlu0 %405
      %407 = vrot.lane.b32.xlu0 %v404, 17
      %v408 = vpop.permute.xlu0 %407
      %vm409 = vcmask 138240
      %v410 = vsel %vm409, %v406, %v408
      %v414 = vsel %vm409, 0.0, %v406
      %v415 = vsel %vm409, %v408, 0.0
      %v416 = vlaneseq
      %v417 = vand.u32 %v416, 127
      %v418 = vadd.s32 %v417, 128
      %vm419 = vcmp.lt.s32.totalorder %v417, 0
      %v420 = vsub.s32 0, %v417
      %v421 = vsel %vm419, %v420, %v417
      %v422 = vshrl.u32 %v421, 4
      %v423 = vand.u32 %v421, 15
      %v424 = vsub.s32 0, %v423
      %v425 = vsel %vm419, %v424, %v423
      %vm426 = vcmp.lt.s32.totalorder %v418, 0
      %v427 = vsub.s32 0, %v418
      %v428 = vsel %vm426, %v427, %v418
      %v429 = vshrl.u32 %v428, 4
      %v430 = vand.u32 %v428, 15
      %v431 = vsub.s32 0, %v430
      %v432 = vsel %vm426, %v431, %v430
      %vm433 = vcmp.ne.s32.totalorder %v425, 0
      %vm434 = vcmp.ne.s32.totalorder %v432, 0
      %vm435 = vcmp.lt.s32.totalorder %v425, 0
      %vm436 = vcmp.lt.s32.totalorder %v432, 0
      %vm437 = vmand %vm435, %vm433
      %vm438 = vmand %vm436, %vm434
      %v439 = vadd.s32 %v425, 16
      %v440 = vadd.s32 %v432, 16
      %v441 = vsel %vm437, %v439, %v425
      %v442 = vsel %vm438, %v440, %v432
      %v443 = vadd.s32 %v441, 4294967295
      %v444 = vadd.s32 %v442, 4294967295
      %vm445 = vcmp.ge.s32.totalorder %v443, 0
      %vm446 = vcmp.ge.s32.totalorder %v444, 0
      %vm447 = vcmp.lt.s32.totalorder %v443, 16
      %vm448 = vcmp.lt.s32.totalorder %v444, 16
      %vm449 = vmand %vm445, %vm447
      %vm450 = vmand %vm446, %vm448
      %v451 = vsel %vm449, 1, 0
      %v452 = vsel %vm450, 1, 0
      %vm453 = vcmp.eq.s32.totalorder %v451, 1
      %vm454 = vcmp.eq.s32.totalorder %v452, 1
      %v455 = vsel %vm453, %v414, 0.0
      %v456 = vsel %vm454, %v410, 0.0
      %v457 = vld [vmem:[%s1] sm:$0x1]
      %v458 = vpack.c.bf16 %v455, %v455
      %v459 = vpack.c.bf16 %v456, %v456
      %v460 = vpack.c.bf16 %v414, %v414
      %v461 = vpack.c.bf16 %v410, %v410
      %v462 = vpack.c.bf16 %v415, %v415
      %v465 = vunpack.c.l.s4 1966171168
      %v466 = vunpack.c.0.s8 %v465
      %v467 = vlaneseq
      %v468 = vshrl.u32 %v467, 7
      %v469 = vsub.s32 %v466, %v468
      %v470 = vrot.slane %v457, %v469
      %v472 = vunpack.c.l.s4 1966171168
      %v473 = vunpack.c.0.s8 %v472
      %v474 = vlaneseq
      %v475 = vshrl.u32 %v474, 7
      %v476 = vsub.s32 %v473, %v475
      %v477 = vrot.slane %v470, %v476
      %478 = vrot.lane.b32.xlu0 %v477, 124
      %v479 = vpop.permute.xlu0 %478
      %483 = vrot.lane.b32.xlu0 %v460, 127
      %v484 = vpop.permute.xlu0 %483
      %485 = vrot.lane.b32.xlu0 %v461, 127
      %v486 = vpop.permute.xlu0 %485
      %487 = vrot.lane.b32.xlu0 %v462, 127
      %v488 = vpop.permute.xlu0 %487
      %vm489 = vcmask 1039360
      %v490 = vsel %vm489, %v484, %v486
      %v491 = vsel %vm489, %v486, %v488
      %vm492 = vcmask 31744
      %v494 = vsel %vm492, %v479, 0
      %vm496 = vcmask 1041408
      %v498 = vsel %vm496, %v490, 0
      %v501 = vsel %vm496, %v491, 0
      %503 = vmatprep.subr.bf16.mxu0 %v501
      %504 = vmatpush1.bf16.msra.mxu0 %v498
      %505 = vmatprep.subr.bf16.mxu0 0
      %506 = vmatpush1.bf16.msra.mxu0 0
      %507 = vmatprep.subr.bf16.mxu0 0
      %508 = vmatpush1.bf16.msra.mxu0 0
      %509 = vmatprep.subr.bf16.mxu0 0
      %510 = vmatpush1.bf16.msra.mxu0 0
      %511 = vmatprep.subr.bf16.mxu0 0
      %512 = vmatpush1.bf16.msra.mxu0 0
      %513 = vmatprep.subr.bf16.mxu0 0
      %514 = vmatpush1.bf16.msra.mxu0 0
      %515 = vmatprep.subr.bf16.mxu0 0
      %516 = vmatpush1.bf16.msra.mxu0 0
      %517 = vmatprep.subr.bf16.mxu0 0
      %518 = vmatpush1.bf16.msra.mxu0 0
      %519 = vmatprep.subr.bf16.mxu0 0
      %520 = vmatpush1.bf16.msra.mxu0 0
      %521 = vmatprep.subr.bf16.mxu0 0
      %522 = vmatpush1.bf16.msra.mxu0 0
      %523 = vmatprep.subr.bf16.mxu0 0
      %524 = vmatpush1.bf16.msra.mxu0 0
      %525 = vmatprep.subr.bf16.mxu0 0
      %526 = vmatpush1.bf16.msra.mxu0 0
      %527 = vmatprep.subr.bf16.mxu0 0
      %528 = vmatpush1.bf16.msra.mxu0 0
      %529 = vmatprep.subr.bf16.mxu0 0
      %530 = vmatpush1.bf16.msra.mxu0 0
      %531 = vmatprep.subr.bf16.mxu0 0
      %532 = vmatpush1.bf16.msra.mxu0 0
      %533 = vmatprep.subr.bf16.mxu0 0
      %534 = vmatpush1.bf16.msra.mxu0 0
      %535 = vmatprep.mubr.bf16.mxu0 0
      %536 = vmatmul.mubr.bf16.gmra.mrb[0].mxu0 %v494
      %v537 = vpop.f32.mrb[0].mxu0
      %v538 = vadd.f32 0.0, %v537
      %v539 = vpop.f32.mrb[0].mxu0
      %v540 = vadd.f32 0.0, %v539
      %v541 = vpop.f32.mrb[0].mxu0
      %v542 = vpop.f32.mrb[0].mxu0
      %543 = vdwg.mxu0
      %v545 = vsel %vm492, %v457, 0
      %v548 = vsel %vm496, %v458, 0
      %v551 = vsel %vm496, %v459, 0
      %553 = vmatprep.subr.bf16.mxu0 %v551
      %554 = vmatpush1.bf16.msra.mxu0 %v548
      %555 = vmatprep.subr.bf16.mxu0 0
      %556 = vmatpush1.bf16.msra.mxu0 0
      %557 = vmatprep.subr.bf16.mxu0 0
      %558 = vmatpush1.bf16.msra.mxu0 0
      %559 = vmatprep.subr.bf16.mxu0 0
      %560 = vmatpush1.bf16.msra.mxu0 0
      %561 = vmatprep.subr.bf16.mxu0 0
      %562 = vmatpush1.bf16.msra.mxu0 0
      %563 = vmatprep.subr.bf16.mxu0 0
      %564 = vmatpush1.bf16.msra.mxu0 0
      %565 = vmatprep.subr.bf16.mxu0 0
      %566 = vmatpush1.bf16.msra.mxu0 0
      %567 = vmatprep.subr.bf16.mxu0 0
      %568 = vmatpush1.bf16.msra.mxu0 0
      %569 = vmatprep.subr.bf16.mxu0 0
      %570 = vmatpush1.bf16.msra.mxu0 0
      %571 = vmatprep.subr.bf16.mxu0 0
      %572 = vmatpush1.bf16.msra.mxu0 0
      %573 = vmatprep.subr.bf16.mxu0 0
      %574 = vmatpush1.bf16.msra.mxu0 0
      %575 = vmatprep.subr.bf16.mxu0 0
      %576 = vmatpush1.bf16.msra.mxu0 0
      %577 = vmatprep.subr.bf16.mxu0 0
      %578 = vmatpush1.bf16.msra.mxu0 0
      %579 = vmatprep.subr.bf16.mxu0 0
      %580 = vmatpush1.bf16.msra.mxu0 0
      %581 = vmatprep.subr.bf16.mxu0 0
      %582 = vmatpush1.bf16.msra.mxu0 0
      %583 = vmatprep.subr.bf16.mxu0 0
      %584 = vmatpush1.bf16.msra.mxu0 0
      %585 = vmatprep.mubr.bf16.mxu0 0
      %586 = vmatmul.mubr.bf16.gmra.mrb[0].mxu0 %v545
      %v587 = vpop.f32.mrb[0].mxu0
      %v588 = vadd.f32 %v538, %v587
      %v589 = vpop.f32.mrb[0].mxu0
      %v590 = vadd.f32 %v540, %v589
      %v591 = vpop.f32.mrb[0].mxu0
      %v592 = vpop.f32.mrb[0].mxu0
      %593 = vdwg.mxu0
      %v594 = vadd.s32 %v441, 1
      %v595 = vadd.s32 %v442, 1
      %vm596 = vcmp.ge.s32.totalorder %v594, 0
      %vm597 = vcmp.ge.s32.totalorder %v595, 0
      %vm598 = vcmp.lt.s32.totalorder %v594, 16
      %vm599 = vcmp.lt.s32.totalorder %v595, 16
      %vm600 = vmand %vm596, %vm598
      %vm601 = vmand %vm597, %vm599
      %v602 = vsel %vm600, 1, 0
      %v603 = vsel %vm601, 1, 0
      %vm604 = vcmp.eq.s32.totalorder %v602, 1
      %vm605 = vcmp.eq.s32.totalorder %v603, 1
      %608 = vrot.lane.b32.xlu0 %v414, 126
      %v609 = vpop.permute.xlu0 %608
      %610 = vrot.lane.b32.xlu0 %v410, 126
      %v611 = vpop.permute.xlu0 %610
      %612 = vrot.lane.b32.xlu0 %v415, 126
      %v613 = vpop.permute.xlu0 %612
      %vm614 = vcmask 1031168
      %v615 = vsel %vm614, %v609, %v611
      %v616 = vsel %vm614, %v611, %v613
      %v619 = vsel %vm604, %v615, 0.0
      %v620 = vsel %vm605, %v616, 0.0
      %v621 = vld [vmem:[%s1] sm:$0x1]
      %v622 = vpack.c.bf16 %v619, %v619
      %v623 = vpack.c.bf16 %v620, %v620
      %v626 = vunpack.c.l.s4 1966171168
      %v627 = vunpack.c.0.s8 %v626
      %v628 = vlaneseq
      %v629 = vshrl.u32 %v628, 7
      %v630 = vsub.s32 %v627, %v629
      %v631 = vrot.slane %v621, %v630
      %v633 = vunpack.c.l.s4 1966171168
      %v634 = vunpack.c.0.s8 %v633
      %v635 = vlaneseq
      %v636 = vshrl.u32 %v635, 7
      %v637 = vsub.s32 %v634, %v636
      %v638 = vrot.slane %v631, %v637
      %639 = vrot.lane.b32.xlu0 %v638, 120
      %v640 = vpop.permute.xlu0 %639
      %v642 = vsel %vm492, %v640, 0
      %v645 = vsel %vm496, %v622, 0
      %v648 = vsel %vm496, %v623, 0
      %650 = vmatprep.subr.bf16.mxu0 %v648
      %651 = vmatpush1.bf16.msra.mxu0 %v645
      %652 = vmatprep.subr.bf16.mxu0 0
      %653 = vmatpush1.bf16.msra.mxu0 0
      %654 = vmatprep.subr.bf16.mxu0 0
      %655 = vmatpush1.bf16.msra.mxu0 0
      %656 = vmatprep.subr.bf16.mxu0 0
      %657 = vmatpush1.bf16.msra.mxu0 0
      %658 = vmatprep.subr.bf16.mxu0 0
      %659 = vmatpush1.bf16.msra.mxu0 0
      %660 = vmatprep.subr.bf16.mxu0 0
      %661 = vmatpush1.bf16.msra.mxu0 0
      %662 = vmatprep.subr.bf16.mxu0 0
      %663 = vmatpush1.bf16.msra.mxu0 0
      %664 = vmatprep.subr.bf16.mxu0 0
      %665 = vmatpush1.bf16.msra.mxu0 0
      %666 = vmatprep.subr.bf16.mxu0 0
      %667 = vmatpush1.bf16.msra.mxu0 0
      %668 = vmatprep.subr.bf16.mxu0 0
      %669 = vmatpush1.bf16.msra.mxu0 0
      %670 = vmatprep.subr.bf16.mxu0 0
      %671 = vmatpush1.bf16.msra.mxu0 0
      %672 = vmatprep.subr.bf16.mxu0 0
      %673 = vmatpush1.bf16.msra.mxu0 0
      %674 = vmatprep.subr.bf16.mxu0 0
      %675 = vmatpush1.bf16.msra.mxu0 0
      %676 = vmatprep.subr.bf16.mxu0 0
      %677 = vmatpush1.bf16.msra.mxu0 0
      %678 = vmatprep.subr.bf16.mxu0 0
      %679 = vmatpush1.bf16.msra.mxu0 0
      %680 = vmatprep.subr.bf16.mxu0 0
      %681 = vmatpush1.bf16.msra.mxu0 0
      %682 = vmatprep.mubr.bf16.mxu0 0
      %683 = vmatmul.mubr.bf16.gmra.mrb[0].mxu0 %v642
      %v684 = vpop.f32.mrb[0].mxu0
      %v685 = vadd.f32 0.0, %v684
      %v686 = vpop.f32.mrb[0].mxu0
      %v687 = vadd.f32 0.0, %v686
      %v688 = vpop.f32.mrb[0].mxu0
      %v689 = vpop.f32.mrb[0].mxu0
      %690 = vdwg.mxu0
      %v691 = vadd.f32 %v588, %v685
      %v692 = vadd.f32 %v590, %v687
      %693 = vrot.lane.b32.xlu0 %v414, 112
      %v694 = vpop.permute.xlu0 %693
      %695 = vrot.lane.b32.xlu0 %v410, 112
      %v696 = vpop.permute.xlu0 %695
      %697 = vrot.lane.b32.xlu0 %v415, 112
      %v698 = vpop.permute.xlu0 %697
      %vm699 = vcmask 916480
      %v700 = vsel %vm699, %v694, %v696
      %v701 = vsel %vm699, %v696, %v698
      %v704 = vsel %vm453, %v700, 0.0
      %v705 = vsel %vm454, %v701, 0.0
      %v706 = vld [vmem:[%s1] sm:$0x1]
      %v707 = vpack.c.bf16 %v704, %v704
      %v708 = vpack.c.bf16 %v705, %v705
      %v711 = vunpack.c.l.s4 1966171168
      %v712 = vunpack.c.0.s8 %v711
      %v713 = vlaneseq
      %v714 = vshrl.u32 %v713, 7
      %v715 = vsub.s32 %v712, %v714
      %v716 = vrot.slane %v706, %v715
      %v718 = vunpack.c.l.s4 1966171168
      %v719 = vunpack.c.0.s8 %v718
      %v720 = vlaneseq
      %v721 = vshrl.u32 %v720, 7
      %v722 = vsub.s32 %v719, %v721
      %v723 = vrot.slane %v716, %v722
      %724 = vrot.lane.b32.xlu0 %v723, 116
      %v725 = vpop.permute.xlu0 %724
      %v727 = vsel %vm492, %v725, 0
      %v730 = vsel %vm496, %v707, 0
      %v733 = vsel %vm496, %v708, 0
      %735 = vmatprep.subr.bf16.mxu0 %v733
      %736 = vmatpush1.bf16.msra.mxu0 %v730
      %737 = vmatprep.subr.bf16.mxu0 0
      %738 = vmatpush1.bf16.msra.mxu0 0
      %739 = vmatprep.subr.bf16.mxu0 0
      %740 = vmatpush1.bf16.msra.mxu0 0
      %741 = vmatprep.subr.bf16.mxu0 0
      %742 = vmatpush1.bf16.msra.mxu0 0
      %743 = vmatprep.subr.bf16.mxu0 0
      %744 = vmatpush1.bf16.msra.mxu0 0
      %745 = vmatprep.subr.bf16.mxu0 0
      %746 = vmatpush1.bf16.msra.mxu0 0
      %747 = vmatprep.subr.bf16.mxu0 0
      %748 = vmatpush1.bf16.msra.mxu0 0
      %749 = vmatprep.subr.bf16.mxu0 0
      %750 = vmatpush1.bf16.msra.mxu0 0
      %751 = vmatprep.subr.bf16.mxu0 0
      %752 = vmatpush1.bf16.msra.mxu0 0
      %753 = vmatprep.subr.bf16.mxu0 0
      %754 = vmatpush1.bf16.msra.mxu0 0
      %755 = vmatprep.subr.bf16.mxu0 0
      %756 = vmatpush1.bf16.msra.mxu0 0
      %757 = vmatprep.subr.bf16.mxu0 0
      %758 = vmatpush1.bf16.msra.mxu0 0
      %759 = vmatprep.subr.bf16.mxu0 0
      %760 = vmatpush1.bf16.msra.mxu0 0
      %761 = vmatprep.subr.bf16.mxu0 0
      %762 = vmatpush1.bf16.msra.mxu0 0
      %763 = vmatprep.subr.bf16.mxu0 0
      %764 = vmatpush1.bf16.msra.mxu0 0
      %765 = vmatprep.subr.bf16.mxu0 0
      %766 = vmatpush1.bf16.msra.mxu0 0
      %767 = vmatprep.mubr.bf16.mxu0 0
      %768 = vmatmul.mubr.bf16.gmra.mrb[0].mxu0 %v727
      %v769 = vpop.f32.mrb[0].mxu0
      %v770 = vadd.f32 0.0, %v769
      %v771 = vpop.f32.mrb[0].mxu0
      %v772 = vadd.f32 0.0, %v771
      %v773 = vpop.f32.mrb[0].mxu0
      %v774 = vpop.f32.mrb[0].mxu0
      %775 = vdwg.mxu0
      %v776 = vadd.f32 %v691, %v770
      %v777 = vadd.f32 %v692, %v772
      %v778 = vld [vmem:[%s1] sm:$0x1]
      %v781 = vunpack.c.l.s4 1966171168
      %v782 = vunpack.c.0.s8 %v781
      %v783 = vlaneseq
      %v784 = vshrl.u32 %v783, 7
      %v785 = vsub.s32 %v782, %v784
      %v786 = vrot.slane %v778, %v785
      %v788 = vunpack.c.l.s4 1966171168
      %v789 = vunpack.c.0.s8 %v788
      %v790 = vlaneseq
      %v791 = vshrl.u32 %v790, 7
      %v792 = vsub.s32 %v789, %v791
      %v793 = vrot.slane %v786, %v792
      %794 = vrot.lane.b32.xlu0 %v793, 112
      %v795 = vpop.permute.xlu0 %794
      %796 = vrot.lane.b32.xlu0 %v460, 111
      %v797 = vpop.permute.xlu0 %796
      %798 = vrot.lane.b32.xlu0 %v461, 111
      %v799 = vpop.permute.xlu0 %798
      %800 = vrot.lane.b32.xlu0 %v462, 111
      %v801 = vpop.permute.xlu0 %800
      %vm802 = vcmask 908288
      %v803 = vsel %vm802, %v797, %v799
      %v804 = vsel %vm802, %v799, %v801
      %v806 = vsel %vm492, %v795, 0
      %v809 = vsel %vm496, %v803, 0
      %v812 = vsel %vm496, %v804, 0
      %814 = vmatprep.subr.bf16.mxu0 %v812
      %815 = vmatpush1.bf16.msra.mxu0 %v809
      %816 = vmatprep.subr.bf16.mxu0 0
      %817 = vmatpush1.bf16.msra.mxu0 0
      %818 = vmatprep.subr.bf16.mxu0 0
      %819 = vmatpush1.bf16.msra.mxu0 0
      %820 = vmatprep.subr.bf16.mxu0 0
      %821 = vmatpush1.bf16.msra.mxu0 0
      %822 = vmatprep.subr.bf16.mxu0 0
      %823 = vmatpush1.bf16.msra.mxu0 0
      %824 = vmatprep.subr.bf16.mxu0 0
      %825 = vmatpush1.bf16.msra.mxu0 0
      %826 = vmatprep.subr.bf16.mxu0 0
      %827 = vmatpush1.bf16.msra.mxu0 0
      %828 = vmatprep.subr.bf16.mxu0 0
      %829 = vmatpush1.bf16.msra.mxu0 0
      %830 = vmatprep.subr.bf16.mxu0 0
      %831 = vmatpush1.bf16.msra.mxu0 0
      %832 = vmatprep.subr.bf16.mxu0 0
      %833 = vmatpush1.bf16.msra.mxu0 0
      %834 = vmatprep.subr.bf16.mxu0 0
      %835 = vmatpush1.bf16.msra.mxu0 0
      %836 = vmatprep.subr.bf16.mxu0 0
      %837 = vmatpush1.bf16.msra.mxu0 0
      %838 = vmatprep.subr.bf16.mxu0 0
      %839 = vmatpush1.bf16.msra.mxu0 0
      %840 = vmatprep.subr.bf16.mxu0 0
      %841 = vmatpush1.bf16.msra.mxu0 0
      %842 = vmatprep.subr.bf16.mxu0 0
      %843 = vmatpush1.bf16.msra.mxu0 0
      %844 = vmatprep.subr.bf16.mxu0 0
      %845 = vmatpush1.bf16.msra.mxu0 0
      %846 = vmatprep.mubr.bf16.mxu0 0
      %847 = vmatmul.mubr.bf16.gmra.mrb[0].mxu0 %v806
      %v848 = vpop.f32.mrb[0].mxu0
      %v849 = vadd.f32 0.0, %v848
      %v850 = vpop.f32.mrb[0].mxu0
      %v851 = vadd.f32 0.0, %v850
      %v852 = vpop.f32.mrb[0].mxu0
      %v853 = vpop.f32.mrb[0].mxu0
      %854 = vdwg.mxu0
      %v855 = vadd.f32 %v776, %v849
      %v856 = vadd.f32 %v777, %v851
      %857 = vrot.lane.b32.xlu0 %v414, 110
      %v858 = vpop.permute.xlu0 %857
      %859 = vrot.lane.b32.xlu0 %v410, 110
      %v860 = vpop.permute.xlu0 %859
      %861 = vrot.lane.b32.xlu0 %v415, 110
      %v862 = vpop.permute.xlu0 %861
      %vm863 = vcmask 900096
      %v864 = vsel %vm863, %v858, %v860
      %v865 = vsel %vm863, %v860, %v862
      %v868 = vsel %vm604, %v864, 0.0
      %v869 = vsel %vm605, %v865, 0.0
      %v870 = vld [vmem:[%s1] sm:$0x1]
      %v871 = vpack.c.bf16 %v868, %v868
      %v872 = vpack.c.bf16 %v869, %v869
      %v875 = vunpack.c.l.s4 1966171168
      %v876 = vunpack.c.0.s8 %v875
      %v877 = vlaneseq
      %v878 = vshrl.u32 %v877, 7
      %v879 = vsub.s32 %v876, %v878
      %v880 = vrot.slane %v870, %v879
      %v882 = vunpack.c.l.s4 1966171168
      %v883 = vunpack.c.0.s8 %v882
      %v884 = vlaneseq
      %v885 = vshrl.u32 %v884, 7
      %v886 = vsub.s32 %v883, %v885
      %v887 = vrot.slane %v880, %v886
      %888 = vrot.lane.b32.xlu0 %v887, 108
      %v889 = vpop.permute.xlu0 %888
      %v891 = vsel %vm492, %v889, 0
      %v894 = vsel %vm496, %v871, 0
      %v897 = vsel %vm496, %v872, 0
      %899 = vmatprep.subr.bf16.mxu0 %v897
      %900 = vmatpush1.bf16.msra.mxu0 %v894
      %901 = vmatprep.subr.bf16.mxu0 0
      %902 = vmatpush1.bf16.msra.mxu0 0
      %903 = vmatprep.subr.bf16.mxu0 0
      %904 = vmatpush1.bf16.msra.mxu0 0
      %905 = vmatprep.subr.bf16.mxu0 0
      %906 = vmatpush1.bf16.msra.mxu0 0
      %907 = vmatprep.subr.bf16.mxu0 0
      %908 = vmatpush1.bf16.msra.mxu0 0
      %909 = vmatprep.subr.bf16.mxu0 0
      %910 = vmatpush1.bf16.msra.mxu0 0
      %911 = vmatprep.subr.bf16.mxu0 0
      %912 = vmatpush1.bf16.msra.mxu0 0
      %913 = vmatprep.subr.bf16.mxu0 0
      %914 = vmatpush1.bf16.msra.mxu0 0
      %915 = vmatprep.subr.bf16.mxu0 0
      %916 = vmatpush1.bf16.msra.mxu0 0
      %917 = vmatprep.subr.bf16.mxu0 0
      %918 = vmatpush1.bf16.msra.mxu0 0
      %919 = vmatprep.subr.bf16.mxu0 0
      %920 = vmatpush1.bf16.msra.mxu0 0
      %921 = vmatprep.subr.bf16.mxu0 0
      %922 = vmatpush1.bf16.msra.mxu0 0
      %923 = vmatprep.subr.bf16.mxu0 0
      %924 = vmatpush1.bf16.msra.mxu0 0
      %925 = vmatprep.subr.bf16.mxu0 0
      %926 = vmatpush1.bf16.msra.mxu0 0
      %927 = vmatprep.subr.bf16.mxu0 0
      %928 = vmatpush1.bf16.msra.mxu0 0
      %929 = vmatprep.subr.bf16.mxu0 0
      %930 = vmatpush1.bf16.msra.mxu0 0
      %931 = vmatprep.mubr.bf16.mxu0 0
      %932 = vmatmul.mubr.bf16.gmra.mrb[0].mxu0 %v891
      %v933 = vpop.f32.mrb[0].mxu0
      %v934 = vadd.f32 0.0, %v933
      %v935 = vpop.f32.mrb[0].mxu0
      %v936 = vadd.f32 0.0, %v935
      %v937 = vpop.f32.mrb[0].mxu0
      %v938 = vpop.f32.mrb[0].mxu0
      %939 = vdwg.mxu0
      %v940 = vadd.f32 %v855, %v934
      %v941 = vadd.f32 %v856, %v936
      %942 = vrot.lane.b32.xlu0 %v414, 96
      %v943 = vpop.permute.xlu0 %942
      %944 = vrot.lane.b32.xlu0 %v410, 96
      %v945 = vpop.permute.xlu0 %944
      %946 = vrot.lane.b32.xlu0 %v415, 96
      %v947 = vpop.permute.xlu0 %946
      %vm948 = vcmask 785408
      %v949 = vsel %vm948, %v943, %v945
      %v950 = vsel %vm948, %v945, %v947
      %v953 = vsel %vm453, %v949, 0.0
      %v954 = vsel %vm454, %v950, 0.0
      %v955 = vld [vmem:[%s1] sm:$0x1]
      %v956 = vpack.c.bf16 %v953, %v953
      %v957 = vpack.c.bf16 %v954, %v954
      %v960 = vunpack.c.l.s4 1966171168
      %v961 = vunpack.c.0.s8 %v960
      %v962 = vlaneseq
      %v963 = vshrl.u32 %v962, 7
      %v964 = vsub.s32 %v961, %v963
      %v965 = vrot.slane %v955, %v964
      %v967 = vunpack.c.l.s4 1966171168
      %v968 = vunpack.c.0.s8 %v967
      %v969 = vlaneseq
      %v970 = vshrl.u32 %v969, 7
      %v971 = vsub.s32 %v968, %v970
      %v972 = vrot.slane %v965, %v971
      %973 = vrot.lane.b32.xlu0 %v972, 104
      %v974 = vpop.permute.xlu0 %973
      %v976 = vsel %vm492, %v974, 0
      %v979 = vsel %vm496, %v956, 0
      %v982 = vsel %vm496, %v957, 0
      %984 = vmatprep.subr.bf16.mxu0 %v982
      %985 = vmatpush1.bf16.msra.mxu0 %v979
      %986 = vmatprep.subr.bf16.mxu0 0
      %987 = vmatpush1.bf16.msra.mxu0 0
      %988 = vmatprep.subr.bf16.mxu0 0
      %989 = vmatpush1.bf16.msra.mxu0 0
      %990 = vmatprep.subr.bf16.mxu0 0
      %991 = vmatpush1.bf16.msra.mxu0 0
      %992 = vmatprep.subr.bf16.mxu0 0
      %993 = vmatpush1.bf16.msra.mxu0 0
      %994 = vmatprep.subr.bf16.mxu0 0
      %995 = vmatpush1.bf16.msra.mxu0 0
      %996 = vmatprep.subr.bf16.mxu0 0
      %997 = vmatpush1.bf16.msra.mxu0 0
      %998 = vmatprep.subr.bf16.mxu0 0
      %999 = vmatpush1.bf16.msra.mxu0 0
      %1000 = vmatprep.subr.bf16.mxu0 0
      %1001 = vmatpush1.bf16.msra.mxu0 0
      %1002 = vmatprep.subr.bf16.mxu0 0
      %1003 = vmatpush1.bf16.msra.mxu0 0
      %1004 = vmatprep.subr.bf16.mxu0 0
      %1005 = vmatpush1.bf16.msra.mxu0 0
      %1006 = vmatprep.subr.bf16.mxu0 0
      %1007 = vmatpush1.bf16.msra.mxu0 0
      %1008 = vmatprep.subr.bf16.mxu0 0
      %1009 = vmatpush1.bf16.msra.mxu0 0
      %1010 = vmatprep.subr.bf16.mxu0 0
      %1011 = vmatpush1.bf16.msra.mxu0 0
      %1012 = vmatprep.subr.bf16.mxu0 0
      %1013 = vmatpush1.bf16.msra.mxu0 0
      %1014 = vmatprep.subr.bf16.mxu0 0
      %1015 = vmatpush1.bf16.msra.mxu0 0
      %1016 = vmatprep.mubr.bf16.mxu0 0
      %1017 = vmatmul.mubr.bf16.gmra.mrb[0].mxu0 %v976
      %v1018 = vpop.f32.mrb[0].mxu0
      %v1019 = vadd.f32 0.0, %v1018
      %v1020 = vpop.f32.mrb[0].mxu0
      %v1021 = vadd.f32 0.0, %v1020
      %v1022 = vpop.f32.mrb[0].mxu0
      %v1023 = vpop.f32.mrb[0].mxu0
      %1024 = vdwg.mxu0
      %v1025 = vadd.f32 %v940, %v1019
      %v1026 = vadd.f32 %v941, %v1021
      %v1027 = vld [vmem:[%s1] sm:$0x1]
      %v1030 = vunpack.c.l.s4 1966171168
      %v1031 = vunpack.c.0.s8 %v1030
      %v1032 = vlaneseq
      %v1033 = vshrl.u32 %v1032, 7
      %v1034 = vsub.s32 %v1031, %v1033
      %v1035 = vrot.slane %v1027, %v1034
      %v1037 = vunpack.c.l.s4 1966171168
      %v1038 = vunpack.c.0.s8 %v1037
      %v1039 = vlaneseq
      %v1040 = vshrl.u32 %v1039, 7
      %v1041 = vsub.s32 %v1038, %v1040
      %v1042 = vrot.slane %v1035, %v1041
      %1043 = vrot.lane.b32.xlu0 %v1042, 100
      %v1044 = vpop.permute.xlu0 %1043
      %1045 = vrot.lane.b32.xlu0 %v460, 95
      %v1046 = vpop.permute.xlu0 %1045
      %1047 = vrot.lane.b32.xlu0 %v461, 95
      %v1048 = vpop.permute.xlu0 %1047
      %1049 = vrot.lane.b32.xlu0 %v462, 95
      %v1050 = vpop.permute.xlu0 %1049
      %vm1051 = vcmask 777216
      %v1052 = vsel %vm1051, %v1046, %v1048
      %v1053 = vsel %vm1051, %v1048, %v1050
      %v1055 = vsel %vm492, %v1044, 0
      %v1058 = vsel %vm496, %v1052, 0
      %v1061 = vsel %vm496, %v1053, 0
      %1063 = vmatprep.subr.bf16.mxu0 %v1061
      %1064 = vmatpush1.bf16.msra.mxu0 %v1058
      %1065 = vmatprep.subr.bf16.mxu0 0
      %1066 = vmatpush1.bf16.msra.mxu0 0
      %1067 = vmatprep.subr.bf16.mxu0 0
      %1068 = vmatpush1.bf16.msra.mxu0 0
      %1069 = vmatprep.subr.bf16.mxu0 0
      %1070 = vmatpush1.bf16.msra.mxu0 0
      %1071 = vmatprep.subr.bf16.mxu0 0
      %1072 = vmatpush1.bf16.msra.mxu0 0
      %1073 = vmatprep.subr.bf16.mxu0 0
      %1074 = vmatpush1.bf16.msra.mxu0 0
      %1075 = vmatprep.subr.bf16.mxu0 0
      %1076 = vmatpush1.bf16.msra.mxu0 0
      %1077 = vmatprep.subr.bf16.mxu0 0
      %1078 = vmatpush1.bf16.msra.mxu0 0
      %1079 = vmatprep.subr.bf16.mxu0 0
      %1080 = vmatpush1.bf16.msra.mxu0 0
      %1081 = vmatprep.subr.bf16.mxu0 0
      %1082 = vmatpush1.bf16.msra.mxu0 0
      %1083 = vmatprep.subr.bf16.mxu0 0
      %1084 = vmatpush1.bf16.msra.mxu0 0
      %1085 = vmatprep.subr.bf16.mxu0 0
      %1086 = vmatpush1.bf16.msra.mxu0 0
      %1087 = vmatprep.subr.bf16.mxu0 0
      %1088 = vmatpush1.bf16.msra.mxu0 0
      %1089 = vmatprep.subr.bf16.mxu0 0
      %1090 = vmatpush1.bf16.msra.mxu0 0
      %1091 = vmatprep.subr.bf16.mxu0 0
      %1092 = vmatpush1.bf16.msra.mxu0 0
      %1093 = vmatprep.subr.bf16.mxu0 0
      %1094 = vmatpush1.bf16.msra.mxu0 0
      %1095 = vmatprep.mubr.bf16.mxu0 0
      %1096 = vmatmul.mubr.bf16.gmra.mrb[0].mxu0 %v1055
      %v1097 = vpop.f32.mrb[0].mxu0
      %v1098 = vadd.f32 0.0, %v1097
      %v1099 = vpop.f32.mrb[0].mxu0
      %v1100 = vadd.f32 0.0, %v1099
      %v1101 = vpop.f32.mrb[0].mxu0
      %v1102 = vpop.f32.mrb[0].mxu0
      %1103 = vdwg.mxu0
      %v1104 = vadd.f32 %v1025, %v1098
      %v1105 = vadd.f32 %v1026, %v1100
      %1106 = vrot.lane.b32.xlu0 %v414, 94
      %v1107 = vpop.permute.xlu0 %1106
      %1108 = vrot.lane.b32.xlu0 %v410, 94
      %v1109 = vpop.permute.xlu0 %1108
      %1110 = vrot.lane.b32.xlu0 %v415, 94
      %v1111 = vpop.permute.xlu0 %1110
      %vm1112 = vcmask 769024
      %v1113 = vsel %vm1112, %v1107, %v1109
      %v1114 = vsel %vm1112, %v1109, %v1111
      %v1117 = vsel %vm604, %v1113, 0.0
      %v1118 = vsel %vm605, %v1114, 0.0
      %v1119 = vld [vmem:[%s1] sm:$0x1]
      %v1120 = vpack.c.bf16 %v1117, %v1117
      %v1121 = vpack.c.bf16 %v1118, %v1118
      %v1124 = vunpack.c.l.s4 1966171168
      %v1125 = vunpack.c.0.s8 %v1124
      %v1126 = vlaneseq
      %v1127 = vshrl.u32 %v1126, 7
      %v1128 = vsub.s32 %v1125, %v1127
      %v1129 = vrot.slane %v1119, %v1128
      %v1131 = vunpack.c.l.s4 1966171168
      %v1132 = vunpack.c.0.s8 %v1131
      %v1133 = vlaneseq
      %v1134 = vshrl.u32 %v1133, 7
      %v1135 = vsub.s32 %v1132, %v1134
      %v1136 = vrot.slane %v1129, %v1135
      %1137 = vrot.lane.b32.xlu0 %v1136, 96
      %v1138 = vpop.permute.xlu0 %1137
      %v1140 = vsel %vm492, %v1138, 0
      %v1143 = vsel %vm496, %v1120, 0
      %v1146 = vsel %vm496, %v1121, 0
      %1148 = vmatprep.subr.bf16.mxu0 %v1146
      %1149 = vmatpush1.bf16.msra.mxu0 %v1143
      %1150 = vmatprep.subr.bf16.mxu0 0
      %1151 = vmatpush1.bf16.msra.mxu0 0
      %1152 = vmatprep.subr.bf16.mxu0 0
      %1153 = vmatpush1.bf16.msra.mxu0 0
      %1154 = vmatprep.subr.bf16.mxu0 0
      %1155 = vmatpush1.bf16.msra.mxu0 0
      %1156 = vmatprep.subr.bf16.mxu0 0
      %1157 = vmatpush1.bf16.msra.mxu0 0
      %1158 = vmatprep.subr.bf16.mxu0 0
      %1159 = vmatpush1.bf16.msra.mxu0 0
      %1160 = vmatprep.subr.bf16.mxu0 0
      %1161 = vmatpush1.bf16.msra.mxu0 0
      %1162 = vmatprep.subr.bf16.mxu0 0
      %1163 = vmatpush1.bf16.msra.mxu0 0
      %1164 = vmatprep.subr.bf16.mxu0 0
      %1165 = vmatpush1.bf16.msra.mxu0 0
      %1166 = vmatprep.subr.bf16.mxu0 0
      %1167 = vmatpush1.bf16.msra.mxu0 0
      %1168 = vmatprep.subr.bf16.mxu0 0
      %1169 = vmatpush1.bf16.msra.mxu0 0
      %1170 = vmatprep.subr.bf16.mxu0 0
      %1171 = vmatpush1.bf16.msra.mxu0 0
      %1172 = vmatprep.subr.bf16.mxu0 0
      %1173 = vmatpush1.bf16.msra.mxu0 0
      %1174 = vmatprep.subr.bf16.mxu0 0
      %1175 = vmatpush1.bf16.msra.mxu0 0
      %1176 = vmatprep.subr.bf16.mxu0 0
      %1177 = vmatpush1.bf16.msra.mxu0 0
      %1178 = vmatprep.subr.bf16.mxu0 0
      %1179 = vmatpush1.bf16.msra.mxu0 0
      %1180 = vmatprep.mubr.bf16.mxu0 0
      %1181 = vmatmul.mubr.bf16.gmra.mrb[0].mxu0 %v1140
      %v1182 = vpop.f32.mrb[0].mxu0
      %v1183 = vadd.f32 0.0, %v1182
      %v1184 = vpop.f32.mrb[0].mxu0
      %v1185 = vadd.f32 0.0, %v1184
      %v1186 = vpop.f32.mrb[0].mxu0
      %v1187 = vpop.f32.mrb[0].mxu0
      %1188 = vdwg.mxu0
      %v1189 = vadd.f32 %v1104, %v1183
      %v1190 = vadd.f32 %v1105, %v1185
      %v1191 = vld [vmem:[%s2] sm:$0x3]
      %1193 = vset.pattern.permute.xlu0 0
      %1194 = vperm.xlu0 %1193, %v1191
      %v1195 = vpop.permute.xlu0 %1194
      %v1197 = vadd.f32 %v1189, %v1195
      %v1198 = vadd.f32 %v1190, %v1195
      %v1199 = vmax.f32 %v1197, 0.0
      %v1200 = vmax.f32 %v1198, 0.0
      %v1201 = vpack.c.bf16 %v1199, %v1199
      %v1202 = vpack.c.bf16 %v1200, %v1200
      %v1203 = vld [vmem:[%s3] sm:$0xff]
      %v1204 = vld [vmem:[%s3 + $0x8] sm:$0xff]
      %v1205 = vld [vmem:[%s3 + $0x10] sm:$0xff]
      %v1206 = vld [vmem:[%s3 + $0x18] sm:$0xff]
      %v1207 = vld [vmem:[%s3 + $0x20] sm:$0xff]
      %v1208 = vld [vmem:[%s3 + $0x28] sm:$0xff]
      %v1209 = vld [vmem:[%s3 + $0x30] sm:$0xff]
      %v1210 = vld [vmem:[%s3 + $0x38] sm:$0xff]
      %v1211 = vld [vmem:[%s3 + $0x40] sm:$0xff]
      %v1212 = vld [vmem:[%s3 + $0x48] sm:$0xff]
      %v1213 = vld [vmem:[%s3 + $0x50] sm:$0xff]
      %v1214 = vld [vmem:[%s3 + $0x58] sm:$0xff]
      %v1215 = vld [vmem:[%s3 + $0x60] sm:$0xff]
      %v1216 = vld [vmem:[%s3 + $0x68] sm:$0xff]
      %v1217 = vld [vmem:[%s3 + $0x70] sm:$0xff]
      %v1218 = vld [vmem:[%s3 + $0x78] sm:$0xff]
      %v1219 = vld [vmem:[%s3 + $0x80] sm:$0xff]
      %v1220 = vld [vmem:[%s3 + $0x88] sm:$0xff]
      %v1221 = vld [vmem:[%s3 + $0x90] sm:$0xff]
      %v1222 = vld [vmem:[%s3 + $0x98] sm:$0xff]
      %v1223 = vld [vmem:[%s3 + $0xa0] sm:$0xff]
      %v1224 = vld [vmem:[%s3 + $0xa8] sm:$0xff]
      %v1225 = vld [vmem:[%s3 + $0xb0] sm:$0xff]
      %v1226 = vld [vmem:[%s3 + $0xb8] sm:$0xff]
      %v1227 = vld [vmem:[%s3 + $0xc0] sm:$0xff]
      %v1228 = vld [vmem:[%s3 + $0xc8] sm:$0xff]
      %v1229 = vld [vmem:[%s3 + $0xd0] sm:$0xff]
      %v1230 = vld [vmem:[%s3 + $0xd8] sm:$0xff]
      %v1231 = vld [vmem:[%s3 + $0xe0] sm:$0xff]
      %v1232 = vld [vmem:[%s3 + $0xe8] sm:$0xff]
      %v1233 = vld [vmem:[%s3 + $0xf0] sm:$0xff]
      %v1234 = vld [vmem:[%s3 + $0xf8] sm:$0xff]
      %v1235 = vld [vmem:[%s3 + $0x100] sm:$0xff]
      %v1236 = vld [vmem:[%s3 + $0x108] sm:$0xff]
      %v1237 = vld [vmem:[%s3 + $0x110] sm:$0xff]
      %v1238 = vld [vmem:[%s3 + $0x118] sm:$0xff]
      %v1239 = vld [vmem:[%s3 + $0x120] sm:$0xff]
      %v1240 = vld [vmem:[%s3 + $0x128] sm:$0xff]
      %v1241 = vld [vmem:[%s3 + $0x130] sm:$0xff]
      %v1242 = vld [vmem:[%s3 + $0x138] sm:$0xff]
      %v1243 = vld [vmem:[%s3 + $0x140] sm:$0xff]
      %v1244 = vld [vmem:[%s3 + $0x148] sm:$0xff]
      %v1245 = vld [vmem:[%s3 + $0x150] sm:$0xff]
      %v1246 = vld [vmem:[%s3 + $0x158] sm:$0xff]
      %v1247 = vld [vmem:[%s3 + $0x160] sm:$0xff]
      %v1248 = vld [vmem:[%s3 + $0x168] sm:$0xff]
      %v1249 = vld [vmem:[%s3 + $0x170] sm:$0xff]
      %v1250 = vld [vmem:[%s3 + $0x178] sm:$0xff]
      %v1251 = vld [vmem:[%s3 + $0x180] sm:$0xff]
      %v1252 = vld [vmem:[%s3 + $0x188] sm:$0xff]
      %v1253 = vld [vmem:[%s3 + $0x190] sm:$0xff]
      %v1254 = vld [vmem:[%s3 + $0x198] sm:$0xff]
      %v1255 = vld [vmem:[%s3 + $0x1a0] sm:$0xff]
      %v1256 = vld [vmem:[%s3 + $0x1a8] sm:$0xff]
      %v1257 = vld [vmem:[%s3 + $0x1b0] sm:$0xff]
      %v1258 = vld [vmem:[%s3 + $0x1b8] sm:$0xff]
      %v1259 = vld [vmem:[%s3 + $0x1c0] sm:$0xff]
      %v1260 = vld [vmem:[%s3 + $0x1c8] sm:$0xff]
      %v1261 = vld [vmem:[%s3 + $0x1d0] sm:$0xff]
      %v1262 = vld [vmem:[%s3 + $0x1d8] sm:$0xff]
      %v1263 = vld [vmem:[%s3 + $0x1e0] sm:$0xff]
      %v1264 = vld [vmem:[%s3 + $0x1e8] sm:$0xff]
      %v1265 = vld [vmem:[%s3 + $0x1f0] sm:$0xff]
      %v1266 = vld [vmem:[%s3 + $0x1f8] sm:$0xff]
      %v1267 = vld [vmem:[%s3 + $0x200] sm:$0xff]
      %v1268 = vld [vmem:[%s3 + $0x208] sm:$0xff]
      %v1269 = vld [vmem:[%s3 + $0x210] sm:$0xff]
      %v1270 = vld [vmem:[%s3 + $0x218] sm:$0xff]
      %v1271 = vld [vmem:[%s3 + $0x220] sm:$0xff]
      %v1272 = vld [vmem:[%s3 + $0x228] sm:$0xff]
      %v1273 = vld [vmem:[%s3 + $0x230] sm:$0xff]
      %v1274 = vld [vmem:[%s3 + $0x238] sm:$0xff]
      %v1275 = vld [vmem:[%s3 + $0x240] sm:$0xff]
      %v1276 = vld [vmem:[%s3 + $0x248] sm:$0xff]
      %v1277 = vld [vmem:[%s3 + $0x250] sm:$0xff]
      %v1278 = vld [vmem:[%s3 + $0x258] sm:$0xff]
      %v1279 = vld [vmem:[%s3 + $0x260] sm:$0xff]
      %v1280 = vld [vmem:[%s3 + $0x268] sm:$0xff]
      %v1281 = vld [vmem:[%s3 + $0x270] sm:$0xff]
      %v1282 = vld [vmem:[%s3 + $0x278] sm:$0xff]
      %v1283 = vld [vmem:[%s3 + $0x280] sm:$0xff]
      %v1284 = vld [vmem:[%s3 + $0x288] sm:$0xff]
      %v1285 = vld [vmem:[%s3 + $0x290] sm:$0xff]
      %v1286 = vld [vmem:[%s3 + $0x298] sm:$0xff]
      %v1287 = vld [vmem:[%s3 + $0x2a0] sm:$0xff]
      %v1288 = vld [vmem:[%s3 + $0x2a8] sm:$0xff]
      %v1289 = vld [vmem:[%s3 + $0x2b0] sm:$0xff]
      %v1290 = vld [vmem:[%s3 + $0x2b8] sm:$0xff]
      %v1291 = vld [vmem:[%s3 + $0x2c0] sm:$0xff]
      %v1292 = vld [vmem:[%s3 + $0x2c8] sm:$0xff]
      %v1293 = vld [vmem:[%s3 + $0x2d0] sm:$0xff]
      %v1294 = vld [vmem:[%s3 + $0x2d8] sm:$0xff]
      %v1295 = vld [vmem:[%s3 + $0x2e0] sm:$0xff]
      %v1296 = vld [vmem:[%s3 + $0x2e8] sm:$0xff]
      %v1297 = vld [vmem:[%s3 + $0x2f0] sm:$0xff]
      %v1298 = vld [vmem:[%s3 + $0x2f8] sm:$0xff]
      %v1299 = vld [vmem:[%s3 + $0x300] sm:$0xff]
      %v1300 = vld [vmem:[%s3 + $0x308] sm:$0xff]
      %v1301 = vld [vmem:[%s3 + $0x310] sm:$0xff]
      %v1302 = vld [vmem:[%s3 + $0x318] sm:$0xff]
      %v1303 = vld [vmem:[%s3 + $0x320] sm:$0xff]
      %v1304 = vld [vmem:[%s3 + $0x328] sm:$0xff]
      %v1305 = vld [vmem:[%s3 + $0x330] sm:$0xff]
      %v1306 = vld [vmem:[%s3 + $0x338] sm:$0xff]
      %v1307 = vld [vmem:[%s3 + $0x340] sm:$0xff]
      %v1308 = vld [vmem:[%s3 + $0x348] sm:$0xff]
      %v1309 = vld [vmem:[%s3 + $0x350] sm:$0xff]
      %v1310 = vld [vmem:[%s3 + $0x358] sm:$0xff]
      %v1311 = vld [vmem:[%s3 + $0x360] sm:$0xff]
      %v1312 = vld [vmem:[%s3 + $0x368] sm:$0xff]
      %v1313 = vld [vmem:[%s3 + $0x370] sm:$0xff]
      %v1314 = vld [vmem:[%s3 + $0x378] sm:$0xff]
      %v1315 = vld [vmem:[%s3 + $0x380] sm:$0xff]
      %v1316 = vld [vmem:[%s3 + $0x388] sm:$0xff]
      %v1317 = vld [vmem:[%s3 + $0x390] sm:$0xff]
      %v1318 = vld [vmem:[%s3 + $0x398] sm:$0xff]
      %v1319 = vld [vmem:[%s3 + $0x3a0] sm:$0xff]
      %v1320 = vld [vmem:[%s3 + $0x3a8] sm:$0xff]
      %v1321 = vld [vmem:[%s3 + $0x3b0] sm:$0xff]
      %v1322 = vld [vmem:[%s3 + $0x3b8] sm:$0xff]
      %v1323 = vld [vmem:[%s3 + $0x3c0] sm:$0xff]
      %v1324 = vld [vmem:[%s3 + $0x3c8] sm:$0xff]
      %v1325 = vld [vmem:[%s3 + $0x3d0] sm:$0xff]
      %v1326 = vld [vmem:[%s3 + $0x3d8] sm:$0xff]
      %v1327 = vld [vmem:[%s3 + $0x3e0] sm:$0xff]
      %v1328 = vld [vmem:[%s3 + $0x3e8] sm:$0xff]
      %v1329 = vld [vmem:[%s3 + $0x3f0] sm:$0xff]
      %v1330 = vld [vmem:[%s3 + $0x3f8] sm:$0xff]
      %v1331 = vld [vmem:[%s389] sm:$0xff]
      %v1332 = vld [vmem:[%s389 + $0x8] sm:$0xff]
      %v1335 = vcombine.high %v1331, %v1331
      %v1337 = vunpack.c.l.s4 1983009808
      %v1338 = vunpack.c.0.s8 %v1337
      %v1339 = vlaneseq
      %v1340 = vshrl.u32 %v1339, 7
      %v1341 = vsub.s32 %v1338, %v1340
      %v1342 = vrot.slane %v1331, %v1341
      %v1344 = vunpack.c.l.s4 1983009808
      %v1345 = vunpack.c.0.s8 %v1344
      %v1346 = vlaneseq
      %v1347 = vshrl.u32 %v1346, 7
      %v1348 = vsub.s32 %v1345, %v1347
      %v1349 = vrot.slane %v1335, %v1348
      %v1350 = vcombine.high %v1342, %v1342
      %v1351 = vcombine.high %v1349, %v1349
      %v1352 = vcombine.high %v1332, %v1332
      %v1354 = vunpack.c.l.s4 1983009808
      %v1355 = vunpack.c.0.s8 %v1354
      %v1356 = vlaneseq
      %v1357 = vshrl.u32 %v1356, 7
      %v1358 = vsub.s32 %v1355, %v1357
      %v1359 = vrot.slane %v1332, %v1358
      %v1361 = vunpack.c.l.s4 1983009808
      %v1362 = vunpack.c.0.s8 %v1361
      %v1363 = vlaneseq
      %v1364 = vshrl.u32 %v1363, 7
      %v1365 = vsub.s32 %v1362, %v1364
      %v1366 = vrot.slane %v1352, %v1365
      %v1367 = vcombine.high %v1359, %v1359
      %v1368 = vcombine.high %v1366, %v1366
      %v1377 = vpack.c.bf16 %v1342, %v1342
      %v1378 = vpack.c.bf16 %v1350, %v1350
      %v1379 = vpack.c.bf16 %v1349, %v1349
      %v1380 = vpack.c.bf16 %v1351, %v1351
      %v1381 = vpack.c.bf16 %v1359, %v1359
      %v1382 = vpack.c.bf16 %v1367, %v1367
      %v1383 = vpack.c.bf16 %v1366, %v1366
      %v1384 = vpack.c.bf16 %v1368, %v1368
      %v1385 = vld [vmem:[%s6] sm:$0x3]
      %1387 = vset.pattern.permute.xlu0 0
      %1388 = vperm.xlu0 %1387, %v1385
      %v1389 = vpop.permute.xlu0 %1388
      %v1519 = vunpack.c.l.b16 %v1203
      %v1520 = vunpack.c.h.b16 %v1203
      %v1521 = vunpack.c.l.b16 %v1204
      %v1522 = vunpack.c.h.b16 %v1204
      %v1523 = vunpack.c.l.b16 %v1205
      %v1524 = vunpack.c.h.b16 %v1205
      %v1525 = vunpack.c.l.b16 %v1206
      %v1526 = vunpack.c.h.b16 %v1206
      %v1527 = vunpack.c.l.b16 %v1207
      %v1528 = vunpack.c.h.b16 %v1207
      %v1529 = vunpack.c.l.b16 %v1208
      %v1530 = vunpack.c.h.b16 %v1208
      %v1531 = vunpack.c.l.b16 %v1209
      %v1532 = vunpack.c.h.b16 %v1209
      %v1533 = vunpack.c.l.b16 %v1210
      %v1534 = vunpack.c.h.b16 %v1210
      %v1535 = vunpack.c.l.b16 %v1211
      %v1536 = vunpack.c.h.b16 %v1211
      %v1537 = vunpack.c.l.b16 %v1212
      %v1538 = vunpack.c.h.b16 %v1212
      %v1539 = vunpack.c.l.b16 %v1213
      %v1540 = vunpack.c.h.b16 %v1213
      %v1541 = vunpack.c.l.b16 %v1214
      %v1542 = vunpack.c.h.b16 %v1214
      %v1543 = vunpack.c.l.b16 %v1215
      %v1544 = vunpack.c.h.b16 %v1215
      %v1545 = vunpack.c.l.b16 %v1216
      %v1546 = vunpack.c.h.b16 %v1216
      %v1547 = vunpack.c.l.b16 %v1217
      %v1548 = vunpack.c.h.b16 %v1217
      %v1549 = vunpack.c.l.b16 %v1218
      %v1550 = vunpack.c.h.b16 %v1218
      %v1551 = vunpack.c.l.b16 %v1219
      %v1552 = vunpack.c.h.b16 %v1219
      %v1553 = vunpack.c.l.b16 %v1220
      %v1554 = vunpack.c.h.b16 %v1220
      %v1555 = vunpack.c.l.b16 %v1221
      %v1556 = vunpack.c.h.b16 %v1221
      %v1557 = vunpack.c.l.b16 %v1222
      %v1558 = vunpack.c.h.b16 %v1222
      %v1559 = vunpack.c.l.b16 %v1223
      %v1560 = vunpack.c.h.b16 %v1223
      %v1561 = vunpack.c.l.b16 %v1224
      %v1562 = vunpack.c.h.b16 %v1224
      %v1563 = vunpack.c.l.b16 %v1225
      %v1564 = vunpack.c.h.b16 %v1225
      %v1565 = vunpack.c.l.b16 %v1226
      %v1566 = vunpack.c.h.b16 %v1226
      %v1567 = vunpack.c.l.b16 %v1227
      %v1568 = vunpack.c.h.b16 %v1227
      %v1569 = vunpack.c.l.b16 %v1228
      %v1570 = vunpack.c.h.b16 %v1228
      %v1571 = vunpack.c.l.b16 %v1229
      %v1572 = vunpack.c.h.b16 %v1229
      %v1573 = vunpack.c.l.b16 %v1230
      %v1574 = vunpack.c.h.b16 %v1230
      %v1575 = vunpack.c.l.b16 %v1231
      %v1576 = vunpack.c.h.b16 %v1231
      %v1577 = vunpack.c.l.b16 %v1232
      %v1578 = vunpack.c.h.b16 %v1232
      %v1579 = vunpack.c.l.b16 %v1233
      %v1580 = vunpack.c.h.b16 %v1233
      %v1581 = vunpack.c.l.b16 %v1234
      %v1582 = vunpack.c.h.b16 %v1234
      %v1583 = vunpack.c.l.b16 %v1235
      %v1584 = vunpack.c.h.b16 %v1235
      %v1585 = vunpack.c.l.b16 %v1236
      %v1586 = vunpack.c.h.b16 %v1236
      %v1587 = vunpack.c.l.b16 %v1237
      %v1588 = vunpack.c.h.b16 %v1237
      %v1589 = vunpack.c.l.b16 %v1238
      %v1590 = vunpack.c.h.b16 %v1238
      %v1591 = vunpack.c.l.b16 %v1239
      %v1592 = vunpack.c.h.b16 %v1239
      %v1593 = vunpack.c.l.b16 %v1240
      %v1594 = vunpack.c.h.b16 %v1240
      %v1595 = vunpack.c.l.b16 %v1241
      %v1596 = vunpack.c.h.b16 %v1241
      %v1597 = vunpack.c.l.b16 %v1242
      %v1598 = vunpack.c.h.b16 %v1242
      %v1599 = vunpack.c.l.b16 %v1243
      %v1600 = vunpack.c.h.b16 %v1243
      %v1601 = vunpack.c.l.b16 %v1244
      %v1602 = vunpack.c.h.b16 %v1244
      %v1603 = vunpack.c.l.b16 %v1245
      %v1604 = vunpack.c.h.b16 %v1245
      %v1605 = vunpack.c.l.b16 %v1246
      %v1606 = vunpack.c.h.b16 %v1246
      %v1607 = vunpack.c.l.b16 %v1247
      %v1608 = vunpack.c.h.b16 %v1247
      %v1609 = vunpack.c.l.b16 %v1248
      %v1610 = vunpack.c.h.b16 %v1248
      %v1611 = vunpack.c.l.b16 %v1249
      %v1612 = vunpack.c.h.b16 %v1249
      %v1613 = vunpack.c.l.b16 %v1250
      %v1614 = vunpack.c.h.b16 %v1250
      %v1615 = vunpack.c.l.b16 %v1251
      %v1616 = vunpack.c.h.b16 %v1251
      %v1617 = vunpack.c.l.b16 %v1252
      %v1618 = vunpack.c.h.b16 %v1252
      %v1619 = vunpack.c.l.b16 %v1253
      %v1620 = vunpack.c.h.b16 %v1253
      %v1621 = vunpack.c.l.b16 %v1254
      %v1622 = vunpack.c.h.b16 %v1254
      %v1623 = vunpack.c.l.b16 %v1255
      %v1624 = vunpack.c.h.b16 %v1255
      %v1625 = vunpack.c.l.b16 %v1256
      %v1626 = vunpack.c.h.b16 %v1256
      %v1627 = vunpack.c.l.b16 %v1257
      %v1628 = vunpack.c.h.b16 %v1257
      %v1629 = vunpack.c.l.b16 %v1258
      %v1630 = vunpack.c.h.b16 %v1258
      %v1631 = vunpack.c.l.b16 %v1259
      %v1632 = vunpack.c.h.b16 %v1259
      %v1633 = vunpack.c.l.b16 %v1260
      %v1634 = vunpack.c.h.b16 %v1260
      %v1635 = vunpack.c.l.b16 %v1261
      %v1636 = vunpack.c.h.b16 %v1261
      %v1637 = vunpack.c.l.b16 %v1262
      %v1638 = vunpack.c.h.b16 %v1262
      %v1639 = vunpack.c.l.b16 %v1263
      %v1640 = vunpack.c.h.b16 %v1263
      %v1641 = vunpack.c.l.b16 %v1264
      %v1642 = vunpack.c.h.b16 %v1264
      %v1643 = vunpack.c.l.b16 %v1265
      %v1644 = vunpack.c.h.b16 %v1265
      %v1645 = vunpack.c.l.b16 %v1266
      %v1646 = vunpack.c.h.b16 %v1266
      %v1647 = vunpack.c.l.b16 %v1267
      %v1648 = vunpack.c.h.b16 %v1267
      %v1649 = vunpack.c.l.b16 %v1268
      %v1650 = vunpack.c.h.b16 %v1268
      %v1651 = vunpack.c.l.b16 %v1269
      %v1652 = vunpack.c.h.b16 %v1269
      %v1653 = vunpack.c.l.b16 %v1270
      %v1654 = vunpack.c.h.b16 %v1270
      %v1655 = vunpack.c.l.b16 %v1271
      %v1656 = vunpack.c.h.b16 %v1271
      %v1657 = vunpack.c.l.b16 %v1272
      %v1658 = vunpack.c.h.b16 %v1272
      %v1659 = vunpack.c.l.b16 %v1273
      %v1660 = vunpack.c.h.b16 %v1273
      %v1661 = vunpack.c.l.b16 %v1274
      %v1662 = vunpack.c.h.b16 %v1274
      %v1663 = vunpack.c.l.b16 %v1275
      %v1664 = vunpack.c.h.b16 %v1275
      %v1665 = vunpack.c.l.b16 %v1276
      %v1666 = vunpack.c.h.b16 %v1276
      %v1667 = vunpack.c.l.b16 %v1277
      %v1668 = vunpack.c.h.b16 %v1277
      %v1669 = vunpack.c.l.b16 %v1278
      %v1670 = vunpack.c.h.b16 %v1278
      %v1671 = vunpack.c.l.b16 %v1279
      %v1672 = vunpack.c.h.b16 %v1279
      %v1673 = vunpack.c.l.b16 %v1280
      %v1674 = vunpack.c.h.b16 %v1280
      %v1675 = vunpack.c.l.b16 %v1281
      %v1676 = vunpack.c.h.b16 %v1281
      %v1677 = vunpack.c.l.b16 %v1282
      %v1678 = vunpack.c.h.b16 %v1282
      %v1679 = vunpack.c.l.b16 %v1283
      %v1680 = vunpack.c.h.b16 %v1283
      %v1681 = vunpack.c.l.b16 %v1284
      %v1682 = vunpack.c.h.b16 %v1284
      %v1683 = vunpack.c.l.b16 %v1285
      %v1684 = vunpack.c.h.b16 %v1285
      %v1685 = vunpack.c.l.b16 %v1286
      %v1686 = vunpack.c.h.b16 %v1286
      %v1687 = vunpack.c.l.b16 %v1287
      %v1688 = vunpack.c.h.b16 %v1287
      %v1689 = vunpack.c.l.b16 %v1288
      %v1690 = vunpack.c.h.b16 %v1288
      %v1691 = vunpack.c.l.b16 %v1289
      %v1692 = vunpack.c.h.b16 %v1289
      %v1693 = vunpack.c.l.b16 %v1290
      %v1694 = vunpack.c.h.b16 %v1290
      %v1695 = vunpack.c.l.b16 %v1291
      %v1696 = vunpack.c.h.b16 %v1291
      %v1697 = vunpack.c.l.b16 %v1292
      %v1698 = vunpack.c.h.b16 %v1292
      %v1699 = vunpack.c.l.b16 %v1293
      %v1700 = vunpack.c.h.b16 %v1293
      %v1701 = vunpack.c.l.b16 %v1294
      %v1702 = vunpack.c.h.b16 %v1294
      %v1703 = vunpack.c.l.b16 %v1295
      %v1704 = vunpack.c.h.b16 %v1295
      %v1705 = vunpack.c.l.b16 %v1296
      %v1706 = vunpack.c.h.b16 %v1296
      %v1707 = vunpack.c.l.b16 %v1297
      %v1708 = vunpack.c.h.b16 %v1297
      %v1709 = vunpack.c.l.b16 %v1298
      %v1710 = vunpack.c.h.b16 %v1298
      %v1711 = vunpack.c.l.b16 %v1299
      %v1712 = vunpack.c.h.b16 %v1299
      %v1713 = vunpack.c.l.b16 %v1300
      %v1714 = vunpack.c.h.b16 %v1300
      %v1715 = vunpack.c.l.b16 %v1301
      %v1716 = vunpack.c.h.b16 %v1301
      %v1717 = vunpack.c.l.b16 %v1302
      %v1718 = vunpack.c.h.b16 %v1302
      %v1719 = vunpack.c.l.b16 %v1303
      %v1720 = vunpack.c.h.b16 %v1303
      %v1721 = vunpack.c.l.b16 %v1304
      %v1722 = vunpack.c.h.b16 %v1304
      %v1723 = vunpack.c.l.b16 %v1305
      %v1724 = vunpack.c.h.b16 %v1305
      %v1725 = vunpack.c.l.b16 %v1306
      %v1726 = vunpack.c.h.b16 %v1306
      %v1727 = vunpack.c.l.b16 %v1307
      %v1728 = vunpack.c.h.b16 %v1307
      %v1729 = vunpack.c.l.b16 %v1308
      %v1730 = vunpack.c.h.b16 %v1308
      %v1731 = vunpack.c.l.b16 %v1309
      %v1732 = vunpack.c.h.b16 %v1309
      %v1733 = vunpack.c.l.b16 %v1310
      %v1734 = vunpack.c.h.b16 %v1310
      %v1735 = vunpack.c.l.b16 %v1311
      %v1736 = vunpack.c.h.b16 %v1311
      %v1737 = vunpack.c.l.b16 %v1312
      %v1738 = vunpack.c.h.b16 %v1312
      %v1739 = vunpack.c.l.b16 %v1313
      %v1740 = vunpack.c.h.b16 %v1313
      %v1741 = vunpack.c.l.b16 %v1314
      %v1742 = vunpack.c.h.b16 %v1314
      %v1743 = vunpack.c.l.b16 %v1315
      %v1744 = vunpack.c.h.b16 %v1315
      %v1745 = vunpack.c.l.b16 %v1316
      %v1746 = vunpack.c.h.b16 %v1316
      %v1747 = vunpack.c.l.b16 %v1317
      %v1748 = vunpack.c.h.b16 %v1317
      %v1749 = vunpack.c.l.b16 %v1318
      %v1750 = vunpack.c.h.b16 %v1318
      %v1751 = vunpack.c.l.b16 %v1319
      %v1752 = vunpack.c.h.b16 %v1319
      %v1753 = vunpack.c.l.b16 %v1320
      %v1754 = vunpack.c.h.b16 %v1320
      %v1755 = vunpack.c.l.b16 %v1321
      %v1756 = vunpack.c.h.b16 %v1321
      %v1757 = vunpack.c.l.b16 %v1322
      %v1758 = vunpack.c.h.b16 %v1322
      %v1759 = vunpack.c.l.b16 %v1323
      %v1760 = vunpack.c.h.b16 %v1323
      %v1761 = vunpack.c.l.b16 %v1324
      %v1762 = vunpack.c.h.b16 %v1324
      %v1763 = vunpack.c.l.b16 %v1325
      %v1764 = vunpack.c.h.b16 %v1325
      %v1765 = vunpack.c.l.b16 %v1326
      %v1766 = vunpack.c.h.b16 %v1326
      %v1767 = vunpack.c.l.b16 %v1327
      %v1768 = vunpack.c.h.b16 %v1327
      %v1769 = vunpack.c.l.b16 %v1328
      %v1770 = vunpack.c.h.b16 %v1328
      %v1771 = vunpack.c.l.b16 %v1329
      %v1772 = vunpack.c.h.b16 %v1329
      %v1773 = vunpack.c.l.b16 %v1330
      %v1774 = vunpack.c.h.b16 %v1330
      %v1775 = vpack.c.b16 %v1527, %v1519
      %v1776 = vpack.c.b16 %v1528, %v1520
      %v1777 = vpack.c.b16 %v1529, %v1521
      %v1778 = vpack.c.b16 %v1530, %v1522
      %v1779 = vpack.c.b16 %v1531, %v1523
      %v1780 = vpack.c.b16 %v1532, %v1524
      %v1781 = vpack.c.b16 %v1533, %v1525
      %v1782 = vpack.c.b16 %v1534, %v1526
      %v1783 = vpack.c.b16 %v1543, %v1535
      %v1784 = vpack.c.b16 %v1544, %v1536
      %v1785 = vpack.c.b16 %v1545, %v1537
      %v1786 = vpack.c.b16 %v1546, %v1538
      %v1787 = vpack.c.b16 %v1547, %v1539
      %v1788 = vpack.c.b16 %v1548, %v1540
      %v1789 = vpack.c.b16 %v1549, %v1541
      %v1790 = vpack.c.b16 %v1550, %v1542
      %v1791 = vpack.c.b16 %v1559, %v1551
      %v1792 = vpack.c.b16 %v1560, %v1552
      %v1793 = vpack.c.b16 %v1561, %v1553
      %v1794 = vpack.c.b16 %v1562, %v1554
      %v1795 = vpack.c.b16 %v1563, %v1555
      %v1796 = vpack.c.b16 %v1564, %v1556
      %v1797 = vpack.c.b16 %v1565, %v1557
      %v1798 = vpack.c.b16 %v1566, %v1558
      %v1799 = vpack.c.b16 %v1575, %v1567
      %v1800 = vpack.c.b16 %v1576, %v1568
      %v1801 = vpack.c.b16 %v1577, %v1569
      %v1802 = vpack.c.b16 %v1578, %v1570
      %v1803 = vpack.c.b16 %v1579, %v1571
      %v1804 = vpack.c.b16 %v1580, %v1572
      %v1805 = vpack.c.b16 %v1581, %v1573
      %v1806 = vpack.c.b16 %v1582, %v1574
      %v1807 = vpack.c.b16 %v1591, %v1583
      %v1808 = vpack.c.b16 %v1592, %v1584
      %v1809 = vpack.c.b16 %v1593, %v1585
      %v1810 = vpack.c.b16 %v1594, %v1586
      %v1811 = vpack.c.b16 %v1595, %v1587
      %v1812 = vpack.c.b16 %v1596, %v1588
      %v1813 = vpack.c.b16 %v1597, %v1589
      %v1814 = vpack.c.b16 %v1598, %v1590
      %v1815 = vpack.c.b16 %v1607, %v1599
      %v1816 = vpack.c.b16 %v1608, %v1600
      %v1817 = vpack.c.b16 %v1609, %v1601
      %v1818 = vpack.c.b16 %v1610, %v1602
      %v1819 = vpack.c.b16 %v1611, %v1603
      %v1820 = vpack.c.b16 %v1612, %v1604
      %v1821 = vpack.c.b16 %v1613, %v1605
      %v1822 = vpack.c.b16 %v1614, %v1606
      %v1823 = vpack.c.b16 %v1623, %v1615
      %v1824 = vpack.c.b16 %v1624, %v1616
      %v1825 = vpack.c.b16 %v1625, %v1617
      %v1826 = vpack.c.b16 %v1626, %v1618
      %v1827 = vpack.c.b16 %v1627, %v1619
      %v1828 = vpack.c.b16 %v1628, %v1620
      %v1829 = vpack.c.b16 %v1629, %v1621
      %v1830 = vpack.c.b16 %v1630, %v1622
      %v1831 = vpack.c.b16 %v1639, %v1631
      %v1832 = vpack.c.b16 %v1640, %v1632
      %v1833 = vpack.c.b16 %v1641, %v1633
      %v1834 = vpack.c.b16 %v1642, %v1634
      %v1835 = vpack.c.b16 %v1643, %v1635
      %v1836 = vpack.c.b16 %v1644, %v1636
      %v1837 = vpack.c.b16 %v1645, %v1637
      %v1838 = vpack.c.b16 %v1646, %v1638
      %v1839 = vpack.c.b16 %v1655, %v1647
      %v1840 = vpack.c.b16 %v1656, %v1648
      %v1841 = vpack.c.b16 %v1657, %v1649
      %v1842 = vpack.c.b16 %v1658, %v1650
      %v1843 = vpack.c.b16 %v1659, %v1651
      %v1844 = vpack.c.b16 %v1660, %v1652
      %v1845 = vpack.c.b16 %v1661, %v1653
      %v1846 = vpack.c.b16 %v1662, %v1654
      %v1847 = vpack.c.b16 %v1671, %v1663
      %v1848 = vpack.c.b16 %v1672, %v1664
      %v1849 = vpack.c.b16 %v1673, %v1665
      %v1850 = vpack.c.b16 %v1674, %v1666
      %v1851 = vpack.c.b16 %v1675, %v1667
      %v1852 = vpack.c.b16 %v1676, %v1668
      %v1853 = vpack.c.b16 %v1677, %v1669
      %v1854 = vpack.c.b16 %v1678, %v1670
      %v1855 = vpack.c.b16 %v1687, %v1679
      %v1856 = vpack.c.b16 %v1688, %v1680
      %v1857 = vpack.c.b16 %v1689, %v1681
      %v1858 = vpack.c.b16 %v1690, %v1682
      %v1859 = vpack.c.b16 %v1691, %v1683
      %v1860 = vpack.c.b16 %v1692, %v1684
      %v1861 = vpack.c.b16 %v1693, %v1685
      %v1862 = vpack.c.b16 %v1694, %v1686
      %v1863 = vpack.c.b16 %v1703, %v1695
      %v1864 = vpack.c.b16 %v1704, %v1696
      %v1865 = vpack.c.b16 %v1705, %v1697
      %v1866 = vpack.c.b16 %v1706, %v1698
      %v1867 = vpack.c.b16 %v1707, %v1699
      %v1868 = vpack.c.b16 %v1708, %v1700
      %v1869 = vpack.c.b16 %v1709, %v1701
      %v1870 = vpack.c.b16 %v1710, %v1702
      %v1871 = vpack.c.b16 %v1719, %v1711
      %v1872 = vpack.c.b16 %v1720, %v1712
      %v1873 = vpack.c.b16 %v1721, %v1713
      %v1874 = vpack.c.b16 %v1722, %v1714
      %v1875 = vpack.c.b16 %v1723, %v1715
      %v1876 = vpack.c.b16 %v1724, %v1716
      %v1877 = vpack.c.b16 %v1725, %v1717
      %v1878 = vpack.c.b16 %v1726, %v1718
      %v1879 = vpack.c.b16 %v1735, %v1727
      %v1880 = vpack.c.b16 %v1736, %v1728
      %v1881 = vpack.c.b16 %v1737, %v1729
      %v1882 = vpack.c.b16 %v1738, %v1730
      %v1883 = vpack.c.b16 %v1739, %v1731
      %v1884 = vpack.c.b16 %v1740, %v1732
      %v1885 = vpack.c.b16 %v1741, %v1733
      %v1886 = vpack.c.b16 %v1742, %v1734
      %v1887 = vpack.c.b16 %v1751, %v1743
      %v1888 = vpack.c.b16 %v1752, %v1744
      %v1889 = vpack.c.b16 %v1753, %v1745
      %v1890 = vpack.c.b16 %v1754, %v1746
      %v1891 = vpack.c.b16 %v1755, %v1747
      %v1892 = vpack.c.b16 %v1756, %v1748
      %v1893 = vpack.c.b16 %v1757, %v1749
      %v1894 = vpack.c.b16 %v1758, %v1750
      %v1895 = vpack.c.b16 %v1767, %v1759
      %v1896 = vpack.c.b16 %v1768, %v1760
      %v1897 = vpack.c.b16 %v1769, %v1761
      %v1898 = vpack.c.b16 %v1770, %v1762
      %v1899 = vpack.c.b16 %v1771, %v1763
      %v1900 = vpack.c.b16 %v1772, %v1764
      %v1901 = vpack.c.b16 %v1773, %v1765
      %v1902 = vpack.c.b16 %v1774, %v1766
      %2031 = vmatprep.subr.bf16.mxu0 %v1776
      %2032 = vmatpush1.bf16.msra.mxu0 %v1775
      %2033 = vmatprep.subr.bf16.mxu0 %v1784
      %2034 = vmatpush1.bf16.msra.mxu0 %v1783
      %2035 = vmatprep.subr.bf16.mxu0 %v1792
      %2036 = vmatpush1.bf16.msra.mxu0 %v1791
      %2037 = vmatprep.subr.bf16.mxu0 %v1800
      %2038 = vmatpush1.bf16.msra.mxu0 %v1799
      %2039 = vmatprep.subr.bf16.mxu0 %v1808
      %2040 = vmatpush1.bf16.msra.mxu0 %v1807
      %2041 = vmatprep.subr.bf16.mxu0 %v1816
      %2042 = vmatpush1.bf16.msra.mxu0 %v1815
      %2043 = vmatprep.subr.bf16.mxu0 %v1824
      %2044 = vmatpush1.bf16.msra.mxu0 %v1823
      %2045 = vmatprep.subr.bf16.mxu0 %v1832
      %2046 = vmatpush1.bf16.msra.mxu0 %v1831
      %2047 = vmatprep.subr.bf16.mxu0 %v1840
      %2048 = vmatpush1.bf16.msra.mxu0 %v1839
      %2049 = vmatprep.subr.bf16.mxu0 %v1848
      %2050 = vmatpush1.bf16.msra.mxu0 %v1847
      %2051 = vmatprep.subr.bf16.mxu0 %v1856
      %2052 = vmatpush1.bf16.msra.mxu0 %v1855
      %2053 = vmatprep.subr.bf16.mxu0 %v1864
      %2054 = vmatpush1.bf16.msra.mxu0 %v1863
      %2055 = vmatprep.subr.bf16.mxu0 %v1872
      %2056 = vmatpush1.bf16.msra.mxu0 %v1871
      %2057 = vmatprep.subr.bf16.mxu0 %v1880
      %2058 = vmatpush1.bf16.msra.mxu0 %v1879
      %2059 = vmatprep.subr.bf16.mxu0 %v1888
      %2060 = vmatpush1.bf16.msra.mxu0 %v1887
      %2061 = vmatprep.subr.bf16.mxu0 %v1896
      %2062 = vmatpush1.bf16.msra.mxu0 %v1895
      %2063 = vmatprep.mubr.bf16.mxu0 %v1202
      %2064 = vmatmul.mubr.bf16.gmra.mrb[0].mxu0 %v1201
      %v2065 = vpop.f32.mrb[0].mxu0
      %v2066 = vadd.f32 %v1389, %v2065
      %v2067 = vpop.f32.mrb[0].mxu0
      %v2068 = vadd.f32 %v1389, %v2067
      %v2069 = vpop.f32.mrb[0].mxu0
      %v2070 = vpop.f32.mrb[0].mxu0
      %2071 = vdwg.mxu0
      %2072 = vmatprep.subr.bf16.mxu0 %v1778
      %2073 = vmatpush1.bf16.msra.mxu0 %v1777
      %2074 = vmatprep.subr.bf16.mxu0 %v1786
      %2075 = vmatpush1.bf16.msra.mxu0 %v1785
      %2076 = vmatprep.subr.bf16.mxu0 %v1794
      %2077 = vmatpush1.bf16.msra.mxu0 %v1793
      %2078 = vmatprep.subr.bf16.mxu0 %v1802
      %2079 = vmatpush1.bf16.msra.mxu0 %v1801
      %2080 = vmatprep.subr.bf16.mxu0 %v1810
      %2081 = vmatpush1.bf16.msra.mxu0 %v1809
      %2082 = vmatprep.subr.bf16.mxu0 %v1818
      %2083 = vmatpush1.bf16.msra.mxu0 %v1817
      %2084 = vmatprep.subr.bf16.mxu0 %v1826
      %2085 = vmatpush1.bf16.msra.mxu0 %v1825
      %2086 = vmatprep.subr.bf16.mxu0 %v1834
      %2087 = vmatpush1.bf16.msra.mxu0 %v1833
      %2088 = vmatprep.subr.bf16.mxu0 %v1842
      %2089 = vmatpush1.bf16.msra.mxu0 %v1841
      %2090 = vmatprep.subr.bf16.mxu0 %v1850
      %2091 = vmatpush1.bf16.msra.mxu0 %v1849
      %2092 = vmatprep.subr.bf16.mxu0 %v1858
      %2093 = vmatpush1.bf16.msra.mxu0 %v1857
      %2094 = vmatprep.subr.bf16.mxu0 %v1866
      %2095 = vmatpush1.bf16.msra.mxu0 %v1865
      %2096 = vmatprep.subr.bf16.mxu0 %v1874
      %2097 = vmatpush1.bf16.msra.mxu0 %v1873
      %2098 = vmatprep.subr.bf16.mxu0 %v1882
      %2099 = vmatpush1.bf16.msra.mxu0 %v1881
      %2100 = vmatprep.subr.bf16.mxu0 %v1890
      %2101 = vmatpush1.bf16.msra.mxu0 %v1889
      %2102 = vmatprep.subr.bf16.mxu0 %v1898
      %2103 = vmatpush1.bf16.msra.mxu0 %v1897
      %2104 = vmatprep.mubr.bf16.mxu0 %v1202
      %2105 = vmatmul.mubr.bf16.gmra.mrb[0].mxu0 %v1201
      %v2106 = vpop.f32.mrb[0].mxu0
      %v2107 = vadd.f32 %v1389, %v2106
      %v2108 = vpop.f32.mrb[0].mxu0
      %v2109 = vadd.f32 %v1389, %v2108
      %v2110 = vpop.f32.mrb[0].mxu0
      %v2111 = vpop.f32.mrb[0].mxu0
      %2112 = vdwg.mxu0
      %2113 = vmatprep.subr.bf16.mxu0 %v1780
      %2114 = vmatpush1.bf16.msra.mxu0 %v1779
      %2115 = vmatprep.subr.bf16.mxu0 %v1788
      %2116 = vmatpush1.bf16.msra.mxu0 %v1787
      %2117 = vmatprep.subr.bf16.mxu0 %v1796
      %2118 = vmatpush1.bf16.msra.mxu0 %v1795
      %2119 = vmatprep.subr.bf16.mxu0 %v1804
      %2120 = vmatpush1.bf16.msra.mxu0 %v1803
      %2121 = vmatprep.subr.bf16.mxu0 %v1812
      %2122 = vmatpush1.bf16.msra.mxu0 %v1811
      %2123 = vmatprep.subr.bf16.mxu0 %v1820
      %2124 = vmatpush1.bf16.msra.mxu0 %v1819
      %2125 = vmatprep.subr.bf16.mxu0 %v1828
      %2126 = vmatpush1.bf16.msra.mxu0 %v1827
      %2127 = vmatprep.subr.bf16.mxu0 %v1836
      %2128 = vmatpush1.bf16.msra.mxu0 %v1835
      %2129 = vmatprep.subr.bf16.mxu0 %v1844
      %2130 = vmatpush1.bf16.msra.mxu0 %v1843
      %2131 = vmatprep.subr.bf16.mxu0 %v1852
      %2132 = vmatpush1.bf16.msra.mxu0 %v1851
      %2133 = vmatprep.subr.bf16.mxu0 %v1860
      %2134 = vmatpush1.bf16.msra.mxu0 %v1859
      %2135 = vmatprep.subr.bf16.mxu0 %v1868
      %2136 = vmatpush1.bf16.msra.mxu0 %v1867
      %2137 = vmatprep.subr.bf16.mxu0 %v1876
      %2138 = vmatpush1.bf16.msra.mxu0 %v1875
      %2139 = vmatprep.subr.bf16.mxu0 %v1884
      %2140 = vmatpush1.bf16.msra.mxu0 %v1883
      %2141 = vmatprep.subr.bf16.mxu0 %v1892
      %2142 = vmatpush1.bf16.msra.mxu0 %v1891
      %2143 = vmatprep.subr.bf16.mxu0 %v1900
      %2144 = vmatpush1.bf16.msra.mxu0 %v1899
      %2145 = vmatprep.mubr.bf16.mxu0 %v1202
      %2146 = vmatmul.mubr.bf16.gmra.mrb[0].mxu0 %v1201
      %v2147 = vpop.f32.mrb[0].mxu0
      %v2148 = vadd.f32 %v1389, %v2147
      %v2149 = vpop.f32.mrb[0].mxu0
      %v2150 = vadd.f32 %v1389, %v2149
      %v2151 = vpop.f32.mrb[0].mxu0
      %v2152 = vpop.f32.mrb[0].mxu0
      %2153 = vdwg.mxu0
      %2154 = vmatprep.subr.bf16.mxu0 %v1782
      %2155 = vmatpush1.bf16.msra.mxu0 %v1781
      %2156 = vmatprep.subr.bf16.mxu0 %v1790
      %2157 = vmatpush1.bf16.msra.mxu0 %v1789
      %2158 = vmatprep.subr.bf16.mxu0 %v1798
      %2159 = vmatpush1.bf16.msra.mxu0 %v1797
      %2160 = vmatprep.subr.bf16.mxu0 %v1806
      %2161 = vmatpush1.bf16.msra.mxu0 %v1805
      %2162 = vmatprep.subr.bf16.mxu0 %v1814
      %2163 = vmatpush1.bf16.msra.mxu0 %v1813
      %2164 = vmatprep.subr.bf16.mxu0 %v1822
      %2165 = vmatpush1.bf16.msra.mxu0 %v1821
      %2166 = vmatprep.subr.bf16.mxu0 %v1830
      %2167 = vmatpush1.bf16.msra.mxu0 %v1829
      %2168 = vmatprep.subr.bf16.mxu0 %v1838
      %2169 = vmatpush1.bf16.msra.mxu0 %v1837
      %2170 = vmatprep.subr.bf16.mxu0 %v1846
      %2171 = vmatpush1.bf16.msra.mxu0 %v1845
      %2172 = vmatprep.subr.bf16.mxu0 %v1854
      %2173 = vmatpush1.bf16.msra.mxu0 %v1853
      %2174 = vmatprep.subr.bf16.mxu0 %v1862
      %2175 = vmatpush1.bf16.msra.mxu0 %v1861
      %2176 = vmatprep.subr.bf16.mxu0 %v1870
      %2177 = vmatpush1.bf16.msra.mxu0 %v1869
      %2178 = vmatprep.subr.bf16.mxu0 %v1878
      %2179 = vmatpush1.bf16.msra.mxu0 %v1877
      %2180 = vmatprep.subr.bf16.mxu0 %v1886
      %2181 = vmatpush1.bf16.msra.mxu0 %v1885
      %2182 = vmatprep.subr.bf16.mxu0 %v1894
      %2183 = vmatpush1.bf16.msra.mxu0 %v1893
      %2184 = vmatprep.subr.bf16.mxu0 %v1902
      %2185 = vmatpush1.bf16.msra.mxu0 %v1901
      %2186 = vmatprep.mubr.bf16.mxu0 %v1202
      %2187 = vmatmul.mubr.bf16.gmra.mrb[0].mxu0 %v1201
      %v2188 = vpop.f32.mrb[0].mxu0
      %v2189 = vadd.f32 %v1389, %v2188
      %v2190 = vpop.f32.mrb[0].mxu0
      %v2191 = vadd.f32 %v1389, %v2190
      %v2192 = vpop.f32.mrb[0].mxu0
      %v2193 = vpop.f32.mrb[0].mxu0
      %2194 = vdwg.mxu0
      %v2195 = vld [vmem:[%s5] sm:$0x1]
      %vm2196 = vcmask 15360
      %v2198 = vsel %vm2196, %v2195, 0
      %vm2200 = vcmask 1040384
      %v2202 = vsel %vm2200, %v1377, 0
      %v2205 = vsel %vm2200, %v1378, 0
      %v2208 = vsel %vm2200, %v1379, 0
      %v2211 = vsel %vm2200, %v1380, 0
      %v2214 = vsel %vm2200, %v1381, 0
      %v2217 = vsel %vm2200, %v1382, 0
      %v2220 = vsel %vm2200, %v1383, 0
      %v2223 = vsel %vm2200, %v1384, 0
      %2225 = vmatprep.subr.bf16.mxu0 %v2205
      %2226 = vmatpush1.bf16.msra.mxu0 %v2202
      %2227 = vmatprep.subr.bf16.mxu0 0
      %2228 = vmatpush1.bf16.msra.mxu0 0
      %2229 = vmatprep.subr.bf16.mxu0 0
      %2230 = vmatpush1.bf16.msra.mxu0 0
      %2231 = vmatprep.subr.bf16.mxu0 0
      %2232 = vmatpush1.bf16.msra.mxu0 0
      %2233 = vmatprep.subr.bf16.mxu0 0
      %2234 = vmatpush1.bf16.msra.mxu0 0
      %2235 = vmatprep.subr.bf16.mxu0 0
      %2236 = vmatpush1.bf16.msra.mxu0 0
      %2237 = vmatprep.subr.bf16.mxu0 0
      %2238 = vmatpush1.bf16.msra.mxu0 0
      %2239 = vmatprep.subr.bf16.mxu0 0
      %2240 = vmatpush1.bf16.msra.mxu0 0
      %2241 = vmatprep.subr.bf16.mxu0 0
      %2242 = vmatpush1.bf16.msra.mxu0 0
      %2243 = vmatprep.subr.bf16.mxu0 0
      %2244 = vmatpush1.bf16.msra.mxu0 0
      %2245 = vmatprep.subr.bf16.mxu0 0
      %2246 = vmatpush1.bf16.msra.mxu0 0
      %2247 = vmatprep.subr.bf16.mxu0 0
      %2248 = vmatpush1.bf16.msra.mxu0 0
      %2249 = vmatprep.subr.bf16.mxu0 0
      %2250 = vmatpush1.bf16.msra.mxu0 0
      %2251 = vmatprep.subr.bf16.mxu0 0
      %2252 = vmatpush1.bf16.msra.mxu0 0
      %2253 = vmatprep.subr.bf16.mxu0 0
      %2254 = vmatpush1.bf16.msra.mxu0 0
      %2255 = vmatprep.subr.bf16.mxu0 0
      %2256 = vmatpush1.bf16.msra.mxu0 0
      %2257 = vmatprep.mubr.bf16.mxu0 0
      %2258 = vmatmul.mubr.bf16.gmra.mrb[0].mxu0 %v2198
      %v2259 = vpop.f32.mrb[0].mxu0
      %v2260 = vadd.f32 0.0, %v2259
      %v2261 = vpop.f32.mrb[0].mxu0
      %v2262 = vadd.f32 0.0, %v2261
      %v2263 = vpop.f32.mrb[0].mxu0
      %v2264 = vpop.f32.mrb[0].mxu0
      %2265 = vdwg.mxu0
      %2266 = vmatprep.subr.bf16.mxu0 %v2211
      %2267 = vmatpush1.bf16.msra.mxu0 %v2208
      %2268 = vmatprep.subr.bf16.mxu0 0
      %2269 = vmatpush1.bf16.msra.mxu0 0
      %2270 = vmatprep.subr.bf16.mxu0 0
      %2271 = vmatpush1.bf16.msra.mxu0 0
      %2272 = vmatprep.subr.bf16.mxu0 0
      %2273 = vmatpush1.bf16.msra.mxu0 0
      %2274 = vmatprep.subr.bf16.mxu0 0
      %2275 = vmatpush1.bf16.msra.mxu0 0
      %2276 = vmatprep.subr.bf16.mxu0 0
      %2277 = vmatpush1.bf16.msra.mxu0 0
      %2278 = vmatprep.subr.bf16.mxu0 0
      %2279 = vmatpush1.bf16.msra.mxu0 0
      %2280 = vmatprep.subr.bf16.mxu0 0
      %2281 = vmatpush1.bf16.msra.mxu0 0
      %2282 = vmatprep.subr.bf16.mxu0 0
      %2283 = vmatpush1.bf16.msra.mxu0 0
      %2284 = vmatprep.subr.bf16.mxu0 0
      %2285 = vmatpush1.bf16.msra.mxu0 0
      %2286 = vmatprep.subr.bf16.mxu0 0
      %2287 = vmatpush1.bf16.msra.mxu0 0
      %2288 = vmatprep.subr.bf16.mxu0 0
      %2289 = vmatpush1.bf16.msra.mxu0 0
      %2290 = vmatprep.subr.bf16.mxu0 0
      %2291 = vmatpush1.bf16.msra.mxu0 0
      %2292 = vmatprep.subr.bf16.mxu0 0
      %2293 = vmatpush1.bf16.msra.mxu0 0
      %2294 = vmatprep.subr.bf16.mxu0 0
      %2295 = vmatpush1.bf16.msra.mxu0 0
      %2296 = vmatprep.subr.bf16.mxu0 0
      %2297 = vmatpush1.bf16.msra.mxu0 0
      %2298 = vmatprep.mubr.bf16.mxu0 0
      %2299 = vmatmul.mubr.bf16.gmra.mrb[0].mxu0 %v2198
      %v2300 = vpop.f32.mrb[0].mxu0
      %v2301 = vadd.f32 0.0, %v2300
      %v2302 = vpop.f32.mrb[0].mxu0
      %v2303 = vadd.f32 0.0, %v2302
      %v2304 = vpop.f32.mrb[0].mxu0
      %v2305 = vpop.f32.mrb[0].mxu0
      %2306 = vdwg.mxu0
      %2307 = vmatprep.subr.bf16.mxu0 %v2217
      %2308 = vmatpush1.bf16.msra.mxu0 %v2214
      %2309 = vmatprep.subr.bf16.mxu0 0
      %2310 = vmatpush1.bf16.msra.mxu0 0
      %2311 = vmatprep.subr.bf16.mxu0 0
      %2312 = vmatpush1.bf16.msra.mxu0 0
      %2313 = vmatprep.subr.bf16.mxu0 0
      %2314 = vmatpush1.bf16.msra.mxu0 0
      %2315 = vmatprep.subr.bf16.mxu0 0
      %2316 = vmatpush1.bf16.msra.mxu0 0
      %2317 = vmatprep.subr.bf16.mxu0 0
      %2318 = vmatpush1.bf16.msra.mxu0 0
      %2319 = vmatprep.subr.bf16.mxu0 0
      %2320 = vmatpush1.bf16.msra.mxu0 0
      %2321 = vmatprep.subr.bf16.mxu0 0
      %2322 = vmatpush1.bf16.msra.mxu0 0
      %2323 = vmatprep.subr.bf16.mxu0 0
      %2324 = vmatpush1.bf16.msra.mxu0 0
      %2325 = vmatprep.subr.bf16.mxu0 0
      %2326 = vmatpush1.bf16.msra.mxu0 0
      %2327 = vmatprep.subr.bf16.mxu0 0
      %2328 = vmatpush1.bf16.msra.mxu0 0
      %2329 = vmatprep.subr.bf16.mxu0 0
      %2330 = vmatpush1.bf16.msra.mxu0 0
      %2331 = vmatprep.subr.bf16.mxu0 0
      %2332 = vmatpush1.bf16.msra.mxu0 0
      %2333 = vmatprep.subr.bf16.mxu0 0
      %2334 = vmatpush1.bf16.msra.mxu0 0
      %2335 = vmatprep.subr.bf16.mxu0 0
      %2336 = vmatpush1.bf16.msra.mxu0 0
      %2337 = vmatprep.subr.bf16.mxu0 0
      %2338 = vmatpush1.bf16.msra.mxu0 0
      %2339 = vmatprep.mubr.bf16.mxu0 0
      %2340 = vmatmul.mubr.bf16.gmra.mrb[0].mxu0 %v2198
      %v2341 = vpop.f32.mrb[0].mxu0
      %v2342 = vadd.f32 0.0, %v2341
      %v2343 = vpop.f32.mrb[0].mxu0
      %v2344 = vadd.f32 0.0, %v2343
      %v2345 = vpop.f32.mrb[0].mxu0
      %v2346 = vpop.f32.mrb[0].mxu0
      %2347 = vdwg.mxu0
      %2348 = vmatprep.subr.bf16.mxu0 %v2223
      %2349 = vmatpush1.bf16.msra.mxu0 %v2220
      %2350 = vmatprep.subr.bf16.mxu0 0
      %2351 = vmatpush1.bf16.msra.mxu0 0
      %2352 = vmatprep.subr.bf16.mxu0 0
      %2353 = vmatpush1.bf16.msra.mxu0 0
      %2354 = vmatprep.subr.bf16.mxu0 0
      %2355 = vmatpush1.bf16.msra.mxu0 0
      %2356 = vmatprep.subr.bf16.mxu0 0
      %2357 = vmatpush1.bf16.msra.mxu0 0
      %2358 = vmatprep.subr.bf16.mxu0 0
      %2359 = vmatpush1.bf16.msra.mxu0 0
      %2360 = vmatprep.subr.bf16.mxu0 0
      %2361 = vmatpush1.bf16.msra.mxu0 0
      %2362 = vmatprep.subr.bf16.mxu0 0
      %2363 = vmatpush1.bf16.msra.mxu0 0
      %2364 = vmatprep.subr.bf16.mxu0 0
      %2365 = vmatpush1.bf16.msra.mxu0 0
      %2366 = vmatprep.subr.bf16.mxu0 0
      %2367 = vmatpush1.bf16.msra.mxu0 0
      %2368 = vmatprep.subr.bf16.mxu0 0
      %2369 = vmatpush1.bf16.msra.mxu0 0
      %2370 = vmatprep.subr.bf16.mxu0 0
      %2371 = vmatpush1.bf16.msra.mxu0 0
      %2372 = vmatprep.subr.bf16.mxu0 0
      %2373 = vmatpush1.bf16.msra.mxu0 0
      %2374 = vmatprep.subr.bf16.mxu0 0
      %2375 = vmatpush1.bf16.msra.mxu0 0
      %2376 = vmatprep.subr.bf16.mxu0 0
      %2377 = vmatpush1.bf16.msra.mxu0 0
      %2378 = vmatprep.subr.bf16.mxu0 0
      %2379 = vmatpush1.bf16.msra.mxu0 0
      %2380 = vmatprep.mubr.bf16.mxu0 0
      %2381 = vmatmul.mubr.bf16.gmra.mrb[0].mxu0 %v2198
      %v2382 = vpop.f32.mrb[0].mxu0
      %v2383 = vadd.f32 0.0, %v2382
      %v2384 = vpop.f32.mrb[0].mxu0
      %v2385 = vadd.f32 0.0, %v2384
      %v2386 = vpop.f32.mrb[0].mxu0
      %v2387 = vpop.f32.mrb[0].mxu0
      %2388 = vdwg.mxu0
      %v2389 = vadd.f32 %v2066, %v2260
      %v2390 = vadd.f32 %v2068, %v2262
      %v2391 = vadd.f32 %v2107, %v2301
      %v2392 = vadd.f32 %v2109, %v2303
      %v2393 = vadd.f32 %v2148, %v2342
      %v2394 = vadd.f32 %v2150, %v2344
      %v2395 = vadd.f32 %v2189, %v2383
      %v2396 = vadd.f32 %v2191, %v2385
      %v2397 = vsel %vm496, %v2389, 0.0
      %v2398 = vsel %vm496, %v2390, 0.0
      %v2399 = vadd.f32 %v2397, %v2398
      %v2400 = vsel %vm496, %v2391, 0.0
      %v2401 = vadd.f32 %v2399, %v2400
      %v2402 = vsel %vm496, %v2392, 0.0
      %v2403 = vadd.f32 %v2401, %v2402
      %v2404 = vsel %vm496, %v2393, 0.0
      %v2405 = vadd.f32 %v2403, %v2404
      %v2406 = vsel %vm496, %v2394, 0.0
      %v2407 = vadd.f32 %v2405, %v2406
      %v2408 = vsel %vm496, %v2395, 0.0
      %v2409 = vadd.f32 %v2407, %v2408
      %v2410 = vsel %vm496, %v2396, 0.0
      %v2411 = vadd.f32 %v2409, %v2410
      %2412 = vadd.xlane.f32.xlu0 %v2411
      %v2413 = vpop.xlane.xlu0 %2412
      %v2414 = vrcp.pop 1024.0
      %v2415 = vmul.f32 %v2413, %v2414
      %v2416 = vsub.f32 %v2389, %v2415
      %v2417 = vsub.f32 %v2390, %v2415
      %v2418 = vsub.f32 %v2391, %v2415
      %v2419 = vsub.f32 %v2392, %v2415
      %v2420 = vsub.f32 %v2393, %v2415
      %v2421 = vsub.f32 %v2394, %v2415
      %v2422 = vsub.f32 %v2395, %v2415
      %v2423 = vsub.f32 %v2396, %v2415
      %v2424 = vmul.f32 %v2416, %v2416
      %v2425 = vmul.f32 %v2417, %v2417
      %v2426 = vmul.f32 %v2418, %v2418
      %v2427 = vmul.f32 %v2419, %v2419
      %v2428 = vmul.f32 %v2420, %v2420
      %v2429 = vmul.f32 %v2421, %v2421
      %v2430 = vmul.f32 %v2422, %v2422
      %v2431 = vmul.f32 %v2423, %v2423
      %v2432 = vsel %vm496, %v2424, 0.0
      %v2433 = vsel %vm496, %v2425, 0.0
      %v2434 = vadd.f32 %v2432, %v2433
      %v2435 = vsel %vm496, %v2426, 0.0
      %v2436 = vadd.f32 %v2434, %v2435
      %v2437 = vsel %vm496, %v2427, 0.0
      %v2438 = vadd.f32 %v2436, %v2437
      %v2439 = vsel %vm496, %v2428, 0.0
      %v2440 = vadd.f32 %v2438, %v2439
      %v2441 = vsel %vm496, %v2429, 0.0
      %v2442 = vadd.f32 %v2440, %v2441
      %v2443 = vsel %vm496, %v2430, 0.0
      %v2444 = vadd.f32 %v2442, %v2443
      %v2445 = vsel %vm496, %v2431, 0.0
      %v2446 = vadd.f32 %v2444, %v2445
      %2447 = vadd.xlane.f32.xlu0 %v2446
      %v2448 = vpop.xlane.xlu0 %2447
      %v2449 = vmul.f32 %v2448, %v2414
      %v2450 = vadd.f32 %v2449, 1e-05
      %v2451 = vrsqrt.pop %v2450
      %v2452 = vmul.f32 %v2416, %v2451
      %v2453 = vmul.f32 %v2417, %v2451
      %v2454 = vmul.f32 %v2418, %v2451
      %v2455 = vmul.f32 %v2419, %v2451
      %v2456 = vmul.f32 %v2420, %v2451
      %v2457 = vmul.f32 %v2421, %v2451
      %v2458 = vmul.f32 %v2422, %v2451
      %v2459 = vmul.f32 %v2423, %v2451
      %v2460 = vld [vmem:[%s394] sm:$0xff]
      %v2461 = vld [vmem:[%s394 + $0x8] sm:$0xff]
      %v2462 = vld [vmem:[%s394 + $0x10] sm:$0xff]
      %v2463 = vld [vmem:[%s394 + $0x18] sm:$0xff]
      %v2472 = vcombine.low %v2452, %v2453
      %v2473 = vcombine.low %v2454, %v2455
      %v2475 = vunpack.c.l.s4 1983009808
      %v2476 = vunpack.c.0.s8 %v2475
      %v2477 = vlaneseq
      %v2478 = vshrl.u32 %v2477, 7
      %v2479 = vsub.s32 %v2476, %v2478
      %v2480 = vrot.slane %v2472, %v2479
      %v2482 = vunpack.c.l.s4 1983009808
      %v2483 = vunpack.c.0.s8 %v2482
      %v2484 = vlaneseq
      %v2485 = vshrl.u32 %v2484, 7
      %v2486 = vsub.s32 %v2483, %v2485
      %v2487 = vrot.slane %v2473, %v2486
      %v2488 = vcombine.low %v2480, %v2487
      %v2489 = vcombine.low %v2456, %v2457
      %v2490 = vcombine.low %v2458, %v2459
      %v2492 = vunpack.c.l.s4 1983009808
      %v2493 = vunpack.c.0.s8 %v2492
      %v2494 = vlaneseq
      %v2495 = vshrl.u32 %v2494, 7
      %v2496 = vsub.s32 %v2493, %v2495
      %v2497 = vrot.slane %v2489, %v2496
      %v2499 = vunpack.c.l.s4 1983009808
      %v2500 = vunpack.c.0.s8 %v2499
      %v2501 = vlaneseq
      %v2502 = vshrl.u32 %v2501, 7
      %v2503 = vsub.s32 %v2500, %v2502
      %v2504 = vrot.slane %v2490, %v2503
      %v2505 = vcombine.low %v2497, %v2504
      %v2508 = vmul.f32 %v2460, %v2488
      %v2509 = vmul.f32 %v2461, %v2505
      %v2510 = vadd.f32 %v2508, %v2462
      %v2511 = vadd.f32 %v2509, %v2463
      %v2512 = vld [vmem:[%s8] sm:$0x3]
      %v2515 = vcombine.high %v2510, %v2510
      %v2517 = vunpack.c.l.s4 1983009808
      %v2518 = vunpack.c.0.s8 %v2517
      %v2519 = vlaneseq
      %v2520 = vshrl.u32 %v2519, 7
      %v2521 = vsub.s32 %v2518, %v2520
      %v2522 = vrot.slane %v2510, %v2521
      %v2524 = vunpack.c.l.s4 1983009808
      %v2525 = vunpack.c.0.s8 %v2524
      %v2526 = vlaneseq
      %v2527 = vshrl.u32 %v2526, 7
      %v2528 = vsub.s32 %v2525, %v2527
      %v2529 = vrot.slane %v2515, %v2528
      %v2530 = vcombine.high %v2522, %v2522
      %v2531 = vcombine.high %v2529, %v2529
      %v2532 = vcombine.high %v2511, %v2511
      %v2534 = vunpack.c.l.s4 1983009808
      %v2535 = vunpack.c.0.s8 %v2534
      %v2536 = vlaneseq
      %v2537 = vshrl.u32 %v2536, 7
      %v2538 = vsub.s32 %v2535, %v2537
      %v2539 = vrot.slane %v2511, %v2538
      %v2541 = vunpack.c.l.s4 1983009808
      %v2542 = vunpack.c.0.s8 %v2541
      %v2543 = vlaneseq
      %v2544 = vshrl.u32 %v2543, 7
      %v2545 = vsub.s32 %v2542, %v2544
      %v2546 = vrot.slane %v2532, %v2545
      %v2547 = vcombine.high %v2539, %v2539
      %v2548 = vcombine.high %v2546, %v2546
      %v2557 = vpack.c.bf16 %v2522, %v2522
      %v2558 = vpack.c.bf16 %v2530, %v2530
      %v2559 = vpack.c.bf16 %v2529, %v2529
      %v2560 = vpack.c.bf16 %v2531, %v2531
      %v2561 = vpack.c.bf16 %v2539, %v2539
      %v2562 = vpack.c.bf16 %v2547, %v2547
      %v2563 = vpack.c.bf16 %v2546, %v2546
      %v2564 = vpack.c.bf16 %v2548, %v2548
      %v2565 = vld [vmem:[%s9] sm:$0xf]
      %2567 = vset.pattern.permute.xlu0 0
      %2568 = vperm.xlu0 %2567, %v2565
      %v2569 = vpop.permute.xlu0 %2568
      %v2572 = vsel %vm2196, %v2512, 0
      %v2575 = vsel %vm2200, %v2557, 0
      %v2578 = vsel %vm2200, %v2558, 0
      %v2581 = vsel %vm2200, %v2559, 0
      %v2584 = vsel %vm2200, %v2560, 0
      %v2587 = vsel %vm2200, %v2561, 0
      %v2590 = vsel %vm2200, %v2562, 0
      %v2593 = vsel %vm2200, %v2563, 0
      %v2596 = vsel %vm2200, %v2564, 0
      %2598 = vmatprep.subr.bf16.mxu0 %v2578
      %2599 = vmatpush1.bf16.msra.mxu0 %v2575
      %2600 = vmatprep.subr.bf16.mxu0 0
      %2601 = vmatpush1.bf16.msra.mxu0 0
      %2602 = vmatprep.subr.bf16.mxu0 0
      %2603 = vmatpush1.bf16.msra.mxu0 0
      %2604 = vmatprep.subr.bf16.mxu0 0
      %2605 = vmatpush1.bf16.msra.mxu0 0
      %2606 = vmatprep.subr.bf16.mxu0 0
      %2607 = vmatpush1.bf16.msra.mxu0 0
      %2608 = vmatprep.subr.bf16.mxu0 0
      %2609 = vmatpush1.bf16.msra.mxu0 0
      %2610 = vmatprep.subr.bf16.mxu0 0
      %2611 = vmatpush1.bf16.msra.mxu0 0
      %2612 = vmatprep.subr.bf16.mxu0 0
      %2613 = vmatpush1.bf16.msra.mxu0 0
      %2614 = vmatprep.subr.bf16.mxu0 0
      %2615 = vmatpush1.bf16.msra.mxu0 0
      %2616 = vmatprep.subr.bf16.mxu0 0
      %2617 = vmatpush1.bf16.msra.mxu0 0
      %2618 = vmatprep.subr.bf16.mxu0 0
      %2619 = vmatpush1.bf16.msra.mxu0 0
      %2620 = vmatprep.subr.bf16.mxu0 0
      %2621 = vmatpush1.bf16.msra.mxu0 0
      %2622 = vmatprep.subr.bf16.mxu0 0
      %2623 = vmatpush1.bf16.msra.mxu0 0
      %2624 = vmatprep.subr.bf16.mxu0 0
      %2625 = vmatpush1.bf16.msra.mxu0 0
      %2626 = vmatprep.subr.bf16.mxu0 0
      %2627 = vmatpush1.bf16.msra.mxu0 0
      %2628 = vmatprep.subr.bf16.mxu0 0
      %2629 = vmatpush1.bf16.msra.mxu0 0
      %2630 = vmatprep.mubr.bf16.mxu0 0
      %2631 = vmatmul.mubr.bf16.gmra.mrb[0].mxu0 %v2572
      %v2632 = vpop.f32.mrb[0].mxu0
      %v2633 = vadd.f32 %v2569, %v2632
      %v2634 = vpop.f32.mrb[0].mxu0
      %v2635 = vadd.f32 %v2569, %v2634
      %v2636 = vpop.f32.mrb[0].mxu0
      %v2637 = vpop.f32.mrb[0].mxu0
      %2638 = vdwg.mxu0
      %2639 = vmatprep.subr.bf16.mxu0 %v2584
      %2640 = vmatpush1.bf16.msra.mxu0 %v2581
      %2641 = vmatprep.subr.bf16.mxu0 0
      %2642 = vmatpush1.bf16.msra.mxu0 0
      %2643 = vmatprep.subr.bf16.mxu0 0
      %2644 = vmatpush1.bf16.msra.mxu0 0
      %2645 = vmatprep.subr.bf16.mxu0 0
      %2646 = vmatpush1.bf16.msra.mxu0 0
      %2647 = vmatprep.subr.bf16.mxu0 0
      %2648 = vmatpush1.bf16.msra.mxu0 0
      %2649 = vmatprep.subr.bf16.mxu0 0
      %2650 = vmatpush1.bf16.msra.mxu0 0
      %2651 = vmatprep.subr.bf16.mxu0 0
      %2652 = vmatpush1.bf16.msra.mxu0 0
      %2653 = vmatprep.subr.bf16.mxu0 0
      %2654 = vmatpush1.bf16.msra.mxu0 0
      %2655 = vmatprep.subr.bf16.mxu0 0
      %2656 = vmatpush1.bf16.msra.mxu0 0
      %2657 = vmatprep.subr.bf16.mxu0 0
      %2658 = vmatpush1.bf16.msra.mxu0 0
      %2659 = vmatprep.subr.bf16.mxu0 0
      %2660 = vmatpush1.bf16.msra.mxu0 0
      %2661 = vmatprep.subr.bf16.mxu0 0
      %2662 = vmatpush1.bf16.msra.mxu0 0
      %2663 = vmatprep.subr.bf16.mxu0 0
      %2664 = vmatpush1.bf16.msra.mxu0 0
      %2665 = vmatprep.subr.bf16.mxu0 0
      %2666 = vmatpush1.bf16.msra.mxu0 0
      %2667 = vmatprep.subr.bf16.mxu0 0
      %2668 = vmatpush1.bf16.msra.mxu0 0
      %2669 = vmatprep.subr.bf16.mxu0 0
      %2670 = vmatpush1.bf16.msra.mxu0 0
      %2671 = vmatprep.mubr.bf16.mxu0 0
      %2672 = vmatmul.mubr.bf16.gmra.mrb[0].mxu0 %v2572
      %v2673 = vpop.f32.mrb[0].mxu0
      %v2674 = vadd.f32 %v2569, %v2673
      %v2675 = vpop.f32.mrb[0].mxu0
      %v2676 = vadd.f32 %v2569, %v2675
      %v2677 = vpop.f32.mrb[0].mxu0
      %v2678 = vpop.f32.mrb[0].mxu0
      %2679 = vdwg.mxu0
      %2680 = vmatprep.subr.bf16.mxu0 %v2590
      %2681 = vmatpush1.bf16.msra.mxu0 %v2587
      %2682 = vmatprep.subr.bf16.mxu0 0
      %2683 = vmatpush1.bf16.msra.mxu0 0
      %2684 = vmatprep.subr.bf16.mxu0 0
      %2685 = vmatpush1.bf16.msra.mxu0 0
      %2686 = vmatprep.subr.bf16.mxu0 0
      %2687 = vmatpush1.bf16.msra.mxu0 0
      %2688 = vmatprep.subr.bf16.mxu0 0
      %2689 = vmatpush1.bf16.msra.mxu0 0
      %2690 = vmatprep.subr.bf16.mxu0 0
      %2691 = vmatpush1.bf16.msra.mxu0 0
      %2692 = vmatprep.subr.bf16.mxu0 0
      %2693 = vmatpush1.bf16.msra.mxu0 0
      %2694 = vmatprep.subr.bf16.mxu0 0
      %2695 = vmatpush1.bf16.msra.mxu0 0
      %2696 = vmatprep.subr.bf16.mxu0 0
      %2697 = vmatpush1.bf16.msra.mxu0 0
      %2698 = vmatprep.subr.bf16.mxu0 0
      %2699 = vmatpush1.bf16.msra.mxu0 0
      %2700 = vmatprep.subr.bf16.mxu0 0
      %2701 = vmatpush1.bf16.msra.mxu0 0
      %2702 = vmatprep.subr.bf16.mxu0 0
      %2703 = vmatpush1.bf16.msra.mxu0 0
      %2704 = vmatprep.subr.bf16.mxu0 0
      %2705 = vmatpush1.bf16.msra.mxu0 0
      %2706 = vmatprep.subr.bf16.mxu0 0
      %2707 = vmatpush1.bf16.msra.mxu0 0
      %2708 = vmatprep.subr.bf16.mxu0 0
      %2709 = vmatpush1.bf16.msra.mxu0 0
      %2710 = vmatprep.subr.bf16.mxu0 0
      %2711 = vmatpush1.bf16.msra.mxu0 0
      %2712 = vmatprep.mubr.bf16.mxu0 0
      %2713 = vmatmul.mubr.bf16.gmra.mrb[0].mxu0 %v2572
      %v2714 = vpop.f32.mrb[0].mxu0
      %v2715 = vadd.f32 %v2569, %v2714
      %v2716 = vpop.f32.mrb[0].mxu0
      %v2717 = vadd.f32 %v2569, %v2716
      %v2718 = vpop.f32.mrb[0].mxu0
      %v2719 = vpop.f32.mrb[0].mxu0
      %2720 = vdwg.mxu0
      %2721 = vmatprep.subr.bf16.mxu0 %v2596
      %2722 = vmatpush1.bf16.msra.mxu0 %v2593
      %2723 = vmatprep.subr.bf16.mxu0 0
      %2724 = vmatpush1.bf16.msra.mxu0 0
      %2725 = vmatprep.subr.bf16.mxu0 0
      %2726 = vmatpush1.bf16.msra.mxu0 0
      %2727 = vmatprep.subr.bf16.mxu0 0
      %2728 = vmatpush1.bf16.msra.mxu0 0
      %2729 = vmatprep.subr.bf16.mxu0 0
      %2730 = vmatpush1.bf16.msra.mxu0 0
      %2731 = vmatprep.subr.bf16.mxu0 0
      %2732 = vmatpush1.bf16.msra.mxu0 0
      %2733 = vmatprep.subr.bf16.mxu0 0
      %2734 = vmatpush1.bf16.msra.mxu0 0
      %2735 = vmatprep.subr.bf16.mxu0 0
      %2736 = vmatpush1.bf16.msra.mxu0 0
      %2737 = vmatprep.subr.bf16.mxu0 0
      %2738 = vmatpush1.bf16.msra.mxu0 0
      %2739 = vmatprep.subr.bf16.mxu0 0
      %2740 = vmatpush1.bf16.msra.mxu0 0
      %2741 = vmatprep.subr.bf16.mxu0 0
      %2742 = vmatpush1.bf16.msra.mxu0 0
      %2743 = vmatprep.subr.bf16.mxu0 0
      %2744 = vmatpush1.bf16.msra.mxu0 0
      %2745 = vmatprep.subr.bf16.mxu0 0
      %2746 = vmatpush1.bf16.msra.mxu0 0
      %2747 = vmatprep.subr.bf16.mxu0 0
      %2748 = vmatpush1.bf16.msra.mxu0 0
      %2749 = vmatprep.subr.bf16.mxu0 0
      %2750 = vmatpush1.bf16.msra.mxu0 0
      %2751 = vmatprep.subr.bf16.mxu0 0
      %2752 = vmatpush1.bf16.msra.mxu0 0
      %2753 = vmatprep.mubr.bf16.mxu0 0
      %2754 = vmatmul.mubr.bf16.gmra.mrb[0].mxu0 %v2572
      %v2755 = vpop.f32.mrb[0].mxu0
      %v2756 = vadd.f32 %v2569, %v2755
      %v2757 = vpop.f32.mrb[0].mxu0
      %v2758 = vadd.f32 %v2569, %v2757
      %v2759 = vpop.f32.mrb[0].mxu0
      %v2760 = vpop.f32.mrb[0].mxu0
      %2761 = vdwg.mxu0
      %v2770 = vcombine.low %v2633, %v2635
      %v2771 = vcombine.low %v2674, %v2676
      %v2772 = vcombine.low %v2715, %v2717
      %v2773 = vcombine.low %v2756, %v2758
      %2778 = vst [vmem:[%s399] sm:$0xff] %v2770
      %2779 = vst [vmem:[%s399 + $0x8] sm:$0xff] %v2771
      %2780 = vst [vmem:[%s399 + $0x10] sm:$0xff] %v2772
      %2781 = vst [vmem:[%s399 + $0x18] sm:$0xff] %v2773
      %p2782 = scmp.lt.s32.totalorder %s21, 1
      %s2783 = scalar_select %p2782, %s21, 1
      %s2784 = smul.addr %s2783, 8
      %s2785 = smul.addr %s2784, 4
      %s2786 = scalar_lea.vmem %s10, %s2785
      // Predicated region
      $region61: #{style_decoder_forward.13} parent=59 // pred_check
        %p2787 = pneg %p264
      $region62: #{style_decoder_forward.13} parent=59 // pred_check_branch
        %2789 = sbr.rel (%p2787) target = $region64
      $region63: #{style_decoder_forward.13} parent=59 // pred_region
        _
      $region64: #{style_decoder_forward.13} parent=59 // pred_fallthru
        _
    $region60: #{style_decoder_forward.13} parent=5 // pred_fallthru
      _
    %p2790 = scmp.le.s32.totalorder 2, %s16
    // Predicated region
    $region65: #{style_decoder_forward.13} parent=5 // pred_check
      %p2791 = pneg %p2790
    $region66: #{style_decoder_forward.13} parent=5 // pred_check_branch
      %2793 = sbr.rel (%p2791) target = $region68
    $region67: #{style_decoder_forward.13} parent=5 // pred_region
      %s2794 = ssub.s32 %s16, 2
      // Predicated region
      $region69: #{style_decoder_forward.13} parent=67 // pred_check
        %p2795 = pneg %p270
      $region70: #{style_decoder_forward.13} parent=67 // pred_check_branch
        %2797 = sbr.rel (%p2795) target = $region72
      $region71: #{style_decoder_forward.13} parent=67 // pred_region
        %p2798 = scmp.lt.s32.totalorder %s22, 1
        %s2799 = scalar_select %p2798, %s22, 1
        %s2800 = smul.addr %s2799, 8
        %s2801 = smul.addr %s2800, 4
        %s2802 = scalar_lea.vmem %s10, %s2801
      $region72: #{style_decoder_forward.13} parent=67 // pred_fallthru
        _
    $region68: #{style_decoder_forward.13} parent=5 // pred_fallthru
      _
  $region6: #{style_decoder_forward.13} parent=0 // loop_footer
    %s20 = sadd.s32 1, %s16
  $region7: #{style_decoder_forward.13} parent=0 // loop_footer_branch
    %15 = sbr.rel target = $region3
  $region8: #{style_decoder_forward.13} parent=0 // loop_exit
    _

</llo_original>
